<compile_context>
chip_gen: v7x
topology: tpu7x:2x2x1
jax: 0.10.0
libtpu: 0.0.40
codegen_flags: <defaults>
</compile_context>

<pallas_src>
import numpy as np
import jax
import jax.numpy as jnp
from jax.experimental import pallas as pl
from jax.experimental.pallas import tpu as pltpu


# ---------------------------------------------------------------------------
# Fused kernel: the entire forward pass, all weights / activations VMEM-resident.
# ---------------------------------------------------------------------------
def _fused_deeponet_kernel(att_ref, y_ref, f_ref, ft_ref, mt_ref, dom_ref, *rest):
    # rest = (42 weight/bias refs in fixed order ..., out_ref, att_scratch)
    o_ref = rest[-2]
    att_sc = rest[-1]
    w_iter = iter(rest[:-2])

    def nxt():
        return next(w_iter)[...]

    def act_fn(z, act):
        if act == "relu":
            return jnp.maximum(z, 0.0)
        if act == "tanh":
            return jnp.tanh(z)
        if act == "sin":
            return jnp.sin(z)
        return z

    def linear(x, act=None):
        w, b = nxt(), nxt()
        z = jnp.dot(x, w, preferred_element_type=jnp.float32) + b
        return act_fn(z, act)

    def linear_cat(xa, xb, act=None):
        # cat((xa, xb), dim=1) @ W  ==  xa @ W[:80] + xb @ W[80:]  (no lane concat needed)
        wa, wb, b = nxt(), nxt(), nxt()
        z = (jnp.dot(xa, wa, preferred_element_type=jnp.float32)
             + jnp.dot(xb, wb, preferred_element_type=jnp.float32) + b)
        return act_fn(z, act)

    # ---- branch2 = ConvNet(activation=Tanh)(dom) -------------------------------
    # Each strided conv is a dense Toeplitz GEMM on the (h, w, c)-flattened map.
    h = linear(dom_ref[...], "relu")        # conv1: (B, 225)  -> (B, 49*40)
    h = linear(h, "relu")                   # conv2: (B, 1960) -> (B, 9*60)
    h = linear(h, "relu")                   # conv3: (B, 540)  -> (B, 100)
    h = linear(h, "tanh")                   # fc1 + Tanh       -> (B, 80)
    branch2 = linear(h)                     # fc2              -> (B, 80)

    # ---- branch1 = linear3( SelfAttention2(f, f, f, mask) ) --------------------
    # TODO(synk): SelfAttention2 is not defined in the provided source; implemented as
    # standard single-head scaled-dot-product attention with Linear(1,1) q/k/v
    # projections (hidden_dim=1 => scale 1) and a key mask (mask==1 keeps the key).
    wq, bq = att_ref[0], att_ref[1]
    wk, bk = att_ref[2], att_ref[3]
    wv, bv = att_ref[4], att_ref[5]
    fv = f_ref[...]                         # (B, 225)  queries (row layout)
    ftv = ft_ref[...]                       # (225, B)  keys/values (column layout)
    mtv = mt_ref[...]                       # (225, B)  key mask (column layout)
    batch = fv.shape[0]
    for b in range(batch):                  # batch is tiny & static -> unrolled at trace time
        q_row = fv[b:b + 1, :] * wq + bq                         # (1, L)
        k_col = ftv[:, b:b + 1] * wk + bk                        # (L, 1)
        v_col = ftv[:, b:b + 1] * wv + bv                        # (L, 1)
        kmask = jnp.where(mtv[:, b:b + 1] > 0,
                          jnp.float32(0.0), jnp.float32(-1e9))   # (L, 1)
        s = k_col * q_row + kmask                                # (L, L): s[j, i] = q_i*k_j
        s = s - jnp.max(s, axis=0, keepdims=True)                # softmax over keys j (axis 0)
        p = jnp.exp(s)
        p = p / jnp.sum(p, axis=0, keepdims=True)
        att_sc[b, :] = jnp.sum(p * v_col, axis=0)                # (L,) attended values
    attn = att_sc[...]                                           # (B, 225)

    z = linear(attn)                        # linear3.fc1 (225 -> 200)
    z = linear(z, "tanh")                   # tanh(fc2)   (200 -> 100)
    z = linear(z, "tanh")                   # tanh(fc3)   (100 -> 80)
    branch1 = linear(z)                     # fc4         (80 -> 80)

    # ---- trunk1 = Vannila_FullyConnectedNet(dim=3)(y); Snake == sin -------------
    t = linear(y_ref[...], "sin")           # (B, 3) -> (B, 80)
    t = linear(t, "sin")
    trunk1 = linear(t)                      # (B, 80)

    # ---- branch = linear1(cat(branch1, branch2)) --------------------------------
    z = linear_cat(branch1, branch2)        # fc1 (160 -> 200), split GEMM
    z = linear(z, "tanh")
    z = linear(z, "tanh")
    branch = linear(z)                      # (B, 80)

    # ---- trunk = linear2(cat(trunk1, branch2)) ----------------------------------
    z = linear_cat(trunk1, branch2)
    z = linear(z, "tanh")
    z = linear(z, "tanh")
    trunk = linear(z)                       # (B, 80)

    # ---- out = sum(branch * trunk, -1)  (inline combine, single tiny store) -----
    o_ref[...] = jnp.sum(branch * trunk, axis=-1, keepdims=True)


# ---------------------------------------------------------------------------
# Parameter init (PyTorch-default uniform(-1/sqrt(fan_in))) + conv->dense folding
# ---------------------------------------------------------------------------
def _lin_init(key, fan_in, fan_out):
    k1, k2 = jax.random.split(key)
    lim = 1.0 / float(fan_in) ** 0.5
    w = jax.random.uniform(k1, (fan_in, fan_out), jnp.float32, -lim, lim)
    b = jax.random.uniform(k2, (1, fan_out), jnp.float32, -lim, lim)
    return w, b


def _conv_as_dense(w_gemm, b, in_ch, in_hw, k, stride):
    """Fold a stride-`stride`, no-padding Conv2d into an equivalent dense matrix acting
    on the channels-last flattened feature map (row-major over (h, w, c)).

    w_gemm: (k*k*in_ch, out_ch) with the patch flattened as (kh, kw, ic); a PyTorch
    Conv2d weight maps to it via w.permute(2, 3, 1, 0).reshape(k*k*ic, oc).
    Returns (M, bias_row, out_hw), M: (in_hw*in_hw*in_ch, out_hw*out_hw*out_ch).
    """
    out_ch = w_gemm.shape[-1]
    out_hw = (in_hw - k) // stride + 1
    w = np.asarray(w_gemm, dtype=np.float32).reshape(k, k, in_ch, out_ch)
    m = np.zeros((in_hw * in_hw * in_ch, out_hw * out_hw * out_ch), np.float32)
    for oi in range(out_hw):
        for oj in range(out_hw):
            col0 = (oi * out_hw + oj) * out_ch
            for di in range(k):
                for dj in range(k):
                    row0 = ((oi * stride + di) * in_hw + (oj * stride + dj)) * in_ch
                    m[row0:row0 + in_ch, col0:col0 + out_ch] = w[di, dj]
    bias = np.tile(np.asarray(b, np.float32).reshape(-1), out_hw * out_hw)[None, :]
    return jnp.asarray(m), jnp.asarray(bias), out_hw


def init_params(key):
    ks = jax.random.split(key, 32)
    p = {}

    # attention1 = SelfAttention2(input_dims=[1,1,1], hidden_dim=1): q/k/v Linear(1,1).
    qkv = []
    for i in range(3):
        k1, k2 = jax.random.split(ks[i])
        qkv.append(jax.random.uniform(k1, (), jnp.float32, -1.0, 1.0))
        qkv.append(jax.random.uniform(k2, (), jnp.float32, -1.0, 1.0))
    p["att"] = jnp.stack(qkv + [jnp.zeros((), jnp.float32)] * 2)   # (8,): wq,bq,wk,bk,wv,bv,0,0

    # conv1 = ConvNet(activation=Tanh()); layer4 exists in __init__ but is unused by forward.
    w, b = _lin_init(ks[3], 1 * 3 * 3, 40)
    p["c1_m"], p["c1_b"], hw = _conv_as_dense(w, b, 1, 15, 3, 2)    # 15x15 -> 7x7
    w, b = _lin_init(ks[4], 40 * 3 * 3, 60)
    p["c2_m"], p["c2_b"], hw = _conv_as_dense(w, b, 40, hw, 3, 2)   # 7x7  -> 3x3
    w, b = _lin_init(ks[5], 60 * 3 * 3, 100)
    p["c3_m"], p["c3_b"], hw = _conv_as_dense(w, b, 60, hw, 3, 2)   # 3x3  -> 1x1
    p["cf1_w"], p["cf1_b"] = _lin_init(ks[6], 100, 80)
    p["cf2_w"], p["cf2_b"] = _lin_init(ks[7], 80, 80)

    # linear3 = FullyConnectedLayer(225, 80)
    p["l3_w1"], p["l3_b1"] = _lin_init(ks[8], 225, 200)
    p["l3_w2"], p["l3_b2"] = _lin_init(ks[9], 200, 100)
    p["l3_w3"], p["l3_b3"] = _lin_init(ks[10], 100, 80)
    p["l3_w4"], p["l3_b4"] = _lin_init(ks[11], 80, 80)

    # trunk = Vannila_FullyConnectedNet(dim=3)
    p["t_w1"], p["t_b1"] = _lin_init(ks[12], 3, 80)
    p["t_w2"], p["t_b2"] = _lin_init(ks[13], 80, 80)
    p["t_w3"], p["t_b3"] = _lin_init(ks[14], 80, 80)

    # linear1 / linear2 = FullyConnectedLayer(160, 80); first (160-wide) layer stored
    # pre-split so cat((a, b), dim=1) @ W == a @ W[:80] + b @ W[80:].
    for name, base in (("l1", 15), ("l2", 19)):
        w, bb = _lin_init(ks[base], 160, 200)
        p[f"{name}_w1a"], p[f"{name}_w1b"], p[f"{name}_b1"] = w[:80], w[80:], bb
        p[f"{name}_w2"], p[f"{name}_b2"] = _lin_init(ks[base + 1], 200, 100)
        p[f"{name}_w3"], p[f"{name}_b3"] = _lin_init(ks[base + 2], 100, 80)
        p[f"{name}_w4"], p[f"{name}_b4"] = _lin_init(ks[base + 3], 80, 80)

    return p


# ---------------------------------------------------------------------------
# Forward wrapper: one fused pallas_call for the whole network
# ---------------------------------------------------------------------------
def deeponet_forward(params, y, f, dom, mask):
    """Pallas forward of conv_deeponet_f.forward((y, f, dom, mask)) -> (B,)."""
    B = y.shape[0]
    y = y.astype(jnp.float32)
    f = f.reshape(B, -1).astype(jnp.float32)
    dom = dom.reshape(B, -1).astype(jnp.float32)
    mask = mask.reshape(B, -1).astype(jnp.float32)
    ft = f.T                                    # (225, B): key/value layout for attention
    mt = mask.T                                 # (225, B)

    # Weight order MUST match the consumption order inside the kernel.
    order = (
        "c1_m", "c1_b", "c2_m", "c2_b", "c3_m", "c3_b",
        "cf1_w", "cf1_b", "cf2_w", "cf2_b",
        "l3_w1", "l3_b1", "l3_w2", "l3_b2", "l3_w3", "l3_b3", "l3_w4", "l3_b4",
        "t_w1", "t_b1", "t_w2", "t_b2", "t_w3", "t_b3",
        "l1_w1a", "l1_w1b", "l1_b1", "l1_w2", "l1_b2", "l1_w3", "l1_b3", "l1_w4", "l1_b4",
        "l2_w1a", "l2_w1b", "l2_b1", "l2_w2", "l2_b2", "l2_w3", "l2_b3", "l2_w4", "l2_b4",
    )
    weights = [params[n] for n in order]

    n_in = 6 + len(weights)
    smem = pl.BlockSpec(memory_space=pltpu.MemorySpace.SMEM)
    vmem = pl.BlockSpec(memory_space=pltpu.MemorySpace.VMEM)

    out = pl.pallas_call(
        _fused_deeponet_kernel,
        out_shape=jax.ShapeDtypeStruct((B, 1), jnp.float32),
        in_specs=[smem] + [vmem] * (n_in - 1),
        out_specs=vmem,
        scratch_shapes=[pltpu.VMEM((B, 225), jnp.float32)],
        compiler_params=pltpu.CompilerParams(vmem_limit_bytes=48 * 1024 * 1024),
    )(params["att"], y, f, ft, mt, dom, *weights)

    return out[:, 0]                             # (B,) — matches torch.sum(..., keepdim=False)


# ---------------------------------------------------------------------------
if __name__ == "__main__":
    key = jax.random.PRNGKey(0)
    kp, ky, kf, kd = jax.random.split(key, 4)

    params = init_params(kp)

    B = 2
    y = jax.random.normal(ky, (B, 3), jnp.float32)       # trunk coordinates (dim=3)
    f = jax.random.normal(kf, (B, 225), jnp.float32)     # source term (15*15 grid)
    dom = jax.random.normal(kd, (B, 225), jnp.float32)   # domain, viewed as 1x15x15
    mask = jnp.ones((B, 225), jnp.float32)                # attention mask (1 = keep)

    fwd = jax.jit(deeponet_forward)
    out = fwd(params, y, f, dom, mask)
    jax.block_until_ready(out)

    assert out.shape == (B,)
    assert bool(jnp.all(jnp.isfinite(out)))
    print("KERNEL_OK")
</pallas_src>

<mosaic_0001>
module attributes {stable_mosaic.version = 11 : i64} {
  func.func @_fused_deeponet_kernel(%arg0: memref<8xf32, #tpu.memory_space<smem>>, %arg1: memref<2x3xf32, #tpu.memory_space<vmem>>, %arg2: memref<2x225xf32, #tpu.memory_space<vmem>>, %arg3: memref<225x2xf32, #tpu.memory_space<vmem>>, %arg4: memref<225x2xf32, #tpu.memory_space<vmem>>, %arg5: memref<2x225xf32, #tpu.memory_space<vmem>>, %arg6: memref<225x1960xf32, #tpu.memory_space<vmem>>, %arg7: memref<1x1960xf32, #tpu.memory_space<vmem>>, %arg8: memref<1960x540xf32, #tpu.memory_space<vmem>>, %arg9: memref<1x540xf32, #tpu.memory_space<vmem>>, %arg10: memref<540x100xf32, #tpu.memory_space<vmem>>, %arg11: memref<1x100xf32, #tpu.memory_space<vmem>>, %arg12: memref<100x80xf32, #tpu.memory_space<vmem>>, %arg13: memref<1x80xf32, #tpu.memory_space<vmem>>, %arg14: memref<80x80xf32, #tpu.memory_space<vmem>>, %arg15: memref<1x80xf32, #tpu.memory_space<vmem>>, %arg16: memref<225x200xf32, #tpu.memory_space<vmem>>, %arg17: memref<1x200xf32, #tpu.memory_space<vmem>>, %arg18: memref<200x100xf32, #tpu.memory_space<vmem>>, %arg19: memref<1x100xf32, #tpu.memory_space<vmem>>, %arg20: memref<100x80xf32, #tpu.memory_space<vmem>>, %arg21: memref<1x80xf32, #tpu.memory_space<vmem>>, %arg22: memref<80x80xf32, #tpu.memory_space<vmem>>, %arg23: memref<1x80xf32, #tpu.memory_space<vmem>>, %arg24: memref<3x80xf32, #tpu.memory_space<vmem>>, %arg25: memref<1x80xf32, #tpu.memory_space<vmem>>, %arg26: memref<80x80xf32, #tpu.memory_space<vmem>>, %arg27: memref<1x80xf32, #tpu.memory_space<vmem>>, %arg28: memref<80x80xf32, #tpu.memory_space<vmem>>, %arg29: memref<1x80xf32, #tpu.memory_space<vmem>>, %arg30: memref<80x200xf32, #tpu.memory_space<vmem>>, %arg31: memref<80x200xf32, #tpu.memory_space<vmem>>, %arg32: memref<1x200xf32, #tpu.memory_space<vmem>>, %arg33: memref<200x100xf32, #tpu.memory_space<vmem>>, %arg34: memref<1x100xf32, #tpu.memory_space<vmem>>, %arg35: memref<100x80xf32, #tpu.memory_space<vmem>>, %arg36: memref<1x80xf32, #tpu.memory_space<vmem>>, %arg37: memref<80x80xf32, #tpu.memory_space<vmem>>, %arg38: memref<1x80xf32, #tpu.memory_space<vmem>>, %arg39: memref<80x200xf32, #tpu.memory_space<vmem>>, %arg40: memref<80x200xf32, #tpu.memory_space<vmem>>, %arg41: memref<1x200xf32, #tpu.memory_space<vmem>>, %arg42: memref<200x100xf32, #tpu.memory_space<vmem>>, %arg43: memref<1x100xf32, #tpu.memory_space<vmem>>, %arg44: memref<100x80xf32, #tpu.memory_space<vmem>>, %arg45: memref<1x80xf32, #tpu.memory_space<vmem>>, %arg46: memref<80x80xf32, #tpu.memory_space<vmem>>, %arg47: memref<1x80xf32, #tpu.memory_space<vmem>>, %arg48: memref<2x1xf32, #tpu.memory_space<vmem>>, %arg49: memref<2x225xf32, #tpu.memory_space<vmem>>) attributes {dimension_semantics = [], scalar_prefetch = 0 : i64, scratch_operands = 1 : i64, tpu.core_type = #tpu.core_type<tc>} {
    %c0 = arith.constant 0 : index
    %c0_0 = arith.constant 0 : index
    %0 = vector.load %arg5[%c0, %c0_0] : memref<2x225xf32, #tpu.memory_space<vmem>>, vector<2x225xf32>
    %c0_1 = arith.constant 0 : index
    %c0_2 = arith.constant 0 : index
    %1 = vector.load %arg6[%c0_1, %c0_2] : memref<225x1960xf32, #tpu.memory_space<vmem>>, vector<225x1960xf32>
    %c0_3 = arith.constant 0 : index
    %c0_4 = arith.constant 0 : index
    %2 = vector.load %arg7[%c0_3, %c0_4] : memref<1x1960xf32, #tpu.memory_space<vmem>>, vector<1x1960xf32>
    %cst = arith.constant dense<0.000000e+00> : vector<2x1960xf32>
    %3 = tpu.matmul %0, %1, %cst {dimension_numbers = #tpu.dot_dimension_numbers<[1], [0], [0], [1], [0, 0, 1, 1], [], []>} : vector<2x225xf32>, vector<225x1960xf32>, vector<2x1960xf32> -> vector<2x1960xf32>
    %4 = vector.broadcast %2 : vector<1x1960xf32> to vector<2x1960xf32>
    %5 = arith.addf %3, %4 : vector<2x1960xf32>
    %cst_5 = arith.constant 0.000000e+00 : f32
    %6 = vector.broadcast %cst_5 : f32 to vector<2x1960xf32>
    %7 = arith.maximumf %5, %6 : vector<2x1960xf32>
    %c0_6 = arith.constant 0 : index
    %c0_7 = arith.constant 0 : index
    %8 = vector.load %arg8[%c0_6, %c0_7] : memref<1960x540xf32, #tpu.memory_space<vmem>>, vector<1960x540xf32>
    %c0_8 = arith.constant 0 : index
    %c0_9 = arith.constant 0 : index
    %9 = vector.load %arg9[%c0_8, %c0_9] : memref<1x540xf32, #tpu.memory_space<vmem>>, vector<1x540xf32>
    %cst_10 = arith.constant dense<0.000000e+00> : vector<2x540xf32>
    %10 = tpu.matmul %7, %8, %cst_10 {dimension_numbers = #tpu.dot_dimension_numbers<[1], [0], [0], [1], [0, 0, 1, 1], [], []>} : vector<2x1960xf32>, vector<1960x540xf32>, vector<2x540xf32> -> vector<2x540xf32>
    %11 = vector.broadcast %9 : vector<1x540xf32> to vector<2x540xf32>
    %12 = arith.addf %10, %11 : vector<2x540xf32>
    %cst_11 = arith.constant 0.000000e+00 : f32
    %13 = vector.broadcast %cst_11 : f32 to vector<2x540xf32>
    %14 = arith.maximumf %12, %13 : vector<2x540xf32>
    %c0_12 = arith.constant 0 : index
    %c0_13 = arith.constant 0 : index
    %15 = vector.load %arg10[%c0_12, %c0_13] : memref<540x100xf32, #tpu.memory_space<vmem>>, vector<540x100xf32>
    %c0_14 = arith.constant 0 : index
    %c0_15 = arith.constant 0 : index
    %16 = vector.load %arg11[%c0_14, %c0_15] : memref<1x100xf32, #tpu.memory_space<vmem>>, vector<1x100xf32>
    %cst_16 = arith.constant dense<0.000000e+00> : vector<2x100xf32>
    %17 = tpu.matmul %14, %15, %cst_16 {dimension_numbers = #tpu.dot_dimension_numbers<[1], [0], [0], [1], [0, 0, 1, 1], [], []>} : vector<2x540xf32>, vector<540x100xf32>, vector<2x100xf32> -> vector<2x100xf32>
    %18 = vector.broadcast %16 : vector<1x100xf32> to vector<2x100xf32>
    %19 = arith.addf %17, %18 : vector<2x100xf32>
    %cst_17 = arith.constant 0.000000e+00 : f32
    %20 = vector.broadcast %cst_17 : f32 to vector<2x100xf32>
    %21 = arith.maximumf %19, %20 : vector<2x100xf32>
    %c0_18 = arith.constant 0 : index
    %c0_19 = arith.constant 0 : index
    %22 = vector.load %arg12[%c0_18, %c0_19] : memref<100x80xf32, #tpu.memory_space<vmem>>, vector<100x80xf32>
    %c0_20 = arith.constant 0 : index
    %c0_21 = arith.constant 0 : index
    %23 = vector.load %arg13[%c0_20, %c0_21] : memref<1x80xf32, #tpu.memory_space<vmem>>, vector<1x80xf32>
    %cst_22 = arith.constant dense<0.000000e+00> : vector<2x80xf32>
    %24 = tpu.matmul %21, %22, %cst_22 {dimension_numbers = #tpu.dot_dimension_numbers<[1], [0], [0], [1], [0, 0, 1, 1], [], []>} : vector<2x100xf32>, vector<100x80xf32>, vector<2x80xf32> -> vector<2x80xf32>
    %25 = vector.broadcast %23 : vector<1x80xf32> to vector<2x80xf32>
    %26 = arith.addf %24, %25 : vector<2x80xf32>
    %27 = math.tanh %26 : vector<2x80xf32>
    %c0_23 = arith.constant 0 : index
    %c0_24 = arith.constant 0 : index
    %28 = vector.load %arg14[%c0_23, %c0_24] : memref<80x80xf32, #tpu.memory_space<vmem>>, vector<80x80xf32>
    %c0_25 = arith.constant 0 : index
    %c0_26 = arith.constant 0 : index
    %29 = vector.load %arg15[%c0_25, %c0_26] : memref<1x80xf32, #tpu.memory_space<vmem>>, vector<1x80xf32>
    %cst_27 = arith.constant dense<0.000000e+00> : vector<2x80xf32>
    %30 = tpu.matmul %27, %28, %cst_27 {dimension_numbers = #tpu.dot_dimension_numbers<[1], [0], [0], [1], [0, 0, 1, 1], [], []>} : vector<2x80xf32>, vector<80x80xf32>, vector<2x80xf32> -> vector<2x80xf32>
    %31 = vector.broadcast %29 : vector<1x80xf32> to vector<2x80xf32>
    %32 = arith.addf %30, %31 : vector<2x80xf32>
    %c0_28 = arith.constant 0 : index
    %33 = memref.load %arg0[%c0_28] : memref<8xf32, #tpu.memory_space<smem>>
    %c1 = arith.constant 1 : index
    %34 = memref.load %arg0[%c1] : memref<8xf32, #tpu.memory_space<smem>>
    %c2 = arith.constant 2 : index
    %35 = memref.load %arg0[%c2] : memref<8xf32, #tpu.memory_space<smem>>
    %c3 = arith.constant 3 : index
    %36 = memref.load %arg0[%c3] : memref<8xf32, #tpu.memory_space<smem>>
    %c4 = arith.constant 4 : index
    %37 = memref.load %arg0[%c4] : memref<8xf32, #tpu.memory_space<smem>>
    %c5 = arith.constant 5 : index
    %38 = memref.load %arg0[%c5] : memref<8xf32, #tpu.memory_space<smem>>
    %c0_29 = arith.constant 0 : index
    %c0_30 = arith.constant 0 : index
    %39 = vector.load %arg2[%c0_29, %c0_30] : memref<2x225xf32, #tpu.memory_space<vmem>>, vector<2x225xf32>
    %c0_31 = arith.constant 0 : index
    %c0_32 = arith.constant 0 : index
    %40 = vector.load %arg3[%c0_31, %c0_32] : memref<225x2xf32, #tpu.memory_space<vmem>>, vector<225x2xf32>
    %c0_33 = arith.constant 0 : index
    %c0_34 = arith.constant 0 : index
    %41 = vector.load %arg4[%c0_33, %c0_34] : memref<225x2xf32, #tpu.memory_space<vmem>>, vector<225x2xf32>
    %42 = vector.extract_strided_slice %39 {offsets = [0, 0], sizes = [1, 225], strides = [1, 1]} : vector<2x225xf32> to vector<1x225xf32>
    %43 = vector.broadcast %33 : f32 to vector<1x225xf32>
    %44 = arith.mulf %42, %43 : vector<1x225xf32>
    %45 = vector.broadcast %34 : f32 to vector<1x225xf32>
    %46 = arith.addf %44, %45 : vector<1x225xf32>
    %47 = vector.extract_strided_slice %40 {offsets = [0, 0], sizes = [225, 1], strides = [1, 1]} : vector<225x2xf32> to vector<225x1xf32>
    %48 = vector.broadcast %35 : f32 to vector<225x1xf32>
    %49 = arith.mulf %47, %48 : vector<225x1xf32>
    %50 = vector.broadcast %36 : f32 to vector<225x1xf32>
    %51 = arith.addf %49, %50 : vector<225x1xf32>
    %52 = vector.extract_strided_slice %40 {offsets = [0, 0], sizes = [225, 1], strides = [1, 1]} : vector<225x2xf32> to vector<225x1xf32>
    %53 = vector.broadcast %37 : f32 to vector<225x1xf32>
    %54 = arith.mulf %52, %53 : vector<225x1xf32>
    %55 = vector.broadcast %38 : f32 to vector<225x1xf32>
    %56 = arith.addf %54, %55 : vector<225x1xf32>
    %57 = vector.extract_strided_slice %41 {offsets = [0, 0], sizes = [225, 1], strides = [1, 1]} : vector<225x2xf32> to vector<225x1xf32>
    %cst_35 = arith.constant 0.000000e+00 : f32
    %58 = vector.broadcast %cst_35 : f32 to vector<225x1xf32>
    %59 = arith.cmpf ogt, %57, %58 : vector<225x1xf32>
    %cst_36 = arith.constant 0.000000e+00 : f32
    %cst_37 = arith.constant -1.000000e+09 : f32
    %60 = vector.broadcast %cst_36 : f32 to vector<225x1xf32>
    %61 = vector.broadcast %cst_37 : f32 to vector<225x1xf32>
    %62 = arith.select %59, %60, %61 : vector<225x1xi1>, vector<225x1xf32>
    %63 = vector.broadcast %51 : vector<225x1xf32> to vector<225x225xf32>
    %64 = vector.broadcast %46 : vector<1x225xf32> to vector<225x225xf32>
    %65 = arith.mulf %63, %64 : vector<225x225xf32>
    %66 = vector.broadcast %62 : vector<225x1xf32> to vector<225x225xf32>
    %67 = arith.addf %65, %66 : vector<225x225xf32>
    %cst_38 = arith.constant dense<0xFF800000> : vector<225xf32>
    %68 = vector.multi_reduction <maximumf>, %67, %cst_38 [0] : vector<225x225xf32> to vector<225xf32>
    %69 = vector.shape_cast %68 : vector<225xf32> to vector<1x225xf32>
    %70 = vector.broadcast %69 : vector<1x225xf32> to vector<225x225xf32>
    %71 = arith.subf %67, %70 : vector<225x225xf32>
    %72 = math.exp %71 : vector<225x225xf32>
    %cst_39 = arith.constant dense<0.000000e+00> : vector<225xf32>
    %73 = vector.multi_reduction <add>, %72, %cst_39 [0] : vector<225x225xf32> to vector<225xf32>
    %74 = vector.shape_cast %73 : vector<225xf32> to vector<1x225xf32>
    %75 = vector.broadcast %74 : vector<1x225xf32> to vector<225x225xf32>
    %76 = arith.divf %72, %75 : vector<225x225xf32>
    %77 = vector.broadcast %56 : vector<225x1xf32> to vector<225x225xf32>
    %78 = arith.mulf %76, %77 : vector<225x225xf32>
    %cst_40 = arith.constant dense<0.000000e+00> : vector<225xf32>
    %79 = vector.multi_reduction <add>, %78, %cst_40 [0] : vector<225x225xf32> to vector<225xf32>
    %c0_41 = arith.constant 0 : index
    %c0_42 = arith.constant 0 : index
    %80 = vector.load %arg49[%c0_41, %c0_42] : memref<2x225xf32, #tpu.memory_space<vmem>>, vector<1x225xf32>
    %81 = vector.shape_cast %80 : vector<1x225xf32> to vector<225xf32>
    %82 = vector.shape_cast %79 : vector<225xf32> to vector<1x225xf32>
    tpu.vector_store %arg49[%c0_41, %c0_42], %82 {strides = array<i32>} : memref<2x225xf32, #tpu.memory_space<vmem>>, vector<1x225xf32>,
    %83 = vector.extract_strided_slice %39 {offsets = [1, 0], sizes = [1, 225], strides = [1, 1]} : vector<2x225xf32> to vector<1x225xf32>
    %84 = vector.broadcast %33 : f32 to vector<1x225xf32>
    %85 = arith.mulf %83, %84 : vector<1x225xf32>
    %86 = vector.broadcast %34 : f32 to vector<1x225xf32>
    %87 = arith.addf %85, %86 : vector<1x225xf32>
    %88 = vector.extract_strided_slice %40 {offsets = [0, 1], sizes = [225, 1], strides = [1, 1]} : vector<225x2xf32> to vector<225x1xf32>
    %89 = vector.broadcast %35 : f32 to vector<225x1xf32>
    %90 = arith.mulf %88, %89 : vector<225x1xf32>
    %91 = vector.broadcast %36 : f32 to vector<225x1xf32>
    %92 = arith.addf %90, %91 : vector<225x1xf32>
    %93 = vector.extract_strided_slice %40 {offsets = [0, 1], sizes = [225, 1], strides = [1, 1]} : vector<225x2xf32> to vector<225x1xf32>
    %94 = vector.broadcast %37 : f32 to vector<225x1xf32>
    %95 = arith.mulf %93, %94 : vector<225x1xf32>
    %96 = vector.broadcast %38 : f32 to vector<225x1xf32>
    %97 = arith.addf %95, %96 : vector<225x1xf32>
    %98 = vector.extract_strided_slice %41 {offsets = [0, 1], sizes = [225, 1], strides = [1, 1]} : vector<225x2xf32> to vector<225x1xf32>
    %cst_43 = arith.constant 0.000000e+00 : f32
    %99 = vector.broadcast %cst_43 : f32 to vector<225x1xf32>
    %100 = arith.cmpf ogt, %98, %99 : vector<225x1xf32>
    %cst_44 = arith.constant 0.000000e+00 : f32
    %cst_45 = arith.constant -1.000000e+09 : f32
    %101 = vector.broadcast %cst_44 : f32 to vector<225x1xf32>
    %102 = vector.broadcast %cst_45 : f32 to vector<225x1xf32>
    %103 = arith.select %100, %101, %102 : vector<225x1xi1>, vector<225x1xf32>
    %104 = vector.broadcast %92 : vector<225x1xf32> to vector<225x225xf32>
    %105 = vector.broadcast %87 : vector<1x225xf32> to vector<225x225xf32>
    %106 = arith.mulf %104, %105 : vector<225x225xf32>
    %107 = vector.broadcast %103 : vector<225x1xf32> to vector<225x225xf32>
    %108 = arith.addf %106, %107 : vector<225x225xf32>
    %cst_46 = arith.constant dense<0xFF800000> : vector<225xf32>
    %109 = vector.multi_reduction <maximumf>, %108, %cst_46 [0] : vector<225x225xf32> to vector<225xf32>
    %110 = vector.shape_cast %109 : vector<225xf32> to vector<1x225xf32>
    %111 = vector.broadcast %110 : vector<1x225xf32> to vector<225x225xf32>
    %112 = arith.subf %108, %111 : vector<225x225xf32>
    %113 = math.exp %112 : vector<225x225xf32>
    %cst_47 = arith.constant dense<0.000000e+00> : vector<225xf32>
    %114 = vector.multi_reduction <add>, %113, %cst_47 [0] : vector<225x225xf32> to vector<225xf32>
    %115 = vector.shape_cast %114 : vector<225xf32> to vector<1x225xf32>
    %116 = vector.broadcast %115 : vector<1x225xf32> to vector<225x225xf32>
    %117 = arith.divf %113, %116 : vector<225x225xf32>
    %118 = vector.broadcast %97 : vector<225x1xf32> to vector<225x225xf32>
    %119 = arith.mulf %117, %118 : vector<225x225xf32>
    %cst_48 = arith.constant dense<0.000000e+00> : vector<225xf32>
    %120 = vector.multi_reduction <add>, %119, %cst_48 [0] : vector<225x225xf32> to vector<225xf32>
    %c1_49 = arith.constant 1 : index
    %c0_50 = arith.constant 0 : index
    %121 = vector.load %arg49[%c1_49, %c0_50] : memref<2x225xf32, #tpu.memory_space<vmem>>, vector<1x225xf32>
    %122 = vector.shape_cast %121 : vector<1x225xf32> to vector<225xf32>
    %123 = vector.shape_cast %120 : vector<225xf32> to vector<1x225xf32>
    tpu.vector_store %arg49[%c1_49, %c0_50], %123 {strides = array<i32>} : memref<2x225xf32, #tpu.memory_space<vmem>>, vector<1x225xf32>,
    %c0_51 = arith.constant 0 : index
    %c0_52 = arith.constant 0 : index
    %124 = vector.load %arg49[%c0_51, %c0_52] : memref<2x225xf32, #tpu.memory_space<vmem>>, vector<2x225xf32>
    %c0_53 = arith.constant 0 : index
    %c0_54 = arith.constant 0 : index
    %125 = vector.load %arg16[%c0_53, %c0_54] : memref<225x200xf32, #tpu.memory_space<vmem>>, vector<225x200xf32>
    %c0_55 = arith.constant 0 : index
    %c0_56 = arith.constant 0 : index
    %126 = vector.load %arg17[%c0_55, %c0_56] : memref<1x200xf32, #tpu.memory_space<vmem>>, vector<1x200xf32>
    %cst_57 = arith.constant dense<0.000000e+00> : vector<2x200xf32>
    %127 = tpu.matmul %124, %125, %cst_57 {dimension_numbers = #tpu.dot_dimension_numbers<[1], [0], [0], [1], [0, 0, 1, 1], [], []>} : vector<2x225xf32>, vector<225x200xf32>, vector<2x200xf32> -> vector<2x200xf32>
    %128 = vector.broadcast %126 : vector<1x200xf32> to vector<2x200xf32>
    %129 = arith.addf %127, %128 : vector<2x200xf32>
    %c0_58 = arith.constant 0 : index
    %c0_59 = arith.constant 0 : index
    %130 = vector.load %arg18[%c0_58, %c0_59] : memref<200x100xf32, #tpu.memory_space<vmem>>, vector<200x100xf32>
    %c0_60 = arith.constant 0 : index
    %c0_61 = arith.constant 0 : index
    %131 = vector.load %arg19[%c0_60, %c0_61] : memref<1x100xf32, #tpu.memory_space<vmem>>, vector<1x100xf32>
    %cst_62 = arith.constant dense<0.000000e+00> : vector<2x100xf32>
    %132 = tpu.matmul %129, %130, %cst_62 {dimension_numbers = #tpu.dot_dimension_numbers<[1], [0], [0], [1], [0, 0, 1, 1], [], []>} : vector<2x200xf32>, vector<200x100xf32>, vector<2x100xf32> -> vector<2x100xf32>
    %133 = vector.broadcast %131 : vector<1x100xf32> to vector<2x100xf32>
    %134 = arith.addf %132, %133 : vector<2x100xf32>
    %135 = math.tanh %134 : vector<2x100xf32>
    %c0_63 = arith.constant 0 : index
    %c0_64 = arith.constant 0 : index
    %136 = vector.load %arg20[%c0_63, %c0_64] : memref<100x80xf32, #tpu.memory_space<vmem>>, vector<100x80xf32>
    %c0_65 = arith.constant 0 : index
    %c0_66 = arith.constant 0 : index
    %137 = vector.load %arg21[%c0_65, %c0_66] : memref<1x80xf32, #tpu.memory_space<vmem>>, vector<1x80xf32>
    %cst_67 = arith.constant dense<0.000000e+00> : vector<2x80xf32>
    %138 = tpu.matmul %135, %136, %cst_67 {dimension_numbers = #tpu.dot_dimension_numbers<[1], [0], [0], [1], [0, 0, 1, 1], [], []>} : vector<2x100xf32>, vector<100x80xf32>, vector<2x80xf32> -> vector<2x80xf32>
    %139 = vector.broadcast %137 : vector<1x80xf32> to vector<2x80xf32>
    %140 = arith.addf %138, %139 : vector<2x80xf32>
    %141 = math.tanh %140 : vector<2x80xf32>
    %c0_68 = arith.constant 0 : index
    %c0_69 = arith.constant 0 : index
    %142 = vector.load %arg22[%c0_68, %c0_69] : memref<80x80xf32, #tpu.memory_space<vmem>>, vector<80x80xf32>
    %c0_70 = arith.constant 0 : index
    %c0_71 = arith.constant 0 : index
    %143 = vector.load %arg23[%c0_70, %c0_71] : memref<1x80xf32, #tpu.memory_space<vmem>>, vector<1x80xf32>
    %cst_72 = arith.constant dense<0.000000e+00> : vector<2x80xf32>
    %144 = tpu.matmul %141, %142, %cst_72 {dimension_numbers = #tpu.dot_dimension_numbers<[1], [0], [0], [1], [0, 0, 1, 1], [], []>} : vector<2x80xf32>, vector<80x80xf32>, vector<2x80xf32> -> vector<2x80xf32>
    %145 = vector.broadcast %143 : vector<1x80xf32> to vector<2x80xf32>
    %146 = arith.addf %144, %145 : vector<2x80xf32>
    %c0_73 = arith.constant 0 : index
    %c0_74 = arith.constant 0 : index
    %147 = vector.load %arg1[%c0_73, %c0_74] : memref<2x3xf32, #tpu.memory_space<vmem>>, vector<2x3xf32>
    %c0_75 = arith.constant 0 : index
    %c0_76 = arith.constant 0 : index
    %148 = vector.load %arg24[%c0_75, %c0_76] : memref<3x80xf32, #tpu.memory_space<vmem>>, vector<3x80xf32>
    %c0_77 = arith.constant 0 : index
    %c0_78 = arith.constant 0 : index
    %149 = vector.load %arg25[%c0_77, %c0_78] : memref<1x80xf32, #tpu.memory_space<vmem>>, vector<1x80xf32>
    %cst_79 = arith.constant dense<0.000000e+00> : vector<2x80xf32>
    %150 = tpu.matmul %147, %148, %cst_79 {dimension_numbers = #tpu.dot_dimension_numbers<[1], [0], [0], [1], [0, 0, 1, 1], [], []>} : vector<2x3xf32>, vector<3x80xf32>, vector<2x80xf32> -> vector<2x80xf32>
    %151 = vector.broadcast %149 : vector<1x80xf32> to vector<2x80xf32>
    %152 = arith.addf %150, %151 : vector<2x80xf32>
    %153 = math.sin %152 : vector<2x80xf32>
    %c0_80 = arith.constant 0 : index
    %c0_81 = arith.constant 0 : index
    %154 = vector.load %arg26[%c0_80, %c0_81] : memref<80x80xf32, #tpu.memory_space<vmem>>, vector<80x80xf32>
    %c0_82 = arith.constant 0 : index
    %c0_83 = arith.constant 0 : index
    %155 = vector.load %arg27[%c0_82, %c0_83] : memref<1x80xf32, #tpu.memory_space<vmem>>, vector<1x80xf32>
    %cst_84 = arith.constant dense<0.000000e+00> : vector<2x80xf32>
    %156 = tpu.matmul %153, %154, %cst_84 {dimension_numbers = #tpu.dot_dimension_numbers<[1], [0], [0], [1], [0, 0, 1, 1], [], []>} : vector<2x80xf32>, vector<80x80xf32>, vector<2x80xf32> -> vector<2x80xf32>
    %157 = vector.broadcast %155 : vector<1x80xf32> to vector<2x80xf32>
    %158 = arith.addf %156, %157 : vector<2x80xf32>
    %159 = math.sin %158 : vector<2x80xf32>
    %c0_85 = arith.constant 0 : index
    %c0_86 = arith.constant 0 : index
    %160 = vector.load %arg28[%c0_85, %c0_86] : memref<80x80xf32, #tpu.memory_space<vmem>>, vector<80x80xf32>
    %c0_87 = arith.constant 0 : index
    %c0_88 = arith.constant 0 : index
    %161 = vector.load %arg29[%c0_87, %c0_88] : memref<1x80xf32, #tpu.memory_space<vmem>>, vector<1x80xf32>
    %cst_89 = arith.constant dense<0.000000e+00> : vector<2x80xf32>
    %162 = tpu.matmul %159, %160, %cst_89 {dimension_numbers = #tpu.dot_dimension_numbers<[1], [0], [0], [1], [0, 0, 1, 1], [], []>} : vector<2x80xf32>, vector<80x80xf32>, vector<2x80xf32> -> vector<2x80xf32>
    %163 = vector.broadcast %161 : vector<1x80xf32> to vector<2x80xf32>
    %164 = arith.addf %162, %163 : vector<2x80xf32>
    %c0_90 = arith.constant 0 : index
    %c0_91 = arith.constant 0 : index
    %165 = vector.load %arg30[%c0_90, %c0_91] : memref<80x200xf32, #tpu.memory_space<vmem>>, vector<80x200xf32>
    %c0_92 = arith.constant 0 : index
    %c0_93 = arith.constant 0 : index
    %166 = vector.load %arg31[%c0_92, %c0_93] : memref<80x200xf32, #tpu.memory_space<vmem>>, vector<80x200xf32>
    %c0_94 = arith.constant 0 : index
    %c0_95 = arith.constant 0 : index
    %167 = vector.load %arg32[%c0_94, %c0_95] : memref<1x200xf32, #tpu.memory_space<vmem>>, vector<1x200xf32>
    %cst_96 = arith.constant dense<0.000000e+00> : vector<2x200xf32>
    %168 = tpu.matmul %146, %165, %cst_96 {dimension_numbers = #tpu.dot_dimension_numbers<[1], [0], [0], [1], [0, 0, 1, 1], [], []>} : vector<2x80xf32>, vector<80x200xf32>, vector<2x200xf32> -> vector<2x200xf32>
    %cst_97 = arith.constant dense<0.000000e+00> : vector<2x200xf32>
    %169 = tpu.matmul %32, %166, %cst_97 {dimension_numbers = #tpu.dot_dimension_numbers<[1], [0], [0], [1], [0, 0, 1, 1], [], []>} : vector<2x80xf32>, vector<80x200xf32>, vector<2x200xf32> -> vector<2x200xf32>
    %170 = arith.addf %168, %169 : vector<2x200xf32>
    %171 = vector.broadcast %167 : vector<1x200xf32> to vector<2x200xf32>
    %172 = arith.addf %170, %171 : vector<2x200xf32>
    %c0_98 = arith.constant 0 : index
    %c0_99 = arith.constant 0 : index
    %173 = vector.load %arg33[%c0_98, %c0_99] : memref<200x100xf32, #tpu.memory_space<vmem>>, vector<200x100xf32>
    %c0_100 = arith.constant 0 : index
    %c0_101 = arith.constant 0 : index
    %174 = vector.load %arg34[%c0_100, %c0_101] : memref<1x100xf32, #tpu.memory_space<vmem>>, vector<1x100xf32>
    %cst_102 = arith.constant dense<0.000000e+00> : vector<2x100xf32>
    %175 = tpu.matmul %172, %173, %cst_102 {dimension_numbers = #tpu.dot_dimension_numbers<[1], [0], [0], [1], [0, 0, 1, 1], [], []>} : vector<2x200xf32>, vector<200x100xf32>, vector<2x100xf32> -> vector<2x100xf32>
    %176 = vector.broadcast %174 : vector<1x100xf32> to vector<2x100xf32>
    %177 = arith.addf %175, %176 : vector<2x100xf32>
    %178 = math.tanh %177 : vector<2x100xf32>
    %c0_103 = arith.constant 0 : index
    %c0_104 = arith.constant 0 : index
    %179 = vector.load %arg35[%c0_103, %c0_104] : memref<100x80xf32, #tpu.memory_space<vmem>>, vector<100x80xf32>
    %c0_105 = arith.constant 0 : index
    %c0_106 = arith.constant 0 : index
    %180 = vector.load %arg36[%c0_105, %c0_106] : memref<1x80xf32, #tpu.memory_space<vmem>>, vector<1x80xf32>
    %cst_107 = arith.constant dense<0.000000e+00> : vector<2x80xf32>
    %181 = tpu.matmul %178, %179, %cst_107 {dimension_numbers = #tpu.dot_dimension_numbers<[1], [0], [0], [1], [0, 0, 1, 1], [], []>} : vector<2x100xf32>, vector<100x80xf32>, vector<2x80xf32> -> vector<2x80xf32>
    %182 = vector.broadcast %180 : vector<1x80xf32> to vector<2x80xf32>
    %183 = arith.addf %181, %182 : vector<2x80xf32>
    %184 = math.tanh %183 : vector<2x80xf32>
    %c0_108 = arith.constant 0 : index
    %c0_109 = arith.constant 0 : index
    %185 = vector.load %arg37[%c0_108, %c0_109] : memref<80x80xf32, #tpu.memory_space<vmem>>, vector<80x80xf32>
    %c0_110 = arith.constant 0 : index
    %c0_111 = arith.constant 0 : index
    %186 = vector.load %arg38[%c0_110, %c0_111] : memref<1x80xf32, #tpu.memory_space<vmem>>, vector<1x80xf32>
    %cst_112 = arith.constant dense<0.000000e+00> : vector<2x80xf32>
    %187 = tpu.matmul %184, %185, %cst_112 {dimension_numbers = #tpu.dot_dimension_numbers<[1], [0], [0], [1], [0, 0, 1, 1], [], []>} : vector<2x80xf32>, vector<80x80xf32>, vector<2x80xf32> -> vector<2x80xf32>
    %188 = vector.broadcast %186 : vector<1x80xf32> to vector<2x80xf32>
    %189 = arith.addf %187, %188 : vector<2x80xf32>
    %c0_113 = arith.constant 0 : index
    %c0_114 = arith.constant 0 : index
    %190 = vector.load %arg39[%c0_113, %c0_114] : memref<80x200xf32, #tpu.memory_space<vmem>>, vector<80x200xf32>
    %c0_115 = arith.constant 0 : index
    %c0_116 = arith.constant 0 : index
    %191 = vector.load %arg40[%c0_115, %c0_116] : memref<80x200xf32, #tpu.memory_space<vmem>>, vector<80x200xf32>
    %c0_117 = arith.constant 0 : index
    %c0_118 = arith.constant 0 : index
    %192 = vector.load %arg41[%c0_117, %c0_118] : memref<1x200xf32, #tpu.memory_space<vmem>>, vector<1x200xf32>
    %cst_119 = arith.constant dense<0.000000e+00> : vector<2x200xf32>
    %193 = tpu.matmul %164, %190, %cst_119 {dimension_numbers = #tpu.dot_dimension_numbers<[1], [0], [0], [1], [0, 0, 1, 1], [], []>} : vector<2x80xf32>, vector<80x200xf32>, vector<2x200xf32> -> vector<2x200xf32>
    %cst_120 = arith.constant dense<0.000000e+00> : vector<2x200xf32>
    %194 = tpu.matmul %32, %191, %cst_120 {dimension_numbers = #tpu.dot_dimension_numbers<[1], [0], [0], [1], [0, 0, 1, 1], [], []>} : vector<2x80xf32>, vector<80x200xf32>, vector<2x200xf32> -> vector<2x200xf32>
    %195 = arith.addf %193, %194 : vector<2x200xf32>
    %196 = vector.broadcast %192 : vector<1x200xf32> to vector<2x200xf32>
    %197 = arith.addf %195, %196 : vector<2x200xf32>
    %c0_121 = arith.constant 0 : index
    %c0_122 = arith.constant 0 : index
    %198 = vector.load %arg42[%c0_121, %c0_122] : memref<200x100xf32, #tpu.memory_space<vmem>>, vector<200x100xf32>
    %c0_123 = arith.constant 0 : index
    %c0_124 = arith.constant 0 : index
    %199 = vector.load %arg43[%c0_123, %c0_124] : memref<1x100xf32, #tpu.memory_space<vmem>>, vector<1x100xf32>
    %cst_125 = arith.constant dense<0.000000e+00> : vector<2x100xf32>
    %200 = tpu.matmul %197, %198, %cst_125 {dimension_numbers = #tpu.dot_dimension_numbers<[1], [0], [0], [1], [0, 0, 1, 1], [], []>} : vector<2x200xf32>, vector<200x100xf32>, vector<2x100xf32> -> vector<2x100xf32>
    %201 = vector.broadcast %199 : vector<1x100xf32> to vector<2x100xf32>
    %202 = arith.addf %200, %201 : vector<2x100xf32>
    %203 = math.tanh %202 : vector<2x100xf32>
    %c0_126 = arith.constant 0 : index
    %c0_127 = arith.constant 0 : index
    %204 = vector.load %arg44[%c0_126, %c0_127] : memref<100x80xf32, #tpu.memory_space<vmem>>, vector<100x80xf32>
    %c0_128 = arith.constant 0 : index
    %c0_129 = arith.constant 0 : index
    %205 = vector.load %arg45[%c0_128, %c0_129] : memref<1x80xf32, #tpu.memory_space<vmem>>, vector<1x80xf32>
    %cst_130 = arith.constant dense<0.000000e+00> : vector<2x80xf32>
    %206 = tpu.matmul %203, %204, %cst_130 {dimension_numbers = #tpu.dot_dimension_numbers<[1], [0], [0], [1], [0, 0, 1, 1], [], []>} : vector<2x100xf32>, vector<100x80xf32>, vector<2x80xf32> -> vector<2x80xf32>
    %207 = vector.broadcast %205 : vector<1x80xf32> to vector<2x80xf32>
    %208 = arith.addf %206, %207 : vector<2x80xf32>
    %209 = math.tanh %208 : vector<2x80xf32>
    %c0_131 = arith.constant 0 : index
    %c0_132 = arith.constant 0 : index
    %210 = vector.load %arg46[%c0_131, %c0_132] : memref<80x80xf32, #tpu.memory_space<vmem>>, vector<80x80xf32>
    %c0_133 = arith.constant 0 : index
    %c0_134 = arith.constant 0 : index
    %211 = vector.load %arg47[%c0_133, %c0_134] : memref<1x80xf32, #tpu.memory_space<vmem>>, vector<1x80xf32>
    %cst_135 = arith.constant dense<0.000000e+00> : vector<2x80xf32>
    %212 = tpu.matmul %209, %210, %cst_135 {dimension_numbers = #tpu.dot_dimension_numbers<[1], [0], [0], [1], [0, 0, 1, 1], [], []>} : vector<2x80xf32>, vector<80x80xf32>, vector<2x80xf32> -> vector<2x80xf32>
    %213 = vector.broadcast %211 : vector<1x80xf32> to vector<2x80xf32>
    %214 = arith.addf %212, %213 : vector<2x80xf32>
    %215 = arith.mulf %189, %214 : vector<2x80xf32>
    %cst_136 = arith.constant dense<0.000000e+00> : vector<2xf32>
    %216 = vector.multi_reduction <add>, %215, %cst_136 [1] : vector<2x80xf32> to vector<2xf32>
    %217 = vector.shape_cast %216 : vector<2xf32> to vector<2x1xf32>
    %c0_137 = arith.constant 0 : index
    %c0_138 = arith.constant 0 : index
    %218 = vector.load %arg48[%c0_137, %c0_138] : memref<2x1xf32, #tpu.memory_space<vmem>>, vector<2x1xf32>
    tpu.vector_store %arg48[%c0_137, %c0_138], %217 {strides = array<i32>} : memref<2x1xf32, #tpu.memory_space<vmem>>, vector<2x1xf32>,
    return
  }
}

</mosaic_0001>

<llo_original>
// kernel: deeponet_forward.1
$region0: #{deeponet_forward.1}
  #allocation0 [shape = 'u32[]', space=smem, size = 0x4, offset = 0x4, fixed_abs, tag = 'smem constant byte address 0x4 - core index']
  #allocation1 [shape = 'u32[144,128]{1,0:T(1,128)}', space=vmem, size = 0x12000, scoped, tag = 'internal scratch']
  #allocation2 [shape = 'f32[2,225]{1,0:T(2,128)}', space=vmem, size = 0x800, scoped, tag = 'scratch operand']
  %s0 = inlined_call_operand.smem [shape: u32[49], index: -1, kind: input, shape index: {}]
  %s1 = sld [smem:[%s0]]
  %s2 = scalar_lea.smem %s0, 1
  %s3 = sld [smem:[%s2]]
  %s4 = scalar_lea.smem %s0, 2
  %s5 = sld [smem:[%s4]]
  %s6 = scalar_lea.smem %s0, 3
  %s7 = sld [smem:[%s6]]
  %s8 = scalar_lea.smem %s0, 4
  %s9 = sld [smem:[%s8]]
  %s10 = scalar_lea.smem %s0, 5
  %s11 = sld [smem:[%s10]]
  %s12 = scalar_lea.smem %s0, 6
  %s13 = sld [smem:[%s12]]
  %s14 = scalar_lea.smem %s0, 7
  %s15 = sld [smem:[%s14]]
  %s16 = scalar_lea.smem %s0, 8
  %s17 = sld [smem:[%s16]]
  %s18 = scalar_lea.smem %s0, 9
  %s19 = sld [smem:[%s18]]
  %s20 = scalar_lea.smem %s0, 10
  %s21 = sld [smem:[%s20]]
  %s22 = scalar_lea.smem %s0, 11
  %s23 = sld [smem:[%s22]]
  %s24 = scalar_lea.smem %s0, 12
  %s25 = sld [smem:[%s24]]
  %s26 = scalar_lea.smem %s0, 13
  %s27 = sld [smem:[%s26]]
  %s28 = scalar_lea.smem %s0, 14
  %s29 = sld [smem:[%s28]]
  %s30 = scalar_lea.smem %s0, 15
  %s31 = sld [smem:[%s30]]
  %s32 = scalar_lea.smem %s0, 16
  %s33 = sld [smem:[%s32]]
  %s34 = scalar_lea.smem %s0, 17
  %s35 = sld [smem:[%s34]]
  %s36 = scalar_lea.smem %s0, 18
  %s37 = sld [smem:[%s36]]
  %s38 = scalar_lea.smem %s0, 19
  %s39 = sld [smem:[%s38]]
  %s40 = scalar_lea.smem %s0, 20
  %s41 = sld [smem:[%s40]]
  %s42 = scalar_lea.smem %s0, 21
  %s43 = sld [smem:[%s42]]
  %s44 = scalar_lea.smem %s0, 22
  %s45 = sld [smem:[%s44]]
  %s46 = scalar_lea.smem %s0, 23
  %s47 = sld [smem:[%s46]]
  %s48 = scalar_lea.smem %s0, 24
  %s49 = sld [smem:[%s48]]
  %s50 = scalar_lea.smem %s0, 25
  %s51 = sld [smem:[%s50]]
  %s52 = scalar_lea.smem %s0, 26
  %s53 = sld [smem:[%s52]]
  %s54 = scalar_lea.smem %s0, 27
  %s55 = sld [smem:[%s54]]
  %s56 = scalar_lea.smem %s0, 28
  %s57 = sld [smem:[%s56]]
  %s58 = scalar_lea.smem %s0, 29
  %s59 = sld [smem:[%s58]]
  %s60 = scalar_lea.smem %s0, 30
  %s61 = sld [smem:[%s60]]
  %s62 = scalar_lea.smem %s0, 31
  %s63 = sld [smem:[%s62]]
  %s64 = scalar_lea.smem %s0, 32
  %s65 = sld [smem:[%s64]]
  %s66 = scalar_lea.smem %s0, 33
  %s67 = sld [smem:[%s66]]
  %s68 = scalar_lea.smem %s0, 34
  %s69 = sld [smem:[%s68]]
  %s70 = scalar_lea.smem %s0, 35
  %s71 = sld [smem:[%s70]]
  %s72 = scalar_lea.smem %s0, 36
  %s73 = sld [smem:[%s72]]
  %s74 = scalar_lea.smem %s0, 37
  %s75 = sld [smem:[%s74]]
  %s76 = scalar_lea.smem %s0, 38
  %s77 = sld [smem:[%s76]]
  %s78 = scalar_lea.smem %s0, 39
  %s79 = sld [smem:[%s78]]
  %s80 = scalar_lea.smem %s0, 40
  %s81 = sld [smem:[%s80]]
  %s82 = scalar_lea.smem %s0, 41
  %s83 = sld [smem:[%s82]]
  %s84 = scalar_lea.smem %s0, 42
  %s85 = sld [smem:[%s84]]
  %s86 = scalar_lea.smem %s0, 43
  %s87 = sld [smem:[%s86]]
  %s88 = scalar_lea.smem %s0, 44
  %s89 = sld [smem:[%s88]]
  %s90 = scalar_lea.smem %s0, 45
  %s91 = sld [smem:[%s90]]
  %s92 = scalar_lea.smem %s0, 46
  %s93 = sld [smem:[%s92]]
  %s94 = scalar_lea.smem %s0, 47
  %s95 = sld [smem:[%s94]]
  %s96 = scalar_lea.smem %s0, 48
  %s97 = sld [smem:[%s96]]
  %s98 = sld [smem:[#allocation0]]
  $region206: #{deeponet_forward.1} parent=0
    _
  %s100 = ssub.s32 1, %s98
  %s101 = scalar_select 0, %s100, %s98
  $region1: #{deeponet_forward.1} parent=0
    #allocation3 [shape = 'u8[512]{0}', space=smem, size = 0x200, scoped, tag = 'input window, operand 0, single buffered']
    #allocation4 [shape = 's32[1]{0}', space=sflag, size = 0x4, scoped, tag = 'scoped memory for deeponet_forward.1']
    %102 = vsyncpa [#allocation4], 0
    // Predicated region
    $region2: #{deeponet_forward.1} parent=1 // pred_check
      _
    $region3: #{deeponet_forward.1} parent=1 // pred_check_branch
      %104 = sbr.rel (0) target = $region5
    $region4: #{deeponet_forward.1} parent=1 // pred_region
      %s106 = ssub.s32 16, 16
      %107 = vsyncadd [#allocation4], %s106
      %s109 = sshll.u32 %s1, 4
      %s110 = int_to_ptr.vmem [resolvable:$true] %s109
      %112 = dma.vmem_to_smem %s110, 16, [#allocation3], [#allocation4]
    $region5: #{deeponet_forward.1} parent=1 // pred_fallthru
      _
    // Predicated region
    $region6: #{deeponet_forward.1} parent=1 // pred_check
      _
    $region7: #{deeponet_forward.1} parent=1 // pred_check_branch
      %114 = sbr.rel (0) target = $region9
    $region8: #{deeponet_forward.1} parent=1 // pred_region
      _
    $region9: #{deeponet_forward.1} parent=1 // pred_fallthru
      _
    // Predicated region
    $region10: #{deeponet_forward.1} parent=1 // pred_check
      _
    $region11: #{deeponet_forward.1} parent=1 // pred_check_branch
      %116 = sbr.rel (0) target = $region13
    $region12: #{deeponet_forward.1} parent=1 // pred_region
      _
    $region13: #{deeponet_forward.1} parent=1 // pred_fallthru
      _
    // Predicated region
    $region14: #{deeponet_forward.1} parent=1 // pred_check
      _
    $region15: #{deeponet_forward.1} parent=1 // pred_check_branch
      %118 = sbr.rel (0) target = $region17
    $region16: #{deeponet_forward.1} parent=1 // pred_region
      _
    $region17: #{deeponet_forward.1} parent=1 // pred_fallthru
      _
    // Predicated region
    $region18: #{deeponet_forward.1} parent=1 // pred_check
      _
    $region19: #{deeponet_forward.1} parent=1 // pred_check_branch
      %120 = sbr.rel (0) target = $region21
    $region20: #{deeponet_forward.1} parent=1 // pred_region
      _
    $region21: #{deeponet_forward.1} parent=1 // pred_fallthru
      _
    // Predicated region
    $region22: #{deeponet_forward.1} parent=1 // pred_check
      _
    $region23: #{deeponet_forward.1} parent=1 // pred_check_branch
      %122 = sbr.rel (0) target = $region25
    $region24: #{deeponet_forward.1} parent=1 // pred_region
      _
    $region25: #{deeponet_forward.1} parent=1 // pred_fallthru
      _
    // Predicated region
    $region26: #{deeponet_forward.1} parent=1 // pred_check
      _
    $region27: #{deeponet_forward.1} parent=1 // pred_check_branch
      %124 = sbr.rel (0) target = $region29
    $region28: #{deeponet_forward.1} parent=1 // pred_region
      _
    $region29: #{deeponet_forward.1} parent=1 // pred_fallthru
      _
    // Predicated region
    $region30: #{deeponet_forward.1} parent=1 // pred_check
      _
    $region31: #{deeponet_forward.1} parent=1 // pred_check_branch
      %126 = sbr.rel (0) target = $region33
    $region32: #{deeponet_forward.1} parent=1 // pred_region
      _
    $region33: #{deeponet_forward.1} parent=1 // pred_fallthru
      _
    // Predicated region
    $region34: #{deeponet_forward.1} parent=1 // pred_check
      _
    $region35: #{deeponet_forward.1} parent=1 // pred_check_branch
      %128 = sbr.rel (0) target = $region37
    $region36: #{deeponet_forward.1} parent=1 // pred_region
      _
    $region37: #{deeponet_forward.1} parent=1 // pred_fallthru
      _
    // Predicated region
    $region38: #{deeponet_forward.1} parent=1 // pred_check
      _
    $region39: #{deeponet_forward.1} parent=1 // pred_check_branch
      %130 = sbr.rel (0) target = $region41
    $region40: #{deeponet_forward.1} parent=1 // pred_region
      _
    $region41: #{deeponet_forward.1} parent=1 // pred_fallthru
      _
    // Predicated region
    $region42: #{deeponet_forward.1} parent=1 // pred_check
      _
    $region43: #{deeponet_forward.1} parent=1 // pred_check_branch
      %132 = sbr.rel (0) target = $region45
    $region44: #{deeponet_forward.1} parent=1 // pred_region
      _
    $region45: #{deeponet_forward.1} parent=1 // pred_fallthru
      _
    // Predicated region
    $region46: #{deeponet_forward.1} parent=1 // pred_check
      _
    $region47: #{deeponet_forward.1} parent=1 // pred_check_branch
      %134 = sbr.rel (0) target = $region49
    $region48: #{deeponet_forward.1} parent=1 // pred_region
      _
    $region49: #{deeponet_forward.1} parent=1 // pred_fallthru
      _
    // Predicated region
    $region50: #{deeponet_forward.1} parent=1 // pred_check
      _
    $region51: #{deeponet_forward.1} parent=1 // pred_check_branch
      %136 = sbr.rel (0) target = $region53
    $region52: #{deeponet_forward.1} parent=1 // pred_region
      _
    $region53: #{deeponet_forward.1} parent=1 // pred_fallthru
      _
    // Predicated region
    $region54: #{deeponet_forward.1} parent=1 // pred_check
      _
    $region55: #{deeponet_forward.1} parent=1 // pred_check_branch
      %138 = sbr.rel (0) target = $region57
    $region56: #{deeponet_forward.1} parent=1 // pred_region
      _
    $region57: #{deeponet_forward.1} parent=1 // pred_fallthru
      _
    // Predicated region
    $region58: #{deeponet_forward.1} parent=1 // pred_check
      _
    $region59: #{deeponet_forward.1} parent=1 // pred_check_branch
      %140 = sbr.rel (0) target = $region61
    $region60: #{deeponet_forward.1} parent=1 // pred_region
      _
    $region61: #{deeponet_forward.1} parent=1 // pred_fallthru
      _
    // Predicated region
    $region62: #{deeponet_forward.1} parent=1 // pred_check
      _
    $region63: #{deeponet_forward.1} parent=1 // pred_check_branch
      %142 = sbr.rel (0) target = $region65
    $region64: #{deeponet_forward.1} parent=1 // pred_region
      _
    $region65: #{deeponet_forward.1} parent=1 // pred_fallthru
      _
    // Predicated region
    $region66: #{deeponet_forward.1} parent=1 // pred_check
      _
    $region67: #{deeponet_forward.1} parent=1 // pred_check_branch
      %144 = sbr.rel (0) target = $region69
    $region68: #{deeponet_forward.1} parent=1 // pred_region
      _
    $region69: #{deeponet_forward.1} parent=1 // pred_fallthru
      _
    // Predicated region
    $region70: #{deeponet_forward.1} parent=1 // pred_check
      _
    $region71: #{deeponet_forward.1} parent=1 // pred_check_branch
      %146 = sbr.rel (0) target = $region73
    $region72: #{deeponet_forward.1} parent=1 // pred_region
      _
    $region73: #{deeponet_forward.1} parent=1 // pred_fallthru
      _
    // Predicated region
    $region74: #{deeponet_forward.1} parent=1 // pred_check
      _
    $region75: #{deeponet_forward.1} parent=1 // pred_check_branch
      %148 = sbr.rel (0) target = $region77
    $region76: #{deeponet_forward.1} parent=1 // pred_region
      _
    $region77: #{deeponet_forward.1} parent=1 // pred_fallthru
      _
    // Predicated region
    $region78: #{deeponet_forward.1} parent=1 // pred_check
      _
    $region79: #{deeponet_forward.1} parent=1 // pred_check_branch
      %150 = sbr.rel (0) target = $region81
    $region80: #{deeponet_forward.1} parent=1 // pred_region
      _
    $region81: #{deeponet_forward.1} parent=1 // pred_fallthru
      _
    // Predicated region
    $region82: #{deeponet_forward.1} parent=1 // pred_check
      _
    $region83: #{deeponet_forward.1} parent=1 // pred_check_branch
      %152 = sbr.rel (0) target = $region85
    $region84: #{deeponet_forward.1} parent=1 // pred_region
      _
    $region85: #{deeponet_forward.1} parent=1 // pred_fallthru
      _
    // Predicated region
    $region86: #{deeponet_forward.1} parent=1 // pred_check
      _
    $region87: #{deeponet_forward.1} parent=1 // pred_check_branch
      %154 = sbr.rel (0) target = $region89
    $region88: #{deeponet_forward.1} parent=1 // pred_region
      _
    $region89: #{deeponet_forward.1} parent=1 // pred_fallthru
      _
    // Predicated region
    $region90: #{deeponet_forward.1} parent=1 // pred_check
      _
    $region91: #{deeponet_forward.1} parent=1 // pred_check_branch
      %156 = sbr.rel (0) target = $region93
    $region92: #{deeponet_forward.1} parent=1 // pred_region
      _
    $region93: #{deeponet_forward.1} parent=1 // pred_fallthru
      _
    // Predicated region
    $region94: #{deeponet_forward.1} parent=1 // pred_check
      _
    $region95: #{deeponet_forward.1} parent=1 // pred_check_branch
      %158 = sbr.rel (0) target = $region97
    $region96: #{deeponet_forward.1} parent=1 // pred_region
      _
    $region97: #{deeponet_forward.1} parent=1 // pred_fallthru
      _
    // Predicated region
    $region98: #{deeponet_forward.1} parent=1 // pred_check
      _
    $region99: #{deeponet_forward.1} parent=1 // pred_check_branch
      %160 = sbr.rel (0) target = $region101
    $region100: #{deeponet_forward.1} parent=1 // pred_region
      _
    $region101: #{deeponet_forward.1} parent=1 // pred_fallthru
      _
    // Predicated region
    $region102: #{deeponet_forward.1} parent=1 // pred_check
      _
    $region103: #{deeponet_forward.1} parent=1 // pred_check_branch
      %162 = sbr.rel (0) target = $region105
    $region104: #{deeponet_forward.1} parent=1 // pred_region
      _
    $region105: #{deeponet_forward.1} parent=1 // pred_fallthru
      _
    // Predicated region
    $region106: #{deeponet_forward.1} parent=1 // pred_check
      _
    $region107: #{deeponet_forward.1} parent=1 // pred_check_branch
      %164 = sbr.rel (0) target = $region109
    $region108: #{deeponet_forward.1} parent=1 // pred_region
      _
    $region109: #{deeponet_forward.1} parent=1 // pred_fallthru
      _
    // Predicated region
    $region110: #{deeponet_forward.1} parent=1 // pred_check
      _
    $region111: #{deeponet_forward.1} parent=1 // pred_check_branch
      %166 = sbr.rel (0) target = $region113
    $region112: #{deeponet_forward.1} parent=1 // pred_region
      _
    $region113: #{deeponet_forward.1} parent=1 // pred_fallthru
      _
    // Predicated region
    $region114: #{deeponet_forward.1} parent=1 // pred_check
      _
    $region115: #{deeponet_forward.1} parent=1 // pred_check_branch
      %168 = sbr.rel (0) target = $region117
    $region116: #{deeponet_forward.1} parent=1 // pred_region
      _
    $region117: #{deeponet_forward.1} parent=1 // pred_fallthru
      _
    // Predicated region
    $region118: #{deeponet_forward.1} parent=1 // pred_check
      _
    $region119: #{deeponet_forward.1} parent=1 // pred_check_branch
      %170 = sbr.rel (0) target = $region121
    $region120: #{deeponet_forward.1} parent=1 // pred_region
      _
    $region121: #{deeponet_forward.1} parent=1 // pred_fallthru
      _
    // Predicated region
    $region122: #{deeponet_forward.1} parent=1 // pred_check
      _
    $region123: #{deeponet_forward.1} parent=1 // pred_check_branch
      %172 = sbr.rel (0) target = $region125
    $region124: #{deeponet_forward.1} parent=1 // pred_region
      _
    $region125: #{deeponet_forward.1} parent=1 // pred_fallthru
      _
    // Predicated region
    $region126: #{deeponet_forward.1} parent=1 // pred_check
      _
    $region127: #{deeponet_forward.1} parent=1 // pred_check_branch
      %174 = sbr.rel (0) target = $region129
    $region128: #{deeponet_forward.1} parent=1 // pred_region
      _
    $region129: #{deeponet_forward.1} parent=1 // pred_fallthru
      _
    // Predicated region
    $region130: #{deeponet_forward.1} parent=1 // pred_check
      _
    $region131: #{deeponet_forward.1} parent=1 // pred_check_branch
      %176 = sbr.rel (0) target = $region133
    $region132: #{deeponet_forward.1} parent=1 // pred_region
      _
    $region133: #{deeponet_forward.1} parent=1 // pred_fallthru
      _
    // Predicated region
    $region134: #{deeponet_forward.1} parent=1 // pred_check
      _
    $region135: #{deeponet_forward.1} parent=1 // pred_check_branch
      %178 = sbr.rel (0) target = $region137
    $region136: #{deeponet_forward.1} parent=1 // pred_region
      _
    $region137: #{deeponet_forward.1} parent=1 // pred_fallthru
      _
    // Predicated region
    $region138: #{deeponet_forward.1} parent=1 // pred_check
      _
    $region139: #{deeponet_forward.1} parent=1 // pred_check_branch
      %180 = sbr.rel (0) target = $region141
    $region140: #{deeponet_forward.1} parent=1 // pred_region
      _
    $region141: #{deeponet_forward.1} parent=1 // pred_fallthru
      _
    // Predicated region
    $region142: #{deeponet_forward.1} parent=1 // pred_check
      _
    $region143: #{deeponet_forward.1} parent=1 // pred_check_branch
      %182 = sbr.rel (0) target = $region145
    $region144: #{deeponet_forward.1} parent=1 // pred_region
      _
    $region145: #{deeponet_forward.1} parent=1 // pred_fallthru
      _
    // Predicated region
    $region146: #{deeponet_forward.1} parent=1 // pred_check
      _
    $region147: #{deeponet_forward.1} parent=1 // pred_check_branch
      %184 = sbr.rel (0) target = $region149
    $region148: #{deeponet_forward.1} parent=1 // pred_region
      _
    $region149: #{deeponet_forward.1} parent=1 // pred_fallthru
      _
    // Predicated region
    $region150: #{deeponet_forward.1} parent=1 // pred_check
      _
    $region151: #{deeponet_forward.1} parent=1 // pred_check_branch
      %186 = sbr.rel (0) target = $region153
    $region152: #{deeponet_forward.1} parent=1 // pred_region
      _
    $region153: #{deeponet_forward.1} parent=1 // pred_fallthru
      _
    // Predicated region
    $region154: #{deeponet_forward.1} parent=1 // pred_check
      _
    $region155: #{deeponet_forward.1} parent=1 // pred_check_branch
      %188 = sbr.rel (0) target = $region157
    $region156: #{deeponet_forward.1} parent=1 // pred_region
      _
    $region157: #{deeponet_forward.1} parent=1 // pred_fallthru
      _
    // Predicated region
    $region158: #{deeponet_forward.1} parent=1 // pred_check
      _
    $region159: #{deeponet_forward.1} parent=1 // pred_check_branch
      %190 = sbr.rel (0) target = $region161
    $region160: #{deeponet_forward.1} parent=1 // pred_region
      _
    $region161: #{deeponet_forward.1} parent=1 // pred_fallthru
      _
    // Predicated region
    $region162: #{deeponet_forward.1} parent=1 // pred_check
      _
    $region163: #{deeponet_forward.1} parent=1 // pred_check_branch
      %192 = sbr.rel (0) target = $region165
    $region164: #{deeponet_forward.1} parent=1 // pred_region
      _
    $region165: #{deeponet_forward.1} parent=1 // pred_fallthru
      _
    // Predicated region
    $region166: #{deeponet_forward.1} parent=1 // pred_check
      _
    $region167: #{deeponet_forward.1} parent=1 // pred_check_branch
      %194 = sbr.rel (0) target = $region169
    $region168: #{deeponet_forward.1} parent=1 // pred_region
      _
    $region169: #{deeponet_forward.1} parent=1 // pred_fallthru
      _
    // Predicated region
    $region170: #{deeponet_forward.1} parent=1 // pred_check
      _
    $region171: #{deeponet_forward.1} parent=1 // pred_check_branch
      %196 = sbr.rel (0) target = $region173
    $region172: #{deeponet_forward.1} parent=1 // pred_region
      _
    $region173: #{deeponet_forward.1} parent=1 // pred_fallthru
      _
    // Predicated region
    $region174: #{deeponet_forward.1} parent=1 // pred_check
      _
    $region175: #{deeponet_forward.1} parent=1 // pred_check_branch
      %198 = sbr.rel (0) target = $region177
    $region176: #{deeponet_forward.1} parent=1 // pred_region
      _
    $region177: #{deeponet_forward.1} parent=1 // pred_fallthru
      _
    // Predicated region
    $region178: #{deeponet_forward.1} parent=1 // pred_check
      _
    $region179: #{deeponet_forward.1} parent=1 // pred_check_branch
      %200 = sbr.rel (0) target = $region181
    $region180: #{deeponet_forward.1} parent=1 // pred_region
      _
    $region181: #{deeponet_forward.1} parent=1 // pred_fallthru
      _
    // Predicated region
    $region182: #{deeponet_forward.1} parent=1 // pred_check
      _
    $region183: #{deeponet_forward.1} parent=1 // pred_check_branch
      %202 = sbr.rel (0) target = $region185
    $region184: #{deeponet_forward.1} parent=1 // pred_region
      _
    $region185: #{deeponet_forward.1} parent=1 // pred_fallthru
      _
    // Predicated region
    $region186: #{deeponet_forward.1} parent=1 // pred_check
      _
    $region187: #{deeponet_forward.1} parent=1 // pred_check_branch
      %204 = sbr.rel (0) target = $region189
    $region188: #{deeponet_forward.1} parent=1 // pred_region
      _
    $region189: #{deeponet_forward.1} parent=1 // pred_fallthru
      _
    // Predicated region
    $region190: #{deeponet_forward.1} parent=1 // pred_check
      _
    $region191: #{deeponet_forward.1} parent=1 // pred_check_branch
      %206 = sbr.rel (0) target = $region193
    $region192: #{deeponet_forward.1} parent=1 // pred_region
      _
    $region193: #{deeponet_forward.1} parent=1 // pred_fallthru
      _
    // Predicated region
    $region194: #{deeponet_forward.1} parent=1 // pred_check
      _
    $region195: #{deeponet_forward.1} parent=1 // pred_check_branch
      %208 = sbr.rel (0) target = $region197
    $region196: #{deeponet_forward.1} parent=1 // pred_region
      %209 = dma.done [#allocation4], 16
    $region197: #{deeponet_forward.1} parent=1 // pred_fallthru
      _
    %210 = sfence
    %v211 = vld [vmem:[%s11] sm:$0xf]
    %v212 = vld [vmem:[%s13] sm:$0xff]
    %v213 = vld [vmem:[%s13 + $0x8] sm:$0xff]
    %v214 = vld [vmem:[%s13 + $0x10] sm:$0xff]
    %v215 = vld [vmem:[%s13 + $0x18] sm:$0xff]
    %v216 = vld [vmem:[%s13 + $0x20] sm:$0xff]
    %v217 = vld [vmem:[%s13 + $0x28] sm:$0xff]
    %v218 = vld [vmem:[%s13 + $0x30] sm:$0xff]
    %v219 = vld [vmem:[%s13 + $0x38] sm:$0xff]
    %v220 = vld [vmem:[%s13 + $0x40] sm:$0xff]
    %v221 = vld [vmem:[%s13 + $0x48] sm:$0xff]
    %v222 = vld [vmem:[%s13 + $0x50] sm:$0xff]
    %v223 = vld [vmem:[%s13 + $0x58] sm:$0xff]
    %v224 = vld [vmem:[%s13 + $0x60] sm:$0xff]
    %v225 = vld [vmem:[%s13 + $0x68] sm:$0xff]
    %v226 = vld [vmem:[%s13 + $0x70] sm:$0xff]
    %v227 = vld [vmem:[%s13 + $0x78] sm:$0xff]
    %v228 = vld [vmem:[%s13 + $0x80] sm:$0xff]
    %v229 = vld [vmem:[%s13 + $0x88] sm:$0xff]
    %v230 = vld [vmem:[%s13 + $0x90] sm:$0xff]
    %v231 = vld [vmem:[%s13 + $0x98] sm:$0xff]
    %v232 = vld [vmem:[%s13 + $0xa0] sm:$0xff]
    %v233 = vld [vmem:[%s13 + $0xa8] sm:$0xff]
    %v234 = vld [vmem:[%s13 + $0xb0] sm:$0xff]
    %v235 = vld [vmem:[%s13 + $0xb8] sm:$0xff]
    %v236 = vld [vmem:[%s13 + $0xc0] sm:$0xff]
    %v237 = vld [vmem:[%s13 + $0xc8] sm:$0xff]
    %v238 = vld [vmem:[%s13 + $0xd0] sm:$0xff]
    %v239 = vld [vmem:[%s13 + $0xd8] sm:$0xff]
    %v240 = vld [vmem:[%s13 + $0xe0] sm:$0xff]
    %v241 = vld [vmem:[%s13 + $0xe8] sm:$0xff]
    %v242 = vld [vmem:[%s13 + $0xf0] sm:$0xff]
    %v243 = vld [vmem:[%s13 + $0xf8] sm:$0xff]
    %v244 = vld [vmem:[%s13 + $0x100] sm:$0xff]
    %v245 = vld [vmem:[%s13 + $0x108] sm:$0xff]
    %v246 = vld [vmem:[%s13 + $0x110] sm:$0xff]
    %v247 = vld [vmem:[%s13 + $0x118] sm:$0xff]
    %v248 = vld [vmem:[%s13 + $0x120] sm:$0xff]
    %v249 = vld [vmem:[%s13 + $0x128] sm:$0xff]
    %v250 = vld [vmem:[%s13 + $0x130] sm:$0xff]
    %v251 = vld [vmem:[%s13 + $0x138] sm:$0xff]
    %v252 = vld [vmem:[%s13 + $0x140] sm:$0xff]
    %v253 = vld [vmem:[%s13 + $0x148] sm:$0xff]
    %v254 = vld [vmem:[%s13 + $0x150] sm:$0xff]
    %v255 = vld [vmem:[%s13 + $0x158] sm:$0xff]
    %v256 = vld [vmem:[%s13 + $0x160] sm:$0xff]
    %v257 = vld [vmem:[%s13 + $0x168] sm:$0xff]
    %v258 = vld [vmem:[%s13 + $0x170] sm:$0xff]
    %v259 = vld [vmem:[%s13 + $0x178] sm:$0xff]
    %v260 = vld [vmem:[%s13 + $0x180] sm:$0xff]
    %v261 = vld [vmem:[%s13 + $0x188] sm:$0xff]
    %v262 = vld [vmem:[%s13 + $0x190] sm:$0xff]
    %v263 = vld [vmem:[%s13 + $0x198] sm:$0xff]
    %v264 = vld [vmem:[%s13 + $0x1a0] sm:$0xff]
    %v265 = vld [vmem:[%s13 + $0x1a8] sm:$0xff]
    %v266 = vld [vmem:[%s13 + $0x1b0] sm:$0xff]
    %v267 = vld [vmem:[%s13 + $0x1b8] sm:$0xff]
    %v268 = vld [vmem:[%s13 + $0x1c0] sm:$0xff]
    %v269 = vld [vmem:[%s13 + $0x1c8] sm:$0xff]
    %v270 = vld [vmem:[%s13 + $0x1d0] sm:$0xff]
    %v271 = vld [vmem:[%s13 + $0x1d8] sm:$0xff]
    %v272 = vld [vmem:[%s13 + $0x1e0] sm:$0xff]
    %v273 = vld [vmem:[%s13 + $0x1e8] sm:$0xff]
    %v274 = vld [vmem:[%s13 + $0x1f0] sm:$0xff]
    %v275 = vld [vmem:[%s13 + $0x1f8] sm:$0xff]
    %v276 = vld [vmem:[%s13 + $0x200] sm:$0xff]
    %v277 = vld [vmem:[%s13 + $0x208] sm:$0xff]
    %v278 = vld [vmem:[%s13 + $0x210] sm:$0xff]
    %v279 = vld [vmem:[%s13 + $0x218] sm:$0xff]
    %v280 = vld [vmem:[%s13 + $0x220] sm:$0xff]
    %v281 = vld [vmem:[%s13 + $0x228] sm:$0xff]
    %v282 = vld [vmem:[%s13 + $0x230] sm:$0xff]
    %v283 = vld [vmem:[%s13 + $0x238] sm:$0xff]
    %v284 = vld [vmem:[%s13 + $0x240] sm:$0xff]
    %v285 = vld [vmem:[%s13 + $0x248] sm:$0xff]
    %v286 = vld [vmem:[%s13 + $0x250] sm:$0xff]
    %v287 = vld [vmem:[%s13 + $0x258] sm:$0xff]
    %v288 = vld [vmem:[%s13 + $0x260] sm:$0xff]
    %v289 = vld [vmem:[%s13 + $0x268] sm:$0xff]
    %v290 = vld [vmem:[%s13 + $0x270] sm:$0xff]
    %v291 = vld [vmem:[%s13 + $0x278] sm:$0xff]
    %v292 = vld [vmem:[%s13 + $0x280] sm:$0xff]
    %v293 = vld [vmem:[%s13 + $0x288] sm:$0xff]
    %v294 = vld [vmem:[%s13 + $0x290] sm:$0xff]
    %v295 = vld [vmem:[%s13 + $0x298] sm:$0xff]
    %v296 = vld [vmem:[%s13 + $0x2a0] sm:$0xff]
    %v297 = vld [vmem:[%s13 + $0x2a8] sm:$0xff]
    %v298 = vld [vmem:[%s13 + $0x2b0] sm:$0xff]
    %v299 = vld [vmem:[%s13 + $0x2b8] sm:$0xff]
    %v300 = vld [vmem:[%s13 + $0x2c0] sm:$0xff]
    %v301 = vld [vmem:[%s13 + $0x2c8] sm:$0xff]
    %v302 = vld [vmem:[%s13 + $0x2d0] sm:$0xff]
    %v303 = vld [vmem:[%s13 + $0x2d8] sm:$0xff]
    %v304 = vld [vmem:[%s13 + $0x2e0] sm:$0xff]
    %v305 = vld [vmem:[%s13 + $0x2e8] sm:$0xff]
    %v306 = vld [vmem:[%s13 + $0x2f0] sm:$0xff]
    %v307 = vld [vmem:[%s13 + $0x2f8] sm:$0xff]
    %v308 = vld [vmem:[%s13 + $0x300] sm:$0xff]
    %v309 = vld [vmem:[%s13 + $0x308] sm:$0xff]
    %v310 = vld [vmem:[%s13 + $0x310] sm:$0xff]
    %v311 = vld [vmem:[%s13 + $0x318] sm:$0xff]
    %v312 = vld [vmem:[%s13 + $0x320] sm:$0xff]
    %v313 = vld [vmem:[%s13 + $0x328] sm:$0xff]
    %v314 = vld [vmem:[%s13 + $0x330] sm:$0xff]
    %v315 = vld [vmem:[%s13 + $0x338] sm:$0xff]
    %v316 = vld [vmem:[%s13 + $0x340] sm:$0xff]
    %v317 = vld [vmem:[%s13 + $0x348] sm:$0xff]
    %v318 = vld [vmem:[%s13 + $0x350] sm:$0xff]
    %v319 = vld [vmem:[%s13 + $0x358] sm:$0xff]
    %v320 = vld [vmem:[%s13 + $0x360] sm:$0xff]
    %v321 = vld [vmem:[%s13 + $0x368] sm:$0xff]
    %v322 = vld [vmem:[%s13 + $0x370] sm:$0xff]
    %v323 = vld [vmem:[%s13 + $0x378] sm:$0xff]
    %v324 = vld [vmem:[%s13 + $0x380] sm:$0xff]
    %v325 = vld [vmem:[%s13 + $0x388] sm:$0xff]
    %v326 = vld [vmem:[%s13 + $0x390] sm:$0xff]
    %v327 = vld [vmem:[%s13 + $0x398] sm:$0xff]
    %v328 = vld [vmem:[%s13 + $0x3a0] sm:$0xff]
    %v329 = vld [vmem:[%s13 + $0x3a8] sm:$0xff]
    %v330 = vld [vmem:[%s13 + $0x3b0] sm:$0xff]
    %v331 = vld [vmem:[%s13 + $0x3b8] sm:$0xff]
    %v332 = vld [vmem:[%s13 + $0x3c0] sm:$0xff]
    %v333 = vld [vmem:[%s13 + $0x3c8] sm:$0xff]
    %v334 = vld [vmem:[%s13 + $0x3d0] sm:$0xff]
    %v335 = vld [vmem:[%s13 + $0x3d8] sm:$0xff]
    %v336 = vld [vmem:[%s13 + $0x3e0] sm:$0xff]
    %v337 = vld [vmem:[%s13 + $0x3e8] sm:$0xff]
    %v338 = vld [vmem:[%s13 + $0x3f0] sm:$0xff]
    %v339 = vld [vmem:[%s13 + $0x3f8] sm:$0xff]
    %v340 = vld [vmem:[%s13 + $0x400] sm:$0xff]
    %v341 = vld [vmem:[%s13 + $0x408] sm:$0xff]
    %v342 = vld [vmem:[%s13 + $0x410] sm:$0xff]
    %v343 = vld [vmem:[%s13 + $0x418] sm:$0xff]
    %v344 = vld [vmem:[%s13 + $0x420] sm:$0xff]
    %v345 = vld [vmem:[%s13 + $0x428] sm:$0xff]
    %v346 = vld [vmem:[%s13 + $0x430] sm:$0xff]
    %v347 = vld [vmem:[%s13 + $0x438] sm:$0xff]
    %v348 = vld [vmem:[%s13 + $0x440] sm:$0xff]
    %v349 = vld [vmem:[%s13 + $0x448] sm:$0xff]
    %v350 = vld [vmem:[%s13 + $0x450] sm:$0xff]
    %v351 = vld [vmem:[%s13 + $0x458] sm:$0xff]
    %v352 = vld [vmem:[%s13 + $0x460] sm:$0xff]
    %v353 = vld [vmem:[%s13 + $0x468] sm:$0xff]
    %v354 = vld [vmem:[%s13 + $0x470] sm:$0xff]
    %v355 = vld [vmem:[%s13 + $0x478] sm:$0xff]
    %v356 = vld [vmem:[%s13 + $0x480] sm:$0xff]
    %v357 = vld [vmem:[%s13 + $0x488] sm:$0xff]
    %v358 = vld [vmem:[%s13 + $0x490] sm:$0xff]
    %v359 = vld [vmem:[%s13 + $0x498] sm:$0xff]
    %v360 = vld [vmem:[%s13 + $0x4a0] sm:$0xff]
    %v361 = vld [vmem:[%s13 + $0x4a8] sm:$0xff]
    %v362 = vld [vmem:[%s13 + $0x4b0] sm:$0xff]
    %v363 = vld [vmem:[%s13 + $0x4b8] sm:$0xff]
    %v364 = vld [vmem:[%s13 + $0x4c0] sm:$0xff]
    %v365 = vld [vmem:[%s13 + $0x4c8] sm:$0xff]
    %v366 = vld [vmem:[%s13 + $0x4d0] sm:$0xff]
    %v367 = vld [vmem:[%s13 + $0x4d8] sm:$0xff]
    %v368 = vld [vmem:[%s13 + $0x4e0] sm:$0xff]
    %v369 = vld [vmem:[%s13 + $0x4e8] sm:$0xff]
    %v370 = vld [vmem:[%s13 + $0x4f0] sm:$0xff]
    %v371 = vld [vmem:[%s13 + $0x4f8] sm:$0xff]
    %v372 = vld [vmem:[%s13 + $0x500] sm:$0xff]
    %v373 = vld [vmem:[%s13 + $0x508] sm:$0xff]
    %v374 = vld [vmem:[%s13 + $0x510] sm:$0xff]
    %v375 = vld [vmem:[%s13 + $0x518] sm:$0xff]
    %v376 = vld [vmem:[%s13 + $0x520] sm:$0xff]
    %v377 = vld [vmem:[%s13 + $0x528] sm:$0xff]
    %v378 = vld [vmem:[%s13 + $0x530] sm:$0xff]
    %v379 = vld [vmem:[%s13 + $0x538] sm:$0xff]
    %v380 = vld [vmem:[%s13 + $0x540] sm:$0xff]
    %v381 = vld [vmem:[%s13 + $0x548] sm:$0xff]
    %v382 = vld [vmem:[%s13 + $0x550] sm:$0xff]
    %v383 = vld [vmem:[%s13 + $0x558] sm:$0xff]
    %v384 = vld [vmem:[%s13 + $0x560] sm:$0xff]
    %v385 = vld [vmem:[%s13 + $0x568] sm:$0xff]
    %v386 = vld [vmem:[%s13 + $0x570] sm:$0xff]
    %v387 = vld [vmem:[%s13 + $0x578] sm:$0xff]
    %v388 = vld [vmem:[%s13 + $0x580] sm:$0xff]
    %v389 = vld [vmem:[%s13 + $0x588] sm:$0xff]
    %v390 = vld [vmem:[%s13 + $0x590] sm:$0xff]
    %v391 = vld [vmem:[%s13 + $0x598] sm:$0xff]
    %v392 = vld [vmem:[%s13 + $0x5a0] sm:$0xff]
    %v393 = vld [vmem:[%s13 + $0x5a8] sm:$0xff]
    %v394 = vld [vmem:[%s13 + $0x5b0] sm:$0xff]
    %v395 = vld [vmem:[%s13 + $0x5b8] sm:$0xff]
    %v396 = vld [vmem:[%s13 + $0x5c0] sm:$0xff]
    %v397 = vld [vmem:[%s13 + $0x5c8] sm:$0xff]
    %v398 = vld [vmem:[%s13 + $0x5d0] sm:$0xff]
    %v399 = vld [vmem:[%s13 + $0x5d8] sm:$0xff]
    %v400 = vld [vmem:[%s13 + $0x5e0] sm:$0xff]
    %v401 = vld [vmem:[%s13 + $0x5e8] sm:$0xff]
    %v402 = vld [vmem:[%s13 + $0x5f0] sm:$0xff]
    %v403 = vld [vmem:[%s13 + $0x5f8] sm:$0xff]
    %v404 = vld [vmem:[%s13 + $0x600] sm:$0xff]
    %v405 = vld [vmem:[%s13 + $0x608] sm:$0xff]
    %v406 = vld [vmem:[%s13 + $0x610] sm:$0xff]
    %v407 = vld [vmem:[%s13 + $0x618] sm:$0xff]
    %v408 = vld [vmem:[%s13 + $0x620] sm:$0xff]
    %v409 = vld [vmem:[%s13 + $0x628] sm:$0xff]
    %v410 = vld [vmem:[%s13 + $0x630] sm:$0xff]
    %v411 = vld [vmem:[%s13 + $0x638] sm:$0xff]
    %v412 = vld [vmem:[%s13 + $0x640] sm:$0xff]
    %v413 = vld [vmem:[%s13 + $0x648] sm:$0xff]
    %v414 = vld [vmem:[%s13 + $0x650] sm:$0xff]
    %v415 = vld [vmem:[%s13 + $0x658] sm:$0xff]
    %v416 = vld [vmem:[%s13 + $0x660] sm:$0xff]
    %v417 = vld [vmem:[%s13 + $0x668] sm:$0xff]
    %v418 = vld [vmem:[%s13 + $0x670] sm:$0xff]
    %v419 = vld [vmem:[%s13 + $0x678] sm:$0xff]
    %v420 = vld [vmem:[%s13 + $0x680] sm:$0xff]
    %v421 = vld [vmem:[%s13 + $0x688] sm:$0xff]
    %v422 = vld [vmem:[%s13 + $0x690] sm:$0xff]
    %v423 = vld [vmem:[%s13 + $0x698] sm:$0xff]
    %v424 = vld [vmem:[%s13 + $0x6a0] sm:$0xff]
    %v425 = vld [vmem:[%s13 + $0x6a8] sm:$0xff]
    %v426 = vld [vmem:[%s13 + $0x6b0] sm:$0xff]
    %v427 = vld [vmem:[%s13 + $0x6b8] sm:$0xff]
    %v428 = vld [vmem:[%s13 + $0x6c0] sm:$0xff]
    %v429 = vld [vmem:[%s13 + $0x6c8] sm:$0xff]
    %v430 = vld [vmem:[%s13 + $0x6d0] sm:$0xff]
    %v431 = vld [vmem:[%s13 + $0x6d8] sm:$0xff]
    %v432 = vld [vmem:[%s13 + $0x6e0] sm:$0xff]
    %v433 = vld [vmem:[%s13 + $0x6e8] sm:$0xff]
    %v434 = vld [vmem:[%s13 + $0x6f0] sm:$0xff]
    %v435 = vld [vmem:[%s13 + $0x6f8] sm:$0xff]
    %v436 = vld [vmem:[%s13 + $0x700] sm:$0xff]
    %v437 = vld [vmem:[%s13 + $0x708] sm:$0xff]
    %v438 = vld [vmem:[%s13 + $0x710] sm:$0xff]
    %v439 = vld [vmem:[%s13 + $0x718] sm:$0xff]
    %v440 = vld [vmem:[%s13 + $0x720] sm:$0xff]
    %v441 = vld [vmem:[%s13 + $0x728] sm:$0xff]
    %v442 = vld [vmem:[%s13 + $0x730] sm:$0xff]
    %v443 = vld [vmem:[%s13 + $0x738] sm:$0xff]
    %v444 = vld [vmem:[%s13 + $0x740] sm:$0xff]
    %v445 = vld [vmem:[%s13 + $0x748] sm:$0xff]
    %v446 = vld [vmem:[%s13 + $0x750] sm:$0xff]
    %v447 = vld [vmem:[%s13 + $0x758] sm:$0xff]
    %v448 = vld [vmem:[%s13 + $0x760] sm:$0xff]
    %v449 = vld [vmem:[%s13 + $0x768] sm:$0xff]
    %v450 = vld [vmem:[%s13 + $0x770] sm:$0xff]
    %v451 = vld [vmem:[%s13 + $0x778] sm:$0xff]
    %v452 = vld [vmem:[%s13 + $0x780] sm:$0xff]
    %v453 = vld [vmem:[%s13 + $0x788] sm:$0xff]
    %v454 = vld [vmem:[%s13 + $0x790] sm:$0xff]
    %v455 = vld [vmem:[%s13 + $0x798] sm:$0xff]
    %v456 = vld [vmem:[%s13 + $0x7a0] sm:$0xff]
    %v457 = vld [vmem:[%s13 + $0x7a8] sm:$0xff]
    %v458 = vld [vmem:[%s13 + $0x7b0] sm:$0xff]
    %v459 = vld [vmem:[%s13 + $0x7b8] sm:$0xff]
    %v460 = vld [vmem:[%s13 + $0x7c0] sm:$0xff]
    %v461 = vld [vmem:[%s13 + $0x7c8] sm:$0xff]
    %v462 = vld [vmem:[%s13 + $0x7d0] sm:$0xff]
    %v463 = vld [vmem:[%s13 + $0x7d8] sm:$0xff]
    %v464 = vld [vmem:[%s13 + $0x7e0] sm:$0xff]
    %v465 = vld [vmem:[%s13 + $0x7e8] sm:$0xff]
    %v466 = vld [vmem:[%s13 + $0x7f0] sm:$0xff]
    %v467 = vld [vmem:[%s13 + $0x7f8] sm:$0xff]
    %v468 = vld [vmem:[%s13 + $0x800] sm:$0xff]
    %v469 = vld [vmem:[%s13 + $0x808] sm:$0xff]
    %v470 = vld [vmem:[%s13 + $0x810] sm:$0xff]
    %v471 = vld [vmem:[%s13 + $0x818] sm:$0xff]
    %v472 = vld [vmem:[%s13 + $0x820] sm:$0xff]
    %v473 = vld [vmem:[%s13 + $0x828] sm:$0xff]
    %v474 = vld [vmem:[%s13 + $0x830] sm:$0xff]
    %v475 = vld [vmem:[%s13 + $0x838] sm:$0xff]
    %v476 = vld [vmem:[%s13 + $0x840] sm:$0xff]
    %v477 = vld [vmem:[%s13 + $0x848] sm:$0xff]
    %v478 = vld [vmem:[%s13 + $0x850] sm:$0xff]
    %v479 = vld [vmem:[%s13 + $0x858] sm:$0xff]
    %v480 = vld [vmem:[%s13 + $0x860] sm:$0xff]
    %v481 = vld [vmem:[%s13 + $0x868] sm:$0xff]
    %v482 = vld [vmem:[%s13 + $0x870] sm:$0xff]
    %v483 = vld [vmem:[%s13 + $0x878] sm:$0xff]
    %v484 = vld [vmem:[%s13 + $0x880] sm:$0xff]
    %v485 = vld [vmem:[%s13 + $0x888] sm:$0xff]
    %v486 = vld [vmem:[%s13 + $0x890] sm:$0xff]
    %v487 = vld [vmem:[%s13 + $0x898] sm:$0xff]
    %v488 = vld [vmem:[%s13 + $0x8a0] sm:$0xff]
    %v489 = vld [vmem:[%s13 + $0x8a8] sm:$0xff]
    %v490 = vld [vmem:[%s13 + $0x8b0] sm:$0xff]
    %v491 = vld [vmem:[%s13 + $0x8b8] sm:$0xff]
    %v492 = vld [vmem:[%s13 + $0x8c0] sm:$0xff]
    %v493 = vld [vmem:[%s13 + $0x8c8] sm:$0xff]
    %v494 = vld [vmem:[%s13 + $0x8d0] sm:$0xff]
    %v495 = vld [vmem:[%s13 + $0x8d8] sm:$0xff]
    %v496 = vld [vmem:[%s13 + $0x8e0] sm:$0xff]
    %v497 = vld [vmem:[%s13 + $0x8e8] sm:$0xff]
    %v498 = vld [vmem:[%s13 + $0x8f0] sm:$0xff]
    %v499 = vld [vmem:[%s13 + $0x8f8] sm:$0xff]
    %v500 = vld [vmem:[%s13 + $0x900] sm:$0xff]
    %v501 = vld [vmem:[%s13 + $0x908] sm:$0xff]
    %v502 = vld [vmem:[%s13 + $0x910] sm:$0xff]
    %v503 = vld [vmem:[%s13 + $0x918] sm:$0xff]
    %v504 = vld [vmem:[%s13 + $0x920] sm:$0xff]
    %v505 = vld [vmem:[%s13 + $0x928] sm:$0xff]
    %v506 = vld [vmem:[%s13 + $0x930] sm:$0xff]
    %v507 = vld [vmem:[%s13 + $0x938] sm:$0xff]
    %v508 = vld [vmem:[%s13 + $0x940] sm:$0xff]
    %v509 = vld [vmem:[%s13 + $0x948] sm:$0xff]
    %v510 = vld [vmem:[%s13 + $0x950] sm:$0xff]
    %v511 = vld [vmem:[%s13 + $0x958] sm:$0xff]
    %v512 = vld [vmem:[%s13 + $0x960] sm:$0xff]
    %v513 = vld [vmem:[%s13 + $0x968] sm:$0xff]
    %v514 = vld [vmem:[%s13 + $0x970] sm:$0xff]
    %v515 = vld [vmem:[%s13 + $0x978] sm:$0xff]
    %v516 = vld [vmem:[%s13 + $0x980] sm:$0xff]
    %v517 = vld [vmem:[%s13 + $0x988] sm:$0xff]
    %v518 = vld [vmem:[%s13 + $0x990] sm:$0xff]
    %v519 = vld [vmem:[%s13 + $0x998] sm:$0xff]
    %v520 = vld [vmem:[%s13 + $0x9a0] sm:$0xff]
    %v521 = vld [vmem:[%s13 + $0x9a8] sm:$0xff]
    %v522 = vld [vmem:[%s13 + $0x9b0] sm:$0xff]
    %v523 = vld [vmem:[%s13 + $0x9b8] sm:$0xff]
    %v524 = vld [vmem:[%s13 + $0x9c0] sm:$0xff]
    %v525 = vld [vmem:[%s13 + $0x9c8] sm:$0xff]
    %v526 = vld [vmem:[%s13 + $0x9d0] sm:$0xff]
    %v527 = vld [vmem:[%s13 + $0x9d8] sm:$0xff]
    %v528 = vld [vmem:[%s13 + $0x9e0] sm:$0xff]
    %v529 = vld [vmem:[%s13 + $0x9e8] sm:$0xff]
    %v530 = vld [vmem:[%s13 + $0x9f0] sm:$0xff]
    %v531 = vld [vmem:[%s13 + $0x9f8] sm:$0xff]
    %v532 = vld [vmem:[%s13 + $0xa00] sm:$0xff]
    %v533 = vld [vmem:[%s13 + $0xa08] sm:$0xff]
    %v534 = vld [vmem:[%s13 + $0xa10] sm:$0xff]
    %v535 = vld [vmem:[%s13 + $0xa18] sm:$0xff]
    %v536 = vld [vmem:[%s13 + $0xa20] sm:$0xff]
    %v537 = vld [vmem:[%s13 + $0xa28] sm:$0xff]
    %v538 = vld [vmem:[%s13 + $0xa30] sm:$0xff]
    %v539 = vld [vmem:[%s13 + $0xa38] sm:$0xff]
    %v540 = vld [vmem:[%s13 + $0xa40] sm:$0xff]
    %v541 = vld [vmem:[%s13 + $0xa48] sm:$0xff]
    %v542 = vld [vmem:[%s13 + $0xa50] sm:$0xff]
    %v543 = vld [vmem:[%s13 + $0xa58] sm:$0xff]
    %v544 = vld [vmem:[%s13 + $0xa60] sm:$0xff]
    %v545 = vld [vmem:[%s13 + $0xa68] sm:$0xff]
    %v546 = vld [vmem:[%s13 + $0xa70] sm:$0xff]
    %v547 = vld [vmem:[%s13 + $0xa78] sm:$0xff]
    %v548 = vld [vmem:[%s13 + $0xa80] sm:$0xff]
    %v549 = vld [vmem:[%s13 + $0xa88] sm:$0xff]
    %v550 = vld [vmem:[%s13 + $0xa90] sm:$0xff]
    %v551 = vld [vmem:[%s13 + $0xa98] sm:$0xff]
    %v552 = vld [vmem:[%s13 + $0xaa0] sm:$0xff]
    %v553 = vld [vmem:[%s13 + $0xaa8] sm:$0xff]
    %v554 = vld [vmem:[%s13 + $0xab0] sm:$0xff]
    %v555 = vld [vmem:[%s13 + $0xab8] sm:$0xff]
    %v556 = vld [vmem:[%s13 + $0xac0] sm:$0xff]
    %v557 = vld [vmem:[%s13 + $0xac8] sm:$0xff]
    %v558 = vld [vmem:[%s13 + $0xad0] sm:$0xff]
    %v559 = vld [vmem:[%s13 + $0xad8] sm:$0xff]
    %v560 = vld [vmem:[%s13 + $0xae0] sm:$0xff]
    %v561 = vld [vmem:[%s13 + $0xae8] sm:$0xff]
    %v562 = vld [vmem:[%s13 + $0xaf0] sm:$0xff]
    %v563 = vld [vmem:[%s13 + $0xaf8] sm:$0xff]
    %v564 = vld [vmem:[%s13 + $0xb00] sm:$0xff]
    %v565 = vld [vmem:[%s13 + $0xb08] sm:$0xff]
    %v566 = vld [vmem:[%s13 + $0xb10] sm:$0xff]
    %v567 = vld [vmem:[%s13 + $0xb18] sm:$0xff]
    %v568 = vld [vmem:[%s13 + $0xb20] sm:$0xff]
    %v569 = vld [vmem:[%s13 + $0xb28] sm:$0xff]
    %v570 = vld [vmem:[%s13 + $0xb30] sm:$0xff]
    %v571 = vld [vmem:[%s13 + $0xb38] sm:$0xff]
    %v572 = vld [vmem:[%s13 + $0xb40] sm:$0xff]
    %v573 = vld [vmem:[%s13 + $0xb48] sm:$0xff]
    %v574 = vld [vmem:[%s13 + $0xb50] sm:$0xff]
    %v575 = vld [vmem:[%s13 + $0xb58] sm:$0xff]
    %v576 = vld [vmem:[%s13 + $0xb60] sm:$0xff]
    %v577 = vld [vmem:[%s13 + $0xb68] sm:$0xff]
    %v578 = vld [vmem:[%s13 + $0xb70] sm:$0xff]
    %v579 = vld [vmem:[%s13 + $0xb78] sm:$0xff]
    %v580 = vld [vmem:[%s13 + $0xb80] sm:$0xff]
    %v581 = vld [vmem:[%s13 + $0xb88] sm:$0xff]
    %v582 = vld [vmem:[%s13 + $0xb90] sm:$0xff]
    %v583 = vld [vmem:[%s13 + $0xb98] sm:$0xff]
    %v584 = vld [vmem:[%s13 + $0xba0] sm:$0xff]
    %v585 = vld [vmem:[%s13 + $0xba8] sm:$0xff]
    %v586 = vld [vmem:[%s13 + $0xbb0] sm:$0xff]
    %v587 = vld [vmem:[%s13 + $0xbb8] sm:$0xff]
    %v588 = vld [vmem:[%s13 + $0xbc0] sm:$0xff]
    %v589 = vld [vmem:[%s13 + $0xbc8] sm:$0xff]
    %v590 = vld [vmem:[%s13 + $0xbd0] sm:$0xff]
    %v591 = vld [vmem:[%s13 + $0xbd8] sm:$0xff]
    %v592 = vld [vmem:[%s13 + $0xbe0] sm:$0xff]
    %v593 = vld [vmem:[%s13 + $0xbe8] sm:$0xff]
    %v594 = vld [vmem:[%s13 + $0xbf0] sm:$0xff]
    %v595 = vld [vmem:[%s13 + $0xbf8] sm:$0xff]
    %v596 = vld [vmem:[%s13 + $0xc00] sm:$0xff]
    %v597 = vld [vmem:[%s13 + $0xc08] sm:$0xff]
    %v598 = vld [vmem:[%s13 + $0xc10] sm:$0xff]
    %v599 = vld [vmem:[%s13 + $0xc18] sm:$0xff]
    %v600 = vld [vmem:[%s13 + $0xc20] sm:$0xff]
    %v601 = vld [vmem:[%s13 + $0xc28] sm:$0xff]
    %v602 = vld [vmem:[%s13 + $0xc30] sm:$0xff]
    %v603 = vld [vmem:[%s13 + $0xc38] sm:$0xff]
    %v604 = vld [vmem:[%s13 + $0xc40] sm:$0xff]
    %v605 = vld [vmem:[%s13 + $0xc48] sm:$0xff]
    %v606 = vld [vmem:[%s13 + $0xc50] sm:$0xff]
    %v607 = vld [vmem:[%s13 + $0xc58] sm:$0xff]
    %v608 = vld [vmem:[%s13 + $0xc60] sm:$0xff]
    %v609 = vld [vmem:[%s13 + $0xc68] sm:$0xff]
    %v610 = vld [vmem:[%s13 + $0xc70] sm:$0xff]
    %v611 = vld [vmem:[%s13 + $0xc78] sm:$0xff]
    %v612 = vld [vmem:[%s13 + $0xc80] sm:$0xff]
    %v613 = vld [vmem:[%s13 + $0xc88] sm:$0xff]
    %v614 = vld [vmem:[%s13 + $0xc90] sm:$0xff]
    %v615 = vld [vmem:[%s13 + $0xc98] sm:$0xff]
    %v616 = vld [vmem:[%s13 + $0xca0] sm:$0xff]
    %v617 = vld [vmem:[%s13 + $0xca8] sm:$0xff]
    %v618 = vld [vmem:[%s13 + $0xcb0] sm:$0xff]
    %v619 = vld [vmem:[%s13 + $0xcb8] sm:$0xff]
    %v620 = vld [vmem:[%s13 + $0xcc0] sm:$0xff]
    %v621 = vld [vmem:[%s13 + $0xcc8] sm:$0xff]
    %v622 = vld [vmem:[%s13 + $0xcd0] sm:$0xff]
    %v623 = vld [vmem:[%s13 + $0xcd8] sm:$0xff]
    %v624 = vld [vmem:[%s13 + $0xce0] sm:$0xff]
    %v625 = vld [vmem:[%s13 + $0xce8] sm:$0xff]
    %v626 = vld [vmem:[%s13 + $0xcf0] sm:$0xff]
    %v627 = vld [vmem:[%s13 + $0xcf8] sm:$0xff]
    %v628 = vld [vmem:[%s13 + $0xd00] sm:$0xff]
    %v629 = vld [vmem:[%s13 + $0xd08] sm:$0xff]
    %v630 = vld [vmem:[%s13 + $0xd10] sm:$0xff]
    %v631 = vld [vmem:[%s13 + $0xd18] sm:$0xff]
    %v632 = vld [vmem:[%s13 + $0xd20] sm:$0xff]
    %v633 = vld [vmem:[%s13 + $0xd28] sm:$0xff]
    %v634 = vld [vmem:[%s13 + $0xd30] sm:$0xff]
    %v635 = vld [vmem:[%s13 + $0xd38] sm:$0xff]
    %v636 = vld [vmem:[%s13 + $0xd40] sm:$0xff]
    %v637 = vld [vmem:[%s13 + $0xd48] sm:$0xff]
    %v638 = vld [vmem:[%s13 + $0xd50] sm:$0xff]
    %v639 = vld [vmem:[%s13 + $0xd58] sm:$0xff]
    %v640 = vld [vmem:[%s13 + $0xd60] sm:$0xff]
    %v641 = vld [vmem:[%s13 + $0xd68] sm:$0xff]
    %v642 = vld [vmem:[%s13 + $0xd70] sm:$0xff]
    %v643 = vld [vmem:[%s13 + $0xd78] sm:$0xff]
    %v644 = vld [vmem:[%s13 + $0xd80] sm:$0xff]
    %v645 = vld [vmem:[%s13 + $0xd88] sm:$0xff]
    %v646 = vld [vmem:[%s13 + $0xd90] sm:$0xff]
    %v647 = vld [vmem:[%s13 + $0xd98] sm:$0xff]
    %v648 = vld [vmem:[%s13 + $0xda0] sm:$0xff]
    %v649 = vld [vmem:[%s13 + $0xda8] sm:$0xff]
    %v650 = vld [vmem:[%s13 + $0xdb0] sm:$0xff]
    %v651 = vld [vmem:[%s13 + $0xdb8] sm:$0xff]
    %v652 = vld [vmem:[%s13 + $0xdc0] sm:$0xff]
    %v653 = vld [vmem:[%s13 + $0xdc8] sm:$0xff]
    %v654 = vld [vmem:[%s13 + $0xdd0] sm:$0xff]
    %v655 = vld [vmem:[%s13 + $0xdd8] sm:$0xff]
    %v656 = vld [vmem:[%s13 + $0xde0] sm:$0xff]
    %v657 = vld [vmem:[%s13 + $0xde8] sm:$0xff]
    %v658 = vld [vmem:[%s13 + $0xdf0] sm:$0xff]
    %v659 = vld [vmem:[%s13 + $0xdf8] sm:$0xff]
    %v660 = vld [vmem:[%s13 + $0xe00] sm:$0x1]
    %v661 = vld [vmem:[%s13 + $0xe08] sm:$0x1]
    %v662 = vld [vmem:[%s13 + $0xe10] sm:$0x1]
    %v663 = vld [vmem:[%s13 + $0xe18] sm:$0x1]
    %v664 = vld [vmem:[%s13 + $0xe20] sm:$0x1]
    %v665 = vld [vmem:[%s13 + $0xe28] sm:$0x1]
    %v666 = vld [vmem:[%s13 + $0xe30] sm:$0x1]
    %v667 = vld [vmem:[%s13 + $0xe38] sm:$0x1]
    %v668 = vld [vmem:[%s13 + $0xe40] sm:$0x1]
    %v669 = vld [vmem:[%s13 + $0xe48] sm:$0x1]
    %v670 = vld [vmem:[%s13 + $0xe50] sm:$0x1]
    %v671 = vld [vmem:[%s13 + $0xe58] sm:$0x1]
    %v672 = vld [vmem:[%s13 + $0xe60] sm:$0x1]
    %v673 = vld [vmem:[%s13 + $0xe68] sm:$0x1]
    %v674 = vld [vmem:[%s13 + $0xe70] sm:$0x1]
    %v675 = vld [vmem:[%s13 + $0xe78] sm:$0x1]
    %v676 = vld [vmem:[%s15] sm:$0xff]
    %v677 = vld [vmem:[%s15 + $0x8] sm:$0xff]
    %v680 = vlaneseq
    %v681 = vshrl.u32 %v680, 7
    %v682 = vsub.s32 0, %v681
    %v683 = vrot.slane %v676, %v682
    %v684 = vlaneseq
    %v685 = vshrl.u32 %v684, 7
    %v686 = vsub.s32 1, %v685
    %v687 = vrot.slane %v676, %v686
    %v688 = vlaneseq
    %v689 = vshrl.u32 %v688, 7
    %v690 = vsub.s32 2, %v689
    %v691 = vrot.slane %v676, %v690
    %v692 = vlaneseq
    %v693 = vshrl.u32 %v692, 7
    %v694 = vsub.s32 3, %v693
    %v695 = vrot.slane %v676, %v694
    %v696 = vlaneseq
    %v697 = vshrl.u32 %v696, 7
    %v698 = vsub.s32 4, %v697
    %v699 = vrot.slane %v676, %v698
    %v700 = vlaneseq
    %v701 = vshrl.u32 %v700, 7
    %v702 = vsub.s32 5, %v701
    %v703 = vrot.slane %v676, %v702
    %v704 = vlaneseq
    %v705 = vshrl.u32 %v704, 7
    %v706 = vsub.s32 6, %v705
    %v707 = vrot.slane %v676, %v706
    %v708 = vlaneseq
    %v709 = vshrl.u32 %v708, 7
    %v710 = vsub.s32 7, %v709
    %v711 = vrot.slane %v676, %v710
    %v712 = vlaneseq
    %v713 = vshrl.u32 %v712, 7
    %v714 = vsub.s32 0, %v713
    %v715 = vrot.slane %v677, %v714
    %v716 = vlaneseq
    %v717 = vshrl.u32 %v716, 7
    %v718 = vsub.s32 1, %v717
    %v719 = vrot.slane %v677, %v718
    %v720 = vlaneseq
    %v721 = vshrl.u32 %v720, 7
    %v722 = vsub.s32 2, %v721
    %v723 = vrot.slane %v677, %v722
    %v724 = vlaneseq
    %v725 = vshrl.u32 %v724, 7
    %v726 = vsub.s32 3, %v725
    %v727 = vrot.slane %v677, %v726
    %v728 = vlaneseq
    %v729 = vshrl.u32 %v728, 7
    %v730 = vsub.s32 4, %v729
    %v731 = vrot.slane %v677, %v730
    %v732 = vlaneseq
    %v733 = vshrl.u32 %v732, 7
    %v734 = vsub.s32 5, %v733
    %v735 = vrot.slane %v677, %v734
    %v736 = vlaneseq
    %v737 = vshrl.u32 %v736, 7
    %v738 = vsub.s32 6, %v737
    %v739 = vrot.slane %v677, %v738
    %v740 = vlaneseq
    %v741 = vshrl.u32 %v740, 7
    %v742 = vsub.s32 7, %v741
    %v743 = vrot.slane %v677, %v742
    %v762 = vunpack.c.l.s4 1983009808
    %v763 = vunpack.c.0.s8 %v762
    %v764 = vlaneseq
    %v765 = vshrl.u32 %v764, 7
    %v766 = vsub.s32 %v763, %v765
    %v767 = vrot.slane %v211, %v766
    %v768 = vcombine.high %v767, %v767
    %vm770 = vcmask 793600
    %v771 = vsel %vm770, %v768, 0
    %vm773 = vcmask 1040384
    %v775 = vsel %vm773, %v660, 0
    %v778 = vsel %vm773, %v661, 0
    %v781 = vsel %vm773, %v662, 0
    %v784 = vsel %vm773, %v663, 0
    %v787 = vsel %vm773, %v664, 0
    %v790 = vsel %vm773, %v665, 0
    %v793 = vsel %vm773, %v666, 0
    %v796 = vsel %vm773, %v667, 0
    %v799 = vsel %vm773, %v668, 0
    %v802 = vsel %vm773, %v669, 0
    %v805 = vsel %vm773, %v670, 0
    %v808 = vsel %vm773, %v671, 0
    %v811 = vsel %vm773, %v672, 0
    %v814 = vsel %vm773, %v673, 0
    %v817 = vsel %vm773, %v674, 0
    %v820 = vsel %vm773, %v675, 0
    %822 = vmatprep.subr.mxu0 %v213
    %823 = vmatpush1.msra.mxu0 %v212
    %824 = vmatprep.subr.mxu0 %v229
    %825 = vmatpush1.msra.mxu0 %v228
    %826 = vmatprep.subr.mxu0 %v245
    %827 = vmatpush1.msra.mxu0 %v244
    %828 = vmatprep.subr.mxu0 %v261
    %829 = vmatpush1.msra.mxu0 %v260
    %830 = vmatprep.subr.mxu0 %v277
    %831 = vmatpush1.msra.mxu0 %v276
    %832 = vmatprep.subr.mxu0 %v293
    %833 = vmatpush1.msra.mxu0 %v292
    %834 = vmatprep.subr.mxu0 %v309
    %835 = vmatpush1.msra.mxu0 %v308
    %836 = vmatprep.subr.mxu0 %v325
    %837 = vmatpush1.msra.mxu0 %v324
    %838 = vmatprep.subr.mxu0 %v341
    %839 = vmatpush1.msra.mxu0 %v340
    %840 = vmatprep.subr.mxu0 %v357
    %841 = vmatpush1.msra.mxu0 %v356
    %842 = vmatprep.subr.mxu0 %v373
    %843 = vmatpush1.msra.mxu0 %v372
    %844 = vmatprep.subr.mxu0 %v389
    %845 = vmatpush1.msra.mxu0 %v388
    %846 = vmatprep.subr.mxu0 %v405
    %847 = vmatpush1.msra.mxu0 %v404
    %848 = vmatprep.subr.mxu0 %v421
    %849 = vmatpush1.msra.mxu0 %v420
    %850 = vmatprep.subr.mxu0 %v437
    %851 = vmatpush1.msra.mxu0 %v436
    %852 = vmatprep.subr.mxu0 %v453
    %853 = vmatpush1.msra.mxu0 %v452
    %854 = vmatprep.subr.mxu0 %v469
    %855 = vmatpush1.msra.mxu0 %v468
    %856 = vmatprep.subr.mxu0 %v485
    %857 = vmatpush1.msra.mxu0 %v484
    %858 = vmatprep.subr.mxu0 %v501
    %859 = vmatpush1.msra.mxu0 %v500
    %860 = vmatprep.subr.mxu0 %v517
    %861 = vmatpush1.msra.mxu0 %v516
    %862 = vmatprep.subr.mxu0 %v533
    %863 = vmatpush1.msra.mxu0 %v532
    %864 = vmatprep.subr.mxu0 %v549
    %865 = vmatpush1.msra.mxu0 %v548
    %866 = vmatprep.subr.mxu0 %v565
    %867 = vmatpush1.msra.mxu0 %v564
    %868 = vmatprep.subr.mxu0 %v581
    %869 = vmatpush1.msra.mxu0 %v580
    %870 = vmatprep.subr.mxu0 %v597
    %871 = vmatpush1.msra.mxu0 %v596
    %872 = vmatprep.subr.mxu0 %v613
    %873 = vmatpush1.msra.mxu0 %v612
    %874 = vmatprep.subr.mxu0 %v629
    %875 = vmatpush1.msra.mxu0 %v628
    %876 = vmatprep.subr.mxu0 %v645
    %877 = vmatpush1.msra.mxu0 %v644
    %878 = vmatprep.subr.mxu0 %v778
    %879 = vmatpush1.msra.mxu0 %v775
    %880 = vmatprep.subr.mxu0 0.0
    %881 = vmatpush1.msra.mxu0 0.0
    %882 = vmatprep.subr.mxu0 0.0
    %883 = vmatpush1.msra.mxu0 0.0
    %884 = vmatprep.subr.mxu0 0.0
    %885 = vmatpush1.msra.mxu0 0.0
    %886 = vmatprep.mubr.f32.mxu0 %v771
    %887 = vmatmul.mubr.f32.gmra.mrb[0].mxu0 %v767
    %v888 = vpop.f32.mrb[0].mxu0
    %v889 = vadd.f32 %v683, %v888
    %v890 = vpop.f32.mrb[0].mxu0
    %v891 = vadd.f32 %v687, %v890
    %892 = vdwg.mxu0
    %893 = vmatprep.subr.mxu0 %v215
    %894 = vmatpush1.msra.mxu0 %v214
    %895 = vmatprep.subr.mxu0 %v231
    %896 = vmatpush1.msra.mxu0 %v230
    %897 = vmatprep.subr.mxu0 %v247
    %898 = vmatpush1.msra.mxu0 %v246
    %899 = vmatprep.subr.mxu0 %v263
    %900 = vmatpush1.msra.mxu0 %v262
    %901 = vmatprep.subr.mxu0 %v279
    %902 = vmatpush1.msra.mxu0 %v278
    %903 = vmatprep.subr.mxu0 %v295
    %904 = vmatpush1.msra.mxu0 %v294
    %905 = vmatprep.subr.mxu0 %v311
    %906 = vmatpush1.msra.mxu0 %v310
    %907 = vmatprep.subr.mxu0 %v327
    %908 = vmatpush1.msra.mxu0 %v326
    %909 = vmatprep.subr.mxu0 %v343
    %910 = vmatpush1.msra.mxu0 %v342
    %911 = vmatprep.subr.mxu0 %v359
    %912 = vmatpush1.msra.mxu0 %v358
    %913 = vmatprep.subr.mxu0 %v375
    %914 = vmatpush1.msra.mxu0 %v374
    %915 = vmatprep.subr.mxu0 %v391
    %916 = vmatpush1.msra.mxu0 %v390
    %917 = vmatprep.subr.mxu0 %v407
    %918 = vmatpush1.msra.mxu0 %v406
    %919 = vmatprep.subr.mxu0 %v423
    %920 = vmatpush1.msra.mxu0 %v422
    %921 = vmatprep.subr.mxu0 %v439
    %922 = vmatpush1.msra.mxu0 %v438
    %923 = vmatprep.subr.mxu0 %v455
    %924 = vmatpush1.msra.mxu0 %v454
    %925 = vmatprep.subr.mxu0 %v471
    %926 = vmatpush1.msra.mxu0 %v470
    %927 = vmatprep.subr.mxu0 %v487
    %928 = vmatpush1.msra.mxu0 %v486
    %929 = vmatprep.subr.mxu0 %v503
    %930 = vmatpush1.msra.mxu0 %v502
    %931 = vmatprep.subr.mxu0 %v519
    %932 = vmatpush1.msra.mxu0 %v518
    %933 = vmatprep.subr.mxu0 %v535
    %934 = vmatpush1.msra.mxu0 %v534
    %935 = vmatprep.subr.mxu0 %v551
    %936 = vmatpush1.msra.mxu0 %v550
    %937 = vmatprep.subr.mxu0 %v567
    %938 = vmatpush1.msra.mxu0 %v566
    %939 = vmatprep.subr.mxu0 %v583
    %940 = vmatpush1.msra.mxu0 %v582
    %941 = vmatprep.subr.mxu0 %v599
    %942 = vmatpush1.msra.mxu0 %v598
    %943 = vmatprep.subr.mxu0 %v615
    %944 = vmatpush1.msra.mxu0 %v614
    %945 = vmatprep.subr.mxu0 %v631
    %946 = vmatpush1.msra.mxu0 %v630
    %947 = vmatprep.subr.mxu0 %v647
    %948 = vmatpush1.msra.mxu0 %v646
    %949 = vmatprep.subr.mxu0 %v784
    %950 = vmatpush1.msra.mxu0 %v781
    %951 = vmatprep.subr.mxu0 0.0
    %952 = vmatpush1.msra.mxu0 0.0
    %953 = vmatprep.subr.mxu0 0.0
    %954 = vmatpush1.msra.mxu0 0.0
    %955 = vmatprep.subr.mxu0 0.0
    %956 = vmatpush1.msra.mxu0 0.0
    %957 = vmatprep.mubr.f32.mxu0 %v771
    %958 = vmatmul.mubr.f32.gmra.mrb[0].mxu0 %v767
    %v959 = vpop.f32.mrb[0].mxu0
    %v960 = vadd.f32 %v691, %v959
    %v961 = vpop.f32.mrb[0].mxu0
    %v962 = vadd.f32 %v695, %v961
    %963 = vdwg.mxu0
    %964 = vmatprep.subr.mxu0 %v217
    %965 = vmatpush1.msra.mxu0 %v216
    %966 = vmatprep.subr.mxu0 %v233
    %967 = vmatpush1.msra.mxu0 %v232
    %968 = vmatprep.subr.mxu0 %v249
    %969 = vmatpush1.msra.mxu0 %v248
    %970 = vmatprep.subr.mxu0 %v265
    %971 = vmatpush1.msra.mxu0 %v264
    %972 = vmatprep.subr.mxu0 %v281
    %973 = vmatpush1.msra.mxu0 %v280
    %974 = vmatprep.subr.mxu0 %v297
    %975 = vmatpush1.msra.mxu0 %v296
    %976 = vmatprep.subr.mxu0 %v313
    %977 = vmatpush1.msra.mxu0 %v312
    %978 = vmatprep.subr.mxu0 %v329
    %979 = vmatpush1.msra.mxu0 %v328
    %980 = vmatprep.subr.mxu0 %v345
    %981 = vmatpush1.msra.mxu0 %v344
    %982 = vmatprep.subr.mxu0 %v361
    %983 = vmatpush1.msra.mxu0 %v360
    %984 = vmatprep.subr.mxu0 %v377
    %985 = vmatpush1.msra.mxu0 %v376
    %986 = vmatprep.subr.mxu0 %v393
    %987 = vmatpush1.msra.mxu0 %v392
    %988 = vmatprep.subr.mxu0 %v409
    %989 = vmatpush1.msra.mxu0 %v408
    %990 = vmatprep.subr.mxu0 %v425
    %991 = vmatpush1.msra.mxu0 %v424
    %992 = vmatprep.subr.mxu0 %v441
    %993 = vmatpush1.msra.mxu0 %v440
    %994 = vmatprep.subr.mxu0 %v457
    %995 = vmatpush1.msra.mxu0 %v456
    %996 = vmatprep.subr.mxu0 %v473
    %997 = vmatpush1.msra.mxu0 %v472
    %998 = vmatprep.subr.mxu0 %v489
    %999 = vmatpush1.msra.mxu0 %v488
    %1000 = vmatprep.subr.mxu0 %v505
    %1001 = vmatpush1.msra.mxu0 %v504
    %1002 = vmatprep.subr.mxu0 %v521
    %1003 = vmatpush1.msra.mxu0 %v520
    %1004 = vmatprep.subr.mxu0 %v537
    %1005 = vmatpush1.msra.mxu0 %v536
    %1006 = vmatprep.subr.mxu0 %v553
    %1007 = vmatpush1.msra.mxu0 %v552
    %1008 = vmatprep.subr.mxu0 %v569
    %1009 = vmatpush1.msra.mxu0 %v568
    %1010 = vmatprep.subr.mxu0 %v585
    %1011 = vmatpush1.msra.mxu0 %v584
    %1012 = vmatprep.subr.mxu0 %v601
    %1013 = vmatpush1.msra.mxu0 %v600
    %1014 = vmatprep.subr.mxu0 %v617
    %1015 = vmatpush1.msra.mxu0 %v616
    %1016 = vmatprep.subr.mxu0 %v633
    %1017 = vmatpush1.msra.mxu0 %v632
    %1018 = vmatprep.subr.mxu0 %v649
    %1019 = vmatpush1.msra.mxu0 %v648
    %1020 = vmatprep.subr.mxu0 %v790
    %1021 = vmatpush1.msra.mxu0 %v787
    %1022 = vmatprep.subr.mxu0 0.0
    %1023 = vmatpush1.msra.mxu0 0.0
    %1024 = vmatprep.subr.mxu0 0.0
    %1025 = vmatpush1.msra.mxu0 0.0
    %1026 = vmatprep.subr.mxu0 0.0
    %1027 = vmatpush1.msra.mxu0 0.0
    %1028 = vmatprep.mubr.f32.mxu0 %v771
    %1029 = vmatmul.mubr.f32.gmra.mrb[0].mxu0 %v767
    %v1030 = vpop.f32.mrb[0].mxu0
    %v1031 = vadd.f32 %v699, %v1030
    %v1032 = vpop.f32.mrb[0].mxu0
    %v1033 = vadd.f32 %v703, %v1032
    %1034 = vdwg.mxu0
    %1035 = vmatprep.subr.mxu0 %v219
    %1036 = vmatpush1.msra.mxu0 %v218
    %1037 = vmatprep.subr.mxu0 %v235
    %1038 = vmatpush1.msra.mxu0 %v234
    %1039 = vmatprep.subr.mxu0 %v251
    %1040 = vmatpush1.msra.mxu0 %v250
    %1041 = vmatprep.subr.mxu0 %v267
    %1042 = vmatpush1.msra.mxu0 %v266
    %1043 = vmatprep.subr.mxu0 %v283
    %1044 = vmatpush1.msra.mxu0 %v282
    %1045 = vmatprep.subr.mxu0 %v299
    %1046 = vmatpush1.msra.mxu0 %v298
    %1047 = vmatprep.subr.mxu0 %v315
    %1048 = vmatpush1.msra.mxu0 %v314
    %1049 = vmatprep.subr.mxu0 %v331
    %1050 = vmatpush1.msra.mxu0 %v330
    %1051 = vmatprep.subr.mxu0 %v347
    %1052 = vmatpush1.msra.mxu0 %v346
    %1053 = vmatprep.subr.mxu0 %v363
    %1054 = vmatpush1.msra.mxu0 %v362
    %1055 = vmatprep.subr.mxu0 %v379
    %1056 = vmatpush1.msra.mxu0 %v378
    %1057 = vmatprep.subr.mxu0 %v395
    %1058 = vmatpush1.msra.mxu0 %v394
    %1059 = vmatprep.subr.mxu0 %v411
    %1060 = vmatpush1.msra.mxu0 %v410
    %1061 = vmatprep.subr.mxu0 %v427
    %1062 = vmatpush1.msra.mxu0 %v426
    %1063 = vmatprep.subr.mxu0 %v443
    %1064 = vmatpush1.msra.mxu0 %v442
    %1065 = vmatprep.subr.mxu0 %v459
    %1066 = vmatpush1.msra.mxu0 %v458
    %1067 = vmatprep.subr.mxu0 %v475
    %1068 = vmatpush1.msra.mxu0 %v474
    %1069 = vmatprep.subr.mxu0 %v491
    %1070 = vmatpush1.msra.mxu0 %v490
    %1071 = vmatprep.subr.mxu0 %v507
    %1072 = vmatpush1.msra.mxu0 %v506
    %1073 = vmatprep.subr.mxu0 %v523
    %1074 = vmatpush1.msra.mxu0 %v522
    %1075 = vmatprep.subr.mxu0 %v539
    %1076 = vmatpush1.msra.mxu0 %v538
    %1077 = vmatprep.subr.mxu0 %v555
    %1078 = vmatpush1.msra.mxu0 %v554
    %1079 = vmatprep.subr.mxu0 %v571
    %1080 = vmatpush1.msra.mxu0 %v570
    %1081 = vmatprep.subr.mxu0 %v587
    %1082 = vmatpush1.msra.mxu0 %v586
    %1083 = vmatprep.subr.mxu0 %v603
    %1084 = vmatpush1.msra.mxu0 %v602
    %1085 = vmatprep.subr.mxu0 %v619
    %1086 = vmatpush1.msra.mxu0 %v618
    %1087 = vmatprep.subr.mxu0 %v635
    %1088 = vmatpush1.msra.mxu0 %v634
    %1089 = vmatprep.subr.mxu0 %v651
    %1090 = vmatpush1.msra.mxu0 %v650
    %1091 = vmatprep.subr.mxu0 %v796
    %1092 = vmatpush1.msra.mxu0 %v793
    %1093 = vmatprep.subr.mxu0 0.0
    %1094 = vmatpush1.msra.mxu0 0.0
    %1095 = vmatprep.subr.mxu0 0.0
    %1096 = vmatpush1.msra.mxu0 0.0
    %1097 = vmatprep.subr.mxu0 0.0
    %1098 = vmatpush1.msra.mxu0 0.0
    %1099 = vmatprep.mubr.f32.mxu0 %v771
    %1100 = vmatmul.mubr.f32.gmra.mrb[0].mxu0 %v767
    %v1101 = vpop.f32.mrb[0].mxu0
    %v1102 = vadd.f32 %v707, %v1101
    %v1103 = vpop.f32.mrb[0].mxu0
    %v1104 = vadd.f32 %v711, %v1103
    %1105 = vdwg.mxu0
    %1106 = vmatprep.subr.mxu0 %v221
    %1107 = vmatpush1.msra.mxu0 %v220
    %1108 = vmatprep.subr.mxu0 %v237
    %1109 = vmatpush1.msra.mxu0 %v236
    %1110 = vmatprep.subr.mxu0 %v253
    %1111 = vmatpush1.msra.mxu0 %v252
    %1112 = vmatprep.subr.mxu0 %v269
    %1113 = vmatpush1.msra.mxu0 %v268
    %1114 = vmatprep.subr.mxu0 %v285
    %1115 = vmatpush1.msra.mxu0 %v284
    %1116 = vmatprep.subr.mxu0 %v301
    %1117 = vmatpush1.msra.mxu0 %v300
    %1118 = vmatprep.subr.mxu0 %v317
    %1119 = vmatpush1.msra.mxu0 %v316
    %1120 = vmatprep.subr.mxu0 %v333
    %1121 = vmatpush1.msra.mxu0 %v332
    %1122 = vmatprep.subr.mxu0 %v349
    %1123 = vmatpush1.msra.mxu0 %v348
    %1124 = vmatprep.subr.mxu0 %v365
    %1125 = vmatpush1.msra.mxu0 %v364
    %1126 = vmatprep.subr.mxu0 %v381
    %1127 = vmatpush1.msra.mxu0 %v380
    %1128 = vmatprep.subr.mxu0 %v397
    %1129 = vmatpush1.msra.mxu0 %v396
    %1130 = vmatprep.subr.mxu0 %v413
    %1131 = vmatpush1.msra.mxu0 %v412
    %1132 = vmatprep.subr.mxu0 %v429
    %1133 = vmatpush1.msra.mxu0 %v428
    %1134 = vmatprep.subr.mxu0 %v445
    %1135 = vmatpush1.msra.mxu0 %v444
    %1136 = vmatprep.subr.mxu0 %v461
    %1137 = vmatpush1.msra.mxu0 %v460
    %1138 = vmatprep.subr.mxu0 %v477
    %1139 = vmatpush1.msra.mxu0 %v476
    %1140 = vmatprep.subr.mxu0 %v493
    %1141 = vmatpush1.msra.mxu0 %v492
    %1142 = vmatprep.subr.mxu0 %v509
    %1143 = vmatpush1.msra.mxu0 %v508
    %1144 = vmatprep.subr.mxu0 %v525
    %1145 = vmatpush1.msra.mxu0 %v524
    %1146 = vmatprep.subr.mxu0 %v541
    %1147 = vmatpush1.msra.mxu0 %v540
    %1148 = vmatprep.subr.mxu0 %v557
    %1149 = vmatpush1.msra.mxu0 %v556
    %1150 = vmatprep.subr.mxu0 %v573
    %1151 = vmatpush1.msra.mxu0 %v572
    %1152 = vmatprep.subr.mxu0 %v589
    %1153 = vmatpush1.msra.mxu0 %v588
    %1154 = vmatprep.subr.mxu0 %v605
    %1155 = vmatpush1.msra.mxu0 %v604
    %1156 = vmatprep.subr.mxu0 %v621
    %1157 = vmatpush1.msra.mxu0 %v620
    %1158 = vmatprep.subr.mxu0 %v637
    %1159 = vmatpush1.msra.mxu0 %v636
    %1160 = vmatprep.subr.mxu0 %v653
    %1161 = vmatpush1.msra.mxu0 %v652
    %1162 = vmatprep.subr.mxu0 %v802
    %1163 = vmatpush1.msra.mxu0 %v799
    %1164 = vmatprep.subr.mxu0 0.0
    %1165 = vmatpush1.msra.mxu0 0.0
    %1166 = vmatprep.subr.mxu0 0.0
    %1167 = vmatpush1.msra.mxu0 0.0
    %1168 = vmatprep.subr.mxu0 0.0
    %1169 = vmatpush1.msra.mxu0 0.0
    %1170 = vmatprep.mubr.f32.mxu0 %v771
    %1171 = vmatmul.mubr.f32.gmra.mrb[0].mxu0 %v767
    %v1172 = vpop.f32.mrb[0].mxu0
    %v1173 = vadd.f32 %v715, %v1172
    %v1174 = vpop.f32.mrb[0].mxu0
    %v1175 = vadd.f32 %v719, %v1174
    %1176 = vdwg.mxu0
    %1177 = vmatprep.subr.mxu0 %v223
    %1178 = vmatpush1.msra.mxu0 %v222
    %1179 = vmatprep.subr.mxu0 %v239
    %1180 = vmatpush1.msra.mxu0 %v238
    %1181 = vmatprep.subr.mxu0 %v255
    %1182 = vmatpush1.msra.mxu0 %v254
    %1183 = vmatprep.subr.mxu0 %v271
    %1184 = vmatpush1.msra.mxu0 %v270
    %1185 = vmatprep.subr.mxu0 %v287
    %1186 = vmatpush1.msra.mxu0 %v286
    %1187 = vmatprep.subr.mxu0 %v303
    %1188 = vmatpush1.msra.mxu0 %v302
    %1189 = vmatprep.subr.mxu0 %v319
    %1190 = vmatpush1.msra.mxu0 %v318
    %1191 = vmatprep.subr.mxu0 %v335
    %1192 = vmatpush1.msra.mxu0 %v334
    %1193 = vmatprep.subr.mxu0 %v351
    %1194 = vmatpush1.msra.mxu0 %v350
    %1195 = vmatprep.subr.mxu0 %v367
    %1196 = vmatpush1.msra.mxu0 %v366
    %1197 = vmatprep.subr.mxu0 %v383
    %1198 = vmatpush1.msra.mxu0 %v382
    %1199 = vmatprep.subr.mxu0 %v399
    %1200 = vmatpush1.msra.mxu0 %v398
    %1201 = vmatprep.subr.mxu0 %v415
    %1202 = vmatpush1.msra.mxu0 %v414
    %1203 = vmatprep.subr.mxu0 %v431
    %1204 = vmatpush1.msra.mxu0 %v430
    %1205 = vmatprep.subr.mxu0 %v447
    %1206 = vmatpush1.msra.mxu0 %v446
    %1207 = vmatprep.subr.mxu0 %v463
    %1208 = vmatpush1.msra.mxu0 %v462
    %1209 = vmatprep.subr.mxu0 %v479
    %1210 = vmatpush1.msra.mxu0 %v478
    %1211 = vmatprep.subr.mxu0 %v495
    %1212 = vmatpush1.msra.mxu0 %v494
    %1213 = vmatprep.subr.mxu0 %v511
    %1214 = vmatpush1.msra.mxu0 %v510
    %1215 = vmatprep.subr.mxu0 %v527
    %1216 = vmatpush1.msra.mxu0 %v526
    %1217 = vmatprep.subr.mxu0 %v543
    %1218 = vmatpush1.msra.mxu0 %v542
    %1219 = vmatprep.subr.mxu0 %v559
    %1220 = vmatpush1.msra.mxu0 %v558
    %1221 = vmatprep.subr.mxu0 %v575
    %1222 = vmatpush1.msra.mxu0 %v574
    %1223 = vmatprep.subr.mxu0 %v591
    %1224 = vmatpush1.msra.mxu0 %v590
    %1225 = vmatprep.subr.mxu0 %v607
    %1226 = vmatpush1.msra.mxu0 %v606
    %1227 = vmatprep.subr.mxu0 %v623
    %1228 = vmatpush1.msra.mxu0 %v622
    %1229 = vmatprep.subr.mxu0 %v639
    %1230 = vmatpush1.msra.mxu0 %v638
    %1231 = vmatprep.subr.mxu0 %v655
    %1232 = vmatpush1.msra.mxu0 %v654
    %1233 = vmatprep.subr.mxu0 %v808
    %1234 = vmatpush1.msra.mxu0 %v805
    %1235 = vmatprep.subr.mxu0 0.0
    %1236 = vmatpush1.msra.mxu0 0.0
    %1237 = vmatprep.subr.mxu0 0.0
    %1238 = vmatpush1.msra.mxu0 0.0
    %1239 = vmatprep.subr.mxu0 0.0
    %1240 = vmatpush1.msra.mxu0 0.0
    %1241 = vmatprep.mubr.f32.mxu0 %v771
    %1242 = vmatmul.mubr.f32.gmra.mrb[0].mxu0 %v767
    %v1243 = vpop.f32.mrb[0].mxu0
    %v1244 = vadd.f32 %v723, %v1243
    %v1245 = vpop.f32.mrb[0].mxu0
    %v1246 = vadd.f32 %v727, %v1245
    %1247 = vdwg.mxu0
    %1248 = vmatprep.subr.mxu0 %v225
    %1249 = vmatpush1.msra.mxu0 %v224
    %1250 = vmatprep.subr.mxu0 %v241
    %1251 = vmatpush1.msra.mxu0 %v240
    %1252 = vmatprep.subr.mxu0 %v257
    %1253 = vmatpush1.msra.mxu0 %v256
    %1254 = vmatprep.subr.mxu0 %v273
    %1255 = vmatpush1.msra.mxu0 %v272
    %1256 = vmatprep.subr.mxu0 %v289
    %1257 = vmatpush1.msra.mxu0 %v288
    %1258 = vmatprep.subr.mxu0 %v305
    %1259 = vmatpush1.msra.mxu0 %v304
    %1260 = vmatprep.subr.mxu0 %v321
    %1261 = vmatpush1.msra.mxu0 %v320
    %1262 = vmatprep.subr.mxu0 %v337
    %1263 = vmatpush1.msra.mxu0 %v336
    %1264 = vmatprep.subr.mxu0 %v353
    %1265 = vmatpush1.msra.mxu0 %v352
    %1266 = vmatprep.subr.mxu0 %v369
    %1267 = vmatpush1.msra.mxu0 %v368
    %1268 = vmatprep.subr.mxu0 %v385
    %1269 = vmatpush1.msra.mxu0 %v384
    %1270 = vmatprep.subr.mxu0 %v401
    %1271 = vmatpush1.msra.mxu0 %v400
    %1272 = vmatprep.subr.mxu0 %v417
    %1273 = vmatpush1.msra.mxu0 %v416
    %1274 = vmatprep.subr.mxu0 %v433
    %1275 = vmatpush1.msra.mxu0 %v432
    %1276 = vmatprep.subr.mxu0 %v449
    %1277 = vmatpush1.msra.mxu0 %v448
    %1278 = vmatprep.subr.mxu0 %v465
    %1279 = vmatpush1.msra.mxu0 %v464
    %1280 = vmatprep.subr.mxu0 %v481
    %1281 = vmatpush1.msra.mxu0 %v480
    %1282 = vmatprep.subr.mxu0 %v497
    %1283 = vmatpush1.msra.mxu0 %v496
    %1284 = vmatprep.subr.mxu0 %v513
    %1285 = vmatpush1.msra.mxu0 %v512
    %1286 = vmatprep.subr.mxu0 %v529
    %1287 = vmatpush1.msra.mxu0 %v528
    %1288 = vmatprep.subr.mxu0 %v545
    %1289 = vmatpush1.msra.mxu0 %v544
    %1290 = vmatprep.subr.mxu0 %v561
    %1291 = vmatpush1.msra.mxu0 %v560
    %1292 = vmatprep.subr.mxu0 %v577
    %1293 = vmatpush1.msra.mxu0 %v576
    %1294 = vmatprep.subr.mxu0 %v593
    %1295 = vmatpush1.msra.mxu0 %v592
    %1296 = vmatprep.subr.mxu0 %v609
    %1297 = vmatpush1.msra.mxu0 %v608
    %1298 = vmatprep.subr.mxu0 %v625
    %1299 = vmatpush1.msra.mxu0 %v624
    %1300 = vmatprep.subr.mxu0 %v641
    %1301 = vmatpush1.msra.mxu0 %v640
    %1302 = vmatprep.subr.mxu0 %v657
    %1303 = vmatpush1.msra.mxu0 %v656
    %1304 = vmatprep.subr.mxu0 %v814
    %1305 = vmatpush1.msra.mxu0 %v811
    %1306 = vmatprep.subr.mxu0 0.0
    %1307 = vmatpush1.msra.mxu0 0.0
    %1308 = vmatprep.subr.mxu0 0.0
    %1309 = vmatpush1.msra.mxu0 0.0
    %1310 = vmatprep.subr.mxu0 0.0
    %1311 = vmatpush1.msra.mxu0 0.0
    %1312 = vmatprep.mubr.f32.mxu0 %v771
    %1313 = vmatmul.mubr.f32.gmra.mrb[0].mxu0 %v767
    %v1314 = vpop.f32.mrb[0].mxu0
    %v1315 = vadd.f32 %v731, %v1314
    %v1316 = vpop.f32.mrb[0].mxu0
    %v1317 = vadd.f32 %v735, %v1316
    %1318 = vdwg.mxu0
    %1319 = vmatprep.subr.mxu0 %v227
    %1320 = vmatpush1.msra.mxu0 %v226
    %1321 = vmatprep.subr.mxu0 %v243
    %1322 = vmatpush1.msra.mxu0 %v242
    %1323 = vmatprep.subr.mxu0 %v259
    %1324 = vmatpush1.msra.mxu0 %v258
    %1325 = vmatprep.subr.mxu0 %v275
    %1326 = vmatpush1.msra.mxu0 %v274
    %1327 = vmatprep.subr.mxu0 %v291
    %1328 = vmatpush1.msra.mxu0 %v290
    %1329 = vmatprep.subr.mxu0 %v307
    %1330 = vmatpush1.msra.mxu0 %v306
    %1331 = vmatprep.subr.mxu0 %v323
    %1332 = vmatpush1.msra.mxu0 %v322
    %1333 = vmatprep.subr.mxu0 %v339
    %1334 = vmatpush1.msra.mxu0 %v338
    %1335 = vmatprep.subr.mxu0 %v355
    %1336 = vmatpush1.msra.mxu0 %v354
    %1337 = vmatprep.subr.mxu0 %v371
    %1338 = vmatpush1.msra.mxu0 %v370
    %1339 = vmatprep.subr.mxu0 %v387
    %1340 = vmatpush1.msra.mxu0 %v386
    %1341 = vmatprep.subr.mxu0 %v403
    %1342 = vmatpush1.msra.mxu0 %v402
    %1343 = vmatprep.subr.mxu0 %v419
    %1344 = vmatpush1.msra.mxu0 %v418
    %1345 = vmatprep.subr.mxu0 %v435
    %1346 = vmatpush1.msra.mxu0 %v434
    %1347 = vmatprep.subr.mxu0 %v451
    %1348 = vmatpush1.msra.mxu0 %v450
    %1349 = vmatprep.subr.mxu0 %v467
    %1350 = vmatpush1.msra.mxu0 %v466
    %1351 = vmatprep.subr.mxu0 %v483
    %1352 = vmatpush1.msra.mxu0 %v482
    %1353 = vmatprep.subr.mxu0 %v499
    %1354 = vmatpush1.msra.mxu0 %v498
    %1355 = vmatprep.subr.mxu0 %v515
    %1356 = vmatpush1.msra.mxu0 %v514
    %1357 = vmatprep.subr.mxu0 %v531
    %1358 = vmatpush1.msra.mxu0 %v530
    %1359 = vmatprep.subr.mxu0 %v547
    %1360 = vmatpush1.msra.mxu0 %v546
    %1361 = vmatprep.subr.mxu0 %v563
    %1362 = vmatpush1.msra.mxu0 %v562
    %1363 = vmatprep.subr.mxu0 %v579
    %1364 = vmatpush1.msra.mxu0 %v578
    %1365 = vmatprep.subr.mxu0 %v595
    %1366 = vmatpush1.msra.mxu0 %v594
    %1367 = vmatprep.subr.mxu0 %v611
    %1368 = vmatpush1.msra.mxu0 %v610
    %1369 = vmatprep.subr.mxu0 %v627
    %1370 = vmatpush1.msra.mxu0 %v626
    %1371 = vmatprep.subr.mxu0 %v643
    %1372 = vmatpush1.msra.mxu0 %v642
    %1373 = vmatprep.subr.mxu0 %v659
    %1374 = vmatpush1.msra.mxu0 %v658
    %1375 = vmatprep.subr.mxu0 %v820
    %1376 = vmatpush1.msra.mxu0 %v817
    %1377 = vmatprep.subr.mxu0 0.0
    %1378 = vmatpush1.msra.mxu0 0.0
    %1379 = vmatprep.subr.mxu0 0.0
    %1380 = vmatpush1.msra.mxu0 0.0
    %1381 = vmatprep.subr.mxu0 0.0
    %1382 = vmatpush1.msra.mxu0 0.0
    %1383 = vmatprep.mubr.f32.mxu0 %v771
    %1384 = vmatmul.mubr.f32.gmra.mrb[0].mxu0 %v767
    %v1385 = vpop.f32.mrb[0].mxu0
    %v1386 = vadd.f32 %v739, %v1385
    %v1387 = vpop.f32.mrb[0].mxu0
    %v1388 = vadd.f32 %v743, %v1387
    %1389 = vdwg.mxu0
    %v1390 = vmax.f32 %v889, 0.0
    %v1391 = vmax.f32 %v891, 0.0
    %v1392 = vmax.f32 %v960, 0.0
    %v1393 = vmax.f32 %v962, 0.0
    %v1394 = vmax.f32 %v1031, 0.0
    %v1395 = vmax.f32 %v1033, 0.0
    %v1396 = vmax.f32 %v1102, 0.0
    %v1397 = vmax.f32 %v1104, 0.0
    %v1398 = vmax.f32 %v1173, 0.0
    %v1399 = vmax.f32 %v1175, 0.0
    %v1400 = vmax.f32 %v1244, 0.0
    %v1401 = vmax.f32 %v1246, 0.0
    %v1402 = vmax.f32 %v1315, 0.0
    %v1403 = vmax.f32 %v1317, 0.0
    %v1404 = vmax.f32 %v1386, 0.0
    %v1405 = vmax.f32 %v1388, 0.0
    %v1406 = vld [vmem:[%s17] sm:$0xff]
    %v1407 = vld [vmem:[%s17 + $0x8] sm:$0xff]
    %v1408 = vld [vmem:[%s17 + $0x10] sm:$0xff]
    %v1409 = vld [vmem:[%s17 + $0x18] sm:$0xff]
    %v1410 = vld [vmem:[%s17 + $0x20] sm:$0xff]
    %v1411 = vld [vmem:[%s17 + $0x28] sm:$0xff]
    %v1412 = vld [vmem:[%s17 + $0x30] sm:$0xff]
    %v1413 = vld [vmem:[%s17 + $0x38] sm:$0xff]
    %v1414 = vld [vmem:[%s17 + $0x40] sm:$0xff]
    %v1415 = vld [vmem:[%s17 + $0x48] sm:$0xff]
    %v1416 = vld [vmem:[%s17 + $0x50] sm:$0xff]
    %v1417 = vld [vmem:[%s17 + $0x58] sm:$0xff]
    %v1418 = vld [vmem:[%s17 + $0x60] sm:$0xff]
    %v1419 = vld [vmem:[%s17 + $0x68] sm:$0xff]
    %v1420 = vld [vmem:[%s17 + $0x70] sm:$0xff]
    %v1421 = vld [vmem:[%s17 + $0x78] sm:$0xff]
    %v1422 = vld [vmem:[%s17 + $0x80] sm:$0xff]
    %v1423 = vld [vmem:[%s17 + $0x88] sm:$0xff]
    %v1424 = vld [vmem:[%s17 + $0x90] sm:$0xff]
    %v1425 = vld [vmem:[%s17 + $0x98] sm:$0xff]
    %v1426 = vld [vmem:[%s17 + $0xa0] sm:$0xff]
    %v1427 = vld [vmem:[%s17 + $0xa8] sm:$0xff]
    %v1428 = vld [vmem:[%s17 + $0xb0] sm:$0xff]
    %v1429 = vld [vmem:[%s17 + $0xb8] sm:$0xff]
    %v1430 = vld [vmem:[%s17 + $0xc0] sm:$0xff]
    %v1431 = vld [vmem:[%s17 + $0xc8] sm:$0xff]
    %v1432 = vld [vmem:[%s17 + $0xd0] sm:$0xff]
    %v1433 = vld [vmem:[%s17 + $0xd8] sm:$0xff]
    %v1434 = vld [vmem:[%s17 + $0xe0] sm:$0xff]
    %v1435 = vld [vmem:[%s17 + $0xe8] sm:$0xff]
    %v1436 = vld [vmem:[%s17 + $0xf0] sm:$0xff]
    %v1437 = vld [vmem:[%s17 + $0xf8] sm:$0xff]
    %v1438 = vld [vmem:[%s17 + $0x100] sm:$0xff]
    %v1439 = vld [vmem:[%s17 + $0x108] sm:$0xff]
    %v1440 = vld [vmem:[%s17 + $0x110] sm:$0xff]
    %v1441 = vld [vmem:[%s17 + $0x118] sm:$0xff]
    %v1442 = vld [vmem:[%s17 + $0x120] sm:$0xff]
    %v1443 = vld [vmem:[%s17 + $0x128] sm:$0xff]
    %v1444 = vld [vmem:[%s17 + $0x130] sm:$0xff]
    %v1445 = vld [vmem:[%s17 + $0x138] sm:$0xff]
    %v1446 = vld [vmem:[%s17 + $0x140] sm:$0xff]
    %v1447 = vld [vmem:[%s17 + $0x148] sm:$0xff]
    %v1448 = vld [vmem:[%s17 + $0x150] sm:$0xff]
    %v1449 = vld [vmem:[%s17 + $0x158] sm:$0xff]
    %v1450 = vld [vmem:[%s17 + $0x160] sm:$0xff]
    %v1451 = vld [vmem:[%s17 + $0x168] sm:$0xff]
    %v1452 = vld [vmem:[%s17 + $0x170] sm:$0xff]
    %v1453 = vld [vmem:[%s17 + $0x178] sm:$0xff]
    %v1454 = vld [vmem:[%s17 + $0x180] sm:$0xff]
    %v1455 = vld [vmem:[%s17 + $0x188] sm:$0xff]
    %v1456 = vld [vmem:[%s17 + $0x190] sm:$0xff]
    %v1457 = vld [vmem:[%s17 + $0x198] sm:$0xff]
    %v1458 = vld [vmem:[%s17 + $0x1a0] sm:$0xff]
    %v1459 = vld [vmem:[%s17 + $0x1a8] sm:$0xff]
    %v1460 = vld [vmem:[%s17 + $0x1b0] sm:$0xff]
    %v1461 = vld [vmem:[%s17 + $0x1b8] sm:$0xff]
    %v1462 = vld [vmem:[%s17 + $0x1c0] sm:$0xff]
    %v1463 = vld [vmem:[%s17 + $0x1c8] sm:$0xff]
    %v1464 = vld [vmem:[%s17 + $0x1d0] sm:$0xff]
    %v1465 = vld [vmem:[%s17 + $0x1d8] sm:$0xff]
    %v1466 = vld [vmem:[%s17 + $0x1e0] sm:$0xff]
    %v1467 = vld [vmem:[%s17 + $0x1e8] sm:$0xff]
    %v1468 = vld [vmem:[%s17 + $0x1f0] sm:$0xff]
    %v1469 = vld [vmem:[%s17 + $0x1f8] sm:$0xff]
    %v1470 = vld [vmem:[%s17 + $0x200] sm:$0xff]
    %v1471 = vld [vmem:[%s17 + $0x208] sm:$0xff]
    %v1472 = vld [vmem:[%s17 + $0x210] sm:$0xff]
    %v1473 = vld [vmem:[%s17 + $0x218] sm:$0xff]
    %v1474 = vld [vmem:[%s17 + $0x220] sm:$0xff]
    %v1475 = vld [vmem:[%s17 + $0x228] sm:$0xff]
    %v1476 = vld [vmem:[%s17 + $0x230] sm:$0xff]
    %v1477 = vld [vmem:[%s17 + $0x238] sm:$0xff]
    %v1478 = vld [vmem:[%s17 + $0x240] sm:$0xff]
    %v1479 = vld [vmem:[%s17 + $0x248] sm:$0xff]
    %v1480 = vld [vmem:[%s17 + $0x250] sm:$0xff]
    %v1481 = vld [vmem:[%s17 + $0x258] sm:$0xff]
    %v1482 = vld [vmem:[%s17 + $0x260] sm:$0xff]
    %v1483 = vld [vmem:[%s17 + $0x268] sm:$0xff]
    %v1484 = vld [vmem:[%s17 + $0x270] sm:$0xff]
    %v1485 = vld [vmem:[%s17 + $0x278] sm:$0xff]
    %v1486 = vld [vmem:[%s17 + $0x280] sm:$0xff]
    %v1487 = vld [vmem:[%s17 + $0x288] sm:$0xff]
    %v1488 = vld [vmem:[%s17 + $0x290] sm:$0xff]
    %v1489 = vld [vmem:[%s17 + $0x298] sm:$0xff]
    %v1490 = vld [vmem:[%s17 + $0x2a0] sm:$0xff]
    %v1491 = vld [vmem:[%s17 + $0x2a8] sm:$0xff]
    %v1492 = vld [vmem:[%s17 + $0x2b0] sm:$0xff]
    %v1493 = vld [vmem:[%s17 + $0x2b8] sm:$0xff]
    %v1494 = vld [vmem:[%s17 + $0x2c0] sm:$0xff]
    %v1495 = vld [vmem:[%s17 + $0x2c8] sm:$0xff]
    %v1496 = vld [vmem:[%s17 + $0x2d0] sm:$0xff]
    %v1497 = vld [vmem:[%s17 + $0x2d8] sm:$0xff]
    %v1498 = vld [vmem:[%s17 + $0x2e0] sm:$0xff]
    %v1499 = vld [vmem:[%s17 + $0x2e8] sm:$0xff]
    %v1500 = vld [vmem:[%s17 + $0x2f0] sm:$0xff]
    %v1501 = vld [vmem:[%s17 + $0x2f8] sm:$0xff]
    %v1502 = vld [vmem:[%s17 + $0x300] sm:$0xff]
    %v1503 = vld [vmem:[%s17 + $0x308] sm:$0xff]
    %v1504 = vld [vmem:[%s17 + $0x310] sm:$0xff]
    %v1505 = vld [vmem:[%s17 + $0x318] sm:$0xff]
    %v1506 = vld [vmem:[%s17 + $0x320] sm:$0xff]
    %v1507 = vld [vmem:[%s17 + $0x328] sm:$0xff]
    %v1508 = vld [vmem:[%s17 + $0x330] sm:$0xff]
    %v1509 = vld [vmem:[%s17 + $0x338] sm:$0xff]
    %v1510 = vld [vmem:[%s17 + $0x340] sm:$0xff]
    %v1511 = vld [vmem:[%s17 + $0x348] sm:$0xff]
    %v1512 = vld [vmem:[%s17 + $0x350] sm:$0xff]
    %v1513 = vld [vmem:[%s17 + $0x358] sm:$0xff]
    %v1514 = vld [vmem:[%s17 + $0x360] sm:$0xff]
    %v1515 = vld [vmem:[%s17 + $0x368] sm:$0xff]
    %v1516 = vld [vmem:[%s17 + $0x370] sm:$0xff]
    %v1517 = vld [vmem:[%s17 + $0x378] sm:$0xff]
    %v1518 = vld [vmem:[%s17 + $0x380] sm:$0xff]
    %v1519 = vld [vmem:[%s17 + $0x388] sm:$0xff]
    %v1520 = vld [vmem:[%s17 + $0x390] sm:$0xff]
    %v1521 = vld [vmem:[%s17 + $0x398] sm:$0xff]
    %v1522 = vld [vmem:[%s17 + $0x3a0] sm:$0xff]
    %v1523 = vld [vmem:[%s17 + $0x3a8] sm:$0xff]
    %v1524 = vld [vmem:[%s17 + $0x3b0] sm:$0xff]
    %v1525 = vld [vmem:[%s17 + $0x3b8] sm:$0xff]
    %v1526 = vld [vmem:[%s17 + $0x3c0] sm:$0xff]
    %v1527 = vld [vmem:[%s17 + $0x3c8] sm:$0xff]
    %v1528 = vld [vmem:[%s17 + $0x3d0] sm:$0xff]
    %v1529 = vld [vmem:[%s17 + $0x3d8] sm:$0xff]
    %v1530 = vld [vmem:[%s17 + $0x3e0] sm:$0xff]
    %v1531 = vld [vmem:[%s17 + $0x3e8] sm:$0xff]
    %v1532 = vld [vmem:[%s17 + $0x3f0] sm:$0xff]
    %v1533 = vld [vmem:[%s17 + $0x3f8] sm:$0xff]
    %v1534 = vld [vmem:[%s17 + $0x400] sm:$0xff]
    %v1535 = vld [vmem:[%s17 + $0x408] sm:$0xff]
    %v1536 = vld [vmem:[%s17 + $0x410] sm:$0xff]
    %v1537 = vld [vmem:[%s17 + $0x418] sm:$0xff]
    %v1538 = vld [vmem:[%s17 + $0x420] sm:$0xff]
    %v1539 = vld [vmem:[%s17 + $0x428] sm:$0xff]
    %v1540 = vld [vmem:[%s17 + $0x430] sm:$0xff]
    %v1541 = vld [vmem:[%s17 + $0x438] sm:$0xff]
    %v1542 = vld [vmem:[%s17 + $0x440] sm:$0xff]
    %v1543 = vld [vmem:[%s17 + $0x448] sm:$0xff]
    %v1544 = vld [vmem:[%s17 + $0x450] sm:$0xff]
    %v1545 = vld [vmem:[%s17 + $0x458] sm:$0xff]
    %v1546 = vld [vmem:[%s17 + $0x460] sm:$0xff]
    %v1547 = vld [vmem:[%s17 + $0x468] sm:$0xff]
    %v1548 = vld [vmem:[%s17 + $0x470] sm:$0xff]
    %v1549 = vld [vmem:[%s17 + $0x478] sm:$0xff]
    %v1550 = vld [vmem:[%s17 + $0x480] sm:$0xff]
    %v1551 = vld [vmem:[%s17 + $0x488] sm:$0xff]
    %v1552 = vld [vmem:[%s17 + $0x490] sm:$0xff]
    %v1553 = vld [vmem:[%s17 + $0x498] sm:$0xff]
    %v1554 = vld [vmem:[%s17 + $0x4a0] sm:$0xff]
    %v1555 = vld [vmem:[%s17 + $0x4a8] sm:$0xff]
    %v1556 = vld [vmem:[%s17 + $0x4b0] sm:$0xff]
    %v1557 = vld [vmem:[%s17 + $0x4b8] sm:$0xff]
    %v1558 = vld [vmem:[%s17 + $0x4c0] sm:$0xff]
    %v1559 = vld [vmem:[%s17 + $0x4c8] sm:$0xff]
    %v1560 = vld [vmem:[%s17 + $0x4d0] sm:$0xff]
    %v1561 = vld [vmem:[%s17 + $0x4d8] sm:$0xff]
    %v1562 = vld [vmem:[%s17 + $0x4e0] sm:$0xff]
    %v1563 = vld [vmem:[%s17 + $0x4e8] sm:$0xff]
    %v1564 = vld [vmem:[%s17 + $0x4f0] sm:$0xff]
    %v1565 = vld [vmem:[%s17 + $0x4f8] sm:$0xff]
    %v1566 = vld [vmem:[%s17 + $0x500] sm:$0xff]
    %v1567 = vld [vmem:[%s17 + $0x508] sm:$0xff]
    %v1568 = vld [vmem:[%s17 + $0x510] sm:$0xff]
    %v1569 = vld [vmem:[%s17 + $0x518] sm:$0xff]
    %v1570 = vld [vmem:[%s17 + $0x520] sm:$0xff]
    %v1571 = vld [vmem:[%s17 + $0x528] sm:$0xff]
    %v1572 = vld [vmem:[%s17 + $0x530] sm:$0xff]
    %v1573 = vld [vmem:[%s17 + $0x538] sm:$0xff]
    %v1574 = vld [vmem:[%s17 + $0x540] sm:$0xff]
    %v1575 = vld [vmem:[%s17 + $0x548] sm:$0xff]
    %v1576 = vld [vmem:[%s17 + $0x550] sm:$0xff]
    %v1577 = vld [vmem:[%s17 + $0x558] sm:$0xff]
    %v1578 = vld [vmem:[%s17 + $0x560] sm:$0xff]
    %v1579 = vld [vmem:[%s17 + $0x568] sm:$0xff]
    %v1580 = vld [vmem:[%s17 + $0x570] sm:$0xff]
    %v1581 = vld [vmem:[%s17 + $0x578] sm:$0xff]
    %v1582 = vld [vmem:[%s17 + $0x580] sm:$0xff]
    %v1583 = vld [vmem:[%s17 + $0x588] sm:$0xff]
    %v1584 = vld [vmem:[%s17 + $0x590] sm:$0xff]
    %v1585 = vld [vmem:[%s17 + $0x598] sm:$0xff]
    %v1586 = vld [vmem:[%s17 + $0x5a0] sm:$0xff]
    %v1587 = vld [vmem:[%s17 + $0x5a8] sm:$0xff]
    %v1588 = vld [vmem:[%s17 + $0x5b0] sm:$0xff]
    %v1589 = vld [vmem:[%s17 + $0x5b8] sm:$0xff]
    %v1590 = vld [vmem:[%s17 + $0x5c0] sm:$0xff]
    %v1591 = vld [vmem:[%s17 + $0x5c8] sm:$0xff]
    %v1592 = vld [vmem:[%s17 + $0x5d0] sm:$0xff]
    %v1593 = vld [vmem:[%s17 + $0x5d8] sm:$0xff]
    %v1594 = vld [vmem:[%s17 + $0x5e0] sm:$0xff]
    %v1595 = vld [vmem:[%s17 + $0x5e8] sm:$0xff]
    %v1596 = vld [vmem:[%s17 + $0x5f0] sm:$0xff]
    %v1597 = vld [vmem:[%s17 + $0x5f8] sm:$0xff]
    %v1598 = vld [vmem:[%s17 + $0x600] sm:$0xff]
    %v1599 = vld [vmem:[%s17 + $0x608] sm:$0xff]
    %v1600 = vld [vmem:[%s17 + $0x610] sm:$0xff]
    %v1601 = vld [vmem:[%s17 + $0x618] sm:$0xff]
    %v1602 = vld [vmem:[%s17 + $0x620] sm:$0xff]
    %v1603 = vld [vmem:[%s17 + $0x628] sm:$0xff]
    %v1604 = vld [vmem:[%s17 + $0x630] sm:$0xff]
    %v1605 = vld [vmem:[%s17 + $0x638] sm:$0xff]
    %v1606 = vld [vmem:[%s17 + $0x640] sm:$0xff]
    %v1607 = vld [vmem:[%s17 + $0x648] sm:$0xff]
    %v1608 = vld [vmem:[%s17 + $0x650] sm:$0xff]
    %v1609 = vld [vmem:[%s17 + $0x658] sm:$0xff]
    %v1610 = vld [vmem:[%s17 + $0x660] sm:$0xff]
    %v1611 = vld [vmem:[%s17 + $0x668] sm:$0xff]
    %v1612 = vld [vmem:[%s17 + $0x670] sm:$0xff]
    %v1613 = vld [vmem:[%s17 + $0x678] sm:$0xff]
    %v1614 = vld [vmem:[%s17 + $0x680] sm:$0xff]
    %v1615 = vld [vmem:[%s17 + $0x688] sm:$0xff]
    %v1616 = vld [vmem:[%s17 + $0x690] sm:$0xff]
    %v1617 = vld [vmem:[%s17 + $0x698] sm:$0xff]
    %v1618 = vld [vmem:[%s17 + $0x6a0] sm:$0xff]
    %v1619 = vld [vmem:[%s17 + $0x6a8] sm:$0xff]
    %v1620 = vld [vmem:[%s17 + $0x6b0] sm:$0xff]
    %v1621 = vld [vmem:[%s17 + $0x6b8] sm:$0xff]
    %v1622 = vld [vmem:[%s17 + $0x6c0] sm:$0xff]
    %v1623 = vld [vmem:[%s17 + $0x6c8] sm:$0xff]
    %v1624 = vld [vmem:[%s17 + $0x6d0] sm:$0xff]
    %v1625 = vld [vmem:[%s17 + $0x6d8] sm:$0xff]
    %v1626 = vld [vmem:[%s17 + $0x6e0] sm:$0xff]
    %v1627 = vld [vmem:[%s17 + $0x6e8] sm:$0xff]
    %v1628 = vld [vmem:[%s17 + $0x6f0] sm:$0xff]
    %v1629 = vld [vmem:[%s17 + $0x6f8] sm:$0xff]
    %v1630 = vld [vmem:[%s17 + $0x700] sm:$0xff]
    %v1631 = vld [vmem:[%s17 + $0x708] sm:$0xff]
    %v1632 = vld [vmem:[%s17 + $0x710] sm:$0xff]
    %v1633 = vld [vmem:[%s17 + $0x718] sm:$0xff]
    %v1634 = vld [vmem:[%s17 + $0x720] sm:$0xff]
    %v1635 = vld [vmem:[%s17 + $0x728] sm:$0xff]
    %v1636 = vld [vmem:[%s17 + $0x730] sm:$0xff]
    %v1637 = vld [vmem:[%s17 + $0x738] sm:$0xff]
    %v1638 = vld [vmem:[%s17 + $0x740] sm:$0xff]
    %v1639 = vld [vmem:[%s17 + $0x748] sm:$0xff]
    %v1640 = vld [vmem:[%s17 + $0x750] sm:$0xff]
    %v1641 = vld [vmem:[%s17 + $0x758] sm:$0xff]
    %v1642 = vld [vmem:[%s17 + $0x760] sm:$0xff]
    %v1643 = vld [vmem:[%s17 + $0x768] sm:$0xff]
    %v1644 = vld [vmem:[%s17 + $0x770] sm:$0xff]
    %v1645 = vld [vmem:[%s17 + $0x778] sm:$0xff]
    %v1646 = vld [vmem:[%s17 + $0x780] sm:$0xff]
    %v1647 = vld [vmem:[%s17 + $0x788] sm:$0xff]
    %v1648 = vld [vmem:[%s17 + $0x790] sm:$0xff]
    %v1649 = vld [vmem:[%s17 + $0x798] sm:$0xff]
    %v1650 = vld [vmem:[%s17 + $0x7a0] sm:$0xff]
    %v1651 = vld [vmem:[%s17 + $0x7a8] sm:$0xff]
    %v1652 = vld [vmem:[%s17 + $0x7b0] sm:$0xff]
    %v1653 = vld [vmem:[%s17 + $0x7b8] sm:$0xff]
    %v1654 = vld [vmem:[%s17 + $0x7c0] sm:$0xff]
    %v1655 = vld [vmem:[%s17 + $0x7c8] sm:$0xff]
    %v1656 = vld [vmem:[%s17 + $0x7d0] sm:$0xff]
    %v1657 = vld [vmem:[%s17 + $0x7d8] sm:$0xff]
    %v1658 = vld [vmem:[%s17 + $0x7e0] sm:$0xff]
    %v1659 = vld [vmem:[%s17 + $0x7e8] sm:$0xff]
    %v1660 = vld [vmem:[%s17 + $0x7f0] sm:$0xff]
    %v1661 = vld [vmem:[%s17 + $0x7f8] sm:$0xff]
    %v1662 = vld [vmem:[%s17 + $0x800] sm:$0xff]
    %v1663 = vld [vmem:[%s17 + $0x808] sm:$0xff]
    %v1664 = vld [vmem:[%s17 + $0x810] sm:$0xff]
    %v1665 = vld [vmem:[%s17 + $0x818] sm:$0xff]
    %v1666 = vld [vmem:[%s17 + $0x820] sm:$0xff]
    %v1667 = vld [vmem:[%s17 + $0x828] sm:$0xff]
    %v1668 = vld [vmem:[%s17 + $0x830] sm:$0xff]
    %v1669 = vld [vmem:[%s17 + $0x838] sm:$0xff]
    %v1670 = vld [vmem:[%s17 + $0x840] sm:$0xff]
    %v1671 = vld [vmem:[%s17 + $0x848] sm:$0xff]
    %v1672 = vld [vmem:[%s17 + $0x850] sm:$0xff]
    %v1673 = vld [vmem:[%s17 + $0x858] sm:$0xff]
    %v1674 = vld [vmem:[%s17 + $0x860] sm:$0xff]
    %v1675 = vld [vmem:[%s17 + $0x868] sm:$0xff]
    %v1676 = vld [vmem:[%s17 + $0x870] sm:$0xff]
    %v1677 = vld [vmem:[%s17 + $0x878] sm:$0xff]
    %v1678 = vld [vmem:[%s17 + $0x880] sm:$0xff]
    %v1679 = vld [vmem:[%s17 + $0x888] sm:$0xff]
    %v1680 = vld [vmem:[%s17 + $0x890] sm:$0xff]
    %v1681 = vld [vmem:[%s17 + $0x898] sm:$0xff]
    %v1682 = vld [vmem:[%s17 + $0x8a0] sm:$0xff]
    %v1683 = vld [vmem:[%s17 + $0x8a8] sm:$0xff]
    %v1684 = vld [vmem:[%s17 + $0x8b0] sm:$0xff]
    %v1685 = vld [vmem:[%s17 + $0x8b8] sm:$0xff]
    %v1686 = vld [vmem:[%s17 + $0x8c0] sm:$0xff]
    %v1687 = vld [vmem:[%s17 + $0x8c8] sm:$0xff]
    %v1688 = vld [vmem:[%s17 + $0x8d0] sm:$0xff]
    %v1689 = vld [vmem:[%s17 + $0x8d8] sm:$0xff]
    %v1690 = vld [vmem:[%s17 + $0x8e0] sm:$0xff]
    %v1691 = vld [vmem:[%s17 + $0x8e8] sm:$0xff]
    %v1692 = vld [vmem:[%s17 + $0x8f0] sm:$0xff]
    %v1693 = vld [vmem:[%s17 + $0x8f8] sm:$0xff]
    %v1694 = vld [vmem:[%s17 + $0x900] sm:$0xff]
    %v1695 = vld [vmem:[%s17 + $0x908] sm:$0xff]
    %v1696 = vld [vmem:[%s17 + $0x910] sm:$0xff]
    %v1697 = vld [vmem:[%s17 + $0x918] sm:$0xff]
    %v1698 = vld [vmem:[%s17 + $0x920] sm:$0xff]
    %v1699 = vld [vmem:[%s17 + $0x928] sm:$0xff]
    %v1700 = vld [vmem:[%s17 + $0x930] sm:$0xff]
    %v1701 = vld [vmem:[%s17 + $0x938] sm:$0xff]
    %v1702 = vld [vmem:[%s17 + $0x940] sm:$0xff]
    %v1703 = vld [vmem:[%s17 + $0x948] sm:$0xff]
    %v1704 = vld [vmem:[%s17 + $0x950] sm:$0xff]
    %v1705 = vld [vmem:[%s17 + $0x958] sm:$0xff]
    %v1706 = vld [vmem:[%s17 + $0x960] sm:$0xff]
    %v1707 = vld [vmem:[%s17 + $0x968] sm:$0xff]
    %v1708 = vld [vmem:[%s17 + $0x970] sm:$0xff]
    %v1709 = vld [vmem:[%s17 + $0x978] sm:$0xff]
    %v1710 = vld [vmem:[%s17 + $0x980] sm:$0xff]
    %v1711 = vld [vmem:[%s17 + $0x988] sm:$0xff]
    %v1712 = vld [vmem:[%s17 + $0x990] sm:$0xff]
    %v1713 = vld [vmem:[%s17 + $0x998] sm:$0xff]
    %v1714 = vld [vmem:[%s17 + $0x9a0] sm:$0xff]
    %v1715 = vld [vmem:[%s17 + $0x9a8] sm:$0xff]
    %v1716 = vld [vmem:[%s17 + $0x9b0] sm:$0xff]
    %v1717 = vld [vmem:[%s17 + $0x9b8] sm:$0xff]
    %v1718 = vld [vmem:[%s17 + $0x9c0] sm:$0xff]
    %v1719 = vld [vmem:[%s17 + $0x9c8] sm:$0xff]
    %v1720 = vld [vmem:[%s17 + $0x9d0] sm:$0xff]
    %v1721 = vld [vmem:[%s17 + $0x9d8] sm:$0xff]
    %v1722 = vld [vmem:[%s17 + $0x9e0] sm:$0xff]
    %v1723 = vld [vmem:[%s17 + $0x9e8] sm:$0xff]
    %v1724 = vld [vmem:[%s17 + $0x9f0] sm:$0xff]
    %v1725 = vld [vmem:[%s17 + $0x9f8] sm:$0xff]
    %v1726 = vld [vmem:[%s17 + $0xa00] sm:$0xff]
    %v1727 = vld [vmem:[%s17 + $0xa08] sm:$0xff]
    %v1728 = vld [vmem:[%s17 + $0xa10] sm:$0xff]
    %v1729 = vld [vmem:[%s17 + $0xa18] sm:$0xff]
    %v1730 = vld [vmem:[%s17 + $0xa20] sm:$0xff]
    %v1731 = vld [vmem:[%s17 + $0xa28] sm:$0xff]
    %v1732 = vld [vmem:[%s17 + $0xa30] sm:$0xff]
    %v1733 = vld [vmem:[%s17 + $0xa38] sm:$0xff]
    %v1734 = vld [vmem:[%s17 + $0xa40] sm:$0xff]
    %v1735 = vld [vmem:[%s17 + $0xa48] sm:$0xff]
    %v1736 = vld [vmem:[%s17 + $0xa50] sm:$0xff]
    %v1737 = vld [vmem:[%s17 + $0xa58] sm:$0xff]
    %v1738 = vld [vmem:[%s17 + $0xa60] sm:$0xff]
    %v1739 = vld [vmem:[%s17 + $0xa68] sm:$0xff]
    %v1740 = vld [vmem:[%s17 + $0xa70] sm:$0xff]
    %v1741 = vld [vmem:[%s17 + $0xa78] sm:$0xff]
    %v1742 = vld [vmem:[%s17 + $0xa80] sm:$0xff]
    %v1743 = vld [vmem:[%s17 + $0xa88] sm:$0xff]
    %v1744 = vld [vmem:[%s17 + $0xa90] sm:$0xff]
    %v1745 = vld [vmem:[%s17 + $0xa98] sm:$0xff]
    %v1746 = vld [vmem:[%s17 + $0xaa0] sm:$0xff]
    %v1747 = vld [vmem:[%s17 + $0xaa8] sm:$0xff]
    %v1748 = vld [vmem:[%s17 + $0xab0] sm:$0xff]
    %v1749 = vld [vmem:[%s17 + $0xab8] sm:$0xff]
    %v1750 = vld [vmem:[%s17 + $0xac0] sm:$0xff]
    %v1751 = vld [vmem:[%s17 + $0xac8] sm:$0xff]
    %v1752 = vld [vmem:[%s17 + $0xad0] sm:$0xff]
    %v1753 = vld [vmem:[%s17 + $0xad8] sm:$0xff]
    %v1754 = vld [vmem:[%s17 + $0xae0] sm:$0xff]
    %v1755 = vld [vmem:[%s17 + $0xae8] sm:$0xff]
    %v1756 = vld [vmem:[%s17 + $0xaf0] sm:$0xff]
    %v1757 = vld [vmem:[%s17 + $0xaf8] sm:$0xff]
    %v1758 = vld [vmem:[%s17 + $0xb00] sm:$0xff]
    %v1759 = vld [vmem:[%s17 + $0xb08] sm:$0xff]
    %v1760 = vld [vmem:[%s17 + $0xb10] sm:$0xff]
    %v1761 = vld [vmem:[%s17 + $0xb18] sm:$0xff]
    %v1762 = vld [vmem:[%s17 + $0xb20] sm:$0xff]
    %v1763 = vld [vmem:[%s17 + $0xb28] sm:$0xff]
    %v1764 = vld [vmem:[%s17 + $0xb30] sm:$0xff]
    %v1765 = vld [vmem:[%s17 + $0xb38] sm:$0xff]
    %v1766 = vld [vmem:[%s17 + $0xb40] sm:$0xff]
    %v1767 = vld [vmem:[%s17 + $0xb48] sm:$0xff]
    %v1768 = vld [vmem:[%s17 + $0xb50] sm:$0xff]
    %v1769 = vld [vmem:[%s17 + $0xb58] sm:$0xff]
    %v1770 = vld [vmem:[%s17 + $0xb60] sm:$0xff]
    %v1771 = vld [vmem:[%s17 + $0xb68] sm:$0xff]
    %v1772 = vld [vmem:[%s17 + $0xb70] sm:$0xff]
    %v1773 = vld [vmem:[%s17 + $0xb78] sm:$0xff]
    %v1774 = vld [vmem:[%s17 + $0xb80] sm:$0xff]
    %v1775 = vld [vmem:[%s17 + $0xb88] sm:$0xff]
    %v1776 = vld [vmem:[%s17 + $0xb90] sm:$0xff]
    %v1777 = vld [vmem:[%s17 + $0xb98] sm:$0xff]
    %v1778 = vld [vmem:[%s17 + $0xba0] sm:$0xff]
    %v1779 = vld [vmem:[%s17 + $0xba8] sm:$0xff]
    %v1780 = vld [vmem:[%s17 + $0xbb0] sm:$0xff]
    %v1781 = vld [vmem:[%s17 + $0xbb8] sm:$0xff]
    %v1782 = vld [vmem:[%s17 + $0xbc0] sm:$0xff]
    %v1783 = vld [vmem:[%s17 + $0xbc8] sm:$0xff]
    %v1784 = vld [vmem:[%s17 + $0xbd0] sm:$0xff]
    %v1785 = vld [vmem:[%s17 + $0xbd8] sm:$0xff]
    %v1786 = vld [vmem:[%s17 + $0xbe0] sm:$0xff]
    %v1787 = vld [vmem:[%s17 + $0xbe8] sm:$0xff]
    %v1788 = vld [vmem:[%s17 + $0xbf0] sm:$0xff]
    %v1789 = vld [vmem:[%s17 + $0xbf8] sm:$0xff]
    %v1790 = vld [vmem:[%s17 + $0xc00] sm:$0xff]
    %v1791 = vld [vmem:[%s17 + $0xc08] sm:$0xff]
    %v1792 = vld [vmem:[%s17 + $0xc10] sm:$0xff]
    %v1793 = vld [vmem:[%s17 + $0xc18] sm:$0xff]
    %v1794 = vld [vmem:[%s17 + $0xc20] sm:$0xff]
    %v1795 = vld [vmem:[%s17 + $0xc28] sm:$0xff]
    %v1796 = vld [vmem:[%s17 + $0xc30] sm:$0xff]
    %v1797 = vld [vmem:[%s17 + $0xc38] sm:$0xff]
    %v1798 = vld [vmem:[%s17 + $0xc40] sm:$0xff]
    %v1799 = vld [vmem:[%s17 + $0xc48] sm:$0xff]
    %v1800 = vld [vmem:[%s17 + $0xc50] sm:$0xff]
    %v1801 = vld [vmem:[%s17 + $0xc58] sm:$0xff]
    %v1802 = vld [vmem:[%s17 + $0xc60] sm:$0xff]
    %v1803 = vld [vmem:[%s17 + $0xc68] sm:$0xff]
    %v1804 = vld [vmem:[%s17 + $0xc70] sm:$0xff]
    %v1805 = vld [vmem:[%s17 + $0xc78] sm:$0xff]
    %v1806 = vld [vmem:[%s17 + $0xc80] sm:$0xff]
    %v1807 = vld [vmem:[%s17 + $0xc88] sm:$0xff]
    %v1808 = vld [vmem:[%s17 + $0xc90] sm:$0xff]
    %v1809 = vld [vmem:[%s17 + $0xc98] sm:$0xff]
    %v1810 = vld [vmem:[%s17 + $0xca0] sm:$0xff]
    %v1811 = vld [vmem:[%s17 + $0xca8] sm:$0xff]
    %v1812 = vld [vmem:[%s17 + $0xcb0] sm:$0xff]
    %v1813 = vld [vmem:[%s17 + $0xcb8] sm:$0xff]
    %v1814 = vld [vmem:[%s17 + $0xcc0] sm:$0xff]
    %v1815 = vld [vmem:[%s17 + $0xcc8] sm:$0xff]
    %v1816 = vld [vmem:[%s17 + $0xcd0] sm:$0xff]
    %v1817 = vld [vmem:[%s17 + $0xcd8] sm:$0xff]
    %v1818 = vld [vmem:[%s17 + $0xce0] sm:$0xff]
    %v1819 = vld [vmem:[%s17 + $0xce8] sm:$0xff]
    %v1820 = vld [vmem:[%s17 + $0xcf0] sm:$0xff]
    %v1821 = vld [vmem:[%s17 + $0xcf8] sm:$0xff]
    %v1822 = vld [vmem:[%s17 + $0xd00] sm:$0xff]
    %v1823 = vld [vmem:[%s17 + $0xd08] sm:$0xff]
    %v1824 = vld [vmem:[%s17 + $0xd10] sm:$0xff]
    %v1825 = vld [vmem:[%s17 + $0xd18] sm:$0xff]
    %v1826 = vld [vmem:[%s17 + $0xd20] sm:$0xff]
    %v1827 = vld [vmem:[%s17 + $0xd28] sm:$0xff]
    %v1828 = vld [vmem:[%s17 + $0xd30] sm:$0xff]
    %v1829 = vld [vmem:[%s17 + $0xd38] sm:$0xff]
    %v1830 = vld [vmem:[%s17 + $0xd40] sm:$0xff]
    %v1831 = vld [vmem:[%s17 + $0xd48] sm:$0xff]
    %v1832 = vld [vmem:[%s17 + $0xd50] sm:$0xff]
    %v1833 = vld [vmem:[%s17 + $0xd58] sm:$0xff]
    %v1834 = vld [vmem:[%s17 + $0xd60] sm:$0xff]
    %v1835 = vld [vmem:[%s17 + $0xd68] sm:$0xff]
    %v1836 = vld [vmem:[%s17 + $0xd70] sm:$0xff]
    %v1837 = vld [vmem:[%s17 + $0xd78] sm:$0xff]
    %v1838 = vld [vmem:[%s17 + $0xd80] sm:$0xff]
    %v1839 = vld [vmem:[%s17 + $0xd88] sm:$0xff]
    %v1840 = vld [vmem:[%s17 + $0xd90] sm:$0xff]
    %v1841 = vld [vmem:[%s17 + $0xd98] sm:$0xff]
    %v1842 = vld [vmem:[%s17 + $0xda0] sm:$0xff]
    %v1843 = vld [vmem:[%s17 + $0xda8] sm:$0xff]
    %v1844 = vld [vmem:[%s17 + $0xdb0] sm:$0xff]
    %v1845 = vld [vmem:[%s17 + $0xdb8] sm:$0xff]
    %v1846 = vld [vmem:[%s17 + $0xdc0] sm:$0xff]
    %v1847 = vld [vmem:[%s17 + $0xdc8] sm:$0xff]
    %v1848 = vld [vmem:[%s17 + $0xdd0] sm:$0xff]
    %v1849 = vld [vmem:[%s17 + $0xdd8] sm:$0xff]
    %v1850 = vld [vmem:[%s17 + $0xde0] sm:$0xff]
    %v1851 = vld [vmem:[%s17 + $0xde8] sm:$0xff]
    %v1852 = vld [vmem:[%s17 + $0xdf0] sm:$0xff]
    %v1853 = vld [vmem:[%s17 + $0xdf8] sm:$0xff]
    %v1854 = vld [vmem:[%s17 + $0xe00] sm:$0xff]
    %v1855 = vld [vmem:[%s17 + $0xe08] sm:$0xff]
    %v1856 = vld [vmem:[%s17 + $0xe10] sm:$0xff]
    %v1857 = vld [vmem:[%s17 + $0xe18] sm:$0xff]
    %v1858 = vld [vmem:[%s17 + $0xe20] sm:$0xff]
    %v1859 = vld [vmem:[%s17 + $0xe28] sm:$0xff]
    %v1860 = vld [vmem:[%s17 + $0xe30] sm:$0xff]
    %v1861 = vld [vmem:[%s17 + $0xe38] sm:$0xff]
    %v1862 = vld [vmem:[%s17 + $0xe40] sm:$0xff]
    %v1863 = vld [vmem:[%s17 + $0xe48] sm:$0xff]
    %v1864 = vld [vmem:[%s17 + $0xe50] sm:$0xff]
    %v1865 = vld [vmem:[%s17 + $0xe58] sm:$0xff]
    %v1866 = vld [vmem:[%s17 + $0xe60] sm:$0xff]
    %v1867 = vld [vmem:[%s17 + $0xe68] sm:$0xff]
    %v1868 = vld [vmem:[%s17 + $0xe70] sm:$0xff]
    %v1869 = vld [vmem:[%s17 + $0xe78] sm:$0xff]
    %v1870 = vld [vmem:[%s17 + $0xe80] sm:$0xff]
    %v1871 = vld [vmem:[%s17 + $0xe88] sm:$0xff]
    %v1872 = vld [vmem:[%s17 + $0xe90] sm:$0xff]
    %v1873 = vld [vmem:[%s17 + $0xe98] sm:$0xff]
    %v1874 = vld [vmem:[%s17 + $0xea0] sm:$0xff]
    %v1875 = vld [vmem:[%s17 + $0xea8] sm:$0xff]
    %v1876 = vld [vmem:[%s17 + $0xeb0] sm:$0xff]
    %v1877 = vld [vmem:[%s17 + $0xeb8] sm:$0xff]
    %v1878 = vld [vmem:[%s17 + $0xec0] sm:$0xff]
    %v1879 = vld [vmem:[%s17 + $0xec8] sm:$0xff]
    %v1880 = vld [vmem:[%s17 + $0xed0] sm:$0xff]
    %v1881 = vld [vmem:[%s17 + $0xed8] sm:$0xff]
    %v1882 = vld [vmem:[%s17 + $0xee0] sm:$0xff]
    %v1883 = vld [vmem:[%s17 + $0xee8] sm:$0xff]
    %v1884 = vld [vmem:[%s17 + $0xef0] sm:$0xff]
    %v1885 = vld [vmem:[%s17 + $0xef8] sm:$0xff]
    %v1886 = vld [vmem:[%s17 + $0xf00] sm:$0xff]
    %v1887 = vld [vmem:[%s17 + $0xf08] sm:$0xff]
    %v1888 = vld [vmem:[%s17 + $0xf10] sm:$0xff]
    %v1889 = vld [vmem:[%s17 + $0xf18] sm:$0xff]
    %v1890 = vld [vmem:[%s17 + $0xf20] sm:$0xff]
    %v1891 = vld [vmem:[%s17 + $0xf28] sm:$0xff]
    %v1892 = vld [vmem:[%s17 + $0xf30] sm:$0xff]
    %v1893 = vld [vmem:[%s17 + $0xf38] sm:$0xff]
    %v1894 = vld [vmem:[%s17 + $0xf40] sm:$0xff]
    %v1895 = vld [vmem:[%s17 + $0xf48] sm:$0xff]
    %v1896 = vld [vmem:[%s17 + $0xf50] sm:$0xff]
    %v1897 = vld [vmem:[%s17 + $0xf58] sm:$0xff]
    %v1898 = vld [vmem:[%s17 + $0xf60] sm:$0xff]
    %v1899 = vld [vmem:[%s17 + $0xf68] sm:$0xff]
    %v1900 = vld [vmem:[%s17 + $0xf70] sm:$0xff]
    %v1901 = vld [vmem:[%s17 + $0xf78] sm:$0xff]
    %v1902 = vld [vmem:[%s17 + $0xf80] sm:$0xff]
    %v1903 = vld [vmem:[%s17 + $0xf88] sm:$0xff]
    %v1904 = vld [vmem:[%s17 + $0xf90] sm:$0xff]
    %v1905 = vld [vmem:[%s17 + $0xf98] sm:$0xff]
    %v1906 = vld [vmem:[%s17 + $0xfa0] sm:$0xff]
    %v1907 = vld [vmem:[%s17 + $0xfa8] sm:$0xff]
    %v1908 = vld [vmem:[%s17 + $0xfb0] sm:$0xff]
    %v1909 = vld [vmem:[%s17 + $0xfb8] sm:$0xff]
    %v1910 = vld [vmem:[%s17 + $0xfc0] sm:$0xff]
    %v1911 = vld [vmem:[%s17 + $0xfc8] sm:$0xff]
    %v1912 = vld [vmem:[%s17 + $0xfd0] sm:$0xff]
    %v1913 = vld [vmem:[%s17 + $0xfd8] sm:$0xff]
    %v1914 = vld [vmem:[%s17 + $0xfe0] sm:$0xff]
    %v1915 = vld [vmem:[%s17 + $0xfe8] sm:$0xff]
    %v1916 = vld [vmem:[%s17 + $0xff0] sm:$0xff]
    %v1917 = vld [vmem:[%s17 + $0xff8] sm:$0xff]
    %v1918 = vld [vmem:[%s17 + $0x1000] sm:$0xff]
    %v1919 = vld [vmem:[%s17 + $0x1008] sm:$0xff]
    %v1920 = vld [vmem:[%s17 + $0x1010] sm:$0xff]
    %v1921 = vld [vmem:[%s17 + $0x1018] sm:$0xff]
    %v1922 = vld [vmem:[%s17 + $0x1020] sm:$0xff]
    %v1923 = vld [vmem:[%s17 + $0x1028] sm:$0xff]
    %v1924 = vld [vmem:[%s17 + $0x1030] sm:$0xff]
    %v1925 = vld [vmem:[%s17 + $0x1038] sm:$0xff]
    %v1926 = vld [vmem:[%s17 + $0x1040] sm:$0xff]
    %v1927 = vld [vmem:[%s17 + $0x1048] sm:$0xff]
    %v1928 = vld [vmem:[%s17 + $0x1050] sm:$0xff]
    %v1929 = vld [vmem:[%s17 + $0x1058] sm:$0xff]
    %v1930 = vld [vmem:[%s17 + $0x1060] sm:$0xff]
    %v1931 = vld [vmem:[%s17 + $0x1068] sm:$0xff]
    %v1932 = vld [vmem:[%s17 + $0x1070] sm:$0xff]
    %v1933 = vld [vmem:[%s17 + $0x1078] sm:$0xff]
    %v1934 = vld [vmem:[%s17 + $0x1080] sm:$0xff]
    %v1935 = vld [vmem:[%s17 + $0x1088] sm:$0xff]
    %v1936 = vld [vmem:[%s17 + $0x1090] sm:$0xff]
    %v1937 = vld [vmem:[%s17 + $0x1098] sm:$0xff]
    %v1938 = vld [vmem:[%s17 + $0x10a0] sm:$0xff]
    %v1939 = vld [vmem:[%s17 + $0x10a8] sm:$0xff]
    %v1940 = vld [vmem:[%s17 + $0x10b0] sm:$0xff]
    %v1941 = vld [vmem:[%s17 + $0x10b8] sm:$0xff]
    %v1942 = vld [vmem:[%s17 + $0x10c0] sm:$0xff]
    %v1943 = vld [vmem:[%s17 + $0x10c8] sm:$0xff]
    %v1944 = vld [vmem:[%s17 + $0x10d0] sm:$0xff]
    %v1945 = vld [vmem:[%s17 + $0x10d8] sm:$0xff]
    %v1946 = vld [vmem:[%s17 + $0x10e0] sm:$0xff]
    %v1947 = vld [vmem:[%s17 + $0x10e8] sm:$0xff]
    %v1948 = vld [vmem:[%s17 + $0x10f0] sm:$0xff]
    %v1949 = vld [vmem:[%s17 + $0x10f8] sm:$0xff]
    %v1950 = vld [vmem:[%s17 + $0x1100] sm:$0xff]
    %v1951 = vld [vmem:[%s17 + $0x1108] sm:$0xff]
    %v1952 = vld [vmem:[%s17 + $0x1110] sm:$0xff]
    %v1953 = vld [vmem:[%s17 + $0x1118] sm:$0xff]
    %v1954 = vld [vmem:[%s17 + $0x1120] sm:$0xff]
    %v1955 = vld [vmem:[%s17 + $0x1128] sm:$0xff]
    %v1956 = vld [vmem:[%s17 + $0x1130] sm:$0xff]
    %v1957 = vld [vmem:[%s17 + $0x1138] sm:$0xff]
    %v1958 = vld [vmem:[%s17 + $0x1140] sm:$0xff]
    %v1959 = vld [vmem:[%s17 + $0x1148] sm:$0xff]
    %v1960 = vld [vmem:[%s17 + $0x1150] sm:$0xff]
    %v1961 = vld [vmem:[%s17 + $0x1158] sm:$0xff]
    %v1962 = vld [vmem:[%s17 + $0x1160] sm:$0xff]
    %v1963 = vld [vmem:[%s17 + $0x1168] sm:$0xff]
    %v1964 = vld [vmem:[%s17 + $0x1170] sm:$0xff]
    %v1965 = vld [vmem:[%s17 + $0x1178] sm:$0xff]
    %v1966 = vld [vmem:[%s17 + $0x1180] sm:$0xff]
    %v1967 = vld [vmem:[%s17 + $0x1188] sm:$0xff]
    %v1968 = vld [vmem:[%s17 + $0x1190] sm:$0xff]
    %v1969 = vld [vmem:[%s17 + $0x1198] sm:$0xff]
    %v1970 = vld [vmem:[%s17 + $0x11a0] sm:$0xff]
    %v1971 = vld [vmem:[%s17 + $0x11a8] sm:$0xff]
    %v1972 = vld [vmem:[%s17 + $0x11b0] sm:$0xff]
    %v1973 = vld [vmem:[%s17 + $0x11b8] sm:$0xff]
    %v1974 = vld [vmem:[%s17 + $0x11c0] sm:$0xff]
    %v1975 = vld [vmem:[%s17 + $0x11c8] sm:$0xff]
    %v1976 = vld [vmem:[%s17 + $0x11d0] sm:$0xff]
    %v1977 = vld [vmem:[%s17 + $0x11d8] sm:$0xff]
    %v1978 = vld [vmem:[%s17 + $0x11e0] sm:$0xff]
    %v1979 = vld [vmem:[%s17 + $0x11e8] sm:$0xff]
    %v1980 = vld [vmem:[%s17 + $0x11f0] sm:$0xff]
    %v1981 = vld [vmem:[%s17 + $0x11f8] sm:$0xff]
    %v1982 = vld [vmem:[%s17 + $0x1200] sm:$0xff]
    %v1983 = vld [vmem:[%s17 + $0x1208] sm:$0xff]
    %v1984 = vld [vmem:[%s17 + $0x1210] sm:$0xff]
    %v1985 = vld [vmem:[%s17 + $0x1218] sm:$0xff]
    %v1986 = vld [vmem:[%s17 + $0x1220] sm:$0xff]
    %v1987 = vld [vmem:[%s17 + $0x1228] sm:$0xff]
    %v1988 = vld [vmem:[%s17 + $0x1230] sm:$0xff]
    %v1989 = vld [vmem:[%s17 + $0x1238] sm:$0xff]
    %v1990 = vld [vmem:[%s17 + $0x1240] sm:$0xff]
    %v1991 = vld [vmem:[%s17 + $0x1248] sm:$0xff]
    %v1992 = vld [vmem:[%s17 + $0x1250] sm:$0xff]
    %v1993 = vld [vmem:[%s17 + $0x1258] sm:$0xff]
    %v1994 = vld [vmem:[%s17 + $0x1260] sm:$0xff]
    %v1995 = vld [vmem:[%s17 + $0x1268] sm:$0xff]
    %v1996 = vld [vmem:[%s17 + $0x1270] sm:$0xff]
    %v1997 = vld [vmem:[%s17 + $0x1278] sm:$0xff]
    %v1998 = vld [vmem:[%s17 + $0x1280] sm:$0xff]
    %v1999 = vld [vmem:[%s17 + $0x1288] sm:$0xff]
    %v2000 = vld [vmem:[%s17 + $0x1290] sm:$0xff]
    %v2001 = vld [vmem:[%s17 + $0x1298] sm:$0xff]
    %v2002 = vld [vmem:[%s17 + $0x12a0] sm:$0xff]
    %v2003 = vld [vmem:[%s17 + $0x12a8] sm:$0xff]
    %v2004 = vld [vmem:[%s17 + $0x12b0] sm:$0xff]
    %v2005 = vld [vmem:[%s17 + $0x12b8] sm:$0xff]
    %v2006 = vld [vmem:[%s17 + $0x12c0] sm:$0xff]
    %v2007 = vld [vmem:[%s17 + $0x12c8] sm:$0xff]
    %v2008 = vld [vmem:[%s17 + $0x12d0] sm:$0xff]
    %v2009 = vld [vmem:[%s17 + $0x12d8] sm:$0xff]
    %v2010 = vld [vmem:[%s17 + $0x12e0] sm:$0xff]
    %v2011 = vld [vmem:[%s17 + $0x12e8] sm:$0xff]
    %v2012 = vld [vmem:[%s17 + $0x12f0] sm:$0xff]
    %v2013 = vld [vmem:[%s17 + $0x12f8] sm:$0xff]
    %v2014 = vld [vmem:[%s17 + $0x1300] sm:$0xff]
    %v2015 = vld [vmem:[%s17 + $0x1308] sm:$0xff]
    %v2016 = vld [vmem:[%s17 + $0x1310] sm:$0xff]
    %v2017 = vld [vmem:[%s17 + $0x1318] sm:$0xff]
    %v2018 = vld [vmem:[%s17 + $0x1320] sm:$0xff]
    %v2019 = vld [vmem:[%s17 + $0x1328] sm:$0xff]
    %v2020 = vld [vmem:[%s17 + $0x1330] sm:$0xff]
    %v2021 = vld [vmem:[%s17 + $0x1338] sm:$0xff]
    %v2022 = vld [vmem:[%s17 + $0x1340] sm:$0xff]
    %v2023 = vld [vmem:[%s17 + $0x1348] sm:$0xff]
    %v2024 = vld [vmem:[%s17 + $0x1350] sm:$0xff]
    %v2025 = vld [vmem:[%s17 + $0x1358] sm:$0xff]
    %v2026 = vld [vmem:[%s17 + $0x1360] sm:$0xff]
    %v2027 = vld [vmem:[%s17 + $0x1368] sm:$0xff]
    %v2028 = vld [vmem:[%s17 + $0x1370] sm:$0xff]
    %v2029 = vld [vmem:[%s17 + $0x1378] sm:$0xff]
    %v2030 = vld [vmem:[%s17 + $0x1380] sm:$0xff]
    %v2031 = vld [vmem:[%s17 + $0x1388] sm:$0xff]
    %v2032 = vld [vmem:[%s17 + $0x1390] sm:$0xff]
    %v2033 = vld [vmem:[%s17 + $0x1398] sm:$0xff]
    %v2034 = vld [vmem:[%s17 + $0x13a0] sm:$0xff]
    %v2035 = vld [vmem:[%s17 + $0x13a8] sm:$0xff]
    %v2036 = vld [vmem:[%s17 + $0x13b0] sm:$0xff]
    %v2037 = vld [vmem:[%s17 + $0x13b8] sm:$0xff]
    %v2038 = vld [vmem:[%s17 + $0x13c0] sm:$0xff]
    %v2039 = vld [vmem:[%s17 + $0x13c8] sm:$0xff]
    %v2040 = vld [vmem:[%s17 + $0x13d0] sm:$0xff]
    %v2041 = vld [vmem:[%s17 + $0x13d8] sm:$0xff]
    %v2042 = vld [vmem:[%s17 + $0x13e0] sm:$0xff]
    %v2043 = vld [vmem:[%s17 + $0x13e8] sm:$0xff]
    %v2044 = vld [vmem:[%s17 + $0x13f0] sm:$0xff]
    %v2045 = vld [vmem:[%s17 + $0x13f8] sm:$0xff]
    %v2046 = vld [vmem:[%s17 + $0x1400] sm:$0xff]
    %v2047 = vld [vmem:[%s17 + $0x1408] sm:$0xff]
    %v2048 = vld [vmem:[%s17 + $0x1410] sm:$0xff]
    %v2049 = vld [vmem:[%s17 + $0x1418] sm:$0xff]
    %v2050 = vld [vmem:[%s17 + $0x1420] sm:$0xff]
    %v2051 = vld [vmem:[%s17 + $0x1428] sm:$0xff]
    %v2052 = vld [vmem:[%s17 + $0x1430] sm:$0xff]
    %v2053 = vld [vmem:[%s17 + $0x1438] sm:$0xff]
    %v2054 = vld [vmem:[%s17 + $0x1440] sm:$0xff]
    %v2055 = vld [vmem:[%s17 + $0x1448] sm:$0xff]
    %v2056 = vld [vmem:[%s17 + $0x1450] sm:$0xff]
    %v2057 = vld [vmem:[%s17 + $0x1458] sm:$0xff]
    %v2058 = vld [vmem:[%s17 + $0x1460] sm:$0xff]
    %v2059 = vld [vmem:[%s17 + $0x1468] sm:$0xff]
    %v2060 = vld [vmem:[%s17 + $0x1470] sm:$0xff]
    %v2061 = vld [vmem:[%s17 + $0x1478] sm:$0xff]
    %v2062 = vld [vmem:[%s17 + $0x1480] sm:$0xff]
    %v2063 = vld [vmem:[%s17 + $0x1488] sm:$0xff]
    %v2064 = vld [vmem:[%s17 + $0x1490] sm:$0xff]
    %v2065 = vld [vmem:[%s17 + $0x1498] sm:$0xff]
    %v2066 = vld [vmem:[%s17 + $0x14a0] sm:$0xff]
    %v2067 = vld [vmem:[%s17 + $0x14a8] sm:$0xff]
    %v2068 = vld [vmem:[%s17 + $0x14b0] sm:$0xff]
    %v2069 = vld [vmem:[%s17 + $0x14b8] sm:$0xff]
    %v2070 = vld [vmem:[%s17 + $0x14c0] sm:$0xff]
    %v2071 = vld [vmem:[%s17 + $0x14c8] sm:$0xff]
    %v2072 = vld [vmem:[%s17 + $0x14d0] sm:$0xff]
    %v2073 = vld [vmem:[%s17 + $0x14d8] sm:$0xff]
    %v2074 = vld [vmem:[%s17 + $0x14e0] sm:$0xff]
    %v2075 = vld [vmem:[%s17 + $0x14e8] sm:$0xff]
    %v2076 = vld [vmem:[%s17 + $0x14f0] sm:$0xff]
    %v2077 = vld [vmem:[%s17 + $0x14f8] sm:$0xff]
    %v2078 = vld [vmem:[%s17 + $0x1500] sm:$0xff]
    %v2079 = vld [vmem:[%s17 + $0x1508] sm:$0xff]
    %v2080 = vld [vmem:[%s17 + $0x1510] sm:$0xff]
    %v2081 = vld [vmem:[%s17 + $0x1518] sm:$0xff]
    %v2082 = vld [vmem:[%s17 + $0x1520] sm:$0xff]
    %v2083 = vld [vmem:[%s17 + $0x1528] sm:$0xff]
    %v2084 = vld [vmem:[%s17 + $0x1530] sm:$0xff]
    %v2085 = vld [vmem:[%s17 + $0x1538] sm:$0xff]
    %v2086 = vld [vmem:[%s17 + $0x1540] sm:$0xff]
    %v2087 = vld [vmem:[%s17 + $0x1548] sm:$0xff]
    %v2088 = vld [vmem:[%s17 + $0x1550] sm:$0xff]
    %v2089 = vld [vmem:[%s17 + $0x1558] sm:$0xff]
    %v2090 = vld [vmem:[%s17 + $0x1560] sm:$0xff]
    %v2091 = vld [vmem:[%s17 + $0x1568] sm:$0xff]
    %v2092 = vld [vmem:[%s17 + $0x1570] sm:$0xff]
    %v2093 = vld [vmem:[%s17 + $0x1578] sm:$0xff]
    %v2094 = vld [vmem:[%s17 + $0x1580] sm:$0xff]
    %v2095 = vld [vmem:[%s17 + $0x1588] sm:$0xff]
    %v2096 = vld [vmem:[%s17 + $0x1590] sm:$0xff]
    %v2097 = vld [vmem:[%s17 + $0x1598] sm:$0xff]
    %v2098 = vld [vmem:[%s17 + $0x15a0] sm:$0xff]
    %v2099 = vld [vmem:[%s17 + $0x15a8] sm:$0xff]
    %v2100 = vld [vmem:[%s17 + $0x15b0] sm:$0xff]
    %v2101 = vld [vmem:[%s17 + $0x15b8] sm:$0xff]
    %v2102 = vld [vmem:[%s17 + $0x15c0] sm:$0xff]
    %v2103 = vld [vmem:[%s17 + $0x15c8] sm:$0xff]
    %v2104 = vld [vmem:[%s17 + $0x15d0] sm:$0xff]
    %v2105 = vld [vmem:[%s17 + $0x15d8] sm:$0xff]
    %v2106 = vld [vmem:[%s17 + $0x15e0] sm:$0xff]
    %v2107 = vld [vmem:[%s17 + $0x15e8] sm:$0xff]
    %v2108 = vld [vmem:[%s17 + $0x15f0] sm:$0xff]
    %v2109 = vld [vmem:[%s17 + $0x15f8] sm:$0xff]
    %v2110 = vld [vmem:[%s17 + $0x1600] sm:$0xff]
    %v2111 = vld [vmem:[%s17 + $0x1608] sm:$0xff]
    %v2112 = vld [vmem:[%s17 + $0x1610] sm:$0xff]
    %v2113 = vld [vmem:[%s17 + $0x1618] sm:$0xff]
    %v2114 = vld [vmem:[%s17 + $0x1620] sm:$0xff]
    %v2115 = vld [vmem:[%s17 + $0x1628] sm:$0xff]
    %v2116 = vld [vmem:[%s17 + $0x1630] sm:$0xff]
    %v2117 = vld [vmem:[%s17 + $0x1638] sm:$0xff]
    %v2118 = vld [vmem:[%s17 + $0x1640] sm:$0xff]
    %v2119 = vld [vmem:[%s17 + $0x1648] sm:$0xff]
    %v2120 = vld [vmem:[%s17 + $0x1650] sm:$0xff]
    %v2121 = vld [vmem:[%s17 + $0x1658] sm:$0xff]
    %v2122 = vld [vmem:[%s17 + $0x1660] sm:$0xff]
    %v2123 = vld [vmem:[%s17 + $0x1668] sm:$0xff]
    %v2124 = vld [vmem:[%s17 + $0x1670] sm:$0xff]
    %v2125 = vld [vmem:[%s17 + $0x1678] sm:$0xff]
    %v2126 = vld [vmem:[%s17 + $0x1680] sm:$0xff]
    %v2127 = vld [vmem:[%s17 + $0x1688] sm:$0xff]
    %v2128 = vld [vmem:[%s17 + $0x1690] sm:$0xff]
    %v2129 = vld [vmem:[%s17 + $0x1698] sm:$0xff]
    %v2130 = vld [vmem:[%s17 + $0x16a0] sm:$0xff]
    %v2131 = vld [vmem:[%s17 + $0x16a8] sm:$0xff]
    %v2132 = vld [vmem:[%s17 + $0x16b0] sm:$0xff]
    %v2133 = vld [vmem:[%s17 + $0x16b8] sm:$0xff]
    %v2134 = vld [vmem:[%s17 + $0x16c0] sm:$0xff]
    %v2135 = vld [vmem:[%s17 + $0x16c8] sm:$0xff]
    %v2136 = vld [vmem:[%s17 + $0x16d0] sm:$0xff]
    %v2137 = vld [vmem:[%s17 + $0x16d8] sm:$0xff]
    %v2138 = vld [vmem:[%s17 + $0x16e0] sm:$0xff]
    %v2139 = vld [vmem:[%s17 + $0x16e8] sm:$0xff]
    %v2140 = vld [vmem:[%s17 + $0x16f0] sm:$0xff]
    %v2141 = vld [vmem:[%s17 + $0x16f8] sm:$0xff]
    %v2142 = vld [vmem:[%s17 + $0x1700] sm:$0xff]
    %v2143 = vld [vmem:[%s17 + $0x1708] sm:$0xff]
    %v2144 = vld [vmem:[%s17 + $0x1710] sm:$0xff]
    %v2145 = vld [vmem:[%s17 + $0x1718] sm:$0xff]
    %v2146 = vld [vmem:[%s17 + $0x1720] sm:$0xff]
    %v2147 = vld [vmem:[%s17 + $0x1728] sm:$0xff]
    %v2148 = vld [vmem:[%s17 + $0x1730] sm:$0xff]
    %v2149 = vld [vmem:[%s17 + $0x1738] sm:$0xff]
    %v2150 = vld [vmem:[%s17 + $0x1740] sm:$0xff]
    %v2151 = vld [vmem:[%s17 + $0x1748] sm:$0xff]
    %v2152 = vld [vmem:[%s17 + $0x1750] sm:$0xff]
    %v2153 = vld [vmem:[%s17 + $0x1758] sm:$0xff]
    %v2154 = vld [vmem:[%s17 + $0x1760] sm:$0xff]
    %v2155 = vld [vmem:[%s17 + $0x1768] sm:$0xff]
    %v2156 = vld [vmem:[%s17 + $0x1770] sm:$0xff]
    %v2157 = vld [vmem:[%s17 + $0x1778] sm:$0xff]
    %v2158 = vld [vmem:[%s17 + $0x1780] sm:$0xff]
    %v2159 = vld [vmem:[%s17 + $0x1788] sm:$0xff]
    %v2160 = vld [vmem:[%s17 + $0x1790] sm:$0xff]
    %v2161 = vld [vmem:[%s17 + $0x1798] sm:$0xff]
    %v2162 = vld [vmem:[%s17 + $0x17a0] sm:$0xff]
    %v2163 = vld [vmem:[%s17 + $0x17a8] sm:$0xff]
    %v2164 = vld [vmem:[%s17 + $0x17b0] sm:$0xff]
    %v2165 = vld [vmem:[%s17 + $0x17b8] sm:$0xff]
    %v2166 = vld [vmem:[%s17 + $0x17c0] sm:$0xff]
    %v2167 = vld [vmem:[%s17 + $0x17c8] sm:$0xff]
    %v2168 = vld [vmem:[%s17 + $0x17d0] sm:$0xff]
    %v2169 = vld [vmem:[%s17 + $0x17d8] sm:$0xff]
    %v2170 = vld [vmem:[%s17 + $0x17e0] sm:$0xff]
    %v2171 = vld [vmem:[%s17 + $0x17e8] sm:$0xff]
    %v2172 = vld [vmem:[%s17 + $0x17f0] sm:$0xff]
    %v2173 = vld [vmem:[%s17 + $0x17f8] sm:$0xff]
    %v2174 = vld [vmem:[%s17 + $0x1800] sm:$0xff]
    %v2175 = vld [vmem:[%s17 + $0x1808] sm:$0xff]
    %v2176 = vld [vmem:[%s17 + $0x1810] sm:$0xff]
    %v2177 = vld [vmem:[%s17 + $0x1818] sm:$0xff]
    %v2178 = vld [vmem:[%s17 + $0x1820] sm:$0xff]
    %v2179 = vld [vmem:[%s17 + $0x1828] sm:$0xff]
    %v2180 = vld [vmem:[%s17 + $0x1830] sm:$0xff]
    %v2181 = vld [vmem:[%s17 + $0x1838] sm:$0xff]
    %v2182 = vld [vmem:[%s17 + $0x1840] sm:$0xff]
    %v2183 = vld [vmem:[%s17 + $0x1848] sm:$0xff]
    %v2184 = vld [vmem:[%s17 + $0x1850] sm:$0xff]
    %v2185 = vld [vmem:[%s17 + $0x1858] sm:$0xff]
    %v2186 = vld [vmem:[%s17 + $0x1860] sm:$0xff]
    %v2187 = vld [vmem:[%s17 + $0x1868] sm:$0xff]
    %v2188 = vld [vmem:[%s17 + $0x1870] sm:$0xff]
    %v2189 = vld [vmem:[%s17 + $0x1878] sm:$0xff]
    %v2190 = vld [vmem:[%s17 + $0x1880] sm:$0xff]
    %v2191 = vld [vmem:[%s17 + $0x1888] sm:$0xff]
    %v2192 = vld [vmem:[%s17 + $0x1890] sm:$0xff]
    %v2193 = vld [vmem:[%s17 + $0x1898] sm:$0xff]
    %v2194 = vld [vmem:[%s17 + $0x18a0] sm:$0xff]
    %v2195 = vld [vmem:[%s17 + $0x18a8] sm:$0xff]
    %v2196 = vld [vmem:[%s17 + $0x18b0] sm:$0xff]
    %v2197 = vld [vmem:[%s17 + $0x18b8] sm:$0xff]
    %v2198 = vld [vmem:[%s17 + $0x18c0] sm:$0xff]
    %v2199 = vld [vmem:[%s17 + $0x18c8] sm:$0xff]
    %v2200 = vld [vmem:[%s17 + $0x18d0] sm:$0xff]
    %v2201 = vld [vmem:[%s17 + $0x18d8] sm:$0xff]
    %v2202 = vld [vmem:[%s17 + $0x18e0] sm:$0xff]
    %v2203 = vld [vmem:[%s17 + $0x18e8] sm:$0xff]
    %v2204 = vld [vmem:[%s17 + $0x18f0] sm:$0xff]
    %v2205 = vld [vmem:[%s17 + $0x18f8] sm:$0xff]
    %v2206 = vld [vmem:[%s17 + $0x1900] sm:$0xff]
    %v2207 = vld [vmem:[%s17 + $0x1908] sm:$0xff]
    %v2208 = vld [vmem:[%s17 + $0x1910] sm:$0xff]
    %v2209 = vld [vmem:[%s17 + $0x1918] sm:$0xff]
    %v2210 = vld [vmem:[%s17 + $0x1920] sm:$0xff]
    %v2211 = vld [vmem:[%s17 + $0x1928] sm:$0xff]
    %v2212 = vld [vmem:[%s17 + $0x1930] sm:$0xff]
    %v2213 = vld [vmem:[%s17 + $0x1938] sm:$0xff]
    %v2214 = vld [vmem:[%s17 + $0x1940] sm:$0xff]
    %v2215 = vld [vmem:[%s17 + $0x1948] sm:$0xff]
    %v2216 = vld [vmem:[%s17 + $0x1950] sm:$0xff]
    %v2217 = vld [vmem:[%s17 + $0x1958] sm:$0xff]
    %v2218 = vld [vmem:[%s17 + $0x1960] sm:$0xff]
    %v2219 = vld [vmem:[%s17 + $0x1968] sm:$0xff]
    %v2220 = vld [vmem:[%s17 + $0x1970] sm:$0xff]
    %v2221 = vld [vmem:[%s17 + $0x1978] sm:$0xff]
    %v2222 = vld [vmem:[%s17 + $0x1980] sm:$0xff]
    %v2223 = vld [vmem:[%s17 + $0x1988] sm:$0xff]
    %v2224 = vld [vmem:[%s17 + $0x1990] sm:$0xff]
    %v2225 = vld [vmem:[%s17 + $0x1998] sm:$0xff]
    %v2226 = vld [vmem:[%s17 + $0x19a0] sm:$0xff]
    %v2227 = vld [vmem:[%s17 + $0x19a8] sm:$0xff]
    %v2228 = vld [vmem:[%s17 + $0x19b0] sm:$0xff]
    %v2229 = vld [vmem:[%s17 + $0x19b8] sm:$0xff]
    %v2230 = vld [vmem:[%s17 + $0x19c0] sm:$0xff]
    %v2231 = vld [vmem:[%s17 + $0x19c8] sm:$0xff]
    %v2232 = vld [vmem:[%s17 + $0x19d0] sm:$0xff]
    %v2233 = vld [vmem:[%s17 + $0x19d8] sm:$0xff]
    %v2234 = vld [vmem:[%s17 + $0x19e0] sm:$0xff]
    %v2235 = vld [vmem:[%s17 + $0x19e8] sm:$0xff]
    %v2236 = vld [vmem:[%s17 + $0x19f0] sm:$0xff]
    %v2237 = vld [vmem:[%s17 + $0x19f8] sm:$0xff]
    %v2238 = vld [vmem:[%s17 + $0x1a00] sm:$0xff]
    %v2239 = vld [vmem:[%s17 + $0x1a08] sm:$0xff]
    %v2240 = vld [vmem:[%s17 + $0x1a10] sm:$0xff]
    %v2241 = vld [vmem:[%s17 + $0x1a18] sm:$0xff]
    %v2242 = vld [vmem:[%s17 + $0x1a20] sm:$0xff]
    %v2243 = vld [vmem:[%s17 + $0x1a28] sm:$0xff]
    %v2244 = vld [vmem:[%s17 + $0x1a30] sm:$0xff]
    %v2245 = vld [vmem:[%s17 + $0x1a38] sm:$0xff]
    %v2246 = vld [vmem:[%s17 + $0x1a40] sm:$0xff]
    %v2247 = vld [vmem:[%s17 + $0x1a48] sm:$0xff]
    %v2248 = vld [vmem:[%s17 + $0x1a50] sm:$0xff]
    %v2249 = vld [vmem:[%s17 + $0x1a58] sm:$0xff]
    %v2250 = vld [vmem:[%s17 + $0x1a60] sm:$0xff]
    %v2251 = vld [vmem:[%s17 + $0x1a68] sm:$0xff]
    %v2252 = vld [vmem:[%s17 + $0x1a70] sm:$0xff]
    %v2253 = vld [vmem:[%s17 + $0x1a78] sm:$0xff]
    %v2254 = vld [vmem:[%s17 + $0x1a80] sm:$0xff]
    %v2255 = vld [vmem:[%s17 + $0x1a88] sm:$0xff]
    %v2256 = vld [vmem:[%s17 + $0x1a90] sm:$0xff]
    %v2257 = vld [vmem:[%s17 + $0x1a98] sm:$0xff]
    %v2258 = vld [vmem:[%s17 + $0x1aa0] sm:$0xff]
    %v2259 = vld [vmem:[%s17 + $0x1aa8] sm:$0xff]
    %v2260 = vld [vmem:[%s17 + $0x1ab0] sm:$0xff]
    %v2261 = vld [vmem:[%s17 + $0x1ab8] sm:$0xff]
    %v2262 = vld [vmem:[%s17 + $0x1ac0] sm:$0xff]
    %v2263 = vld [vmem:[%s17 + $0x1ac8] sm:$0xff]
    %v2264 = vld [vmem:[%s17 + $0x1ad0] sm:$0xff]
    %v2265 = vld [vmem:[%s17 + $0x1ad8] sm:$0xff]
    %v2266 = vld [vmem:[%s17 + $0x1ae0] sm:$0xff]
    %v2267 = vld [vmem:[%s17 + $0x1ae8] sm:$0xff]
    %v2268 = vld [vmem:[%s17 + $0x1af0] sm:$0xff]
    %v2269 = vld [vmem:[%s17 + $0x1af8] sm:$0xff]
    %v2270 = vld [vmem:[%s17 + $0x1b00] sm:$0xff]
    %v2271 = vld [vmem:[%s17 + $0x1b08] sm:$0xff]
    %v2272 = vld [vmem:[%s17 + $0x1b10] sm:$0xff]
    %v2273 = vld [vmem:[%s17 + $0x1b18] sm:$0xff]
    %v2274 = vld [vmem:[%s17 + $0x1b20] sm:$0xff]
    %v2275 = vld [vmem:[%s17 + $0x1b28] sm:$0xff]
    %v2276 = vld [vmem:[%s17 + $0x1b30] sm:$0xff]
    %v2277 = vld [vmem:[%s17 + $0x1b38] sm:$0xff]
    %v2278 = vld [vmem:[%s17 + $0x1b40] sm:$0xff]
    %v2279 = vld [vmem:[%s17 + $0x1b48] sm:$0xff]
    %v2280 = vld [vmem:[%s17 + $0x1b50] sm:$0xff]
    %v2281 = vld [vmem:[%s17 + $0x1b58] sm:$0xff]
    %v2282 = vld [vmem:[%s17 + $0x1b60] sm:$0xff]
    %v2283 = vld [vmem:[%s17 + $0x1b68] sm:$0xff]
    %v2284 = vld [vmem:[%s17 + $0x1b70] sm:$0xff]
    %v2285 = vld [vmem:[%s17 + $0x1b78] sm:$0xff]
    %v2286 = vld [vmem:[%s17 + $0x1b80] sm:$0xff]
    %v2287 = vld [vmem:[%s17 + $0x1b88] sm:$0xff]
    %v2288 = vld [vmem:[%s17 + $0x1b90] sm:$0xff]
    %v2289 = vld [vmem:[%s17 + $0x1b98] sm:$0xff]
    %v2290 = vld [vmem:[%s17 + $0x1ba0] sm:$0xff]
    %v2291 = vld [vmem:[%s17 + $0x1ba8] sm:$0xff]
    %v2292 = vld [vmem:[%s17 + $0x1bb0] sm:$0xff]
    %v2293 = vld [vmem:[%s17 + $0x1bb8] sm:$0xff]
    %v2294 = vld [vmem:[%s17 + $0x1bc0] sm:$0xff]
    %v2295 = vld [vmem:[%s17 + $0x1bc8] sm:$0xff]
    %v2296 = vld [vmem:[%s17 + $0x1bd0] sm:$0xff]
    %v2297 = vld [vmem:[%s17 + $0x1bd8] sm:$0xff]
    %v2298 = vld [vmem:[%s17 + $0x1be0] sm:$0xff]
    %v2299 = vld [vmem:[%s17 + $0x1be8] sm:$0xff]
    %v2300 = vld [vmem:[%s17 + $0x1bf0] sm:$0xff]
    %v2301 = vld [vmem:[%s17 + $0x1bf8] sm:$0xff]
    %v2302 = vld [vmem:[%s17 + $0x1c00] sm:$0xff]
    %v2303 = vld [vmem:[%s17 + $0x1c08] sm:$0xff]
    %v2304 = vld [vmem:[%s17 + $0x1c10] sm:$0xff]
    %v2305 = vld [vmem:[%s17 + $0x1c18] sm:$0xff]
    %v2306 = vld [vmem:[%s17 + $0x1c20] sm:$0xff]
    %v2307 = vld [vmem:[%s17 + $0x1c28] sm:$0xff]
    %v2308 = vld [vmem:[%s17 + $0x1c30] sm:$0xff]
    %v2309 = vld [vmem:[%s17 + $0x1c38] sm:$0xff]
    %v2310 = vld [vmem:[%s17 + $0x1c40] sm:$0xff]
    %v2311 = vld [vmem:[%s17 + $0x1c48] sm:$0xff]
    %v2312 = vld [vmem:[%s17 + $0x1c50] sm:$0xff]
    %v2313 = vld [vmem:[%s17 + $0x1c58] sm:$0xff]
    %v2314 = vld [vmem:[%s17 + $0x1c60] sm:$0xff]
    %v2315 = vld [vmem:[%s17 + $0x1c68] sm:$0xff]
    %v2316 = vld [vmem:[%s17 + $0x1c70] sm:$0xff]
    %v2317 = vld [vmem:[%s17 + $0x1c78] sm:$0xff]
    %v2318 = vld [vmem:[%s17 + $0x1c80] sm:$0xff]
    %v2319 = vld [vmem:[%s17 + $0x1c88] sm:$0xff]
    %v2320 = vld [vmem:[%s17 + $0x1c90] sm:$0xff]
    %v2321 = vld [vmem:[%s17 + $0x1c98] sm:$0xff]
    %v2322 = vld [vmem:[%s17 + $0x1ca0] sm:$0xff]
    %v2323 = vld [vmem:[%s17 + $0x1ca8] sm:$0xff]
    %v2324 = vld [vmem:[%s17 + $0x1cb0] sm:$0xff]
    %v2325 = vld [vmem:[%s17 + $0x1cb8] sm:$0xff]
    %v2326 = vld [vmem:[%s17 + $0x1cc0] sm:$0xff]
    %v2327 = vld [vmem:[%s17 + $0x1cc8] sm:$0xff]
    %v2328 = vld [vmem:[%s17 + $0x1cd0] sm:$0xff]
    %v2329 = vld [vmem:[%s17 + $0x1cd8] sm:$0xff]
    %v2330 = vld [vmem:[%s17 + $0x1ce0] sm:$0xff]
    %v2331 = vld [vmem:[%s17 + $0x1ce8] sm:$0xff]
    %v2332 = vld [vmem:[%s17 + $0x1cf0] sm:$0xff]
    %v2333 = vld [vmem:[%s17 + $0x1cf8] sm:$0xff]
    %v2334 = vld [vmem:[%s17 + $0x1d00] sm:$0xff]
    %v2335 = vld [vmem:[%s17 + $0x1d08] sm:$0xff]
    %v2336 = vld [vmem:[%s17 + $0x1d10] sm:$0xff]
    %v2337 = vld [vmem:[%s17 + $0x1d18] sm:$0xff]
    %v2338 = vld [vmem:[%s17 + $0x1d20] sm:$0xff]
    %v2339 = vld [vmem:[%s17 + $0x1d28] sm:$0xff]
    %v2340 = vld [vmem:[%s17 + $0x1d30] sm:$0xff]
    %v2341 = vld [vmem:[%s17 + $0x1d38] sm:$0xff]
    %v2342 = vld [vmem:[%s17 + $0x1d40] sm:$0xff]
    %v2343 = vld [vmem:[%s17 + $0x1d48] sm:$0xff]
    %v2344 = vld [vmem:[%s17 + $0x1d50] sm:$0xff]
    %v2345 = vld [vmem:[%s17 + $0x1d58] sm:$0xff]
    %v2346 = vld [vmem:[%s17 + $0x1d60] sm:$0xff]
    %v2347 = vld [vmem:[%s17 + $0x1d68] sm:$0xff]
    %v2348 = vld [vmem:[%s17 + $0x1d70] sm:$0xff]
    %v2349 = vld [vmem:[%s17 + $0x1d78] sm:$0xff]
    %v2350 = vld [vmem:[%s17 + $0x1d80] sm:$0xff]
    %v2351 = vld [vmem:[%s17 + $0x1d88] sm:$0xff]
    %v2352 = vld [vmem:[%s17 + $0x1d90] sm:$0xff]
    %v2353 = vld [vmem:[%s17 + $0x1d98] sm:$0xff]
    %v2354 = vld [vmem:[%s17 + $0x1da0] sm:$0xff]
    %v2355 = vld [vmem:[%s17 + $0x1da8] sm:$0xff]
    %v2356 = vld [vmem:[%s17 + $0x1db0] sm:$0xff]
    %v2357 = vld [vmem:[%s17 + $0x1db8] sm:$0xff]
    %v2358 = vld [vmem:[%s17 + $0x1dc0] sm:$0xff]
    %v2359 = vld [vmem:[%s17 + $0x1dc8] sm:$0xff]
    %v2360 = vld [vmem:[%s17 + $0x1dd0] sm:$0xff]
    %v2361 = vld [vmem:[%s17 + $0x1dd8] sm:$0xff]
    %v2362 = vld [vmem:[%s17 + $0x1de0] sm:$0xff]
    %v2363 = vld [vmem:[%s17 + $0x1de8] sm:$0xff]
    %v2364 = vld [vmem:[%s17 + $0x1df0] sm:$0xff]
    %v2365 = vld [vmem:[%s17 + $0x1df8] sm:$0xff]
    %v2366 = vld [vmem:[%s17 + $0x1e00] sm:$0xff]
    %v2367 = vld [vmem:[%s17 + $0x1e08] sm:$0xff]
    %v2368 = vld [vmem:[%s17 + $0x1e10] sm:$0xff]
    %v2369 = vld [vmem:[%s17 + $0x1e18] sm:$0xff]
    %v2370 = vld [vmem:[%s17 + $0x1e20] sm:$0xff]
    %v2371 = vld [vmem:[%s17 + $0x1e28] sm:$0xff]
    %v2372 = vld [vmem:[%s17 + $0x1e30] sm:$0xff]
    %v2373 = vld [vmem:[%s17 + $0x1e38] sm:$0xff]
    %v2374 = vld [vmem:[%s17 + $0x1e40] sm:$0xff]
    %v2375 = vld [vmem:[%s17 + $0x1e48] sm:$0xff]
    %v2376 = vld [vmem:[%s17 + $0x1e50] sm:$0xff]
    %v2377 = vld [vmem:[%s17 + $0x1e58] sm:$0xff]
    %v2378 = vld [vmem:[%s17 + $0x1e60] sm:$0xff]
    %v2379 = vld [vmem:[%s17 + $0x1e68] sm:$0xff]
    %v2380 = vld [vmem:[%s17 + $0x1e70] sm:$0xff]
    %v2381 = vld [vmem:[%s17 + $0x1e78] sm:$0xff]
    %v2382 = vld [vmem:[%s17 + $0x1e80] sm:$0xff]
    %v2383 = vld [vmem:[%s17 + $0x1e88] sm:$0xff]
    %v2384 = vld [vmem:[%s17 + $0x1e90] sm:$0xff]
    %v2385 = vld [vmem:[%s17 + $0x1e98] sm:$0xff]
    %v2386 = vld [vmem:[%s17 + $0x1ea0] sm:$0xff]
    %v2387 = vld [vmem:[%s17 + $0x1ea8] sm:$0xff]
    %v2388 = vld [vmem:[%s17 + $0x1eb0] sm:$0xff]
    %v2389 = vld [vmem:[%s17 + $0x1eb8] sm:$0xff]
    %v2390 = vld [vmem:[%s17 + $0x1ec0] sm:$0xff]
    %v2391 = vld [vmem:[%s17 + $0x1ec8] sm:$0xff]
    %v2392 = vld [vmem:[%s17 + $0x1ed0] sm:$0xff]
    %v2393 = vld [vmem:[%s17 + $0x1ed8] sm:$0xff]
    %v2394 = vld [vmem:[%s17 + $0x1ee0] sm:$0xff]
    %v2395 = vld [vmem:[%s17 + $0x1ee8] sm:$0xff]
    %v2396 = vld [vmem:[%s17 + $0x1ef0] sm:$0xff]
    %v2397 = vld [vmem:[%s17 + $0x1ef8] sm:$0xff]
    %v2398 = vld [vmem:[%s17 + $0x1f00] sm:$0xff]
    %v2399 = vld [vmem:[%s17 + $0x1f08] sm:$0xff]
    %v2400 = vld [vmem:[%s17 + $0x1f10] sm:$0xff]
    %v2401 = vld [vmem:[%s17 + $0x1f18] sm:$0xff]
    %v2402 = vld [vmem:[%s17 + $0x1f20] sm:$0xff]
    %v2403 = vld [vmem:[%s17 + $0x1f28] sm:$0xff]
    %v2404 = vld [vmem:[%s17 + $0x1f30] sm:$0xff]
    %v2405 = vld [vmem:[%s17 + $0x1f38] sm:$0xff]
    %v2406 = vld [vmem:[%s17 + $0x1f40] sm:$0xff]
    %v2407 = vld [vmem:[%s17 + $0x1f48] sm:$0xff]
    %v2408 = vld [vmem:[%s17 + $0x1f50] sm:$0xff]
    %v2409 = vld [vmem:[%s17 + $0x1f58] sm:$0xff]
    %v2410 = vld [vmem:[%s17 + $0x1f60] sm:$0xff]
    %v2411 = vld [vmem:[%s17 + $0x1f68] sm:$0xff]
    %v2412 = vld [vmem:[%s17 + $0x1f70] sm:$0xff]
    %v2413 = vld [vmem:[%s17 + $0x1f78] sm:$0xff]
    %v2414 = vld [vmem:[%s17 + $0x1f80] sm:$0xff]
    %v2415 = vld [vmem:[%s17 + $0x1f88] sm:$0xff]
    %v2416 = vld [vmem:[%s17 + $0x1f90] sm:$0xff]
    %v2417 = vld [vmem:[%s17 + $0x1f98] sm:$0xff]
    %v2418 = vld [vmem:[%s17 + $0x1fa0] sm:$0xff]
    %v2419 = vld [vmem:[%s17 + $0x1fa8] sm:$0xff]
    %v2420 = vld [vmem:[%s17 + $0x1fb0] sm:$0xff]
    %v2421 = vld [vmem:[%s17 + $0x1fb8] sm:$0xff]
    %v2422 = vld [vmem:[%s17 + $0x1fc0] sm:$0xff]
    %v2423 = vld [vmem:[%s17 + $0x1fc8] sm:$0xff]
    %v2424 = vld [vmem:[%s17 + $0x1fd0] sm:$0xff]
    %v2425 = vld [vmem:[%s17 + $0x1fd8] sm:$0xff]
    %v2426 = vld [vmem:[%s17 + $0x1fe0] sm:$0xff]
    %v2427 = vld [vmem:[%s17 + $0x1fe8] sm:$0xff]
    %v2428 = vld [vmem:[%s17 + $0x1ff0] sm:$0xff]
    %v2429 = vld [vmem:[%s17 + $0x1ff8] sm:$0xff]
    %v2430 = vld [vmem:[%s17 + $0x2000] sm:$0xff]
    %v2431 = vld [vmem:[%s17 + $0x2008] sm:$0xff]
    %v2432 = vld [vmem:[%s17 + $0x2010] sm:$0xff]
    %v2433 = vld [vmem:[%s17 + $0x2018] sm:$0xff]
    %v2434 = vld [vmem:[%s17 + $0x2020] sm:$0xff]
    %v2435 = vld [vmem:[%s17 + $0x2028] sm:$0xff]
    %v2436 = vld [vmem:[%s17 + $0x2030] sm:$0xff]
    %v2437 = vld [vmem:[%s17 + $0x2038] sm:$0xff]
    %v2438 = vld [vmem:[%s17 + $0x2040] sm:$0xff]
    %v2439 = vld [vmem:[%s17 + $0x2048] sm:$0xff]
    %v2440 = vld [vmem:[%s17 + $0x2050] sm:$0xff]
    %v2441 = vld [vmem:[%s17 + $0x2058] sm:$0xff]
    %v2442 = vld [vmem:[%s17 + $0x2060] sm:$0xff]
    %v2443 = vld [vmem:[%s17 + $0x2068] sm:$0xff]
    %v2444 = vld [vmem:[%s17 + $0x2070] sm:$0xff]
    %v2445 = vld [vmem:[%s17 + $0x2078] sm:$0xff]
    %v2446 = vld [vmem:[%s17 + $0x2080] sm:$0xff]
    %v2447 = vld [vmem:[%s17 + $0x2088] sm:$0xff]
    %v2448 = vld [vmem:[%s17 + $0x2090] sm:$0xff]
    %v2449 = vld [vmem:[%s17 + $0x2098] sm:$0xff]
    %v2450 = vld [vmem:[%s17 + $0x20a0] sm:$0xff]
    %v2451 = vld [vmem:[%s17 + $0x20a8] sm:$0xff]
    %v2452 = vld [vmem:[%s17 + $0x20b0] sm:$0xff]
    %v2453 = vld [vmem:[%s17 + $0x20b8] sm:$0xff]
    %v2454 = vld [vmem:[%s17 + $0x20c0] sm:$0xff]
    %v2455 = vld [vmem:[%s17 + $0x20c8] sm:$0xff]
    %v2456 = vld [vmem:[%s17 + $0x20d0] sm:$0xff]
    %v2457 = vld [vmem:[%s17 + $0x20d8] sm:$0xff]
    %v2458 = vld [vmem:[%s17 + $0x20e0] sm:$0xff]
    %v2459 = vld [vmem:[%s17 + $0x20e8] sm:$0xff]
    %v2460 = vld [vmem:[%s17 + $0x20f0] sm:$0xff]
    %v2461 = vld [vmem:[%s17 + $0x20f8] sm:$0xff]
    %v2462 = vld [vmem:[%s17 + $0x2100] sm:$0xff]
    %v2463 = vld [vmem:[%s17 + $0x2108] sm:$0xff]
    %v2464 = vld [vmem:[%s17 + $0x2110] sm:$0xff]
    %v2465 = vld [vmem:[%s17 + $0x2118] sm:$0xff]
    %v2466 = vld [vmem:[%s17 + $0x2120] sm:$0xff]
    %v2467 = vld [vmem:[%s17 + $0x2128] sm:$0xff]
    %v2468 = vld [vmem:[%s17 + $0x2130] sm:$0xff]
    %v2469 = vld [vmem:[%s17 + $0x2138] sm:$0xff]
    %v2470 = vld [vmem:[%s17 + $0x2140] sm:$0xff]
    %v2471 = vld [vmem:[%s17 + $0x2148] sm:$0xff]
    %v2472 = vld [vmem:[%s17 + $0x2150] sm:$0xff]
    %v2473 = vld [vmem:[%s17 + $0x2158] sm:$0xff]
    %v2474 = vld [vmem:[%s17 + $0x2160] sm:$0xff]
    %v2475 = vld [vmem:[%s17 + $0x2168] sm:$0xff]
    %v2476 = vld [vmem:[%s17 + $0x2170] sm:$0xff]
    %v2477 = vld [vmem:[%s17 + $0x2178] sm:$0xff]
    %v2478 = vld [vmem:[%s17 + $0x2180] sm:$0xff]
    %v2479 = vld [vmem:[%s17 + $0x2188] sm:$0xff]
    %v2480 = vld [vmem:[%s17 + $0x2190] sm:$0xff]
    %v2481 = vld [vmem:[%s17 + $0x2198] sm:$0xff]
    %v2482 = vld [vmem:[%s17 + $0x21a0] sm:$0xff]
    %v2483 = vld [vmem:[%s17 + $0x21a8] sm:$0xff]
    %v2484 = vld [vmem:[%s17 + $0x21b0] sm:$0xff]
    %v2485 = vld [vmem:[%s17 + $0x21b8] sm:$0xff]
    %v2486 = vld [vmem:[%s17 + $0x21c0] sm:$0xff]
    %v2487 = vld [vmem:[%s17 + $0x21c8] sm:$0xff]
    %v2488 = vld [vmem:[%s17 + $0x21d0] sm:$0xff]
    %v2489 = vld [vmem:[%s17 + $0x21d8] sm:$0xff]
    %v2490 = vld [vmem:[%s17 + $0x21e0] sm:$0xff]
    %v2491 = vld [vmem:[%s17 + $0x21e8] sm:$0xff]
    %v2492 = vld [vmem:[%s17 + $0x21f0] sm:$0xff]
    %v2493 = vld [vmem:[%s17 + $0x21f8] sm:$0xff]
    %v2494 = vld [vmem:[%s17 + $0x2200] sm:$0xff]
    %v2495 = vld [vmem:[%s17 + $0x2208] sm:$0xff]
    %v2496 = vld [vmem:[%s17 + $0x2210] sm:$0xff]
    %v2497 = vld [vmem:[%s17 + $0x2218] sm:$0xff]
    %v2498 = vld [vmem:[%s17 + $0x2220] sm:$0xff]
    %v2499 = vld [vmem:[%s17 + $0x2228] sm:$0xff]
    %v2500 = vld [vmem:[%s17 + $0x2230] sm:$0xff]
    %v2501 = vld [vmem:[%s17 + $0x2238] sm:$0xff]
    %v2502 = vld [vmem:[%s17 + $0x2240] sm:$0xff]
    %v2503 = vld [vmem:[%s17 + $0x2248] sm:$0xff]
    %v2504 = vld [vmem:[%s17 + $0x2250] sm:$0xff]
    %v2505 = vld [vmem:[%s17 + $0x2258] sm:$0xff]
    %v2506 = vld [vmem:[%s17 + $0x2260] sm:$0xff]
    %v2507 = vld [vmem:[%s17 + $0x2268] sm:$0xff]
    %v2508 = vld [vmem:[%s17 + $0x2270] sm:$0xff]
    %v2509 = vld [vmem:[%s17 + $0x2278] sm:$0xff]
    %v2510 = vld [vmem:[%s17 + $0x2280] sm:$0xff]
    %v2511 = vld [vmem:[%s17 + $0x2288] sm:$0xff]
    %v2512 = vld [vmem:[%s17 + $0x2290] sm:$0xff]
    %v2513 = vld [vmem:[%s17 + $0x2298] sm:$0xff]
    %v2514 = vld [vmem:[%s17 + $0x22a0] sm:$0xff]
    %v2515 = vld [vmem:[%s17 + $0x22a8] sm:$0xff]
    %v2516 = vld [vmem:[%s17 + $0x22b0] sm:$0xff]
    %v2517 = vld [vmem:[%s17 + $0x22b8] sm:$0xff]
    %v2518 = vld [vmem:[%s17 + $0x22c0] sm:$0xff]
    %v2519 = vld [vmem:[%s17 + $0x22c8] sm:$0xff]
    %v2520 = vld [vmem:[%s17 + $0x22d0] sm:$0xff]
    %v2521 = vld [vmem:[%s17 + $0x22d8] sm:$0xff]
    %v2522 = vld [vmem:[%s17 + $0x22e0] sm:$0xff]
    %v2523 = vld [vmem:[%s17 + $0x22e8] sm:$0xff]
    %v2524 = vld [vmem:[%s17 + $0x22f0] sm:$0xff]
    %v2525 = vld [vmem:[%s17 + $0x22f8] sm:$0xff]
    %v2526 = vld [vmem:[%s17 + $0x2300] sm:$0xff]
    %v2527 = vld [vmem:[%s17 + $0x2308] sm:$0xff]
    %v2528 = vld [vmem:[%s17 + $0x2310] sm:$0xff]
    %v2529 = vld [vmem:[%s17 + $0x2318] sm:$0xff]
    %v2530 = vld [vmem:[%s17 + $0x2320] sm:$0xff]
    %v2531 = vld [vmem:[%s17 + $0x2328] sm:$0xff]
    %v2532 = vld [vmem:[%s17 + $0x2330] sm:$0xff]
    %v2533 = vld [vmem:[%s17 + $0x2338] sm:$0xff]
    %v2534 = vld [vmem:[%s17 + $0x2340] sm:$0xff]
    %v2535 = vld [vmem:[%s17 + $0x2348] sm:$0xff]
    %v2536 = vld [vmem:[%s17 + $0x2350] sm:$0xff]
    %v2537 = vld [vmem:[%s17 + $0x2358] sm:$0xff]
    %v2538 = vld [vmem:[%s17 + $0x2360] sm:$0xff]
    %v2539 = vld [vmem:[%s17 + $0x2368] sm:$0xff]
    %v2540 = vld [vmem:[%s17 + $0x2370] sm:$0xff]
    %v2541 = vld [vmem:[%s17 + $0x2378] sm:$0xff]
    %v2542 = vld [vmem:[%s17 + $0x2380] sm:$0xff]
    %v2543 = vld [vmem:[%s17 + $0x2388] sm:$0xff]
    %v2544 = vld [vmem:[%s17 + $0x2390] sm:$0xff]
    %v2545 = vld [vmem:[%s17 + $0x2398] sm:$0xff]
    %v2546 = vld [vmem:[%s17 + $0x23a0] sm:$0xff]
    %v2547 = vld [vmem:[%s17 + $0x23a8] sm:$0xff]
    %v2548 = vld [vmem:[%s17 + $0x23b0] sm:$0xff]
    %v2549 = vld [vmem:[%s17 + $0x23b8] sm:$0xff]
    %v2550 = vld [vmem:[%s17 + $0x23c0] sm:$0xff]
    %v2551 = vld [vmem:[%s17 + $0x23c8] sm:$0xff]
    %v2552 = vld [vmem:[%s17 + $0x23d0] sm:$0xff]
    %v2553 = vld [vmem:[%s17 + $0x23d8] sm:$0xff]
    %v2554 = vld [vmem:[%s17 + $0x23e0] sm:$0xff]
    %v2555 = vld [vmem:[%s17 + $0x23e8] sm:$0xff]
    %v2556 = vld [vmem:[%s17 + $0x23f0] sm:$0xff]
    %v2557 = vld [vmem:[%s17 + $0x23f8] sm:$0xff]
    %v2558 = vld [vmem:[%s17 + $0x2400] sm:$0xff]
    %v2559 = vld [vmem:[%s17 + $0x2408] sm:$0xff]
    %v2560 = vld [vmem:[%s17 + $0x2410] sm:$0xff]
    %v2561 = vld [vmem:[%s17 + $0x2418] sm:$0xff]
    %v2562 = vld [vmem:[%s17 + $0x2420] sm:$0xff]
    %v2563 = vld [vmem:[%s17 + $0x2428] sm:$0xff]
    %v2564 = vld [vmem:[%s17 + $0x2430] sm:$0xff]
    %v2565 = vld [vmem:[%s17 + $0x2438] sm:$0xff]
    %v2566 = vld [vmem:[%s17 + $0x2440] sm:$0xff]
    %v2567 = vld [vmem:[%s17 + $0x2448] sm:$0xff]
    %v2568 = vld [vmem:[%s17 + $0x2450] sm:$0xff]
    %v2569 = vld [vmem:[%s17 + $0x2458] sm:$0xff]
    %v2570 = vld [vmem:[%s17 + $0x2460] sm:$0xff]
    %v2571 = vld [vmem:[%s17 + $0x2468] sm:$0xff]
    %v2572 = vld [vmem:[%s17 + $0x2470] sm:$0xff]
    %v2573 = vld [vmem:[%s17 + $0x2478] sm:$0xff]
    %v2574 = vld [vmem:[%s17 + $0x2480] sm:$0xff]
    %v2575 = vld [vmem:[%s17 + $0x2488] sm:$0xff]
    %v2576 = vld [vmem:[%s17 + $0x2490] sm:$0xff]
    %v2577 = vld [vmem:[%s17 + $0x2498] sm:$0xff]
    %v2578 = vld [vmem:[%s17 + $0x24a0] sm:$0xff]
    %v2579 = vld [vmem:[%s17 + $0x24a8] sm:$0xff]
    %v2580 = vld [vmem:[%s17 + $0x24b0] sm:$0xff]
    %v2581 = vld [vmem:[%s17 + $0x24b8] sm:$0xff]
    %v2582 = vld [vmem:[%s17 + $0x24c0] sm:$0xff]
    %v2583 = vld [vmem:[%s17 + $0x24c8] sm:$0xff]
    %v2584 = vld [vmem:[%s17 + $0x24d0] sm:$0xff]
    %v2585 = vld [vmem:[%s17 + $0x24d8] sm:$0xff]
    %v2586 = vld [vmem:[%s17 + $0x24e0] sm:$0xff]
    %v2587 = vld [vmem:[%s17 + $0x24e8] sm:$0xff]
    %v2588 = vld [vmem:[%s17 + $0x24f0] sm:$0xff]
    %v2589 = vld [vmem:[%s17 + $0x24f8] sm:$0xff]
    %v2590 = vld [vmem:[%s17 + $0x2500] sm:$0xff]
    %v2591 = vld [vmem:[%s17 + $0x2508] sm:$0xff]
    %v2592 = vld [vmem:[%s17 + $0x2510] sm:$0xff]
    %v2593 = vld [vmem:[%s17 + $0x2518] sm:$0xff]
    %v2594 = vld [vmem:[%s17 + $0x2520] sm:$0xff]
    %v2595 = vld [vmem:[%s17 + $0x2528] sm:$0xff]
    %v2596 = vld [vmem:[%s17 + $0x2530] sm:$0xff]
    %v2597 = vld [vmem:[%s17 + $0x2538] sm:$0xff]
    %v2598 = vld [vmem:[%s17 + $0x2540] sm:$0xff]
    %v2599 = vld [vmem:[%s17 + $0x2548] sm:$0xff]
    %v2600 = vld [vmem:[%s17 + $0x2550] sm:$0xff]
    %v2601 = vld [vmem:[%s17 + $0x2558] sm:$0xff]
    %v2602 = vld [vmem:[%s17 + $0x2560] sm:$0xff]
    %v2603 = vld [vmem:[%s17 + $0x2568] sm:$0xff]
    %v2604 = vld [vmem:[%s17 + $0x2570] sm:$0xff]
    %v2605 = vld [vmem:[%s17 + $0x2578] sm:$0xff]
    %v2606 = vld [vmem:[%s17 + $0x2580] sm:$0xff]
    %v2607 = vld [vmem:[%s17 + $0x2588] sm:$0xff]
    %v2608 = vld [vmem:[%s17 + $0x2590] sm:$0xff]
    %v2609 = vld [vmem:[%s17 + $0x2598] sm:$0xff]
    %v2610 = vld [vmem:[%s17 + $0x25a0] sm:$0xff]
    %v2611 = vld [vmem:[%s17 + $0x25a8] sm:$0xff]
    %v2612 = vld [vmem:[%s17 + $0x25b0] sm:$0xff]
    %v2613 = vld [vmem:[%s17 + $0x25b8] sm:$0xff]
    %v2614 = vld [vmem:[%s17 + $0x25c0] sm:$0xff]
    %v2615 = vld [vmem:[%s17 + $0x25c8] sm:$0xff]
    %v2616 = vld [vmem:[%s17 + $0x25d0] sm:$0xff]
    %v2617 = vld [vmem:[%s17 + $0x25d8] sm:$0xff]
    %v2618 = vld [vmem:[%s17 + $0x25e0] sm:$0xff]
    %v2619 = vld [vmem:[%s17 + $0x25e8] sm:$0xff]
    %v2620 = vld [vmem:[%s17 + $0x25f0] sm:$0xff]
    %v2621 = vld [vmem:[%s17 + $0x25f8] sm:$0xff]
    %v2622 = vld [vmem:[%s17 + $0x2600] sm:$0xff]
    %v2623 = vld [vmem:[%s17 + $0x2608] sm:$0xff]
    %v2624 = vld [vmem:[%s17 + $0x2610] sm:$0xff]
    %v2625 = vld [vmem:[%s17 + $0x2618] sm:$0xff]
    %v2626 = vld [vmem:[%s17 + $0x2620] sm:$0xff]
    %v2627 = vld [vmem:[%s17 + $0x2628] sm:$0xff]
    %v2628 = vld [vmem:[%s17 + $0x2630] sm:$0xff]
    %v2629 = vld [vmem:[%s17 + $0x2638] sm:$0xff]
    %v2630 = vld [vmem:[%s17 + $0x2640] sm:$0xff]
    %v2631 = vld [vmem:[%s19] sm:$0x1f]
    %v2633 = vlaneseq
    %v2634 = vshrl.u32 %v2633, 7
    %v2635 = vsub.s32 0, %v2634
    %v2636 = vrot.slane %v2631, %v2635
    %v2637 = vlaneseq
    %v2638 = vshrl.u32 %v2637, 7
    %v2639 = vsub.s32 1, %v2638
    %v2640 = vrot.slane %v2631, %v2639
    %v2641 = vlaneseq
    %v2642 = vshrl.u32 %v2641, 7
    %v2643 = vsub.s32 2, %v2642
    %v2644 = vrot.slane %v2631, %v2643
    %v2645 = vlaneseq
    %v2646 = vshrl.u32 %v2645, 7
    %v2647 = vsub.s32 3, %v2646
    %v2648 = vrot.slane %v2631, %v2647
    %v2649 = vlaneseq
    %v2650 = vshrl.u32 %v2649, 7
    %v2651 = vsub.s32 4, %v2650
    %v2652 = vrot.slane %v2631, %v2651
    %vm2658 = vcmask 326656
    %v2660 = vsel %vm2658, %v1405, 0
    %2662 = vmatprep.subr.mxu0 %v1407
    %2663 = vmatpush1.msra.mxu0 %v1406
    %2664 = vmatprep.subr.mxu0 %v1412
    %2665 = vmatpush1.msra.mxu0 %v1411
    %2666 = vmatprep.subr.mxu0 %v1417
    %2667 = vmatpush1.msra.mxu0 %v1416
    %2668 = vmatprep.subr.mxu0 %v1422
    %2669 = vmatpush1.msra.mxu0 %v1421
    %2670 = vmatprep.subr.mxu0 %v1427
    %2671 = vmatpush1.msra.mxu0 %v1426
    %2672 = vmatprep.subr.mxu0 %v1432
    %2673 = vmatpush1.msra.mxu0 %v1431
    %2674 = vmatprep.subr.mxu0 %v1437
    %2675 = vmatpush1.msra.mxu0 %v1436
    %2676 = vmatprep.subr.mxu0 %v1442
    %2677 = vmatpush1.msra.mxu0 %v1441
    %2678 = vmatprep.subr.mxu0 %v1447
    %2679 = vmatpush1.msra.mxu0 %v1446
    %2680 = vmatprep.subr.mxu0 %v1452
    %2681 = vmatpush1.msra.mxu0 %v1451
    %2682 = vmatprep.subr.mxu0 %v1457
    %2683 = vmatpush1.msra.mxu0 %v1456
    %2684 = vmatprep.subr.mxu0 %v1462
    %2685 = vmatpush1.msra.mxu0 %v1461
    %2686 = vmatprep.subr.mxu0 %v1467
    %2687 = vmatpush1.msra.mxu0 %v1466
    %2688 = vmatprep.subr.mxu0 %v1472
    %2689 = vmatpush1.msra.mxu0 %v1471
    %2690 = vmatprep.subr.mxu0 %v1477
    %2691 = vmatpush1.msra.mxu0 %v1476
    %2692 = vmatprep.subr.mxu0 %v1482
    %2693 = vmatpush1.msra.mxu0 %v1481
    %2694 = vmatprep.subr.mxu0 %v1487
    %2695 = vmatpush1.msra.mxu0 %v1486
    %2696 = vmatprep.subr.mxu0 %v1492
    %2697 = vmatpush1.msra.mxu0 %v1491
    %2698 = vmatprep.subr.mxu0 %v1497
    %2699 = vmatpush1.msra.mxu0 %v1496
    %2700 = vmatprep.subr.mxu0 %v1502
    %2701 = vmatpush1.msra.mxu0 %v1501
    %2702 = vmatprep.subr.mxu0 %v1507
    %2703 = vmatpush1.msra.mxu0 %v1506
    %2704 = vmatprep.subr.mxu0 %v1512
    %2705 = vmatpush1.msra.mxu0 %v1511
    %2706 = vmatprep.subr.mxu0 %v1517
    %2707 = vmatpush1.msra.mxu0 %v1516
    %2708 = vmatprep.subr.mxu0 %v1522
    %2709 = vmatpush1.msra.mxu0 %v1521
    %2710 = vmatprep.subr.mxu0 %v1527
    %2711 = vmatpush1.msra.mxu0 %v1526
    %2712 = vmatprep.subr.mxu0 %v1532
    %2713 = vmatpush1.msra.mxu0 %v1531
    %2714 = vmatprep.subr.mxu0 %v1537
    %2715 = vmatpush1.msra.mxu0 %v1536
    %2716 = vmatprep.subr.mxu0 %v1542
    %2717 = vmatpush1.msra.mxu0 %v1541
    %2718 = vmatprep.subr.mxu0 %v1547
    %2719 = vmatpush1.msra.mxu0 %v1546
    %2720 = vmatprep.subr.mxu0 %v1552
    %2721 = vmatpush1.msra.mxu0 %v1551
    %2722 = vmatprep.subr.mxu0 %v1557
    %2723 = vmatpush1.msra.mxu0 %v1556
    %2724 = vmatprep.subr.mxu0 %v1562
    %2725 = vmatpush1.msra.mxu0 %v1561
    %2726 = vmatprep.mubr.f32.mxu0 %v1391
    %2727 = vmatmul.mubr.f32.gmra.mrb[0].mxu0 %v1390
    %v2728 = vpop.f32.mrb[0].mxu0
    %v2729 = vadd.f32 %v2636, %v2728
    %v2730 = vpop.f32.mrb[0].mxu0
    %v2731 = vadd.f32 %v2640, %v2730
    %2732 = vdwg.mxu0
    %2733 = vmatprep.subr.mxu0 %v1567
    %2734 = vmatpush1.msra.mxu0 %v1566
    %2735 = vmatprep.subr.mxu0 %v1572
    %2736 = vmatpush1.msra.mxu0 %v1571
    %2737 = vmatprep.subr.mxu0 %v1577
    %2738 = vmatpush1.msra.mxu0 %v1576
    %2739 = vmatprep.subr.mxu0 %v1582
    %2740 = vmatpush1.msra.mxu0 %v1581
    %2741 = vmatprep.subr.mxu0 %v1587
    %2742 = vmatpush1.msra.mxu0 %v1586
    %2743 = vmatprep.subr.mxu0 %v1592
    %2744 = vmatpush1.msra.mxu0 %v1591
    %2745 = vmatprep.subr.mxu0 %v1597
    %2746 = vmatpush1.msra.mxu0 %v1596
    %2747 = vmatprep.subr.mxu0 %v1602
    %2748 = vmatpush1.msra.mxu0 %v1601
    %2749 = vmatprep.subr.mxu0 %v1607
    %2750 = vmatpush1.msra.mxu0 %v1606
    %2751 = vmatprep.subr.mxu0 %v1612
    %2752 = vmatpush1.msra.mxu0 %v1611
    %2753 = vmatprep.subr.mxu0 %v1617
    %2754 = vmatpush1.msra.mxu0 %v1616
    %2755 = vmatprep.subr.mxu0 %v1622
    %2756 = vmatpush1.msra.mxu0 %v1621
    %2757 = vmatprep.subr.mxu0 %v1627
    %2758 = vmatpush1.msra.mxu0 %v1626
    %2759 = vmatprep.subr.mxu0 %v1632
    %2760 = vmatpush1.msra.mxu0 %v1631
    %2761 = vmatprep.subr.mxu0 %v1637
    %2762 = vmatpush1.msra.mxu0 %v1636
    %2763 = vmatprep.subr.mxu0 %v1642
    %2764 = vmatpush1.msra.mxu0 %v1641
    %2765 = vmatprep.subr.mxu0 %v1647
    %2766 = vmatpush1.msra.mxu0 %v1646
    %2767 = vmatprep.subr.mxu0 %v1652
    %2768 = vmatpush1.msra.mxu0 %v1651
    %2769 = vmatprep.subr.mxu0 %v1657
    %2770 = vmatpush1.msra.mxu0 %v1656
    %2771 = vmatprep.subr.mxu0 %v1662
    %2772 = vmatpush1.msra.mxu0 %v1661
    %2773 = vmatprep.subr.mxu0 %v1667
    %2774 = vmatpush1.msra.mxu0 %v1666
    %2775 = vmatprep.subr.mxu0 %v1672
    %2776 = vmatpush1.msra.mxu0 %v1671
    %2777 = vmatprep.subr.mxu0 %v1677
    %2778 = vmatpush1.msra.mxu0 %v1676
    %2779 = vmatprep.subr.mxu0 %v1682
    %2780 = vmatpush1.msra.mxu0 %v1681
    %2781 = vmatprep.subr.mxu0 %v1687
    %2782 = vmatpush1.msra.mxu0 %v1686
    %2783 = vmatprep.subr.mxu0 %v1692
    %2784 = vmatpush1.msra.mxu0 %v1691
    %2785 = vmatprep.subr.mxu0 %v1697
    %2786 = vmatpush1.msra.mxu0 %v1696
    %2787 = vmatprep.subr.mxu0 %v1702
    %2788 = vmatpush1.msra.mxu0 %v1701
    %2789 = vmatprep.subr.mxu0 %v1707
    %2790 = vmatpush1.msra.mxu0 %v1706
    %2791 = vmatprep.subr.mxu0 %v1712
    %2792 = vmatpush1.msra.mxu0 %v1711
    %2793 = vmatprep.subr.mxu0 %v1717
    %2794 = vmatpush1.msra.mxu0 %v1716
    %2795 = vmatprep.subr.mxu0 %v1722
    %2796 = vmatpush1.msra.mxu0 %v1721
    %2797 = vmatprep.mubr.f32.mxu0 %v1393
    %2798 = vmatmul.mubr.f32.gmra.mrb[0].mxu0 %v1392
    %v2799 = vpop.f32.mrb[0].mxu0
    %v2800 = vadd.f32 %v2729, %v2799
    %v2801 = vpop.f32.mrb[0].mxu0
    %v2802 = vadd.f32 %v2731, %v2801
    %2803 = vdwg.mxu0
    %2804 = vmatprep.subr.mxu0 %v1727
    %2805 = vmatpush1.msra.mxu0 %v1726
    %2806 = vmatprep.subr.mxu0 %v1732
    %2807 = vmatpush1.msra.mxu0 %v1731
    %2808 = vmatprep.subr.mxu0 %v1737
    %2809 = vmatpush1.msra.mxu0 %v1736
    %2810 = vmatprep.subr.mxu0 %v1742
    %2811 = vmatpush1.msra.mxu0 %v1741
    %2812 = vmatprep.subr.mxu0 %v1747
    %2813 = vmatpush1.msra.mxu0 %v1746
    %2814 = vmatprep.subr.mxu0 %v1752
    %2815 = vmatpush1.msra.mxu0 %v1751
    %2816 = vmatprep.subr.mxu0 %v1757
    %2817 = vmatpush1.msra.mxu0 %v1756
    %2818 = vmatprep.subr.mxu0 %v1762
    %2819 = vmatpush1.msra.mxu0 %v1761
    %2820 = vmatprep.subr.mxu0 %v1767
    %2821 = vmatpush1.msra.mxu0 %v1766
    %2822 = vmatprep.subr.mxu0 %v1772
    %2823 = vmatpush1.msra.mxu0 %v1771
    %2824 = vmatprep.subr.mxu0 %v1777
    %2825 = vmatpush1.msra.mxu0 %v1776
    %2826 = vmatprep.subr.mxu0 %v1782
    %2827 = vmatpush1.msra.mxu0 %v1781
    %2828 = vmatprep.subr.mxu0 %v1787
    %2829 = vmatpush1.msra.mxu0 %v1786
    %2830 = vmatprep.subr.mxu0 %v1792
    %2831 = vmatpush1.msra.mxu0 %v1791
    %2832 = vmatprep.subr.mxu0 %v1797
    %2833 = vmatpush1.msra.mxu0 %v1796
    %2834 = vmatprep.subr.mxu0 %v1802
    %2835 = vmatpush1.msra.mxu0 %v1801
    %2836 = vmatprep.subr.mxu0 %v1807
    %2837 = vmatpush1.msra.mxu0 %v1806
    %2838 = vmatprep.subr.mxu0 %v1812
    %2839 = vmatpush1.msra.mxu0 %v1811
    %2840 = vmatprep.subr.mxu0 %v1817
    %2841 = vmatpush1.msra.mxu0 %v1816
    %2842 = vmatprep.subr.mxu0 %v1822
    %2843 = vmatpush1.msra.mxu0 %v1821
    %2844 = vmatprep.subr.mxu0 %v1827
    %2845 = vmatpush1.msra.mxu0 %v1826
    %2846 = vmatprep.subr.mxu0 %v1832
    %2847 = vmatpush1.msra.mxu0 %v1831
    %2848 = vmatprep.subr.mxu0 %v1837
    %2849 = vmatpush1.msra.mxu0 %v1836
    %2850 = vmatprep.subr.mxu0 %v1842
    %2851 = vmatpush1.msra.mxu0 %v1841
    %2852 = vmatprep.subr.mxu0 %v1847
    %2853 = vmatpush1.msra.mxu0 %v1846
    %2854 = vmatprep.subr.mxu0 %v1852
    %2855 = vmatpush1.msra.mxu0 %v1851
    %2856 = vmatprep.subr.mxu0 %v1857
    %2857 = vmatpush1.msra.mxu0 %v1856
    %2858 = vmatprep.subr.mxu0 %v1862
    %2859 = vmatpush1.msra.mxu0 %v1861
    %2860 = vmatprep.subr.mxu0 %v1867
    %2861 = vmatpush1.msra.mxu0 %v1866
    %2862 = vmatprep.subr.mxu0 %v1872
    %2863 = vmatpush1.msra.mxu0 %v1871
    %2864 = vmatprep.subr.mxu0 %v1877
    %2865 = vmatpush1.msra.mxu0 %v1876
    %2866 = vmatprep.subr.mxu0 %v1882
    %2867 = vmatpush1.msra.mxu0 %v1881
    %2868 = vmatprep.mubr.f32.mxu0 %v1395
    %2869 = vmatmul.mubr.f32.gmra.mrb[0].mxu0 %v1394
    %v2870 = vpop.f32.mrb[0].mxu0
    %v2871 = vadd.f32 %v2800, %v2870
    %v2872 = vpop.f32.mrb[0].mxu0
    %v2873 = vadd.f32 %v2802, %v2872
    %2874 = vdwg.mxu0
    %2875 = vmatprep.subr.mxu0 %v1887
    %2876 = vmatpush1.msra.mxu0 %v1886
    %2877 = vmatprep.subr.mxu0 %v1892
    %2878 = vmatpush1.msra.mxu0 %v1891
    %2879 = vmatprep.subr.mxu0 %v1897
    %2880 = vmatpush1.msra.mxu0 %v1896
    %2881 = vmatprep.subr.mxu0 %v1902
    %2882 = vmatpush1.msra.mxu0 %v1901
    %2883 = vmatprep.subr.mxu0 %v1907
    %2884 = vmatpush1.msra.mxu0 %v1906
    %2885 = vmatprep.subr.mxu0 %v1912
    %2886 = vmatpush1.msra.mxu0 %v1911
    %2887 = vmatprep.subr.mxu0 %v1917
    %2888 = vmatpush1.msra.mxu0 %v1916
    %2889 = vmatprep.subr.mxu0 %v1922
    %2890 = vmatpush1.msra.mxu0 %v1921
    %2891 = vmatprep.subr.mxu0 %v1927
    %2892 = vmatpush1.msra.mxu0 %v1926
    %2893 = vmatprep.subr.mxu0 %v1932
    %2894 = vmatpush1.msra.mxu0 %v1931
    %2895 = vmatprep.subr.mxu0 %v1937
    %2896 = vmatpush1.msra.mxu0 %v1936
    %2897 = vmatprep.subr.mxu0 %v1942
    %2898 = vmatpush1.msra.mxu0 %v1941
    %2899 = vmatprep.subr.mxu0 %v1947
    %2900 = vmatpush1.msra.mxu0 %v1946
    %2901 = vmatprep.subr.mxu0 %v1952
    %2902 = vmatpush1.msra.mxu0 %v1951
    %2903 = vmatprep.subr.mxu0 %v1957
    %2904 = vmatpush1.msra.mxu0 %v1956
    %2905 = vmatprep.subr.mxu0 %v1962
    %2906 = vmatpush1.msra.mxu0 %v1961
    %2907 = vmatprep.subr.mxu0 %v1967
    %2908 = vmatpush1.msra.mxu0 %v1966
    %2909 = vmatprep.subr.mxu0 %v1972
    %2910 = vmatpush1.msra.mxu0 %v1971
    %2911 = vmatprep.subr.mxu0 %v1977
    %2912 = vmatpush1.msra.mxu0 %v1976
    %2913 = vmatprep.subr.mxu0 %v1982
    %2914 = vmatpush1.msra.mxu0 %v1981
    %2915 = vmatprep.subr.mxu0 %v1987
    %2916 = vmatpush1.msra.mxu0 %v1986
    %2917 = vmatprep.subr.mxu0 %v1992
    %2918 = vmatpush1.msra.mxu0 %v1991
    %2919 = vmatprep.subr.mxu0 %v1997
    %2920 = vmatpush1.msra.mxu0 %v1996
    %2921 = vmatprep.subr.mxu0 %v2002
    %2922 = vmatpush1.msra.mxu0 %v2001
    %2923 = vmatprep.subr.mxu0 %v2007
    %2924 = vmatpush1.msra.mxu0 %v2006
    %2925 = vmatprep.subr.mxu0 %v2012
    %2926 = vmatpush1.msra.mxu0 %v2011
    %2927 = vmatprep.subr.mxu0 %v2017
    %2928 = vmatpush1.msra.mxu0 %v2016
    %2929 = vmatprep.subr.mxu0 %v2022
    %2930 = vmatpush1.msra.mxu0 %v2021
    %2931 = vmatprep.subr.mxu0 %v2027
    %2932 = vmatpush1.msra.mxu0 %v2026
    %2933 = vmatprep.subr.mxu0 %v2032
    %2934 = vmatpush1.msra.mxu0 %v2031
    %2935 = vmatprep.subr.mxu0 %v2037
    %2936 = vmatpush1.msra.mxu0 %v2036
    %2937 = vmatprep.subr.mxu0 %v2042
    %2938 = vmatpush1.msra.mxu0 %v2041
    %2939 = vmatprep.mubr.f32.mxu0 %v1397
    %2940 = vmatmul.mubr.f32.gmra.mrb[0].mxu0 %v1396
    %v2941 = vpop.f32.mrb[0].mxu0
    %v2942 = vadd.f32 %v2871, %v2941
    %v2943 = vpop.f32.mrb[0].mxu0
    %v2944 = vadd.f32 %v2873, %v2943
    %2945 = vdwg.mxu0
    %2946 = vmatprep.subr.mxu0 %v2047
    %2947 = vmatpush1.msra.mxu0 %v2046
    %2948 = vmatprep.subr.mxu0 %v2052
    %2949 = vmatpush1.msra.mxu0 %v2051
    %2950 = vmatprep.subr.mxu0 %v2057
    %2951 = vmatpush1.msra.mxu0 %v2056
    %2952 = vmatprep.subr.mxu0 %v2062
    %2953 = vmatpush1.msra.mxu0 %v2061
    %2954 = vmatprep.subr.mxu0 %v2067
    %2955 = vmatpush1.msra.mxu0 %v2066
    %2956 = vmatprep.subr.mxu0 %v2072
    %2957 = vmatpush1.msra.mxu0 %v2071
    %2958 = vmatprep.subr.mxu0 %v2077
    %2959 = vmatpush1.msra.mxu0 %v2076
    %2960 = vmatprep.subr.mxu0 %v2082
    %2961 = vmatpush1.msra.mxu0 %v2081
    %2962 = vmatprep.subr.mxu0 %v2087
    %2963 = vmatpush1.msra.mxu0 %v2086
    %2964 = vmatprep.subr.mxu0 %v2092
    %2965 = vmatpush1.msra.mxu0 %v2091
    %2966 = vmatprep.subr.mxu0 %v2097
    %2967 = vmatpush1.msra.mxu0 %v2096
    %2968 = vmatprep.subr.mxu0 %v2102
    %2969 = vmatpush1.msra.mxu0 %v2101
    %2970 = vmatprep.subr.mxu0 %v2107
    %2971 = vmatpush1.msra.mxu0 %v2106
    %2972 = vmatprep.subr.mxu0 %v2112
    %2973 = vmatpush1.msra.mxu0 %v2111
    %2974 = vmatprep.subr.mxu0 %v2117
    %2975 = vmatpush1.msra.mxu0 %v2116
    %2976 = vmatprep.subr.mxu0 %v2122
    %2977 = vmatpush1.msra.mxu0 %v2121
    %2978 = vmatprep.subr.mxu0 %v2127
    %2979 = vmatpush1.msra.mxu0 %v2126
    %2980 = vmatprep.subr.mxu0 %v2132
    %2981 = vmatpush1.msra.mxu0 %v2131
    %2982 = vmatprep.subr.mxu0 %v2137
    %2983 = vmatpush1.msra.mxu0 %v2136
    %2984 = vmatprep.subr.mxu0 %v2142
    %2985 = vmatpush1.msra.mxu0 %v2141
    %2986 = vmatprep.subr.mxu0 %v2147
    %2987 = vmatpush1.msra.mxu0 %v2146
    %2988 = vmatprep.subr.mxu0 %v2152
    %2989 = vmatpush1.msra.mxu0 %v2151
    %2990 = vmatprep.subr.mxu0 %v2157
    %2991 = vmatpush1.msra.mxu0 %v2156
    %2992 = vmatprep.subr.mxu0 %v2162
    %2993 = vmatpush1.msra.mxu0 %v2161
    %2994 = vmatprep.subr.mxu0 %v2167
    %2995 = vmatpush1.msra.mxu0 %v2166
    %2996 = vmatprep.subr.mxu0 %v2172
    %2997 = vmatpush1.msra.mxu0 %v2171
    %2998 = vmatprep.subr.mxu0 %v2177
    %2999 = vmatpush1.msra.mxu0 %v2176
    %3000 = vmatprep.subr.mxu0 %v2182
    %3001 = vmatpush1.msra.mxu0 %v2181
    %3002 = vmatprep.subr.mxu0 %v2187
    %3003 = vmatpush1.msra.mxu0 %v2186
    %3004 = vmatprep.subr.mxu0 %v2192
    %3005 = vmatpush1.msra.mxu0 %v2191
    %3006 = vmatprep.subr.mxu0 %v2197
    %3007 = vmatpush1.msra.mxu0 %v2196
    %3008 = vmatprep.subr.mxu0 %v2202
    %3009 = vmatpush1.msra.mxu0 %v2201
    %3010 = vmatprep.mubr.f32.mxu0 %v1399
    %3011 = vmatmul.mubr.f32.gmra.mrb[0].mxu0 %v1398
    %v3012 = vpop.f32.mrb[0].mxu0
    %v3013 = vadd.f32 %v2942, %v3012
    %v3014 = vpop.f32.mrb[0].mxu0
    %v3015 = vadd.f32 %v2944, %v3014
    %3016 = vdwg.mxu0
    %3017 = vmatprep.subr.mxu0 %v2207
    %3018 = vmatpush1.msra.mxu0 %v2206
    %3019 = vmatprep.subr.mxu0 %v2212
    %3020 = vmatpush1.msra.mxu0 %v2211
    %3021 = vmatprep.subr.mxu0 %v2217
    %3022 = vmatpush1.msra.mxu0 %v2216
    %3023 = vmatprep.subr.mxu0 %v2222
    %3024 = vmatpush1.msra.mxu0 %v2221
    %3025 = vmatprep.subr.mxu0 %v2227
    %3026 = vmatpush1.msra.mxu0 %v2226
    %3027 = vmatprep.subr.mxu0 %v2232
    %3028 = vmatpush1.msra.mxu0 %v2231
    %3029 = vmatprep.subr.mxu0 %v2237
    %3030 = vmatpush1.msra.mxu0 %v2236
    %3031 = vmatprep.subr.mxu0 %v2242
    %3032 = vmatpush1.msra.mxu0 %v2241
    %3033 = vmatprep.subr.mxu0 %v2247
    %3034 = vmatpush1.msra.mxu0 %v2246
    %3035 = vmatprep.subr.mxu0 %v2252
    %3036 = vmatpush1.msra.mxu0 %v2251
    %3037 = vmatprep.subr.mxu0 %v2257
    %3038 = vmatpush1.msra.mxu0 %v2256
    %3039 = vmatprep.subr.mxu0 %v2262
    %3040 = vmatpush1.msra.mxu0 %v2261
    %3041 = vmatprep.subr.mxu0 %v2267
    %3042 = vmatpush1.msra.mxu0 %v2266
    %3043 = vmatprep.subr.mxu0 %v2272
    %3044 = vmatpush1.msra.mxu0 %v2271
    %3045 = vmatprep.subr.mxu0 %v2277
    %3046 = vmatpush1.msra.mxu0 %v2276
    %3047 = vmatprep.subr.mxu0 %v2282
    %3048 = vmatpush1.msra.mxu0 %v2281
    %3049 = vmatprep.subr.mxu0 %v2287
    %3050 = vmatpush1.msra.mxu0 %v2286
    %3051 = vmatprep.subr.mxu0 %v2292
    %3052 = vmatpush1.msra.mxu0 %v2291
    %3053 = vmatprep.subr.mxu0 %v2297
    %3054 = vmatpush1.msra.mxu0 %v2296
    %3055 = vmatprep.subr.mxu0 %v2302
    %3056 = vmatpush1.msra.mxu0 %v2301
    %3057 = vmatprep.subr.mxu0 %v2307
    %3058 = vmatpush1.msra.mxu0 %v2306
    %3059 = vmatprep.subr.mxu0 %v2312
    %3060 = vmatpush1.msra.mxu0 %v2311
    %3061 = vmatprep.subr.mxu0 %v2317
    %3062 = vmatpush1.msra.mxu0 %v2316
    %3063 = vmatprep.subr.mxu0 %v2322
    %3064 = vmatpush1.msra.mxu0 %v2321
    %3065 = vmatprep.subr.mxu0 %v2327
    %3066 = vmatpush1.msra.mxu0 %v2326
    %3067 = vmatprep.subr.mxu0 %v2332
    %3068 = vmatpush1.msra.mxu0 %v2331
    %3069 = vmatprep.subr.mxu0 %v2337
    %3070 = vmatpush1.msra.mxu0 %v2336
    %3071 = vmatprep.subr.mxu0 %v2342
    %3072 = vmatpush1.msra.mxu0 %v2341
    %3073 = vmatprep.subr.mxu0 %v2347
    %3074 = vmatpush1.msra.mxu0 %v2346
    %3075 = vmatprep.subr.mxu0 %v2352
    %3076 = vmatpush1.msra.mxu0 %v2351
    %3077 = vmatprep.subr.mxu0 %v2357
    %3078 = vmatpush1.msra.mxu0 %v2356
    %3079 = vmatprep.subr.mxu0 %v2362
    %3080 = vmatpush1.msra.mxu0 %v2361
    %3081 = vmatprep.mubr.f32.mxu0 %v1401
    %3082 = vmatmul.mubr.f32.gmra.mrb[0].mxu0 %v1400
    %v3083 = vpop.f32.mrb[0].mxu0
    %v3084 = vadd.f32 %v3013, %v3083
    %v3085 = vpop.f32.mrb[0].mxu0
    %v3086 = vadd.f32 %v3015, %v3085
    %3087 = vdwg.mxu0
    %3088 = vmatprep.subr.mxu0 %v2367
    %3089 = vmatpush1.msra.mxu0 %v2366
    %3090 = vmatprep.subr.mxu0 %v2372
    %3091 = vmatpush1.msra.mxu0 %v2371
    %3092 = vmatprep.subr.mxu0 %v2377
    %3093 = vmatpush1.msra.mxu0 %v2376
    %3094 = vmatprep.subr.mxu0 %v2382
    %3095 = vmatpush1.msra.mxu0 %v2381
    %3096 = vmatprep.subr.mxu0 %v2387
    %3097 = vmatpush1.msra.mxu0 %v2386
    %3098 = vmatprep.subr.mxu0 %v2392
    %3099 = vmatpush1.msra.mxu0 %v2391
    %3100 = vmatprep.subr.mxu0 %v2397
    %3101 = vmatpush1.msra.mxu0 %v2396
    %3102 = vmatprep.subr.mxu0 %v2402
    %3103 = vmatpush1.msra.mxu0 %v2401
    %3104 = vmatprep.subr.mxu0 %v2407
    %3105 = vmatpush1.msra.mxu0 %v2406
    %3106 = vmatprep.subr.mxu0 %v2412
    %3107 = vmatpush1.msra.mxu0 %v2411
    %3108 = vmatprep.subr.mxu0 %v2417
    %3109 = vmatpush1.msra.mxu0 %v2416
    %3110 = vmatprep.subr.mxu0 %v2422
    %3111 = vmatpush1.msra.mxu0 %v2421
    %3112 = vmatprep.subr.mxu0 %v2427
    %3113 = vmatpush1.msra.mxu0 %v2426
    %3114 = vmatprep.subr.mxu0 %v2432
    %3115 = vmatpush1.msra.mxu0 %v2431
    %3116 = vmatprep.subr.mxu0 %v2437
    %3117 = vmatpush1.msra.mxu0 %v2436
    %3118 = vmatprep.subr.mxu0 %v2442
    %3119 = vmatpush1.msra.mxu0 %v2441
    %3120 = vmatprep.subr.mxu0 %v2447
    %3121 = vmatpush1.msra.mxu0 %v2446
    %3122 = vmatprep.subr.mxu0 %v2452
    %3123 = vmatpush1.msra.mxu0 %v2451
    %3124 = vmatprep.subr.mxu0 %v2457
    %3125 = vmatpush1.msra.mxu0 %v2456
    %3126 = vmatprep.subr.mxu0 %v2462
    %3127 = vmatpush1.msra.mxu0 %v2461
    %3128 = vmatprep.subr.mxu0 %v2467
    %3129 = vmatpush1.msra.mxu0 %v2466
    %3130 = vmatprep.subr.mxu0 %v2472
    %3131 = vmatpush1.msra.mxu0 %v2471
    %3132 = vmatprep.subr.mxu0 %v2477
    %3133 = vmatpush1.msra.mxu0 %v2476
    %3134 = vmatprep.subr.mxu0 %v2482
    %3135 = vmatpush1.msra.mxu0 %v2481
    %3136 = vmatprep.subr.mxu0 %v2487
    %3137 = vmatpush1.msra.mxu0 %v2486
    %3138 = vmatprep.subr.mxu0 %v2492
    %3139 = vmatpush1.msra.mxu0 %v2491
    %3140 = vmatprep.subr.mxu0 %v2497
    %3141 = vmatpush1.msra.mxu0 %v2496
    %3142 = vmatprep.subr.mxu0 %v2502
    %3143 = vmatpush1.msra.mxu0 %v2501
    %3144 = vmatprep.subr.mxu0 %v2507
    %3145 = vmatpush1.msra.mxu0 %v2506
    %3146 = vmatprep.subr.mxu0 %v2512
    %3147 = vmatpush1.msra.mxu0 %v2511
    %3148 = vmatprep.subr.mxu0 %v2517
    %3149 = vmatpush1.msra.mxu0 %v2516
    %3150 = vmatprep.subr.mxu0 %v2522
    %3151 = vmatpush1.msra.mxu0 %v2521
    %3152 = vmatprep.mubr.f32.mxu0 %v1403
    %3153 = vmatmul.mubr.f32.gmra.mrb[0].mxu0 %v1402
    %v3154 = vpop.f32.mrb[0].mxu0
    %v3155 = vadd.f32 %v3084, %v3154
    %v3156 = vpop.f32.mrb[0].mxu0
    %v3157 = vadd.f32 %v3086, %v3156
    %3158 = vdwg.mxu0
    %3159 = vmatprep.subr.mxu0 %v2527
    %3160 = vmatpush1.msra.mxu0 %v2526
    %3161 = vmatprep.subr.mxu0 %v2532
    %3162 = vmatpush1.msra.mxu0 %v2531
    %3163 = vmatprep.subr.mxu0 %v2537
    %3164 = vmatpush1.msra.mxu0 %v2536
    %3165 = vmatprep.subr.mxu0 %v2542
    %3166 = vmatpush1.msra.mxu0 %v2541
    %3167 = vmatprep.subr.mxu0 %v2547
    %3168 = vmatpush1.msra.mxu0 %v2546
    %3169 = vmatprep.subr.mxu0 %v2552
    %3170 = vmatpush1.msra.mxu0 %v2551
    %3171 = vmatprep.subr.mxu0 %v2557
    %3172 = vmatpush1.msra.mxu0 %v2556
    %3173 = vmatprep.subr.mxu0 %v2562
    %3174 = vmatpush1.msra.mxu0 %v2561
    %3175 = vmatprep.subr.mxu0 %v2567
    %3176 = vmatpush1.msra.mxu0 %v2566
    %3177 = vmatprep.subr.mxu0 %v2572
    %3178 = vmatpush1.msra.mxu0 %v2571
    %3179 = vmatprep.subr.mxu0 %v2577
    %3180 = vmatpush1.msra.mxu0 %v2576
    %3181 = vmatprep.subr.mxu0 %v2582
    %3182 = vmatpush1.msra.mxu0 %v2581
    %3183 = vmatprep.subr.mxu0 %v2587
    %3184 = vmatpush1.msra.mxu0 %v2586
    %3185 = vmatprep.subr.mxu0 %v2592
    %3186 = vmatpush1.msra.mxu0 %v2591
    %3187 = vmatprep.subr.mxu0 %v2597
    %3188 = vmatpush1.msra.mxu0 %v2596
    %3189 = vmatprep.subr.mxu0 %v2602
    %3190 = vmatpush1.msra.mxu0 %v2601
    %3191 = vmatprep.subr.mxu0 %v2607
    %3192 = vmatpush1.msra.mxu0 %v2606
    %3193 = vmatprep.subr.mxu0 %v2612
    %3194 = vmatpush1.msra.mxu0 %v2611
    %3195 = vmatprep.subr.mxu0 %v2617
    %3196 = vmatpush1.msra.mxu0 %v2616
    %3197 = vmatprep.subr.mxu0 %v2622
    %3198 = vmatpush1.msra.mxu0 %v2621
    %3199 = vmatprep.subr.mxu0 %v2627
    %3200 = vmatpush1.msra.mxu0 %v2626
    %3201 = vmatprep.subr.mxu0 0.0
    %3202 = vmatpush1.msra.mxu0 0.0
    %3203 = vmatprep.subr.mxu0 0.0
    %3204 = vmatpush1.msra.mxu0 0.0
    %3205 = vmatprep.subr.mxu0 0.0
    %3206 = vmatpush1.msra.mxu0 0.0
    %3207 = vmatprep.subr.mxu0 0.0
    %3208 = vmatpush1.msra.mxu0 0.0
    %3209 = vmatprep.subr.mxu0 0.0
    %3210 = vmatpush1.msra.mxu0 0.0
    %3211 = vmatprep.subr.mxu0 0.0
    %3212 = vmatpush1.msra.mxu0 0.0
    %3213 = vmatprep.subr.mxu0 0.0
    %3214 = vmatpush1.msra.mxu0 0.0
    %3215 = vmatprep.subr.mxu0 0.0
    %3216 = vmatpush1.msra.mxu0 0.0
    %3217 = vmatprep.subr.mxu0 0.0
    %3218 = vmatpush1.msra.mxu0 0.0
    %3219 = vmatprep.subr.mxu0 0.0
    %3220 = vmatpush1.msra.mxu0 0.0
    %3221 = vmatprep.subr.mxu0 0.0
    %3222 = vmatpush1.msra.mxu0 0.0
    %3223 = vmatprep.mubr.f32.mxu0 %v2660
    %3224 = vmatmul.mubr.f32.gmra.mrb[0].mxu0 %v1404
    %v3225 = vpop.f32.mrb[0].mxu0
    %v3226 = vadd.f32 %v3155, %v3225
    %v3227 = vpop.f32.mrb[0].mxu0
    %v3228 = vadd.f32 %v3157, %v3227
    %3229 = vdwg.mxu0
    %3230 = vmatprep.subr.mxu0 %v1409
    %3231 = vmatpush1.msra.mxu0 %v1408
    %3232 = vmatprep.subr.mxu0 %v1414
    %3233 = vmatpush1.msra.mxu0 %v1413
    %3234 = vmatprep.subr.mxu0 %v1419
    %3235 = vmatpush1.msra.mxu0 %v1418
    %3236 = vmatprep.subr.mxu0 %v1424
    %3237 = vmatpush1.msra.mxu0 %v1423
    %3238 = vmatprep.subr.mxu0 %v1429
    %3239 = vmatpush1.msra.mxu0 %v1428
    %3240 = vmatprep.subr.mxu0 %v1434
    %3241 = vmatpush1.msra.mxu0 %v1433
    %3242 = vmatprep.subr.mxu0 %v1439
    %3243 = vmatpush1.msra.mxu0 %v1438
    %3244 = vmatprep.subr.mxu0 %v1444
    %3245 = vmatpush1.msra.mxu0 %v1443
    %3246 = vmatprep.subr.mxu0 %v1449
    %3247 = vmatpush1.msra.mxu0 %v1448
    %3248 = vmatprep.subr.mxu0 %v1454
    %3249 = vmatpush1.msra.mxu0 %v1453
    %3250 = vmatprep.subr.mxu0 %v1459
    %3251 = vmatpush1.msra.mxu0 %v1458
    %3252 = vmatprep.subr.mxu0 %v1464
    %3253 = vmatpush1.msra.mxu0 %v1463
    %3254 = vmatprep.subr.mxu0 %v1469
    %3255 = vmatpush1.msra.mxu0 %v1468
    %3256 = vmatprep.subr.mxu0 %v1474
    %3257 = vmatpush1.msra.mxu0 %v1473
    %3258 = vmatprep.subr.mxu0 %v1479
    %3259 = vmatpush1.msra.mxu0 %v1478
    %3260 = vmatprep.subr.mxu0 %v1484
    %3261 = vmatpush1.msra.mxu0 %v1483
    %3262 = vmatprep.subr.mxu0 %v1489
    %3263 = vmatpush1.msra.mxu0 %v1488
    %3264 = vmatprep.subr.mxu0 %v1494
    %3265 = vmatpush1.msra.mxu0 %v1493
    %3266 = vmatprep.subr.mxu0 %v1499
    %3267 = vmatpush1.msra.mxu0 %v1498
    %3268 = vmatprep.subr.mxu0 %v1504
    %3269 = vmatpush1.msra.mxu0 %v1503
    %3270 = vmatprep.subr.mxu0 %v1509
    %3271 = vmatpush1.msra.mxu0 %v1508
    %3272 = vmatprep.subr.mxu0 %v1514
    %3273 = vmatpush1.msra.mxu0 %v1513
    %3274 = vmatprep.subr.mxu0 %v1519
    %3275 = vmatpush1.msra.mxu0 %v1518
    %3276 = vmatprep.subr.mxu0 %v1524
    %3277 = vmatpush1.msra.mxu0 %v1523
    %3278 = vmatprep.subr.mxu0 %v1529
    %3279 = vmatpush1.msra.mxu0 %v1528
    %3280 = vmatprep.subr.mxu0 %v1534
    %3281 = vmatpush1.msra.mxu0 %v1533
    %3282 = vmatprep.subr.mxu0 %v1539
    %3283 = vmatpush1.msra.mxu0 %v1538
    %3284 = vmatprep.subr.mxu0 %v1544
    %3285 = vmatpush1.msra.mxu0 %v1543
    %3286 = vmatprep.subr.mxu0 %v1549
    %3287 = vmatpush1.msra.mxu0 %v1548
    %3288 = vmatprep.subr.mxu0 %v1554
    %3289 = vmatpush1.msra.mxu0 %v1553
    %3290 = vmatprep.subr.mxu0 %v1559
    %3291 = vmatpush1.msra.mxu0 %v1558
    %3292 = vmatprep.subr.mxu0 %v1564
    %3293 = vmatpush1.msra.mxu0 %v1563
    %3294 = vmatprep.mubr.f32.mxu0 %v1391
    %3295 = vmatmul.mubr.f32.gmra.mrb[0].mxu0 %v1390
    %v3296 = vpop.f32.mrb[0].mxu0
    %v3297 = vadd.f32 %v2644, %v3296
    %v3298 = vpop.f32.mrb[0].mxu0
    %v3299 = vadd.f32 %v2648, %v3298
    %3300 = vdwg.mxu0
    %3301 = vmatprep.subr.mxu0 %v1569
    %3302 = vmatpush1.msra.mxu0 %v1568
    %3303 = vmatprep.subr.mxu0 %v1574
    %3304 = vmatpush1.msra.mxu0 %v1573
    %3305 = vmatprep.subr.mxu0 %v1579
    %3306 = vmatpush1.msra.mxu0 %v1578
    %3307 = vmatprep.subr.mxu0 %v1584
    %3308 = vmatpush1.msra.mxu0 %v1583
    %3309 = vmatprep.subr.mxu0 %v1589
    %3310 = vmatpush1.msra.mxu0 %v1588
    %3311 = vmatprep.subr.mxu0 %v1594
    %3312 = vmatpush1.msra.mxu0 %v1593
    %3313 = vmatprep.subr.mxu0 %v1599
    %3314 = vmatpush1.msra.mxu0 %v1598
    %3315 = vmatprep.subr.mxu0 %v1604
    %3316 = vmatpush1.msra.mxu0 %v1603
    %3317 = vmatprep.subr.mxu0 %v1609
    %3318 = vmatpush1.msra.mxu0 %v1608
    %3319 = vmatprep.subr.mxu0 %v1614
    %3320 = vmatpush1.msra.mxu0 %v1613
    %3321 = vmatprep.subr.mxu0 %v1619
    %3322 = vmatpush1.msra.mxu0 %v1618
    %3323 = vmatprep.subr.mxu0 %v1624
    %3324 = vmatpush1.msra.mxu0 %v1623
    %3325 = vmatprep.subr.mxu0 %v1629
    %3326 = vmatpush1.msra.mxu0 %v1628
    %3327 = vmatprep.subr.mxu0 %v1634
    %3328 = vmatpush1.msra.mxu0 %v1633
    %3329 = vmatprep.subr.mxu0 %v1639
    %3330 = vmatpush1.msra.mxu0 %v1638
    %3331 = vmatprep.subr.mxu0 %v1644
    %3332 = vmatpush1.msra.mxu0 %v1643
    %3333 = vmatprep.subr.mxu0 %v1649
    %3334 = vmatpush1.msra.mxu0 %v1648
    %3335 = vmatprep.subr.mxu0 %v1654
    %3336 = vmatpush1.msra.mxu0 %v1653
    %3337 = vmatprep.subr.mxu0 %v1659
    %3338 = vmatpush1.msra.mxu0 %v1658
    %3339 = vmatprep.subr.mxu0 %v1664
    %3340 = vmatpush1.msra.mxu0 %v1663
    %3341 = vmatprep.subr.mxu0 %v1669
    %3342 = vmatpush1.msra.mxu0 %v1668
    %3343 = vmatprep.subr.mxu0 %v1674
    %3344 = vmatpush1.msra.mxu0 %v1673
    %3345 = vmatprep.subr.mxu0 %v1679
    %3346 = vmatpush1.msra.mxu0 %v1678
    %3347 = vmatprep.subr.mxu0 %v1684
    %3348 = vmatpush1.msra.mxu0 %v1683
    %3349 = vmatprep.subr.mxu0 %v1689
    %3350 = vmatpush1.msra.mxu0 %v1688
    %3351 = vmatprep.subr.mxu0 %v1694
    %3352 = vmatpush1.msra.mxu0 %v1693
    %3353 = vmatprep.subr.mxu0 %v1699
    %3354 = vmatpush1.msra.mxu0 %v1698
    %3355 = vmatprep.subr.mxu0 %v1704
    %3356 = vmatpush1.msra.mxu0 %v1703
    %3357 = vmatprep.subr.mxu0 %v1709
    %3358 = vmatpush1.msra.mxu0 %v1708
    %3359 = vmatprep.subr.mxu0 %v1714
    %3360 = vmatpush1.msra.mxu0 %v1713
    %3361 = vmatprep.subr.mxu0 %v1719
    %3362 = vmatpush1.msra.mxu0 %v1718
    %3363 = vmatprep.subr.mxu0 %v1724
    %3364 = vmatpush1.msra.mxu0 %v1723
    %3365 = vmatprep.mubr.f32.mxu0 %v1393
    %3366 = vmatmul.mubr.f32.gmra.mrb[0].mxu0 %v1392
    %v3367 = vpop.f32.mrb[0].mxu0
    %v3368 = vadd.f32 %v3297, %v3367
    %v3369 = vpop.f32.mrb[0].mxu0
    %v3370 = vadd.f32 %v3299, %v3369
    %3371 = vdwg.mxu0
    %3372 = vmatprep.subr.mxu0 %v1729
    %3373 = vmatpush1.msra.mxu0 %v1728
    %3374 = vmatprep.subr.mxu0 %v1734
    %3375 = vmatpush1.msra.mxu0 %v1733
    %3376 = vmatprep.subr.mxu0 %v1739
    %3377 = vmatpush1.msra.mxu0 %v1738
    %3378 = vmatprep.subr.mxu0 %v1744
    %3379 = vmatpush1.msra.mxu0 %v1743
    %3380 = vmatprep.subr.mxu0 %v1749
    %3381 = vmatpush1.msra.mxu0 %v1748
    %3382 = vmatprep.subr.mxu0 %v1754
    %3383 = vmatpush1.msra.mxu0 %v1753
    %3384 = vmatprep.subr.mxu0 %v1759
    %3385 = vmatpush1.msra.mxu0 %v1758
    %3386 = vmatprep.subr.mxu0 %v1764
    %3387 = vmatpush1.msra.mxu0 %v1763
    %3388 = vmatprep.subr.mxu0 %v1769
    %3389 = vmatpush1.msra.mxu0 %v1768
    %3390 = vmatprep.subr.mxu0 %v1774
    %3391 = vmatpush1.msra.mxu0 %v1773
    %3392 = vmatprep.subr.mxu0 %v1779
    %3393 = vmatpush1.msra.mxu0 %v1778
    %3394 = vmatprep.subr.mxu0 %v1784
    %3395 = vmatpush1.msra.mxu0 %v1783
    %3396 = vmatprep.subr.mxu0 %v1789
    %3397 = vmatpush1.msra.mxu0 %v1788
    %3398 = vmatprep.subr.mxu0 %v1794
    %3399 = vmatpush1.msra.mxu0 %v1793
    %3400 = vmatprep.subr.mxu0 %v1799
    %3401 = vmatpush1.msra.mxu0 %v1798
    %3402 = vmatprep.subr.mxu0 %v1804
    %3403 = vmatpush1.msra.mxu0 %v1803
    %3404 = vmatprep.subr.mxu0 %v1809
    %3405 = vmatpush1.msra.mxu0 %v1808
    %3406 = vmatprep.subr.mxu0 %v1814
    %3407 = vmatpush1.msra.mxu0 %v1813
    %3408 = vmatprep.subr.mxu0 %v1819
    %3409 = vmatpush1.msra.mxu0 %v1818
    %3410 = vmatprep.subr.mxu0 %v1824
    %3411 = vmatpush1.msra.mxu0 %v1823
    %3412 = vmatprep.subr.mxu0 %v1829
    %3413 = vmatpush1.msra.mxu0 %v1828
    %3414 = vmatprep.subr.mxu0 %v1834
    %3415 = vmatpush1.msra.mxu0 %v1833
    %3416 = vmatprep.subr.mxu0 %v1839
    %3417 = vmatpush1.msra.mxu0 %v1838
    %3418 = vmatprep.subr.mxu0 %v1844
    %3419 = vmatpush1.msra.mxu0 %v1843
    %3420 = vmatprep.subr.mxu0 %v1849
    %3421 = vmatpush1.msra.mxu0 %v1848
    %3422 = vmatprep.subr.mxu0 %v1854
    %3423 = vmatpush1.msra.mxu0 %v1853
    %3424 = vmatprep.subr.mxu0 %v1859
    %3425 = vmatpush1.msra.mxu0 %v1858
    %3426 = vmatprep.subr.mxu0 %v1864
    %3427 = vmatpush1.msra.mxu0 %v1863
    %3428 = vmatprep.subr.mxu0 %v1869
    %3429 = vmatpush1.msra.mxu0 %v1868
    %3430 = vmatprep.subr.mxu0 %v1874
    %3431 = vmatpush1.msra.mxu0 %v1873
    %3432 = vmatprep.subr.mxu0 %v1879
    %3433 = vmatpush1.msra.mxu0 %v1878
    %3434 = vmatprep.subr.mxu0 %v1884
    %3435 = vmatpush1.msra.mxu0 %v1883
    %3436 = vmatprep.mubr.f32.mxu0 %v1395
    %3437 = vmatmul.mubr.f32.gmra.mrb[0].mxu0 %v1394
    %v3438 = vpop.f32.mrb[0].mxu0
    %v3439 = vadd.f32 %v3368, %v3438
    %v3440 = vpop.f32.mrb[0].mxu0
    %v3441 = vadd.f32 %v3370, %v3440
    %3442 = vdwg.mxu0
    %3443 = vmatprep.subr.mxu0 %v1889
    %3444 = vmatpush1.msra.mxu0 %v1888
    %3445 = vmatprep.subr.mxu0 %v1894
    %3446 = vmatpush1.msra.mxu0 %v1893
    %3447 = vmatprep.subr.mxu0 %v1899
    %3448 = vmatpush1.msra.mxu0 %v1898
    %3449 = vmatprep.subr.mxu0 %v1904
    %3450 = vmatpush1.msra.mxu0 %v1903
    %3451 = vmatprep.subr.mxu0 %v1909
    %3452 = vmatpush1.msra.mxu0 %v1908
    %3453 = vmatprep.subr.mxu0 %v1914
    %3454 = vmatpush1.msra.mxu0 %v1913
    %3455 = vmatprep.subr.mxu0 %v1919
    %3456 = vmatpush1.msra.mxu0 %v1918
    %3457 = vmatprep.subr.mxu0 %v1924
    %3458 = vmatpush1.msra.mxu0 %v1923
    %3459 = vmatprep.subr.mxu0 %v1929
    %3460 = vmatpush1.msra.mxu0 %v1928
    %3461 = vmatprep.subr.mxu0 %v1934
    %3462 = vmatpush1.msra.mxu0 %v1933
    %3463 = vmatprep.subr.mxu0 %v1939
    %3464 = vmatpush1.msra.mxu0 %v1938
    %3465 = vmatprep.subr.mxu0 %v1944
    %3466 = vmatpush1.msra.mxu0 %v1943
    %3467 = vmatprep.subr.mxu0 %v1949
    %3468 = vmatpush1.msra.mxu0 %v1948
    %3469 = vmatprep.subr.mxu0 %v1954
    %3470 = vmatpush1.msra.mxu0 %v1953
    %3471 = vmatprep.subr.mxu0 %v1959
    %3472 = vmatpush1.msra.mxu0 %v1958
    %3473 = vmatprep.subr.mxu0 %v1964
    %3474 = vmatpush1.msra.mxu0 %v1963
    %3475 = vmatprep.subr.mxu0 %v1969
    %3476 = vmatpush1.msra.mxu0 %v1968
    %3477 = vmatprep.subr.mxu0 %v1974
    %3478 = vmatpush1.msra.mxu0 %v1973
    %3479 = vmatprep.subr.mxu0 %v1979
    %3480 = vmatpush1.msra.mxu0 %v1978
    %3481 = vmatprep.subr.mxu0 %v1984
    %3482 = vmatpush1.msra.mxu0 %v1983
    %3483 = vmatprep.subr.mxu0 %v1989
    %3484 = vmatpush1.msra.mxu0 %v1988
    %3485 = vmatprep.subr.mxu0 %v1994
    %3486 = vmatpush1.msra.mxu0 %v1993
    %3487 = vmatprep.subr.mxu0 %v1999
    %3488 = vmatpush1.msra.mxu0 %v1998
    %3489 = vmatprep.subr.mxu0 %v2004
    %3490 = vmatpush1.msra.mxu0 %v2003
    %3491 = vmatprep.subr.mxu0 %v2009
    %3492 = vmatpush1.msra.mxu0 %v2008
    %3493 = vmatprep.subr.mxu0 %v2014
    %3494 = vmatpush1.msra.mxu0 %v2013
    %3495 = vmatprep.subr.mxu0 %v2019
    %3496 = vmatpush1.msra.mxu0 %v2018
    %3497 = vmatprep.subr.mxu0 %v2024
    %3498 = vmatpush1.msra.mxu0 %v2023
    %3499 = vmatprep.subr.mxu0 %v2029
    %3500 = vmatpush1.msra.mxu0 %v2028
    %3501 = vmatprep.subr.mxu0 %v2034
    %3502 = vmatpush1.msra.mxu0 %v2033
    %3503 = vmatprep.subr.mxu0 %v2039
    %3504 = vmatpush1.msra.mxu0 %v2038
    %3505 = vmatprep.subr.mxu0 %v2044
    %3506 = vmatpush1.msra.mxu0 %v2043
    %3507 = vmatprep.mubr.f32.mxu0 %v1397
    %3508 = vmatmul.mubr.f32.gmra.mrb[0].mxu0 %v1396
    %v3509 = vpop.f32.mrb[0].mxu0
    %v3510 = vadd.f32 %v3439, %v3509
    %v3511 = vpop.f32.mrb[0].mxu0
    %v3512 = vadd.f32 %v3441, %v3511
    %3513 = vdwg.mxu0
    %3514 = vmatprep.subr.mxu0 %v2049
    %3515 = vmatpush1.msra.mxu0 %v2048
    %3516 = vmatprep.subr.mxu0 %v2054
    %3517 = vmatpush1.msra.mxu0 %v2053
    %3518 = vmatprep.subr.mxu0 %v2059
    %3519 = vmatpush1.msra.mxu0 %v2058
    %3520 = vmatprep.subr.mxu0 %v2064
    %3521 = vmatpush1.msra.mxu0 %v2063
    %3522 = vmatprep.subr.mxu0 %v2069
    %3523 = vmatpush1.msra.mxu0 %v2068
    %3524 = vmatprep.subr.mxu0 %v2074
    %3525 = vmatpush1.msra.mxu0 %v2073
    %3526 = vmatprep.subr.mxu0 %v2079
    %3527 = vmatpush1.msra.mxu0 %v2078
    %3528 = vmatprep.subr.mxu0 %v2084
    %3529 = vmatpush1.msra.mxu0 %v2083
    %3530 = vmatprep.subr.mxu0 %v2089
    %3531 = vmatpush1.msra.mxu0 %v2088
    %3532 = vmatprep.subr.mxu0 %v2094
    %3533 = vmatpush1.msra.mxu0 %v2093
    %3534 = vmatprep.subr.mxu0 %v2099
    %3535 = vmatpush1.msra.mxu0 %v2098
    %3536 = vmatprep.subr.mxu0 %v2104
    %3537 = vmatpush1.msra.mxu0 %v2103
    %3538 = vmatprep.subr.mxu0 %v2109
    %3539 = vmatpush1.msra.mxu0 %v2108
    %3540 = vmatprep.subr.mxu0 %v2114
    %3541 = vmatpush1.msra.mxu0 %v2113
    %3542 = vmatprep.subr.mxu0 %v2119
    %3543 = vmatpush1.msra.mxu0 %v2118
    %3544 = vmatprep.subr.mxu0 %v2124
    %3545 = vmatpush1.msra.mxu0 %v2123
    %3546 = vmatprep.subr.mxu0 %v2129
    %3547 = vmatpush1.msra.mxu0 %v2128
    %3548 = vmatprep.subr.mxu0 %v2134
    %3549 = vmatpush1.msra.mxu0 %v2133
    %3550 = vmatprep.subr.mxu0 %v2139
    %3551 = vmatpush1.msra.mxu0 %v2138
    %3552 = vmatprep.subr.mxu0 %v2144
    %3553 = vmatpush1.msra.mxu0 %v2143
    %3554 = vmatprep.subr.mxu0 %v2149
    %3555 = vmatpush1.msra.mxu0 %v2148
    %3556 = vmatprep.subr.mxu0 %v2154
    %3557 = vmatpush1.msra.mxu0 %v2153
    %3558 = vmatprep.subr.mxu0 %v2159
    %3559 = vmatpush1.msra.mxu0 %v2158
    %3560 = vmatprep.subr.mxu0 %v2164
    %3561 = vmatpush1.msra.mxu0 %v2163
    %3562 = vmatprep.subr.mxu0 %v2169
    %3563 = vmatpush1.msra.mxu0 %v2168
    %3564 = vmatprep.subr.mxu0 %v2174
    %3565 = vmatpush1.msra.mxu0 %v2173
    %3566 = vmatprep.subr.mxu0 %v2179
    %3567 = vmatpush1.msra.mxu0 %v2178
    %3568 = vmatprep.subr.mxu0 %v2184
    %3569 = vmatpush1.msra.mxu0 %v2183
    %3570 = vmatprep.subr.mxu0 %v2189
    %3571 = vmatpush1.msra.mxu0 %v2188
    %3572 = vmatprep.subr.mxu0 %v2194
    %3573 = vmatpush1.msra.mxu0 %v2193
    %3574 = vmatprep.subr.mxu0 %v2199
    %3575 = vmatpush1.msra.mxu0 %v2198
    %3576 = vmatprep.subr.mxu0 %v2204
    %3577 = vmatpush1.msra.mxu0 %v2203
    %3578 = vmatprep.mubr.f32.mxu0 %v1399
    %3579 = vmatmul.mubr.f32.gmra.mrb[0].mxu0 %v1398
    %v3580 = vpop.f32.mrb[0].mxu0
    %v3581 = vadd.f32 %v3510, %v3580
    %v3582 = vpop.f32.mrb[0].mxu0
    %v3583 = vadd.f32 %v3512, %v3582
    %3584 = vdwg.mxu0
    %3585 = vmatprep.subr.mxu0 %v2209
    %3586 = vmatpush1.msra.mxu0 %v2208
    %3587 = vmatprep.subr.mxu0 %v2214
    %3588 = vmatpush1.msra.mxu0 %v2213
    %3589 = vmatprep.subr.mxu0 %v2219
    %3590 = vmatpush1.msra.mxu0 %v2218
    %3591 = vmatprep.subr.mxu0 %v2224
    %3592 = vmatpush1.msra.mxu0 %v2223
    %3593 = vmatprep.subr.mxu0 %v2229
    %3594 = vmatpush1.msra.mxu0 %v2228
    %3595 = vmatprep.subr.mxu0 %v2234
    %3596 = vmatpush1.msra.mxu0 %v2233
    %3597 = vmatprep.subr.mxu0 %v2239
    %3598 = vmatpush1.msra.mxu0 %v2238
    %3599 = vmatprep.subr.mxu0 %v2244
    %3600 = vmatpush1.msra.mxu0 %v2243
    %3601 = vmatprep.subr.mxu0 %v2249
    %3602 = vmatpush1.msra.mxu0 %v2248
    %3603 = vmatprep.subr.mxu0 %v2254
    %3604 = vmatpush1.msra.mxu0 %v2253
    %3605 = vmatprep.subr.mxu0 %v2259
    %3606 = vmatpush1.msra.mxu0 %v2258
    %3607 = vmatprep.subr.mxu0 %v2264
    %3608 = vmatpush1.msra.mxu0 %v2263
    %3609 = vmatprep.subr.mxu0 %v2269
    %3610 = vmatpush1.msra.mxu0 %v2268
    %3611 = vmatprep.subr.mxu0 %v2274
    %3612 = vmatpush1.msra.mxu0 %v2273
    %3613 = vmatprep.subr.mxu0 %v2279
    %3614 = vmatpush1.msra.mxu0 %v2278
    %3615 = vmatprep.subr.mxu0 %v2284
    %3616 = vmatpush1.msra.mxu0 %v2283
    %3617 = vmatprep.subr.mxu0 %v2289
    %3618 = vmatpush1.msra.mxu0 %v2288
    %3619 = vmatprep.subr.mxu0 %v2294
    %3620 = vmatpush1.msra.mxu0 %v2293
    %3621 = vmatprep.subr.mxu0 %v2299
    %3622 = vmatpush1.msra.mxu0 %v2298
    %3623 = vmatprep.subr.mxu0 %v2304
    %3624 = vmatpush1.msra.mxu0 %v2303
    %3625 = vmatprep.subr.mxu0 %v2309
    %3626 = vmatpush1.msra.mxu0 %v2308
    %3627 = vmatprep.subr.mxu0 %v2314
    %3628 = vmatpush1.msra.mxu0 %v2313
    %3629 = vmatprep.subr.mxu0 %v2319
    %3630 = vmatpush1.msra.mxu0 %v2318
    %3631 = vmatprep.subr.mxu0 %v2324
    %3632 = vmatpush1.msra.mxu0 %v2323
    %3633 = vmatprep.subr.mxu0 %v2329
    %3634 = vmatpush1.msra.mxu0 %v2328
    %3635 = vmatprep.subr.mxu0 %v2334
    %3636 = vmatpush1.msra.mxu0 %v2333
    %3637 = vmatprep.subr.mxu0 %v2339
    %3638 = vmatpush1.msra.mxu0 %v2338
    %3639 = vmatprep.subr.mxu0 %v2344
    %3640 = vmatpush1.msra.mxu0 %v2343
    %3641 = vmatprep.subr.mxu0 %v2349
    %3642 = vmatpush1.msra.mxu0 %v2348
    %3643 = vmatprep.subr.mxu0 %v2354
    %3644 = vmatpush1.msra.mxu0 %v2353
    %3645 = vmatprep.subr.mxu0 %v2359
    %3646 = vmatpush1.msra.mxu0 %v2358
    %3647 = vmatprep.subr.mxu0 %v2364
    %3648 = vmatpush1.msra.mxu0 %v2363
    %3649 = vmatprep.mubr.f32.mxu0 %v1401
    %3650 = vmatmul.mubr.f32.gmra.mrb[0].mxu0 %v1400
    %v3651 = vpop.f32.mrb[0].mxu0
    %v3652 = vadd.f32 %v3581, %v3651
    %v3653 = vpop.f32.mrb[0].mxu0
    %v3654 = vadd.f32 %v3583, %v3653
    %3655 = vdwg.mxu0
    %3656 = vmatprep.subr.mxu0 %v2369
    %3657 = vmatpush1.msra.mxu0 %v2368
    %3658 = vmatprep.subr.mxu0 %v2374
    %3659 = vmatpush1.msra.mxu0 %v2373
    %3660 = vmatprep.subr.mxu0 %v2379
    %3661 = vmatpush1.msra.mxu0 %v2378
    %3662 = vmatprep.subr.mxu0 %v2384
    %3663 = vmatpush1.msra.mxu0 %v2383
    %3664 = vmatprep.subr.mxu0 %v2389
    %3665 = vmatpush1.msra.mxu0 %v2388
    %3666 = vmatprep.subr.mxu0 %v2394
    %3667 = vmatpush1.msra.mxu0 %v2393
    %3668 = vmatprep.subr.mxu0 %v2399
    %3669 = vmatpush1.msra.mxu0 %v2398
    %3670 = vmatprep.subr.mxu0 %v2404
    %3671 = vmatpush1.msra.mxu0 %v2403
    %3672 = vmatprep.subr.mxu0 %v2409
    %3673 = vmatpush1.msra.mxu0 %v2408
    %3674 = vmatprep.subr.mxu0 %v2414
    %3675 = vmatpush1.msra.mxu0 %v2413
    %3676 = vmatprep.subr.mxu0 %v2419
    %3677 = vmatpush1.msra.mxu0 %v2418
    %3678 = vmatprep.subr.mxu0 %v2424
    %3679 = vmatpush1.msra.mxu0 %v2423
    %3680 = vmatprep.subr.mxu0 %v2429
    %3681 = vmatpush1.msra.mxu0 %v2428
    %3682 = vmatprep.subr.mxu0 %v2434
    %3683 = vmatpush1.msra.mxu0 %v2433
    %3684 = vmatprep.subr.mxu0 %v2439
    %3685 = vmatpush1.msra.mxu0 %v2438
    %3686 = vmatprep.subr.mxu0 %v2444
    %3687 = vmatpush1.msra.mxu0 %v2443
    %3688 = vmatprep.subr.mxu0 %v2449
    %3689 = vmatpush1.msra.mxu0 %v2448
    %3690 = vmatprep.subr.mxu0 %v2454
    %3691 = vmatpush1.msra.mxu0 %v2453
    %3692 = vmatprep.subr.mxu0 %v2459
    %3693 = vmatpush1.msra.mxu0 %v2458
    %3694 = vmatprep.subr.mxu0 %v2464
    %3695 = vmatpush1.msra.mxu0 %v2463
    %3696 = vmatprep.subr.mxu0 %v2469
    %3697 = vmatpush1.msra.mxu0 %v2468
    %3698 = vmatprep.subr.mxu0 %v2474
    %3699 = vmatpush1.msra.mxu0 %v2473
    %3700 = vmatprep.subr.mxu0 %v2479
    %3701 = vmatpush1.msra.mxu0 %v2478
    %3702 = vmatprep.subr.mxu0 %v2484
    %3703 = vmatpush1.msra.mxu0 %v2483
    %3704 = vmatprep.subr.mxu0 %v2489
    %3705 = vmatpush1.msra.mxu0 %v2488
    %3706 = vmatprep.subr.mxu0 %v2494
    %3707 = vmatpush1.msra.mxu0 %v2493
    %3708 = vmatprep.subr.mxu0 %v2499
    %3709 = vmatpush1.msra.mxu0 %v2498
    %3710 = vmatprep.subr.mxu0 %v2504
    %3711 = vmatpush1.msra.mxu0 %v2503
    %3712 = vmatprep.subr.mxu0 %v2509
    %3713 = vmatpush1.msra.mxu0 %v2508
    %3714 = vmatprep.subr.mxu0 %v2514
    %3715 = vmatpush1.msra.mxu0 %v2513
    %3716 = vmatprep.subr.mxu0 %v2519
    %3717 = vmatpush1.msra.mxu0 %v2518
    %3718 = vmatprep.subr.mxu0 %v2524
    %3719 = vmatpush1.msra.mxu0 %v2523
    %3720 = vmatprep.mubr.f32.mxu0 %v1403
    %3721 = vmatmul.mubr.f32.gmra.mrb[0].mxu0 %v1402
    %v3722 = vpop.f32.mrb[0].mxu0
    %v3723 = vadd.f32 %v3652, %v3722
    %v3724 = vpop.f32.mrb[0].mxu0
    %v3725 = vadd.f32 %v3654, %v3724
    %3726 = vdwg.mxu0
    %3727 = vmatprep.subr.mxu0 %v2529
    %3728 = vmatpush1.msra.mxu0 %v2528
    %3729 = vmatprep.subr.mxu0 %v2534
    %3730 = vmatpush1.msra.mxu0 %v2533
    %3731 = vmatprep.subr.mxu0 %v2539
    %3732 = vmatpush1.msra.mxu0 %v2538
    %3733 = vmatprep.subr.mxu0 %v2544
    %3734 = vmatpush1.msra.mxu0 %v2543
    %3735 = vmatprep.subr.mxu0 %v2549
    %3736 = vmatpush1.msra.mxu0 %v2548
    %3737 = vmatprep.subr.mxu0 %v2554
    %3738 = vmatpush1.msra.mxu0 %v2553
    %3739 = vmatprep.subr.mxu0 %v2559
    %3740 = vmatpush1.msra.mxu0 %v2558
    %3741 = vmatprep.subr.mxu0 %v2564
    %3742 = vmatpush1.msra.mxu0 %v2563
    %3743 = vmatprep.subr.mxu0 %v2569
    %3744 = vmatpush1.msra.mxu0 %v2568
    %3745 = vmatprep.subr.mxu0 %v2574
    %3746 = vmatpush1.msra.mxu0 %v2573
    %3747 = vmatprep.subr.mxu0 %v2579
    %3748 = vmatpush1.msra.mxu0 %v2578
    %3749 = vmatprep.subr.mxu0 %v2584
    %3750 = vmatpush1.msra.mxu0 %v2583
    %3751 = vmatprep.subr.mxu0 %v2589
    %3752 = vmatpush1.msra.mxu0 %v2588
    %3753 = vmatprep.subr.mxu0 %v2594
    %3754 = vmatpush1.msra.mxu0 %v2593
    %3755 = vmatprep.subr.mxu0 %v2599
    %3756 = vmatpush1.msra.mxu0 %v2598
    %3757 = vmatprep.subr.mxu0 %v2604
    %3758 = vmatpush1.msra.mxu0 %v2603
    %3759 = vmatprep.subr.mxu0 %v2609
    %3760 = vmatpush1.msra.mxu0 %v2608
    %3761 = vmatprep.subr.mxu0 %v2614
    %3762 = vmatpush1.msra.mxu0 %v2613
    %3763 = vmatprep.subr.mxu0 %v2619
    %3764 = vmatpush1.msra.mxu0 %v2618
    %3765 = vmatprep.subr.mxu0 %v2624
    %3766 = vmatpush1.msra.mxu0 %v2623
    %3767 = vmatprep.subr.mxu0 %v2629
    %3768 = vmatpush1.msra.mxu0 %v2628
    %3769 = vmatprep.subr.mxu0 0.0
    %3770 = vmatpush1.msra.mxu0 0.0
    %3771 = vmatprep.subr.mxu0 0.0
    %3772 = vmatpush1.msra.mxu0 0.0
    %3773 = vmatprep.subr.mxu0 0.0
    %3774 = vmatpush1.msra.mxu0 0.0
    %3775 = vmatprep.subr.mxu0 0.0
    %3776 = vmatpush1.msra.mxu0 0.0
    %3777 = vmatprep.subr.mxu0 0.0
    %3778 = vmatpush1.msra.mxu0 0.0
    %3779 = vmatprep.subr.mxu0 0.0
    %3780 = vmatpush1.msra.mxu0 0.0
    %3781 = vmatprep.subr.mxu0 0.0
    %3782 = vmatpush1.msra.mxu0 0.0
    %3783 = vmatprep.subr.mxu0 0.0
    %3784 = vmatpush1.msra.mxu0 0.0
    %3785 = vmatprep.subr.mxu0 0.0
    %3786 = vmatpush1.msra.mxu0 0.0
    %3787 = vmatprep.subr.mxu0 0.0
    %3788 = vmatpush1.msra.mxu0 0.0
    %3789 = vmatprep.subr.mxu0 0.0
    %3790 = vmatpush1.msra.mxu0 0.0
    %3791 = vmatprep.mubr.f32.mxu0 %v2660
    %3792 = vmatmul.mubr.f32.gmra.mrb[0].mxu0 %v1404
    %v3793 = vpop.f32.mrb[0].mxu0
    %v3794 = vadd.f32 %v3723, %v3793
    %v3795 = vpop.f32.mrb[0].mxu0
    %v3796 = vadd.f32 %v3725, %v3795
    %3797 = vdwg.mxu0
    %3798 = vmatprep.subr.mxu0 0.0
    %3799 = vmatpush1.msra.mxu0 %v1410
    %3800 = vmatprep.subr.mxu0 0.0
    %3801 = vmatpush1.msra.mxu0 %v1415
    %3802 = vmatprep.subr.mxu0 0.0
    %3803 = vmatpush1.msra.mxu0 %v1420
    %3804 = vmatprep.subr.mxu0 0.0
    %3805 = vmatpush1.msra.mxu0 %v1425
    %3806 = vmatprep.subr.mxu0 0.0
    %3807 = vmatpush1.msra.mxu0 %v1430
    %3808 = vmatprep.subr.mxu0 0.0
    %3809 = vmatpush1.msra.mxu0 %v1435
    %3810 = vmatprep.subr.mxu0 0.0
    %3811 = vmatpush1.msra.mxu0 %v1440
    %3812 = vmatprep.subr.mxu0 0.0
    %3813 = vmatpush1.msra.mxu0 %v1445
    %3814 = vmatprep.subr.mxu0 0.0
    %3815 = vmatpush1.msra.mxu0 %v1450
    %3816 = vmatprep.subr.mxu0 0.0
    %3817 = vmatpush1.msra.mxu0 %v1455
    %3818 = vmatprep.subr.mxu0 0.0
    %3819 = vmatpush1.msra.mxu0 %v1460
    %3820 = vmatprep.subr.mxu0 0.0
    %3821 = vmatpush1.msra.mxu0 %v1465
    %3822 = vmatprep.subr.mxu0 0.0
    %3823 = vmatpush1.msra.mxu0 %v1470
    %3824 = vmatprep.subr.mxu0 0.0
    %3825 = vmatpush1.msra.mxu0 %v1475
    %3826 = vmatprep.subr.mxu0 0.0
    %3827 = vmatpush1.msra.mxu0 %v1480
    %3828 = vmatprep.subr.mxu0 0.0
    %3829 = vmatpush1.msra.mxu0 %v1485
    %3830 = vmatprep.subr.mxu0 0.0
    %3831 = vmatpush1.msra.mxu0 %v1490
    %3832 = vmatprep.subr.mxu0 0.0
    %3833 = vmatpush1.msra.mxu0 %v1495
    %3834 = vmatprep.subr.mxu0 0.0
    %3835 = vmatpush1.msra.mxu0 %v1500
    %3836 = vmatprep.subr.mxu0 0.0
    %3837 = vmatpush1.msra.mxu0 %v1505
    %3838 = vmatprep.subr.mxu0 0.0
    %3839 = vmatpush1.msra.mxu0 %v1510
    %3840 = vmatprep.subr.mxu0 0.0
    %3841 = vmatpush1.msra.mxu0 %v1515
    %3842 = vmatprep.subr.mxu0 0.0
    %3843 = vmatpush1.msra.mxu0 %v1520
    %3844 = vmatprep.subr.mxu0 0.0
    %3845 = vmatpush1.msra.mxu0 %v1525
    %3846 = vmatprep.subr.mxu0 0.0
    %3847 = vmatpush1.msra.mxu0 %v1530
    %3848 = vmatprep.subr.mxu0 0.0
    %3849 = vmatpush1.msra.mxu0 %v1535
    %3850 = vmatprep.subr.mxu0 0.0
    %3851 = vmatpush1.msra.mxu0 %v1540
    %3852 = vmatprep.subr.mxu0 0.0
    %3853 = vmatpush1.msra.mxu0 %v1545
    %3854 = vmatprep.subr.mxu0 0.0
    %3855 = vmatpush1.msra.mxu0 %v1550
    %3856 = vmatprep.subr.mxu0 0.0
    %3857 = vmatpush1.msra.mxu0 %v1555
    %3858 = vmatprep.subr.mxu0 0.0
    %3859 = vmatpush1.msra.mxu0 %v1560
    %3860 = vmatprep.subr.mxu0 0.0
    %3861 = vmatpush1.msra.mxu0 %v1565
    %3862 = vmatprep.mubr.f32.mxu0 %v1391
    %3863 = vmatmul.mubr.f32.gmra.mrb[0].mxu0 %v1390
    %v3864 = vpop.f32.mrb[0].mxu0
    %v3865 = vadd.f32 %v2652, %v3864
    %v3866 = vpop.f32.mrb[0].mxu0
    %3867 = vdwg.mxu0
    %3868 = vmatprep.subr.mxu0 0.0
    %3869 = vmatpush1.msra.mxu0 %v1570
    %3870 = vmatprep.subr.mxu0 0.0
    %3871 = vmatpush1.msra.mxu0 %v1575
    %3872 = vmatprep.subr.mxu0 0.0
    %3873 = vmatpush1.msra.mxu0 %v1580
    %3874 = vmatprep.subr.mxu0 0.0
    %3875 = vmatpush1.msra.mxu0 %v1585
    %3876 = vmatprep.subr.mxu0 0.0
    %3877 = vmatpush1.msra.mxu0 %v1590
    %3878 = vmatprep.subr.mxu0 0.0
    %3879 = vmatpush1.msra.mxu0 %v1595
    %3880 = vmatprep.subr.mxu0 0.0
    %3881 = vmatpush1.msra.mxu0 %v1600
    %3882 = vmatprep.subr.mxu0 0.0
    %3883 = vmatpush1.msra.mxu0 %v1605
    %3884 = vmatprep.subr.mxu0 0.0
    %3885 = vmatpush1.msra.mxu0 %v1610
    %3886 = vmatprep.subr.mxu0 0.0
    %3887 = vmatpush1.msra.mxu0 %v1615
    %3888 = vmatprep.subr.mxu0 0.0
    %3889 = vmatpush1.msra.mxu0 %v1620
    %3890 = vmatprep.subr.mxu0 0.0
    %3891 = vmatpush1.msra.mxu0 %v1625
    %3892 = vmatprep.subr.mxu0 0.0
    %3893 = vmatpush1.msra.mxu0 %v1630
    %3894 = vmatprep.subr.mxu0 0.0
    %3895 = vmatpush1.msra.mxu0 %v1635
    %3896 = vmatprep.subr.mxu0 0.0
    %3897 = vmatpush1.msra.mxu0 %v1640
    %3898 = vmatprep.subr.mxu0 0.0
    %3899 = vmatpush1.msra.mxu0 %v1645
    %3900 = vmatprep.subr.mxu0 0.0
    %3901 = vmatpush1.msra.mxu0 %v1650
    %3902 = vmatprep.subr.mxu0 0.0
    %3903 = vmatpush1.msra.mxu0 %v1655
    %3904 = vmatprep.subr.mxu0 0.0
    %3905 = vmatpush1.msra.mxu0 %v1660
    %3906 = vmatprep.subr.mxu0 0.0
    %3907 = vmatpush1.msra.mxu0 %v1665
    %3908 = vmatprep.subr.mxu0 0.0
    %3909 = vmatpush1.msra.mxu0 %v1670
    %3910 = vmatprep.subr.mxu0 0.0
    %3911 = vmatpush1.msra.mxu0 %v1675
    %3912 = vmatprep.subr.mxu0 0.0
    %3913 = vmatpush1.msra.mxu0 %v1680
    %3914 = vmatprep.subr.mxu0 0.0
    %3915 = vmatpush1.msra.mxu0 %v1685
    %3916 = vmatprep.subr.mxu0 0.0
    %3917 = vmatpush1.msra.mxu0 %v1690
    %3918 = vmatprep.subr.mxu0 0.0
    %3919 = vmatpush1.msra.mxu0 %v1695
    %3920 = vmatprep.subr.mxu0 0.0
    %3921 = vmatpush1.msra.mxu0 %v1700
    %3922 = vmatprep.subr.mxu0 0.0
    %3923 = vmatpush1.msra.mxu0 %v1705
    %3924 = vmatprep.subr.mxu0 0.0
    %3925 = vmatpush1.msra.mxu0 %v1710
    %3926 = vmatprep.subr.mxu0 0.0
    %3927 = vmatpush1.msra.mxu0 %v1715
    %3928 = vmatprep.subr.mxu0 0.0
    %3929 = vmatpush1.msra.mxu0 %v1720
    %3930 = vmatprep.subr.mxu0 0.0
    %3931 = vmatpush1.msra.mxu0 %v1725
    %3932 = vmatprep.mubr.f32.mxu0 %v1393
    %3933 = vmatmul.mubr.f32.gmra.mrb[0].mxu0 %v1392
    %v3934 = vpop.f32.mrb[0].mxu0
    %v3935 = vadd.f32 %v3865, %v3934
    %v3936 = vpop.f32.mrb[0].mxu0
    %3937 = vdwg.mxu0
    %3938 = vmatprep.subr.mxu0 0.0
    %3939 = vmatpush1.msra.mxu0 %v1730
    %3940 = vmatprep.subr.mxu0 0.0
    %3941 = vmatpush1.msra.mxu0 %v1735
    %3942 = vmatprep.subr.mxu0 0.0
    %3943 = vmatpush1.msra.mxu0 %v1740
    %3944 = vmatprep.subr.mxu0 0.0
    %3945 = vmatpush1.msra.mxu0 %v1745
    %3946 = vmatprep.subr.mxu0 0.0
    %3947 = vmatpush1.msra.mxu0 %v1750
    %3948 = vmatprep.subr.mxu0 0.0
    %3949 = vmatpush1.msra.mxu0 %v1755
    %3950 = vmatprep.subr.mxu0 0.0
    %3951 = vmatpush1.msra.mxu0 %v1760
    %3952 = vmatprep.subr.mxu0 0.0
    %3953 = vmatpush1.msra.mxu0 %v1765
    %3954 = vmatprep.subr.mxu0 0.0
    %3955 = vmatpush1.msra.mxu0 %v1770
    %3956 = vmatprep.subr.mxu0 0.0
    %3957 = vmatpush1.msra.mxu0 %v1775
    %3958 = vmatprep.subr.mxu0 0.0
    %3959 = vmatpush1.msra.mxu0 %v1780
    %3960 = vmatprep.subr.mxu0 0.0
    %3961 = vmatpush1.msra.mxu0 %v1785
    %3962 = vmatprep.subr.mxu0 0.0
    %3963 = vmatpush1.msra.mxu0 %v1790
    %3964 = vmatprep.subr.mxu0 0.0
    %3965 = vmatpush1.msra.mxu0 %v1795
    %3966 = vmatprep.subr.mxu0 0.0
    %3967 = vmatpush1.msra.mxu0 %v1800
    %3968 = vmatprep.subr.mxu0 0.0
    %3969 = vmatpush1.msra.mxu0 %v1805
    %3970 = vmatprep.subr.mxu0 0.0
    %3971 = vmatpush1.msra.mxu0 %v1810
    %3972 = vmatprep.subr.mxu0 0.0
    %3973 = vmatpush1.msra.mxu0 %v1815
    %3974 = vmatprep.subr.mxu0 0.0
    %3975 = vmatpush1.msra.mxu0 %v1820
    %3976 = vmatprep.subr.mxu0 0.0
    %3977 = vmatpush1.msra.mxu0 %v1825
    %3978 = vmatprep.subr.mxu0 0.0
    %3979 = vmatpush1.msra.mxu0 %v1830
    %3980 = vmatprep.subr.mxu0 0.0
    %3981 = vmatpush1.msra.mxu0 %v1835
    %3982 = vmatprep.subr.mxu0 0.0
    %3983 = vmatpush1.msra.mxu0 %v1840
    %3984 = vmatprep.subr.mxu0 0.0
    %3985 = vmatpush1.msra.mxu0 %v1845
    %3986 = vmatprep.subr.mxu0 0.0
    %3987 = vmatpush1.msra.mxu0 %v1850
    %3988 = vmatprep.subr.mxu0 0.0
    %3989 = vmatpush1.msra.mxu0 %v1855
    %3990 = vmatprep.subr.mxu0 0.0
    %3991 = vmatpush1.msra.mxu0 %v1860
    %3992 = vmatprep.subr.mxu0 0.0
    %3993 = vmatpush1.msra.mxu0 %v1865
    %3994 = vmatprep.subr.mxu0 0.0
    %3995 = vmatpush1.msra.mxu0 %v1870
    %3996 = vmatprep.subr.mxu0 0.0
    %3997 = vmatpush1.msra.mxu0 %v1875
    %3998 = vmatprep.subr.mxu0 0.0
    %3999 = vmatpush1.msra.mxu0 %v1880
    %4000 = vmatprep.subr.mxu0 0.0
    %4001 = vmatpush1.msra.mxu0 %v1885
    %4002 = vmatprep.mubr.f32.mxu0 %v1395
    %4003 = vmatmul.mubr.f32.gmra.mrb[0].mxu0 %v1394
    %v4004 = vpop.f32.mrb[0].mxu0
    %v4005 = vadd.f32 %v3935, %v4004
    %v4006 = vpop.f32.mrb[0].mxu0
    %4007 = vdwg.mxu0
    %4008 = vmatprep.subr.mxu0 0.0
    %4009 = vmatpush1.msra.mxu0 %v1890
    %4010 = vmatprep.subr.mxu0 0.0
    %4011 = vmatpush1.msra.mxu0 %v1895
    %4012 = vmatprep.subr.mxu0 0.0
    %4013 = vmatpush1.msra.mxu0 %v1900
    %4014 = vmatprep.subr.mxu0 0.0
    %4015 = vmatpush1.msra.mxu0 %v1905
    %4016 = vmatprep.subr.mxu0 0.0
    %4017 = vmatpush1.msra.mxu0 %v1910
    %4018 = vmatprep.subr.mxu0 0.0
    %4019 = vmatpush1.msra.mxu0 %v1915
    %4020 = vmatprep.subr.mxu0 0.0
    %4021 = vmatpush1.msra.mxu0 %v1920
    %4022 = vmatprep.subr.mxu0 0.0
    %4023 = vmatpush1.msra.mxu0 %v1925
    %4024 = vmatprep.subr.mxu0 0.0
    %4025 = vmatpush1.msra.mxu0 %v1930
    %4026 = vmatprep.subr.mxu0 0.0
    %4027 = vmatpush1.msra.mxu0 %v1935
    %4028 = vmatprep.subr.mxu0 0.0
    %4029 = vmatpush1.msra.mxu0 %v1940
    %4030 = vmatprep.subr.mxu0 0.0
    %4031 = vmatpush1.msra.mxu0 %v1945
    %4032 = vmatprep.subr.mxu0 0.0
    %4033 = vmatpush1.msra.mxu0 %v1950
    %4034 = vmatprep.subr.mxu0 0.0
    %4035 = vmatpush1.msra.mxu0 %v1955
    %4036 = vmatprep.subr.mxu0 0.0
    %4037 = vmatpush1.msra.mxu0 %v1960
    %4038 = vmatprep.subr.mxu0 0.0
    %4039 = vmatpush1.msra.mxu0 %v1965
    %4040 = vmatprep.subr.mxu0 0.0
    %4041 = vmatpush1.msra.mxu0 %v1970
    %4042 = vmatprep.subr.mxu0 0.0
    %4043 = vmatpush1.msra.mxu0 %v1975
    %4044 = vmatprep.subr.mxu0 0.0
    %4045 = vmatpush1.msra.mxu0 %v1980
    %4046 = vmatprep.subr.mxu0 0.0
    %4047 = vmatpush1.msra.mxu0 %v1985
    %4048 = vmatprep.subr.mxu0 0.0
    %4049 = vmatpush1.msra.mxu0 %v1990
    %4050 = vmatprep.subr.mxu0 0.0
    %4051 = vmatpush1.msra.mxu0 %v1995
    %4052 = vmatprep.subr.mxu0 0.0
    %4053 = vmatpush1.msra.mxu0 %v2000
    %4054 = vmatprep.subr.mxu0 0.0
    %4055 = vmatpush1.msra.mxu0 %v2005
    %4056 = vmatprep.subr.mxu0 0.0
    %4057 = vmatpush1.msra.mxu0 %v2010
    %4058 = vmatprep.subr.mxu0 0.0
    %4059 = vmatpush1.msra.mxu0 %v2015
    %4060 = vmatprep.subr.mxu0 0.0
    %4061 = vmatpush1.msra.mxu0 %v2020
    %4062 = vmatprep.subr.mxu0 0.0
    %4063 = vmatpush1.msra.mxu0 %v2025
    %4064 = vmatprep.subr.mxu0 0.0
    %4065 = vmatpush1.msra.mxu0 %v2030
    %4066 = vmatprep.subr.mxu0 0.0
    %4067 = vmatpush1.msra.mxu0 %v2035
    %4068 = vmatprep.subr.mxu0 0.0
    %4069 = vmatpush1.msra.mxu0 %v2040
    %4070 = vmatprep.subr.mxu0 0.0
    %4071 = vmatpush1.msra.mxu0 %v2045
    %4072 = vmatprep.mubr.f32.mxu0 %v1397
    %4073 = vmatmul.mubr.f32.gmra.mrb[0].mxu0 %v1396
    %v4074 = vpop.f32.mrb[0].mxu0
    %v4075 = vadd.f32 %v4005, %v4074
    %v4076 = vpop.f32.mrb[0].mxu0
    %4077 = vdwg.mxu0
    %4078 = vmatprep.subr.mxu0 0.0
    %4079 = vmatpush1.msra.mxu0 %v2050
    %4080 = vmatprep.subr.mxu0 0.0
    %4081 = vmatpush1.msra.mxu0 %v2055
    %4082 = vmatprep.subr.mxu0 0.0
    %4083 = vmatpush1.msra.mxu0 %v2060
    %4084 = vmatprep.subr.mxu0 0.0
    %4085 = vmatpush1.msra.mxu0 %v2065
    %4086 = vmatprep.subr.mxu0 0.0
    %4087 = vmatpush1.msra.mxu0 %v2070
    %4088 = vmatprep.subr.mxu0 0.0
    %4089 = vmatpush1.msra.mxu0 %v2075
    %4090 = vmatprep.subr.mxu0 0.0
    %4091 = vmatpush1.msra.mxu0 %v2080
    %4092 = vmatprep.subr.mxu0 0.0
    %4093 = vmatpush1.msra.mxu0 %v2085
    %4094 = vmatprep.subr.mxu0 0.0
    %4095 = vmatpush1.msra.mxu0 %v2090
    %4096 = vmatprep.subr.mxu0 0.0
    %4097 = vmatpush1.msra.mxu0 %v2095
    %4098 = vmatprep.subr.mxu0 0.0
    %4099 = vmatpush1.msra.mxu0 %v2100
    %4100 = vmatprep.subr.mxu0 0.0
    %4101 = vmatpush1.msra.mxu0 %v2105
    %4102 = vmatprep.subr.mxu0 0.0
    %4103 = vmatpush1.msra.mxu0 %v2110
    %4104 = vmatprep.subr.mxu0 0.0
    %4105 = vmatpush1.msra.mxu0 %v2115
    %4106 = vmatprep.subr.mxu0 0.0
    %4107 = vmatpush1.msra.mxu0 %v2120
    %4108 = vmatprep.subr.mxu0 0.0
    %4109 = vmatpush1.msra.mxu0 %v2125
    %4110 = vmatprep.subr.mxu0 0.0
    %4111 = vmatpush1.msra.mxu0 %v2130
    %4112 = vmatprep.subr.mxu0 0.0
    %4113 = vmatpush1.msra.mxu0 %v2135
    %4114 = vmatprep.subr.mxu0 0.0
    %4115 = vmatpush1.msra.mxu0 %v2140
    %4116 = vmatprep.subr.mxu0 0.0
    %4117 = vmatpush1.msra.mxu0 %v2145
    %4118 = vmatprep.subr.mxu0 0.0
    %4119 = vmatpush1.msra.mxu0 %v2150
    %4120 = vmatprep.subr.mxu0 0.0
    %4121 = vmatpush1.msra.mxu0 %v2155
    %4122 = vmatprep.subr.mxu0 0.0
    %4123 = vmatpush1.msra.mxu0 %v2160
    %4124 = vmatprep.subr.mxu0 0.0
    %4125 = vmatpush1.msra.mxu0 %v2165
    %4126 = vmatprep.subr.mxu0 0.0
    %4127 = vmatpush1.msra.mxu0 %v2170
    %4128 = vmatprep.subr.mxu0 0.0
    %4129 = vmatpush1.msra.mxu0 %v2175
    %4130 = vmatprep.subr.mxu0 0.0
    %4131 = vmatpush1.msra.mxu0 %v2180
    %4132 = vmatprep.subr.mxu0 0.0
    %4133 = vmatpush1.msra.mxu0 %v2185
    %4134 = vmatprep.subr.mxu0 0.0
    %4135 = vmatpush1.msra.mxu0 %v2190
    %4136 = vmatprep.subr.mxu0 0.0
    %4137 = vmatpush1.msra.mxu0 %v2195
    %4138 = vmatprep.subr.mxu0 0.0
    %4139 = vmatpush1.msra.mxu0 %v2200
    %4140 = vmatprep.subr.mxu0 0.0
    %4141 = vmatpush1.msra.mxu0 %v2205
    %4142 = vmatprep.mubr.f32.mxu0 %v1399
    %4143 = vmatmul.mubr.f32.gmra.mrb[0].mxu0 %v1398
    %v4144 = vpop.f32.mrb[0].mxu0
    %v4145 = vadd.f32 %v4075, %v4144
    %v4146 = vpop.f32.mrb[0].mxu0
    %4147 = vdwg.mxu0
    %4148 = vmatprep.subr.mxu0 0.0
    %4149 = vmatpush1.msra.mxu0 %v2210
    %4150 = vmatprep.subr.mxu0 0.0
    %4151 = vmatpush1.msra.mxu0 %v2215
    %4152 = vmatprep.subr.mxu0 0.0
    %4153 = vmatpush1.msra.mxu0 %v2220
    %4154 = vmatprep.subr.mxu0 0.0
    %4155 = vmatpush1.msra.mxu0 %v2225
    %4156 = vmatprep.subr.mxu0 0.0
    %4157 = vmatpush1.msra.mxu0 %v2230
    %4158 = vmatprep.subr.mxu0 0.0
    %4159 = vmatpush1.msra.mxu0 %v2235
    %4160 = vmatprep.subr.mxu0 0.0
    %4161 = vmatpush1.msra.mxu0 %v2240
    %4162 = vmatprep.subr.mxu0 0.0
    %4163 = vmatpush1.msra.mxu0 %v2245
    %4164 = vmatprep.subr.mxu0 0.0
    %4165 = vmatpush1.msra.mxu0 %v2250
    %4166 = vmatprep.subr.mxu0 0.0
    %4167 = vmatpush1.msra.mxu0 %v2255
    %4168 = vmatprep.subr.mxu0 0.0
    %4169 = vmatpush1.msra.mxu0 %v2260
    %4170 = vmatprep.subr.mxu0 0.0
    %4171 = vmatpush1.msra.mxu0 %v2265
    %4172 = vmatprep.subr.mxu0 0.0
    %4173 = vmatpush1.msra.mxu0 %v2270
    %4174 = vmatprep.subr.mxu0 0.0
    %4175 = vmatpush1.msra.mxu0 %v2275
    %4176 = vmatprep.subr.mxu0 0.0
    %4177 = vmatpush1.msra.mxu0 %v2280
    %4178 = vmatprep.subr.mxu0 0.0
    %4179 = vmatpush1.msra.mxu0 %v2285
    %4180 = vmatprep.subr.mxu0 0.0
    %4181 = vmatpush1.msra.mxu0 %v2290
    %4182 = vmatprep.subr.mxu0 0.0
    %4183 = vmatpush1.msra.mxu0 %v2295
    %4184 = vmatprep.subr.mxu0 0.0
    %4185 = vmatpush1.msra.mxu0 %v2300
    %4186 = vmatprep.subr.mxu0 0.0
    %4187 = vmatpush1.msra.mxu0 %v2305
    %4188 = vmatprep.subr.mxu0 0.0
    %4189 = vmatpush1.msra.mxu0 %v2310
    %4190 = vmatprep.subr.mxu0 0.0
    %4191 = vmatpush1.msra.mxu0 %v2315
    %4192 = vmatprep.subr.mxu0 0.0
    %4193 = vmatpush1.msra.mxu0 %v2320
    %4194 = vmatprep.subr.mxu0 0.0
    %4195 = vmatpush1.msra.mxu0 %v2325
    %4196 = vmatprep.subr.mxu0 0.0
    %4197 = vmatpush1.msra.mxu0 %v2330
    %4198 = vmatprep.subr.mxu0 0.0
    %4199 = vmatpush1.msra.mxu0 %v2335
    %4200 = vmatprep.subr.mxu0 0.0
    %4201 = vmatpush1.msra.mxu0 %v2340
    %4202 = vmatprep.subr.mxu0 0.0
    %4203 = vmatpush1.msra.mxu0 %v2345
    %4204 = vmatprep.subr.mxu0 0.0
    %4205 = vmatpush1.msra.mxu0 %v2350
    %4206 = vmatprep.subr.mxu0 0.0
    %4207 = vmatpush1.msra.mxu0 %v2355
    %4208 = vmatprep.subr.mxu0 0.0
    %4209 = vmatpush1.msra.mxu0 %v2360
    %4210 = vmatprep.subr.mxu0 0.0
    %4211 = vmatpush1.msra.mxu0 %v2365
    %4212 = vmatprep.mubr.f32.mxu0 %v1401
    %4213 = vmatmul.mubr.f32.gmra.mrb[0].mxu0 %v1400
    %v4214 = vpop.f32.mrb[0].mxu0
    %v4215 = vadd.f32 %v4145, %v4214
    %v4216 = vpop.f32.mrb[0].mxu0
    %4217 = vdwg.mxu0
    %4218 = vmatprep.subr.mxu0 0.0
    %4219 = vmatpush1.msra.mxu0 %v2370
    %4220 = vmatprep.subr.mxu0 0.0
    %4221 = vmatpush1.msra.mxu0 %v2375
    %4222 = vmatprep.subr.mxu0 0.0
    %4223 = vmatpush1.msra.mxu0 %v2380
    %4224 = vmatprep.subr.mxu0 0.0
    %4225 = vmatpush1.msra.mxu0 %v2385
    %4226 = vmatprep.subr.mxu0 0.0
    %4227 = vmatpush1.msra.mxu0 %v2390
    %4228 = vmatprep.subr.mxu0 0.0
    %4229 = vmatpush1.msra.mxu0 %v2395
    %4230 = vmatprep.subr.mxu0 0.0
    %4231 = vmatpush1.msra.mxu0 %v2400
    %4232 = vmatprep.subr.mxu0 0.0
    %4233 = vmatpush1.msra.mxu0 %v2405
    %4234 = vmatprep.subr.mxu0 0.0
    %4235 = vmatpush1.msra.mxu0 %v2410
    %4236 = vmatprep.subr.mxu0 0.0
    %4237 = vmatpush1.msra.mxu0 %v2415
    %4238 = vmatprep.subr.mxu0 0.0
    %4239 = vmatpush1.msra.mxu0 %v2420
    %4240 = vmatprep.subr.mxu0 0.0
    %4241 = vmatpush1.msra.mxu0 %v2425
    %4242 = vmatprep.subr.mxu0 0.0
    %4243 = vmatpush1.msra.mxu0 %v2430
    %4244 = vmatprep.subr.mxu0 0.0
    %4245 = vmatpush1.msra.mxu0 %v2435
    %4246 = vmatprep.subr.mxu0 0.0
    %4247 = vmatpush1.msra.mxu0 %v2440
    %4248 = vmatprep.subr.mxu0 0.0
    %4249 = vmatpush1.msra.mxu0 %v2445
    %4250 = vmatprep.subr.mxu0 0.0
    %4251 = vmatpush1.msra.mxu0 %v2450
    %4252 = vmatprep.subr.mxu0 0.0
    %4253 = vmatpush1.msra.mxu0 %v2455
    %4254 = vmatprep.subr.mxu0 0.0
    %4255 = vmatpush1.msra.mxu0 %v2460
    %4256 = vmatprep.subr.mxu0 0.0
    %4257 = vmatpush1.msra.mxu0 %v2465
    %4258 = vmatprep.subr.mxu0 0.0
    %4259 = vmatpush1.msra.mxu0 %v2470
    %4260 = vmatprep.subr.mxu0 0.0
    %4261 = vmatpush1.msra.mxu0 %v2475
    %4262 = vmatprep.subr.mxu0 0.0
    %4263 = vmatpush1.msra.mxu0 %v2480
    %4264 = vmatprep.subr.mxu0 0.0
    %4265 = vmatpush1.msra.mxu0 %v2485
    %4266 = vmatprep.subr.mxu0 0.0
    %4267 = vmatpush1.msra.mxu0 %v2490
    %4268 = vmatprep.subr.mxu0 0.0
    %4269 = vmatpush1.msra.mxu0 %v2495
    %4270 = vmatprep.subr.mxu0 0.0
    %4271 = vmatpush1.msra.mxu0 %v2500
    %4272 = vmatprep.subr.mxu0 0.0
    %4273 = vmatpush1.msra.mxu0 %v2505
    %4274 = vmatprep.subr.mxu0 0.0
    %4275 = vmatpush1.msra.mxu0 %v2510
    %4276 = vmatprep.subr.mxu0 0.0
    %4277 = vmatpush1.msra.mxu0 %v2515
    %4278 = vmatprep.subr.mxu0 0.0
    %4279 = vmatpush1.msra.mxu0 %v2520
    %4280 = vmatprep.subr.mxu0 0.0
    %4281 = vmatpush1.msra.mxu0 %v2525
    %4282 = vmatprep.mubr.f32.mxu0 %v1403
    %4283 = vmatmul.mubr.f32.gmra.mrb[0].mxu0 %v1402
    %v4284 = vpop.f32.mrb[0].mxu0
    %v4285 = vadd.f32 %v4215, %v4284
    %v4286 = vpop.f32.mrb[0].mxu0
    %4287 = vdwg.mxu0
    %4288 = vmatprep.subr.mxu0 0.0
    %4289 = vmatpush1.msra.mxu0 %v2530
    %4290 = vmatprep.subr.mxu0 0.0
    %4291 = vmatpush1.msra.mxu0 %v2535
    %4292 = vmatprep.subr.mxu0 0.0
    %4293 = vmatpush1.msra.mxu0 %v2540
    %4294 = vmatprep.subr.mxu0 0.0
    %4295 = vmatpush1.msra.mxu0 %v2545
    %4296 = vmatprep.subr.mxu0 0.0
    %4297 = vmatpush1.msra.mxu0 %v2550
    %4298 = vmatprep.subr.mxu0 0.0
    %4299 = vmatpush1.msra.mxu0 %v2555
    %4300 = vmatprep.subr.mxu0 0.0
    %4301 = vmatpush1.msra.mxu0 %v2560
    %4302 = vmatprep.subr.mxu0 0.0
    %4303 = vmatpush1.msra.mxu0 %v2565
    %4304 = vmatprep.subr.mxu0 0.0
    %4305 = vmatpush1.msra.mxu0 %v2570
    %4306 = vmatprep.subr.mxu0 0.0
    %4307 = vmatpush1.msra.mxu0 %v2575
    %4308 = vmatprep.subr.mxu0 0.0
    %4309 = vmatpush1.msra.mxu0 %v2580
    %4310 = vmatprep.subr.mxu0 0.0
    %4311 = vmatpush1.msra.mxu0 %v2585
    %4312 = vmatprep.subr.mxu0 0.0
    %4313 = vmatpush1.msra.mxu0 %v2590
    %4314 = vmatprep.subr.mxu0 0.0
    %4315 = vmatpush1.msra.mxu0 %v2595
    %4316 = vmatprep.subr.mxu0 0.0
    %4317 = vmatpush1.msra.mxu0 %v2600
    %4318 = vmatprep.subr.mxu0 0.0
    %4319 = vmatpush1.msra.mxu0 %v2605
    %4320 = vmatprep.subr.mxu0 0.0
    %4321 = vmatpush1.msra.mxu0 %v2610
    %4322 = vmatprep.subr.mxu0 0.0
    %4323 = vmatpush1.msra.mxu0 %v2615
    %4324 = vmatprep.subr.mxu0 0.0
    %4325 = vmatpush1.msra.mxu0 %v2620
    %4326 = vmatprep.subr.mxu0 0.0
    %4327 = vmatpush1.msra.mxu0 %v2625
    %4328 = vmatprep.subr.mxu0 0.0
    %4329 = vmatpush1.msra.mxu0 %v2630
    %4330 = vmatprep.subr.mxu0 0.0
    %4331 = vmatpush1.msra.mxu0 0.0
    %4332 = vmatprep.subr.mxu0 0.0
    %4333 = vmatpush1.msra.mxu0 0.0
    %4334 = vmatprep.subr.mxu0 0.0
    %4335 = vmatpush1.msra.mxu0 0.0
    %4336 = vmatprep.subr.mxu0 0.0
    %4337 = vmatpush1.msra.mxu0 0.0
    %4338 = vmatprep.subr.mxu0 0.0
    %4339 = vmatpush1.msra.mxu0 0.0
    %4340 = vmatprep.subr.mxu0 0.0
    %4341 = vmatpush1.msra.mxu0 0.0
    %4342 = vmatprep.subr.mxu0 0.0
    %4343 = vmatpush1.msra.mxu0 0.0
    %4344 = vmatprep.subr.mxu0 0.0
    %4345 = vmatpush1.msra.mxu0 0.0
    %4346 = vmatprep.subr.mxu0 0.0
    %4347 = vmatpush1.msra.mxu0 0.0
    %4348 = vmatprep.subr.mxu0 0.0
    %4349 = vmatpush1.msra.mxu0 0.0
    %4350 = vmatprep.subr.mxu0 0.0
    %4351 = vmatpush1.msra.mxu0 0.0
    %4352 = vmatprep.mubr.f32.mxu0 %v2660
    %4353 = vmatmul.mubr.f32.gmra.mrb[0].mxu0 %v1404
    %v4354 = vpop.f32.mrb[0].mxu0
    %v4355 = vadd.f32 %v4285, %v4354
    %v4356 = vpop.f32.mrb[0].mxu0
    %4357 = vdwg.mxu0
    %v4358 = vmax.f32 %v3226, 0.0
    %v4359 = vmax.f32 %v3228, 0.0
    %v4360 = vmax.f32 %v3794, 0.0
    %v4361 = vmax.f32 %v3796, 0.0
    %v4362 = vmax.f32 %v4355, 0.0
    %v4363 = vld [vmem:[%s21] sm:$0xff]
    %v4364 = vld [vmem:[%s21 + $0x8] sm:$0xff]
    %v4365 = vld [vmem:[%s21 + $0x10] sm:$0xff]
    %v4366 = vld [vmem:[%s21 + $0x18] sm:$0xff]
    %v4367 = vld [vmem:[%s21 + $0x20] sm:$0xff]
    %v4368 = vld [vmem:[%s21 + $0x28] sm:$0xff]
    %v4369 = vld [vmem:[%s21 + $0x30] sm:$0xff]
    %v4370 = vld [vmem:[%s21 + $0x38] sm:$0xff]
    %v4371 = vld [vmem:[%s21 + $0x40] sm:$0xff]
    %v4372 = vld [vmem:[%s21 + $0x48] sm:$0xff]
    %v4373 = vld [vmem:[%s21 + $0x50] sm:$0xff]
    %v4374 = vld [vmem:[%s21 + $0x58] sm:$0xff]
    %v4375 = vld [vmem:[%s21 + $0x60] sm:$0xff]
    %v4376 = vld [vmem:[%s21 + $0x68] sm:$0xff]
    %v4377 = vld [vmem:[%s21 + $0x70] sm:$0xff]
    %v4378 = vld [vmem:[%s21 + $0x78] sm:$0xff]
    %v4379 = vld [vmem:[%s21 + $0x80] sm:$0xff]
    %v4380 = vld [vmem:[%s21 + $0x88] sm:$0xff]
    %v4381 = vld [vmem:[%s21 + $0x90] sm:$0xff]
    %v4382 = vld [vmem:[%s21 + $0x98] sm:$0xff]
    %v4383 = vld [vmem:[%s21 + $0xa0] sm:$0xff]
    %v4384 = vld [vmem:[%s21 + $0xa8] sm:$0xff]
    %v4385 = vld [vmem:[%s21 + $0xb0] sm:$0xff]
    %v4386 = vld [vmem:[%s21 + $0xb8] sm:$0xff]
    %v4387 = vld [vmem:[%s21 + $0xc0] sm:$0xff]
    %v4388 = vld [vmem:[%s21 + $0xc8] sm:$0xff]
    %v4389 = vld [vmem:[%s21 + $0xd0] sm:$0xff]
    %v4390 = vld [vmem:[%s21 + $0xd8] sm:$0xff]
    %v4391 = vld [vmem:[%s21 + $0xe0] sm:$0xff]
    %v4392 = vld [vmem:[%s21 + $0xe8] sm:$0xff]
    %v4393 = vld [vmem:[%s21 + $0xf0] sm:$0xff]
    %v4394 = vld [vmem:[%s21 + $0xf8] sm:$0xff]
    %v4395 = vld [vmem:[%s21 + $0x100] sm:$0xff]
    %v4396 = vld [vmem:[%s21 + $0x108] sm:$0xff]
    %v4397 = vld [vmem:[%s21 + $0x110] sm:$0xff]
    %v4398 = vld [vmem:[%s21 + $0x118] sm:$0xff]
    %v4399 = vld [vmem:[%s21 + $0x120] sm:$0xff]
    %v4400 = vld [vmem:[%s21 + $0x128] sm:$0xff]
    %v4401 = vld [vmem:[%s21 + $0x130] sm:$0xff]
    %v4402 = vld [vmem:[%s21 + $0x138] sm:$0xff]
    %v4403 = vld [vmem:[%s21 + $0x140] sm:$0xff]
    %v4404 = vld [vmem:[%s21 + $0x148] sm:$0xff]
    %v4405 = vld [vmem:[%s21 + $0x150] sm:$0xff]
    %v4406 = vld [vmem:[%s21 + $0x158] sm:$0xff]
    %v4407 = vld [vmem:[%s21 + $0x160] sm:$0xff]
    %v4408 = vld [vmem:[%s21 + $0x168] sm:$0xff]
    %v4409 = vld [vmem:[%s21 + $0x170] sm:$0xff]
    %v4410 = vld [vmem:[%s21 + $0x178] sm:$0xff]
    %v4411 = vld [vmem:[%s21 + $0x180] sm:$0xff]
    %v4412 = vld [vmem:[%s21 + $0x188] sm:$0xff]
    %v4413 = vld [vmem:[%s21 + $0x190] sm:$0xff]
    %v4414 = vld [vmem:[%s21 + $0x198] sm:$0xff]
    %v4415 = vld [vmem:[%s21 + $0x1a0] sm:$0xff]
    %v4416 = vld [vmem:[%s21 + $0x1a8] sm:$0xff]
    %v4417 = vld [vmem:[%s21 + $0x1b0] sm:$0xff]
    %v4418 = vld [vmem:[%s21 + $0x1b8] sm:$0xff]
    %v4419 = vld [vmem:[%s21 + $0x1c0] sm:$0xff]
    %v4420 = vld [vmem:[%s21 + $0x1c8] sm:$0xff]
    %v4421 = vld [vmem:[%s21 + $0x1d0] sm:$0xff]
    %v4422 = vld [vmem:[%s21 + $0x1d8] sm:$0xff]
    %v4423 = vld [vmem:[%s21 + $0x1e0] sm:$0xff]
    %v4424 = vld [vmem:[%s21 + $0x1e8] sm:$0xff]
    %v4425 = vld [vmem:[%s21 + $0x1f0] sm:$0xff]
    %v4426 = vld [vmem:[%s21 + $0x1f8] sm:$0xff]
    %v4427 = vld [vmem:[%s21 + $0x200] sm:$0xff]
    %v4428 = vld [vmem:[%s21 + $0x208] sm:$0xff]
    %v4429 = vld [vmem:[%s21 + $0x210] sm:$0xff]
    %v4430 = vld [vmem:[%s21 + $0x218] sm:$0xf]
    %v4431 = vld [vmem:[%s23] sm:$0x1]
    %v4433 = vlaneseq
    %v4434 = vshrl.u32 %v4433, 7
    %v4435 = vsub.s32 0, %v4434
    %v4436 = vrot.slane %v4431, %v4435
    %vm4438 = vcmask 228352
    %v4440 = vsel %vm4438, %v4362, 0
    %vm4442 = vcmask 1043456
    %v4444 = vsel %vm4442, %v4430, 0
    %4446 = vmatprep.subr.mxu0 0.0
    %4447 = vmatpush1.msra.mxu0 %v4363
    %4448 = vmatprep.subr.mxu0 0.0
    %4449 = vmatpush1.msra.mxu0 %v4364
    %4450 = vmatprep.subr.mxu0 0.0
    %4451 = vmatpush1.msra.mxu0 %v4365
    %4452 = vmatprep.subr.mxu0 0.0
    %4453 = vmatpush1.msra.mxu0 %v4366
    %4454 = vmatprep.subr.mxu0 0.0
    %4455 = vmatpush1.msra.mxu0 %v4367
    %4456 = vmatprep.subr.mxu0 0.0
    %4457 = vmatpush1.msra.mxu0 %v4368
    %4458 = vmatprep.subr.mxu0 0.0
    %4459 = vmatpush1.msra.mxu0 %v4369
    %4460 = vmatprep.subr.mxu0 0.0
    %4461 = vmatpush1.msra.mxu0 %v4370
    %4462 = vmatprep.subr.mxu0 0.0
    %4463 = vmatpush1.msra.mxu0 %v4371
    %4464 = vmatprep.subr.mxu0 0.0
    %4465 = vmatpush1.msra.mxu0 %v4372
    %4466 = vmatprep.subr.mxu0 0.0
    %4467 = vmatpush1.msra.mxu0 %v4373
    %4468 = vmatprep.subr.mxu0 0.0
    %4469 = vmatpush1.msra.mxu0 %v4374
    %4470 = vmatprep.subr.mxu0 0.0
    %4471 = vmatpush1.msra.mxu0 %v4375
    %4472 = vmatprep.subr.mxu0 0.0
    %4473 = vmatpush1.msra.mxu0 %v4376
    %4474 = vmatprep.subr.mxu0 0.0
    %4475 = vmatpush1.msra.mxu0 %v4377
    %4476 = vmatprep.subr.mxu0 0.0
    %4477 = vmatpush1.msra.mxu0 %v4378
    %4478 = vmatprep.subr.mxu0 0.0
    %4479 = vmatpush1.msra.mxu0 %v4379
    %4480 = vmatprep.subr.mxu0 0.0
    %4481 = vmatpush1.msra.mxu0 %v4380
    %4482 = vmatprep.subr.mxu0 0.0
    %4483 = vmatpush1.msra.mxu0 %v4381
    %4484 = vmatprep.subr.mxu0 0.0
    %4485 = vmatpush1.msra.mxu0 %v4382
    %4486 = vmatprep.subr.mxu0 0.0
    %4487 = vmatpush1.msra.mxu0 %v4383
    %4488 = vmatprep.subr.mxu0 0.0
    %4489 = vmatpush1.msra.mxu0 %v4384
    %4490 = vmatprep.subr.mxu0 0.0
    %4491 = vmatpush1.msra.mxu0 %v4385
    %4492 = vmatprep.subr.mxu0 0.0
    %4493 = vmatpush1.msra.mxu0 %v4386
    %4494 = vmatprep.subr.mxu0 0.0
    %4495 = vmatpush1.msra.mxu0 %v4387
    %4496 = vmatprep.subr.mxu0 0.0
    %4497 = vmatpush1.msra.mxu0 %v4388
    %4498 = vmatprep.subr.mxu0 0.0
    %4499 = vmatpush1.msra.mxu0 %v4389
    %4500 = vmatprep.subr.mxu0 0.0
    %4501 = vmatpush1.msra.mxu0 %v4390
    %4502 = vmatprep.subr.mxu0 0.0
    %4503 = vmatpush1.msra.mxu0 %v4391
    %4504 = vmatprep.subr.mxu0 0.0
    %4505 = vmatpush1.msra.mxu0 %v4392
    %4506 = vmatprep.subr.mxu0 0.0
    %4507 = vmatpush1.msra.mxu0 %v4393
    %4508 = vmatprep.subr.mxu0 0.0
    %4509 = vmatpush1.msra.mxu0 %v4394
    %4510 = vmatprep.mubr.f32.mxu0 %v4359
    %4511 = vmatmul.mubr.f32.gmra.mrb[0].mxu0 %v4358
    %v4512 = vpop.f32.mrb[0].mxu0
    %v4513 = vadd.f32 %v4436, %v4512
    %v4514 = vpop.f32.mrb[0].mxu0
    %4515 = vdwg.mxu0
    %4516 = vmatprep.subr.mxu0 0.0
    %4517 = vmatpush1.msra.mxu0 %v4395
    %4518 = vmatprep.subr.mxu0 0.0
    %4519 = vmatpush1.msra.mxu0 %v4396
    %4520 = vmatprep.subr.mxu0 0.0
    %4521 = vmatpush1.msra.mxu0 %v4397
    %4522 = vmatprep.subr.mxu0 0.0
    %4523 = vmatpush1.msra.mxu0 %v4398
    %4524 = vmatprep.subr.mxu0 0.0
    %4525 = vmatpush1.msra.mxu0 %v4399
    %4526 = vmatprep.subr.mxu0 0.0
    %4527 = vmatpush1.msra.mxu0 %v4400
    %4528 = vmatprep.subr.mxu0 0.0
    %4529 = vmatpush1.msra.mxu0 %v4401
    %4530 = vmatprep.subr.mxu0 0.0
    %4531 = vmatpush1.msra.mxu0 %v4402
    %4532 = vmatprep.subr.mxu0 0.0
    %4533 = vmatpush1.msra.mxu0 %v4403
    %4534 = vmatprep.subr.mxu0 0.0
    %4535 = vmatpush1.msra.mxu0 %v4404
    %4536 = vmatprep.subr.mxu0 0.0
    %4537 = vmatpush1.msra.mxu0 %v4405
    %4538 = vmatprep.subr.mxu0 0.0
    %4539 = vmatpush1.msra.mxu0 %v4406
    %4540 = vmatprep.subr.mxu0 0.0
    %4541 = vmatpush1.msra.mxu0 %v4407
    %4542 = vmatprep.subr.mxu0 0.0
    %4543 = vmatpush1.msra.mxu0 %v4408
    %4544 = vmatprep.subr.mxu0 0.0
    %4545 = vmatpush1.msra.mxu0 %v4409
    %4546 = vmatprep.subr.mxu0 0.0
    %4547 = vmatpush1.msra.mxu0 %v4410
    %4548 = vmatprep.subr.mxu0 0.0
    %4549 = vmatpush1.msra.mxu0 %v4411
    %4550 = vmatprep.subr.mxu0 0.0
    %4551 = vmatpush1.msra.mxu0 %v4412
    %4552 = vmatprep.subr.mxu0 0.0
    %4553 = vmatpush1.msra.mxu0 %v4413
    %4554 = vmatprep.subr.mxu0 0.0
    %4555 = vmatpush1.msra.mxu0 %v4414
    %4556 = vmatprep.subr.mxu0 0.0
    %4557 = vmatpush1.msra.mxu0 %v4415
    %4558 = vmatprep.subr.mxu0 0.0
    %4559 = vmatpush1.msra.mxu0 %v4416
    %4560 = vmatprep.subr.mxu0 0.0
    %4561 = vmatpush1.msra.mxu0 %v4417
    %4562 = vmatprep.subr.mxu0 0.0
    %4563 = vmatpush1.msra.mxu0 %v4418
    %4564 = vmatprep.subr.mxu0 0.0
    %4565 = vmatpush1.msra.mxu0 %v4419
    %4566 = vmatprep.subr.mxu0 0.0
    %4567 = vmatpush1.msra.mxu0 %v4420
    %4568 = vmatprep.subr.mxu0 0.0
    %4569 = vmatpush1.msra.mxu0 %v4421
    %4570 = vmatprep.subr.mxu0 0.0
    %4571 = vmatpush1.msra.mxu0 %v4422
    %4572 = vmatprep.subr.mxu0 0.0
    %4573 = vmatpush1.msra.mxu0 %v4423
    %4574 = vmatprep.subr.mxu0 0.0
    %4575 = vmatpush1.msra.mxu0 %v4424
    %4576 = vmatprep.subr.mxu0 0.0
    %4577 = vmatpush1.msra.mxu0 %v4425
    %4578 = vmatprep.subr.mxu0 0.0
    %4579 = vmatpush1.msra.mxu0 %v4426
    %4580 = vmatprep.mubr.f32.mxu0 %v4361
    %4581 = vmatmul.mubr.f32.gmra.mrb[0].mxu0 %v4360
    %v4582 = vpop.f32.mrb[0].mxu0
    %v4583 = vadd.f32 %v4513, %v4582
    %v4584 = vpop.f32.mrb[0].mxu0
    %4585 = vdwg.mxu0
    %4586 = vmatprep.subr.mxu0 0.0
    %4587 = vmatpush1.msra.mxu0 %v4427
    %4588 = vmatprep.subr.mxu0 0.0
    %4589 = vmatpush1.msra.mxu0 %v4428
    %4590 = vmatprep.subr.mxu0 0.0
    %4591 = vmatpush1.msra.mxu0 %v4429
    %4592 = vmatprep.subr.mxu0 0.0
    %4593 = vmatpush1.msra.mxu0 %v4444
    %4594 = vmatprep.subr.mxu0 0.0
    %4595 = vmatpush1.msra.mxu0 0.0
    %4596 = vmatprep.subr.mxu0 0.0
    %4597 = vmatpush1.msra.mxu0 0.0
    %4598 = vmatprep.subr.mxu0 0.0
    %4599 = vmatpush1.msra.mxu0 0.0
    %4600 = vmatprep.subr.mxu0 0.0
    %4601 = vmatpush1.msra.mxu0 0.0
    %4602 = vmatprep.subr.mxu0 0.0
    %4603 = vmatpush1.msra.mxu0 0.0
    %4604 = vmatprep.subr.mxu0 0.0
    %4605 = vmatpush1.msra.mxu0 0.0
    %4606 = vmatprep.subr.mxu0 0.0
    %4607 = vmatpush1.msra.mxu0 0.0
    %4608 = vmatprep.subr.mxu0 0.0
    %4609 = vmatpush1.msra.mxu0 0.0
    %4610 = vmatprep.subr.mxu0 0.0
    %4611 = vmatpush1.msra.mxu0 0.0
    %4612 = vmatprep.subr.mxu0 0.0
    %4613 = vmatpush1.msra.mxu0 0.0
    %4614 = vmatprep.subr.mxu0 0.0
    %4615 = vmatpush1.msra.mxu0 0.0
    %4616 = vmatprep.subr.mxu0 0.0
    %4617 = vmatpush1.msra.mxu0 0.0
    %4618 = vmatprep.subr.mxu0 0.0
    %4619 = vmatpush1.msra.mxu0 0.0
    %4620 = vmatprep.subr.mxu0 0.0
    %4621 = vmatpush1.msra.mxu0 0.0
    %4622 = vmatprep.subr.mxu0 0.0
    %4623 = vmatpush1.msra.mxu0 0.0
    %4624 = vmatprep.subr.mxu0 0.0
    %4625 = vmatpush1.msra.mxu0 0.0
    %4626 = vmatprep.subr.mxu0 0.0
    %4627 = vmatpush1.msra.mxu0 0.0
    %4628 = vmatprep.subr.mxu0 0.0
    %4629 = vmatpush1.msra.mxu0 0.0
    %4630 = vmatprep.subr.mxu0 0.0
    %4631 = vmatpush1.msra.mxu0 0.0
    %4632 = vmatprep.subr.mxu0 0.0
    %4633 = vmatpush1.msra.mxu0 0.0
    %4634 = vmatprep.subr.mxu0 0.0
    %4635 = vmatpush1.msra.mxu0 0.0
    %4636 = vmatprep.subr.mxu0 0.0
    %4637 = vmatpush1.msra.mxu0 0.0
    %4638 = vmatprep.subr.mxu0 0.0
    %4639 = vmatpush1.msra.mxu0 0.0
    %4640 = vmatprep.subr.mxu0 0.0
    %4641 = vmatpush1.msra.mxu0 0.0
    %4642 = vmatprep.subr.mxu0 0.0
    %4643 = vmatpush1.msra.mxu0 0.0
    %4644 = vmatprep.subr.mxu0 0.0
    %4645 = vmatpush1.msra.mxu0 0.0
    %4646 = vmatprep.subr.mxu0 0.0
    %4647 = vmatpush1.msra.mxu0 0.0
    %4648 = vmatprep.subr.mxu0 0.0
    %4649 = vmatpush1.msra.mxu0 0.0
    %4650 = vmatprep.mubr.f32.mxu0 0.0
    %4651 = vmatmul.mubr.f32.gmra.mrb[0].mxu0 %v4440
    %v4652 = vpop.f32.mrb[0].mxu0
    %v4653 = vadd.f32 %v4583, %v4652
    %v4654 = vpop.f32.mrb[0].mxu0
    %4655 = vdwg.mxu0
    %v4656 = vmax.f32 %v4653, 0.0
    %v4657 = vld [vmem:[%s25] sm:$0xff]
    %v4658 = vld [vmem:[%s25 + $0x8] sm:$0xff]
    %v4659 = vld [vmem:[%s25 + $0x10] sm:$0xff]
    %v4660 = vld [vmem:[%s25 + $0x18] sm:$0xff]
    %v4661 = vld [vmem:[%s25 + $0x20] sm:$0xff]
    %v4662 = vld [vmem:[%s25 + $0x28] sm:$0xff]
    %v4663 = vld [vmem:[%s25 + $0x30] sm:$0xff]
    %v4664 = vld [vmem:[%s25 + $0x38] sm:$0xff]
    %v4665 = vld [vmem:[%s25 + $0x40] sm:$0xff]
    %v4666 = vld [vmem:[%s25 + $0x48] sm:$0xff]
    %v4667 = vld [vmem:[%s25 + $0x50] sm:$0xff]
    %v4668 = vld [vmem:[%s25 + $0x58] sm:$0xff]
    %v4669 = vld [vmem:[%s25 + $0x60] sm:$0xf]
    %v4670 = vld [vmem:[%s27] sm:$0x1]
    %v4672 = vlaneseq
    %v4673 = vshrl.u32 %v4672, 7
    %v4674 = vsub.s32 0, %v4673
    %v4675 = vrot.slane %v4670, %v4674
    %vm4677 = vcmask 818176
    %v4679 = vsel %vm4677, %v4656, 0
    %v4682 = vsel %vm4442, %v4669, 0
    %4684 = vmatprep.subr.mxu0 0.0
    %4685 = vmatpush1.msra.mxu0 %v4657
    %4686 = vmatprep.subr.mxu0 0.0
    %4687 = vmatpush1.msra.mxu0 %v4658
    %4688 = vmatprep.subr.mxu0 0.0
    %4689 = vmatpush1.msra.mxu0 %v4659
    %4690 = vmatprep.subr.mxu0 0.0
    %4691 = vmatpush1.msra.mxu0 %v4660
    %4692 = vmatprep.subr.mxu0 0.0
    %4693 = vmatpush1.msra.mxu0 %v4661
    %4694 = vmatprep.subr.mxu0 0.0
    %4695 = vmatpush1.msra.mxu0 %v4662
    %4696 = vmatprep.subr.mxu0 0.0
    %4697 = vmatpush1.msra.mxu0 %v4663
    %4698 = vmatprep.subr.mxu0 0.0
    %4699 = vmatpush1.msra.mxu0 %v4664
    %4700 = vmatprep.subr.mxu0 0.0
    %4701 = vmatpush1.msra.mxu0 %v4665
    %4702 = vmatprep.subr.mxu0 0.0
    %4703 = vmatpush1.msra.mxu0 %v4666
    %4704 = vmatprep.subr.mxu0 0.0
    %4705 = vmatpush1.msra.mxu0 %v4667
    %4706 = vmatprep.subr.mxu0 0.0
    %4707 = vmatpush1.msra.mxu0 %v4668
    %4708 = vmatprep.subr.mxu0 0.0
    %4709 = vmatpush1.msra.mxu0 %v4682
    %4710 = vmatprep.subr.mxu0 0.0
    %4711 = vmatpush1.msra.mxu0 0.0
    %4712 = vmatprep.subr.mxu0 0.0
    %4713 = vmatpush1.msra.mxu0 0.0
    %4714 = vmatprep.subr.mxu0 0.0
    %4715 = vmatpush1.msra.mxu0 0.0
    %4716 = vmatprep.subr.mxu0 0.0
    %4717 = vmatpush1.msra.mxu0 0.0
    %4718 = vmatprep.subr.mxu0 0.0
    %4719 = vmatpush1.msra.mxu0 0.0
    %4720 = vmatprep.subr.mxu0 0.0
    %4721 = vmatpush1.msra.mxu0 0.0
    %4722 = vmatprep.subr.mxu0 0.0
    %4723 = vmatpush1.msra.mxu0 0.0
    %4724 = vmatprep.subr.mxu0 0.0
    %4725 = vmatpush1.msra.mxu0 0.0
    %4726 = vmatprep.subr.mxu0 0.0
    %4727 = vmatpush1.msra.mxu0 0.0
    %4728 = vmatprep.subr.mxu0 0.0
    %4729 = vmatpush1.msra.mxu0 0.0
    %4730 = vmatprep.subr.mxu0 0.0
    %4731 = vmatpush1.msra.mxu0 0.0
    %4732 = vmatprep.subr.mxu0 0.0
    %4733 = vmatpush1.msra.mxu0 0.0
    %4734 = vmatprep.subr.mxu0 0.0
    %4735 = vmatpush1.msra.mxu0 0.0
    %4736 = vmatprep.subr.mxu0 0.0
    %4737 = vmatpush1.msra.mxu0 0.0
    %4738 = vmatprep.subr.mxu0 0.0
    %4739 = vmatpush1.msra.mxu0 0.0
    %4740 = vmatprep.subr.mxu0 0.0
    %4741 = vmatpush1.msra.mxu0 0.0
    %4742 = vmatprep.subr.mxu0 0.0
    %4743 = vmatpush1.msra.mxu0 0.0
    %4744 = vmatprep.subr.mxu0 0.0
    %4745 = vmatpush1.msra.mxu0 0.0
    %4746 = vmatprep.subr.mxu0 0.0
    %4747 = vmatpush1.msra.mxu0 0.0
    %4748 = vmatprep.mubr.f32.mxu0 0.0
    %4749 = vmatmul.mubr.f32.gmra.mrb[0].mxu0 %v4679
    %v4750 = vpop.f32.mrb[0].mxu0
    %v4751 = vadd.f32 %v4675, %v4750
    %v4752 = vpop.f32.mrb[0].mxu0
    %4753 = vdwg.mxu0
    %v4754 = vtanh.pop %v4751
    %v4755 = vld [vmem:[%s29] sm:$0xff]
    %v4756 = vld [vmem:[%s29 + $0x8] sm:$0xff]
    %v4757 = vld [vmem:[%s29 + $0x10] sm:$0xff]
    %v4758 = vld [vmem:[%s29 + $0x18] sm:$0xff]
    %v4759 = vld [vmem:[%s29 + $0x20] sm:$0xff]
    %v4760 = vld [vmem:[%s29 + $0x28] sm:$0xff]
    %v4761 = vld [vmem:[%s29 + $0x30] sm:$0xff]
    %v4762 = vld [vmem:[%s29 + $0x38] sm:$0xff]
    %v4763 = vld [vmem:[%s29 + $0x40] sm:$0xff]
    %v4764 = vld [vmem:[%s29 + $0x48] sm:$0xff]
    %v4765 = vld [vmem:[%s31] sm:$0x1]
    %v4767 = vlaneseq
    %v4768 = vshrl.u32 %v4767, 7
    %v4769 = vsub.s32 0, %v4768
    %v4770 = vrot.slane %v4765, %v4769
    %vm4772 = vcmask 654336
    %v4774 = vsel %vm4772, %v4754, 0
    %4776 = vmatprep.subr.mxu0 0.0
    %4777 = vmatpush1.msra.mxu0 %v4755
    %4778 = vmatprep.subr.mxu0 0.0
    %4779 = vmatpush1.msra.mxu0 %v4756
    %4780 = vmatprep.subr.mxu0 0.0
    %4781 = vmatpush1.msra.mxu0 %v4757
    %4782 = vmatprep.subr.mxu0 0.0
    %4783 = vmatpush1.msra.mxu0 %v4758
    %4784 = vmatprep.subr.mxu0 0.0
    %4785 = vmatpush1.msra.mxu0 %v4759
    %4786 = vmatprep.subr.mxu0 0.0
    %4787 = vmatpush1.msra.mxu0 %v4760
    %4788 = vmatprep.subr.mxu0 0.0
    %4789 = vmatpush1.msra.mxu0 %v4761
    %4790 = vmatprep.subr.mxu0 0.0
    %4791 = vmatpush1.msra.mxu0 %v4762
    %4792 = vmatprep.subr.mxu0 0.0
    %4793 = vmatpush1.msra.mxu0 %v4763
    %4794 = vmatprep.subr.mxu0 0.0
    %4795 = vmatpush1.msra.mxu0 %v4764
    %4796 = vmatprep.subr.mxu0 0.0
    %4797 = vmatpush1.msra.mxu0 0.0
    %4798 = vmatprep.subr.mxu0 0.0
    %4799 = vmatpush1.msra.mxu0 0.0
    %4800 = vmatprep.subr.mxu0 0.0
    %4801 = vmatpush1.msra.mxu0 0.0
    %4802 = vmatprep.subr.mxu0 0.0
    %4803 = vmatpush1.msra.mxu0 0.0
    %4804 = vmatprep.subr.mxu0 0.0
    %4805 = vmatpush1.msra.mxu0 0.0
    %4806 = vmatprep.subr.mxu0 0.0
    %4807 = vmatpush1.msra.mxu0 0.0
    %4808 = vmatprep.subr.mxu0 0.0
    %4809 = vmatpush1.msra.mxu0 0.0
    %4810 = vmatprep.subr.mxu0 0.0
    %4811 = vmatpush1.msra.mxu0 0.0
    %4812 = vmatprep.subr.mxu0 0.0
    %4813 = vmatpush1.msra.mxu0 0.0
    %4814 = vmatprep.subr.mxu0 0.0
    %4815 = vmatpush1.msra.mxu0 0.0
    %4816 = vmatprep.subr.mxu0 0.0
    %4817 = vmatpush1.msra.mxu0 0.0
    %4818 = vmatprep.subr.mxu0 0.0
    %4819 = vmatpush1.msra.mxu0 0.0
    %4820 = vmatprep.subr.mxu0 0.0
    %4821 = vmatpush1.msra.mxu0 0.0
    %4822 = vmatprep.subr.mxu0 0.0
    %4823 = vmatpush1.msra.mxu0 0.0
    %4824 = vmatprep.subr.mxu0 0.0
    %4825 = vmatpush1.msra.mxu0 0.0
    %4826 = vmatprep.subr.mxu0 0.0
    %4827 = vmatpush1.msra.mxu0 0.0
    %4828 = vmatprep.subr.mxu0 0.0
    %4829 = vmatpush1.msra.mxu0 0.0
    %4830 = vmatprep.subr.mxu0 0.0
    %4831 = vmatpush1.msra.mxu0 0.0
    %4832 = vmatprep.subr.mxu0 0.0
    %4833 = vmatpush1.msra.mxu0 0.0
    %4834 = vmatprep.subr.mxu0 0.0
    %4835 = vmatpush1.msra.mxu0 0.0
    %4836 = vmatprep.subr.mxu0 0.0
    %4837 = vmatpush1.msra.mxu0 0.0
    %4838 = vmatprep.subr.mxu0 0.0
    %4839 = vmatpush1.msra.mxu0 0.0
    %4840 = vmatprep.mubr.f32.mxu0 0.0
    %4841 = vmatmul.mubr.f32.gmra.mrb[0].mxu0 %v4774
    %v4842 = vpop.f32.mrb[0].mxu0
    %v4843 = vadd.f32 %v4770, %v4842
    %v4844 = vpop.f32.mrb[0].mxu0
    %4845 = vdwg.mxu0
    %s4846 = sld [smem:[#allocation3]]
    %s4847 = sld [smem:[#allocation3 + $0x1]]
    %s4848 = sld [smem:[#allocation3 + $0x2]]
    %s4849 = sld [smem:[#allocation3 + $0x3]]
    %s4850 = sld [smem:[#allocation3 + $0x4]]
    %s4851 = sld [smem:[#allocation3 + $0x5]]
    %v4852 = vld [vmem:[%s5] sm:$0xf]
    %v4853 = vld [vmem:[%s7] sm:$0xff]
    %v4854 = vld [vmem:[%s7 + $0x8] sm:$0xff]
    %v4855 = vld [vmem:[%s7 + $0x10] sm:$0xff]
    %v4856 = vld [vmem:[%s7 + $0x18] sm:$0xff]
    %v4857 = vld [vmem:[%s7 + $0x20] sm:$0xff]
    %v4858 = vld [vmem:[%s7 + $0x28] sm:$0xff]
    %v4859 = vld [vmem:[%s7 + $0x30] sm:$0xff]
    %v4860 = vld [vmem:[%s7 + $0x38] sm:$0xff]
    %v4861 = vld [vmem:[%s7 + $0x40] sm:$0xff]
    %v4862 = vld [vmem:[%s7 + $0x48] sm:$0xff]
    %v4863 = vld [vmem:[%s7 + $0x50] sm:$0xff]
    %v4864 = vld [vmem:[%s7 + $0x58] sm:$0xff]
    %v4865 = vld [vmem:[%s7 + $0x60] sm:$0xff]
    %v4866 = vld [vmem:[%s7 + $0x68] sm:$0xff]
    %v4867 = vld [vmem:[%s7 + $0x70] sm:$0xff]
    %v4868 = vld [vmem:[%s7 + $0x78] sm:$0xff]
    %v4869 = vld [vmem:[%s7 + $0x80] sm:$0xff]
    %v4870 = vld [vmem:[%s7 + $0x88] sm:$0xff]
    %v4871 = vld [vmem:[%s7 + $0x90] sm:$0xff]
    %v4872 = vld [vmem:[%s7 + $0x98] sm:$0xff]
    %v4873 = vld [vmem:[%s7 + $0xa0] sm:$0xff]
    %v4874 = vld [vmem:[%s7 + $0xa8] sm:$0xff]
    %v4875 = vld [vmem:[%s7 + $0xb0] sm:$0xff]
    %v4876 = vld [vmem:[%s7 + $0xb8] sm:$0xff]
    %v4877 = vld [vmem:[%s7 + $0xc0] sm:$0xff]
    %v4878 = vld [vmem:[%s7 + $0xc8] sm:$0xff]
    %v4879 = vld [vmem:[%s7 + $0xd0] sm:$0xff]
    %v4880 = vld [vmem:[%s7 + $0xd8] sm:$0xff]
    %v4881 = vld [vmem:[%s7 + $0xe0] sm:$0x1]
    %v4882 = vld [vmem:[%s9] sm:$0xff]
    %v4883 = vld [vmem:[%s9 + $0x8] sm:$0xff]
    %v4884 = vld [vmem:[%s9 + $0x10] sm:$0xff]
    %v4885 = vld [vmem:[%s9 + $0x18] sm:$0xff]
    %v4886 = vld [vmem:[%s9 + $0x20] sm:$0xff]
    %v4887 = vld [vmem:[%s9 + $0x28] sm:$0xff]
    %v4888 = vld [vmem:[%s9 + $0x30] sm:$0xff]
    %v4889 = vld [vmem:[%s9 + $0x38] sm:$0xff]
    %v4890 = vld [vmem:[%s9 + $0x40] sm:$0xff]
    %v4891 = vld [vmem:[%s9 + $0x48] sm:$0xff]
    %v4892 = vld [vmem:[%s9 + $0x50] sm:$0xff]
    %v4893 = vld [vmem:[%s9 + $0x58] sm:$0xff]
    %v4894 = vld [vmem:[%s9 + $0x60] sm:$0xff]
    %v4895 = vld [vmem:[%s9 + $0x68] sm:$0xff]
    %v4896 = vld [vmem:[%s9 + $0x70] sm:$0xff]
    %v4897 = vld [vmem:[%s9 + $0x78] sm:$0xff]
    %v4898 = vld [vmem:[%s9 + $0x80] sm:$0xff]
    %v4899 = vld [vmem:[%s9 + $0x88] sm:$0xff]
    %v4900 = vld [vmem:[%s9 + $0x90] sm:$0xff]
    %v4901 = vld [vmem:[%s9 + $0x98] sm:$0xff]
    %v4902 = vld [vmem:[%s9 + $0xa0] sm:$0xff]
    %v4903 = vld [vmem:[%s9 + $0xa8] sm:$0xff]
    %v4904 = vld [vmem:[%s9 + $0xb0] sm:$0xff]
    %v4905 = vld [vmem:[%s9 + $0xb8] sm:$0xff]
    %v4906 = vld [vmem:[%s9 + $0xc0] sm:$0xff]
    %v4907 = vld [vmem:[%s9 + $0xc8] sm:$0xff]
    %v4908 = vld [vmem:[%s9 + $0xd0] sm:$0xff]
    %v4909 = vld [vmem:[%s9 + $0xd8] sm:$0xff]
    %v4910 = vld [vmem:[%s9 + $0xe0] sm:$0x1]
    %v4911 = vstv %s4846
    %v4912 = vmul.f32 %v4852, %v4911
    %v4913 = vstv %s4847
    %v4914 = vadd.f32 %v4912, %v4913
    %v4915 = vstv %s4848
    %v4916 = vmul.f32 %v4853, %v4915
    %v4917 = vmul.f32 %v4854, %v4915
    %v4918 = vmul.f32 %v4855, %v4915
    %v4919 = vmul.f32 %v4856, %v4915
    %v4920 = vmul.f32 %v4857, %v4915
    %v4921 = vmul.f32 %v4858, %v4915
    %v4922 = vmul.f32 %v4859, %v4915
    %v4923 = vmul.f32 %v4860, %v4915
    %v4924 = vmul.f32 %v4861, %v4915
    %v4925 = vmul.f32 %v4862, %v4915
    %v4926 = vmul.f32 %v4863, %v4915
    %v4927 = vmul.f32 %v4864, %v4915
    %v4928 = vmul.f32 %v4865, %v4915
    %v4929 = vmul.f32 %v4866, %v4915
    %v4930 = vmul.f32 %v4867, %v4915
    %v4931 = vmul.f32 %v4868, %v4915
    %v4932 = vmul.f32 %v4869, %v4915
    %v4933 = vmul.f32 %v4870, %v4915
    %v4934 = vmul.f32 %v4871, %v4915
    %v4935 = vmul.f32 %v4872, %v4915
    %v4936 = vmul.f32 %v4873, %v4915
    %v4937 = vmul.f32 %v4874, %v4915
    %v4938 = vmul.f32 %v4875, %v4915
    %v4939 = vmul.f32 %v4876, %v4915
    %v4940 = vmul.f32 %v4877, %v4915
    %v4941 = vmul.f32 %v4878, %v4915
    %v4942 = vmul.f32 %v4879, %v4915
    %v4943 = vmul.f32 %v4880, %v4915
    %v4944 = vmul.f32 %v4881, %v4915
    %v4945 = vstv %s4849
    %v4946 = vadd.f32 %v4916, %v4945
    %v4947 = vadd.f32 %v4917, %v4945
    %v4948 = vadd.f32 %v4918, %v4945
    %v4949 = vadd.f32 %v4919, %v4945
    %v4950 = vadd.f32 %v4920, %v4945
    %v4951 = vadd.f32 %v4921, %v4945
    %v4952 = vadd.f32 %v4922, %v4945
    %v4953 = vadd.f32 %v4923, %v4945
    %v4954 = vadd.f32 %v4924, %v4945
    %v4955 = vadd.f32 %v4925, %v4945
    %v4956 = vadd.f32 %v4926, %v4945
    %v4957 = vadd.f32 %v4927, %v4945
    %v4958 = vadd.f32 %v4928, %v4945
    %v4959 = vadd.f32 %v4929, %v4945
    %v4960 = vadd.f32 %v4930, %v4945
    %v4961 = vadd.f32 %v4931, %v4945
    %v4962 = vadd.f32 %v4932, %v4945
    %v4963 = vadd.f32 %v4933, %v4945
    %v4964 = vadd.f32 %v4934, %v4945
    %v4965 = vadd.f32 %v4935, %v4945
    %v4966 = vadd.f32 %v4936, %v4945
    %v4967 = vadd.f32 %v4937, %v4945
    %v4968 = vadd.f32 %v4938, %v4945
    %v4969 = vadd.f32 %v4939, %v4945
    %v4970 = vadd.f32 %v4940, %v4945
    %v4971 = vadd.f32 %v4941, %v4945
    %v4972 = vadd.f32 %v4942, %v4945
    %v4973 = vadd.f32 %v4943, %v4945
    %v4974 = vadd.f32 %v4944, %v4945
    %v4975 = vstv %s4850
    %v4976 = vmul.f32 %v4853, %v4975
    %v4977 = vmul.f32 %v4854, %v4975
    %v4978 = vmul.f32 %v4855, %v4975
    %v4979 = vmul.f32 %v4856, %v4975
    %v4980 = vmul.f32 %v4857, %v4975
    %v4981 = vmul.f32 %v4858, %v4975
    %v4982 = vmul.f32 %v4859, %v4975
    %v4983 = vmul.f32 %v4860, %v4975
    %v4984 = vmul.f32 %v4861, %v4975
    %v4985 = vmul.f32 %v4862, %v4975
    %v4986 = vmul.f32 %v4863, %v4975
    %v4987 = vmul.f32 %v4864, %v4975
    %v4988 = vmul.f32 %v4865, %v4975
    %v4989 = vmul.f32 %v4866, %v4975
    %v4990 = vmul.f32 %v4867, %v4975
    %v4991 = vmul.f32 %v4868, %v4975
    %v4992 = vmul.f32 %v4869, %v4975
    %v4993 = vmul.f32 %v4870, %v4975
    %v4994 = vmul.f32 %v4871, %v4975
    %v4995 = vmul.f32 %v4872, %v4975
    %v4996 = vmul.f32 %v4873, %v4975
    %v4997 = vmul.f32 %v4874, %v4975
    %v4998 = vmul.f32 %v4875, %v4975
    %v4999 = vmul.f32 %v4876, %v4975
    %v5000 = vmul.f32 %v4877, %v4975
    %v5001 = vmul.f32 %v4878, %v4975
    %v5002 = vmul.f32 %v4879, %v4975
    %v5003 = vmul.f32 %v4880, %v4975
    %v5004 = vmul.f32 %v4881, %v4975
    %v5005 = vstv %s4851
    %v5006 = vadd.f32 %v4976, %v5005
    %v5007 = vadd.f32 %v4977, %v5005
    %v5008 = vadd.f32 %v4978, %v5005
    %v5009 = vadd.f32 %v4979, %v5005
    %v5010 = vadd.f32 %v4980, %v5005
    %v5011 = vadd.f32 %v4981, %v5005
    %v5012 = vadd.f32 %v4982, %v5005
    %v5013 = vadd.f32 %v4983, %v5005
    %v5014 = vadd.f32 %v4984, %v5005
    %v5015 = vadd.f32 %v4985, %v5005
    %v5016 = vadd.f32 %v4986, %v5005
    %v5017 = vadd.f32 %v4987, %v5005
    %v5018 = vadd.f32 %v4988, %v5005
    %v5019 = vadd.f32 %v4989, %v5005
    %v5020 = vadd.f32 %v4990, %v5005
    %v5021 = vadd.f32 %v4991, %v5005
    %v5022 = vadd.f32 %v4992, %v5005
    %v5023 = vadd.f32 %v4993, %v5005
    %v5024 = vadd.f32 %v4994, %v5005
    %v5025 = vadd.f32 %v4995, %v5005
    %v5026 = vadd.f32 %v4996, %v5005
    %v5027 = vadd.f32 %v4997, %v5005
    %v5028 = vadd.f32 %v4998, %v5005
    %v5029 = vadd.f32 %v4999, %v5005
    %v5030 = vadd.f32 %v5000, %v5005
    %v5031 = vadd.f32 %v5001, %v5005
    %v5032 = vadd.f32 %v5002, %v5005
    %v5033 = vadd.f32 %v5003, %v5005
    %v5034 = vadd.f32 %v5004, %v5005
    %vm5035 = vcmp.gt.f32.partialorder %v4882, 0.0
    %vm5036 = vcmp.gt.f32.partialorder %v4883, 0.0
    %vm5037 = vcmp.gt.f32.partialorder %v4884, 0.0
    %vm5038 = vcmp.gt.f32.partialorder %v4885, 0.0
    %vm5039 = vcmp.gt.f32.partialorder %v4886, 0.0
    %vm5040 = vcmp.gt.f32.partialorder %v4887, 0.0
    %vm5041 = vcmp.gt.f32.partialorder %v4888, 0.0
    %vm5042 = vcmp.gt.f32.partialorder %v4889, 0.0
    %vm5043 = vcmp.gt.f32.partialorder %v4890, 0.0
    %vm5044 = vcmp.gt.f32.partialorder %v4891, 0.0
    %vm5045 = vcmp.gt.f32.partialorder %v4892, 0.0
    %vm5046 = vcmp.gt.f32.partialorder %v4893, 0.0
    %vm5047 = vcmp.gt.f32.partialorder %v4894, 0.0
    %vm5048 = vcmp.gt.f32.partialorder %v4895, 0.0
    %vm5049 = vcmp.gt.f32.partialorder %v4896, 0.0
    %vm5050 = vcmp.gt.f32.partialorder %v4897, 0.0
    %vm5051 = vcmp.gt.f32.partialorder %v4898, 0.0
    %vm5052 = vcmp.gt.f32.partialorder %v4899, 0.0
    %vm5053 = vcmp.gt.f32.partialorder %v4900, 0.0
    %vm5054 = vcmp.gt.f32.partialorder %v4901, 0.0
    %vm5055 = vcmp.gt.f32.partialorder %v4902, 0.0
    %vm5056 = vcmp.gt.f32.partialorder %v4903, 0.0
    %vm5057 = vcmp.gt.f32.partialorder %v4904, 0.0
    %vm5058 = vcmp.gt.f32.partialorder %v4905, 0.0
    %vm5059 = vcmp.gt.f32.partialorder %v4906, 0.0
    %vm5060 = vcmp.gt.f32.partialorder %v4907, 0.0
    %vm5061 = vcmp.gt.f32.partialorder %v4908, 0.0
    %vm5062 = vcmp.gt.f32.partialorder %v4909, 0.0
    %vm5063 = vcmp.gt.f32.partialorder %v4910, 0.0
    %v5064 = vsel %vm5035, 0.0, -1e+09
    %v5065 = vsel %vm5036, 0.0, -1e+09
    %v5066 = vsel %vm5037, 0.0, -1e+09
    %v5067 = vsel %vm5038, 0.0, -1e+09
    %v5068 = vsel %vm5039, 0.0, -1e+09
    %v5069 = vsel %vm5040, 0.0, -1e+09
    %v5070 = vsel %vm5041, 0.0, -1e+09
    %v5071 = vsel %vm5042, 0.0, -1e+09
    %v5072 = vsel %vm5043, 0.0, -1e+09
    %v5073 = vsel %vm5044, 0.0, -1e+09
    %v5074 = vsel %vm5045, 0.0, -1e+09
    %v5075 = vsel %vm5046, 0.0, -1e+09
    %v5076 = vsel %vm5047, 0.0, -1e+09
    %v5077 = vsel %vm5048, 0.0, -1e+09
    %v5078 = vsel %vm5049, 0.0, -1e+09
    %v5079 = vsel %vm5050, 0.0, -1e+09
    %v5080 = vsel %vm5051, 0.0, -1e+09
    %v5081 = vsel %vm5052, 0.0, -1e+09
    %v5082 = vsel %vm5053, 0.0, -1e+09
    %v5083 = vsel %vm5054, 0.0, -1e+09
    %v5084 = vsel %vm5055, 0.0, -1e+09
    %v5085 = vsel %vm5056, 0.0, -1e+09
    %v5086 = vsel %vm5057, 0.0, -1e+09
    %v5087 = vsel %vm5058, 0.0, -1e+09
    %v5088 = vsel %vm5059, 0.0, -1e+09
    %v5089 = vsel %vm5060, 0.0, -1e+09
    %v5090 = vsel %vm5061, 0.0, -1e+09
    %v5091 = vsel %vm5062, 0.0, -1e+09
    %v5092 = vsel %vm5063, 0.0, -1e+09
    %5094 = vset.pattern.permute.xlu0 0
    %5095 = vperm.xlu0 %5094, %v4946
    %v5096 = vpop.permute.xlu0 %5095
    %5099 = vset.pattern.permute.xlu0 0
    %5100 = vperm.xlu0 %5099, %v4947
    %v5101 = vpop.permute.xlu0 %5100
    %5104 = vset.pattern.permute.xlu0 0
    %5105 = vperm.xlu0 %5104, %v4948
    %v5106 = vpop.permute.xlu0 %5105
    %5109 = vset.pattern.permute.xlu0 0
    %5110 = vperm.xlu0 %5109, %v4949
    %v5111 = vpop.permute.xlu0 %5110
    %5114 = vset.pattern.permute.xlu0 0
    %5115 = vperm.xlu0 %5114, %v4950
    %v5116 = vpop.permute.xlu0 %5115
    %5119 = vset.pattern.permute.xlu0 0
    %5120 = vperm.xlu0 %5119, %v4951
    %v5121 = vpop.permute.xlu0 %5120
    %5124 = vset.pattern.permute.xlu0 0
    %5125 = vperm.xlu0 %5124, %v4952
    %v5126 = vpop.permute.xlu0 %5125
    %5129 = vset.pattern.permute.xlu0 0
    %5130 = vperm.xlu0 %5129, %v4953
    %v5131 = vpop.permute.xlu0 %5130
    %5134 = vset.pattern.permute.xlu0 0
    %5135 = vperm.xlu0 %5134, %v4954
    %v5136 = vpop.permute.xlu0 %5135
    %5139 = vset.pattern.permute.xlu0 0
    %5140 = vperm.xlu0 %5139, %v4955
    %v5141 = vpop.permute.xlu0 %5140
    %5144 = vset.pattern.permute.xlu0 0
    %5145 = vperm.xlu0 %5144, %v4956
    %v5146 = vpop.permute.xlu0 %5145
    %5149 = vset.pattern.permute.xlu0 0
    %5150 = vperm.xlu0 %5149, %v4957
    %v5151 = vpop.permute.xlu0 %5150
    %5154 = vset.pattern.permute.xlu0 0
    %5155 = vperm.xlu0 %5154, %v4958
    %v5156 = vpop.permute.xlu0 %5155
    %5159 = vset.pattern.permute.xlu0 0
    %5160 = vperm.xlu0 %5159, %v4959
    %v5161 = vpop.permute.xlu0 %5160
    %5164 = vset.pattern.permute.xlu0 0
    %5165 = vperm.xlu0 %5164, %v4960
    %v5166 = vpop.permute.xlu0 %5165
    %5169 = vset.pattern.permute.xlu0 0
    %5170 = vperm.xlu0 %5169, %v4961
    %v5171 = vpop.permute.xlu0 %5170
    %5174 = vset.pattern.permute.xlu0 0
    %5175 = vperm.xlu0 %5174, %v4962
    %v5176 = vpop.permute.xlu0 %5175
    %5179 = vset.pattern.permute.xlu0 0
    %5180 = vperm.xlu0 %5179, %v4963
    %v5181 = vpop.permute.xlu0 %5180
    %5184 = vset.pattern.permute.xlu0 0
    %5185 = vperm.xlu0 %5184, %v4964
    %v5186 = vpop.permute.xlu0 %5185
    %5189 = vset.pattern.permute.xlu0 0
    %5190 = vperm.xlu0 %5189, %v4965
    %v5191 = vpop.permute.xlu0 %5190
    %5194 = vset.pattern.permute.xlu0 0
    %5195 = vperm.xlu0 %5194, %v4966
    %v5196 = vpop.permute.xlu0 %5195
    %5199 = vset.pattern.permute.xlu0 0
    %5200 = vperm.xlu0 %5199, %v4967
    %v5201 = vpop.permute.xlu0 %5200
    %5204 = vset.pattern.permute.xlu0 0
    %5205 = vperm.xlu0 %5204, %v4968
    %v5206 = vpop.permute.xlu0 %5205
    %5209 = vset.pattern.permute.xlu0 0
    %5210 = vperm.xlu0 %5209, %v4969
    %v5211 = vpop.permute.xlu0 %5210
    %5214 = vset.pattern.permute.xlu0 0
    %5215 = vperm.xlu0 %5214, %v4970
    %v5216 = vpop.permute.xlu0 %5215
    %5219 = vset.pattern.permute.xlu0 0
    %5220 = vperm.xlu0 %5219, %v4971
    %v5221 = vpop.permute.xlu0 %5220
    %5224 = vset.pattern.permute.xlu0 0
    %5225 = vperm.xlu0 %5224, %v4972
    %v5226 = vpop.permute.xlu0 %5225
    %5229 = vset.pattern.permute.xlu0 0
    %5230 = vperm.xlu0 %5229, %v4973
    %v5231 = vpop.permute.xlu0 %5230
    %5234 = vset.pattern.permute.xlu0 0
    %5235 = vperm.xlu0 %5234, %v4974
    %v5236 = vpop.permute.xlu0 %5235
    %v5239 = vlaneseq
    %v5240 = vshrl.u32 %v5239, 7
    %v5241 = vsub.s32 0, %v5240
    %v5242 = vrot.slane %v4914, %v5241
    %v5243 = vlaneseq
    %v5244 = vshrl.u32 %v5243, 7
    %v5245 = vsub.s32 2, %v5244
    %v5246 = vrot.slane %v4914, %v5245
    %v5249 = vlaneseq
    %v5250 = vshrl.u32 %v5249, 7
    %v5251 = vsub.s32 0, %v5250
    %v5252 = vrot.slane %v5242, %v5251
    %v5253 = vlaneseq
    %v5254 = vshrl.u32 %v5253, 7
    %v5255 = vsub.s32 0, %v5254
    %v5256 = vrot.slane %v5246, %v5255
    %v5257 = vmul.f32 %v5096, %v5252
    %v5258 = vmul.f32 %v5096, %v5256
    %v5259 = vmul.f32 %v5101, %v5252
    %v5260 = vmul.f32 %v5101, %v5256
    %v5261 = vmul.f32 %v5106, %v5252
    %v5262 = vmul.f32 %v5106, %v5256
    %v5263 = vmul.f32 %v5111, %v5252
    %v5264 = vmul.f32 %v5111, %v5256
    %v5265 = vmul.f32 %v5116, %v5252
    %v5266 = vmul.f32 %v5116, %v5256
    %v5267 = vmul.f32 %v5121, %v5252
    %v5268 = vmul.f32 %v5121, %v5256
    %v5269 = vmul.f32 %v5126, %v5252
    %v5270 = vmul.f32 %v5126, %v5256
    %v5271 = vmul.f32 %v5131, %v5252
    %v5272 = vmul.f32 %v5131, %v5256
    %v5273 = vmul.f32 %v5136, %v5252
    %v5274 = vmul.f32 %v5136, %v5256
    %v5275 = vmul.f32 %v5141, %v5252
    %v5276 = vmul.f32 %v5141, %v5256
    %v5277 = vmul.f32 %v5146, %v5252
    %v5278 = vmul.f32 %v5146, %v5256
    %v5279 = vmul.f32 %v5151, %v5252
    %v5280 = vmul.f32 %v5151, %v5256
    %v5281 = vmul.f32 %v5156, %v5252
    %v5282 = vmul.f32 %v5156, %v5256
    %v5283 = vmul.f32 %v5161, %v5252
    %v5284 = vmul.f32 %v5161, %v5256
    %v5285 = vmul.f32 %v5166, %v5252
    %v5286 = vmul.f32 %v5166, %v5256
    %v5287 = vmul.f32 %v5171, %v5252
    %v5288 = vmul.f32 %v5171, %v5256
    %v5289 = vmul.f32 %v5176, %v5252
    %v5290 = vmul.f32 %v5176, %v5256
    %v5291 = vmul.f32 %v5181, %v5252
    %v5292 = vmul.f32 %v5181, %v5256
    %v5293 = vmul.f32 %v5186, %v5252
    %v5294 = vmul.f32 %v5186, %v5256
    %v5295 = vmul.f32 %v5191, %v5252
    %v5296 = vmul.f32 %v5191, %v5256
    %v5297 = vmul.f32 %v5196, %v5252
    %v5298 = vmul.f32 %v5196, %v5256
    %v5299 = vmul.f32 %v5201, %v5252
    %v5300 = vmul.f32 %v5201, %v5256
    %v5301 = vmul.f32 %v5206, %v5252
    %v5302 = vmul.f32 %v5206, %v5256
    %v5303 = vmul.f32 %v5211, %v5252
    %v5304 = vmul.f32 %v5211, %v5256
    %v5305 = vmul.f32 %v5216, %v5252
    %v5306 = vmul.f32 %v5216, %v5256
    %v5307 = vmul.f32 %v5221, %v5252
    %v5308 = vmul.f32 %v5221, %v5256
    %v5309 = vmul.f32 %v5226, %v5252
    %v5310 = vmul.f32 %v5226, %v5256
    %v5311 = vmul.f32 %v5231, %v5252
    %v5312 = vmul.f32 %v5231, %v5256
    %v5313 = vmul.f32 %v5236, %v5252
    %v5314 = vmul.f32 %v5236, %v5256
    %5316 = vset.pattern.permute.xlu0 0
    %5317 = vperm.xlu0 %5316, %v5064
    %v5318 = vpop.permute.xlu0 %5317
    %5321 = vset.pattern.permute.xlu0 0
    %5322 = vperm.xlu0 %5321, %v5065
    %v5323 = vpop.permute.xlu0 %5322
    %5326 = vset.pattern.permute.xlu0 0
    %5327 = vperm.xlu0 %5326, %v5066
    %v5328 = vpop.permute.xlu0 %5327
    %5331 = vset.pattern.permute.xlu0 0
    %5332 = vperm.xlu0 %5331, %v5067
    %v5333 = vpop.permute.xlu0 %5332
    %5336 = vset.pattern.permute.xlu0 0
    %5337 = vperm.xlu0 %5336, %v5068
    %v5338 = vpop.permute.xlu0 %5337
    %5341 = vset.pattern.permute.xlu0 0
    %5342 = vperm.xlu0 %5341, %v5069
    %v5343 = vpop.permute.xlu0 %5342
    %5346 = vset.pattern.permute.xlu0 0
    %5347 = vperm.xlu0 %5346, %v5070
    %v5348 = vpop.permute.xlu0 %5347
    %5351 = vset.pattern.permute.xlu0 0
    %5352 = vperm.xlu0 %5351, %v5071
    %v5353 = vpop.permute.xlu0 %5352
    %5356 = vset.pattern.permute.xlu0 0
    %5357 = vperm.xlu0 %5356, %v5072
    %v5358 = vpop.permute.xlu0 %5357
    %5361 = vset.pattern.permute.xlu0 0
    %5362 = vperm.xlu0 %5361, %v5073
    %v5363 = vpop.permute.xlu0 %5362
    %5366 = vset.pattern.permute.xlu0 0
    %5367 = vperm.xlu0 %5366, %v5074
    %v5368 = vpop.permute.xlu0 %5367
    %5371 = vset.pattern.permute.xlu0 0
    %5372 = vperm.xlu0 %5371, %v5075
    %v5373 = vpop.permute.xlu0 %5372
    %5376 = vset.pattern.permute.xlu0 0
    %5377 = vperm.xlu0 %5376, %v5076
    %v5378 = vpop.permute.xlu0 %5377
    %5381 = vset.pattern.permute.xlu0 0
    %5382 = vperm.xlu0 %5381, %v5077
    %v5383 = vpop.permute.xlu0 %5382
    %5386 = vset.pattern.permute.xlu0 0
    %5387 = vperm.xlu0 %5386, %v5078
    %v5388 = vpop.permute.xlu0 %5387
    %5391 = vset.pattern.permute.xlu0 0
    %5392 = vperm.xlu0 %5391, %v5079
    %v5393 = vpop.permute.xlu0 %5392
    %5396 = vset.pattern.permute.xlu0 0
    %5397 = vperm.xlu0 %5396, %v5080
    %v5398 = vpop.permute.xlu0 %5397
    %5401 = vset.pattern.permute.xlu0 0
    %5402 = vperm.xlu0 %5401, %v5081
    %v5403 = vpop.permute.xlu0 %5402
    %5406 = vset.pattern.permute.xlu0 0
    %5407 = vperm.xlu0 %5406, %v5082
    %v5408 = vpop.permute.xlu0 %5407
    %5411 = vset.pattern.permute.xlu0 0
    %5412 = vperm.xlu0 %5411, %v5083
    %v5413 = vpop.permute.xlu0 %5412
    %5416 = vset.pattern.permute.xlu0 0
    %5417 = vperm.xlu0 %5416, %v5084
    %v5418 = vpop.permute.xlu0 %5417
    %5421 = vset.pattern.permute.xlu0 0
    %5422 = vperm.xlu0 %5421, %v5085
    %v5423 = vpop.permute.xlu0 %5422
    %5426 = vset.pattern.permute.xlu0 0
    %5427 = vperm.xlu0 %5426, %v5086
    %v5428 = vpop.permute.xlu0 %5427
    %5431 = vset.pattern.permute.xlu0 0
    %5432 = vperm.xlu0 %5431, %v5087
    %v5433 = vpop.permute.xlu0 %5432
    %5436 = vset.pattern.permute.xlu0 0
    %5437 = vperm.xlu0 %5436, %v5088
    %v5438 = vpop.permute.xlu0 %5437
    %5441 = vset.pattern.permute.xlu0 0
    %5442 = vperm.xlu0 %5441, %v5089
    %v5443 = vpop.permute.xlu0 %5442
    %5446 = vset.pattern.permute.xlu0 0
    %5447 = vperm.xlu0 %5446, %v5090
    %v5448 = vpop.permute.xlu0 %5447
    %5451 = vset.pattern.permute.xlu0 0
    %5452 = vperm.xlu0 %5451, %v5091
    %v5453 = vpop.permute.xlu0 %5452
    %5456 = vset.pattern.permute.xlu0 0
    %5457 = vperm.xlu0 %5456, %v5092
    %v5458 = vpop.permute.xlu0 %5457
    %v5460 = vadd.f32 %v5257, %v5318
    %v5461 = vadd.f32 %v5258, %v5318
    %v5462 = vadd.f32 %v5259, %v5323
    %v5463 = vadd.f32 %v5260, %v5323
    %v5464 = vadd.f32 %v5261, %v5328
    %v5465 = vadd.f32 %v5262, %v5328
    %v5466 = vadd.f32 %v5263, %v5333
    %v5467 = vadd.f32 %v5264, %v5333
    %v5468 = vadd.f32 %v5265, %v5338
    %v5469 = vadd.f32 %v5266, %v5338
    %v5470 = vadd.f32 %v5267, %v5343
    %v5471 = vadd.f32 %v5268, %v5343
    %v5472 = vadd.f32 %v5269, %v5348
    %v5473 = vadd.f32 %v5270, %v5348
    %v5474 = vadd.f32 %v5271, %v5353
    %v5475 = vadd.f32 %v5272, %v5353
    %v5476 = vadd.f32 %v5273, %v5358
    %v5477 = vadd.f32 %v5274, %v5358
    %v5478 = vadd.f32 %v5275, %v5363
    %v5479 = vadd.f32 %v5276, %v5363
    %v5480 = vadd.f32 %v5277, %v5368
    %v5481 = vadd.f32 %v5278, %v5368
    %v5482 = vadd.f32 %v5279, %v5373
    %v5483 = vadd.f32 %v5280, %v5373
    %v5484 = vadd.f32 %v5281, %v5378
    %v5485 = vadd.f32 %v5282, %v5378
    %v5486 = vadd.f32 %v5283, %v5383
    %v5487 = vadd.f32 %v5284, %v5383
    %v5488 = vadd.f32 %v5285, %v5388
    %v5489 = vadd.f32 %v5286, %v5388
    %v5490 = vadd.f32 %v5287, %v5393
    %v5491 = vadd.f32 %v5288, %v5393
    %v5492 = vadd.f32 %v5289, %v5398
    %v5493 = vadd.f32 %v5290, %v5398
    %v5494 = vadd.f32 %v5291, %v5403
    %v5495 = vadd.f32 %v5292, %v5403
    %v5496 = vadd.f32 %v5293, %v5408
    %v5497 = vadd.f32 %v5294, %v5408
    %v5498 = vadd.f32 %v5295, %v5413
    %v5499 = vadd.f32 %v5296, %v5413
    %v5500 = vadd.f32 %v5297, %v5418
    %v5501 = vadd.f32 %v5298, %v5418
    %v5502 = vadd.f32 %v5299, %v5423
    %v5503 = vadd.f32 %v5300, %v5423
    %v5504 = vadd.f32 %v5301, %v5428
    %v5505 = vadd.f32 %v5302, %v5428
    %v5506 = vadd.f32 %v5303, %v5433
    %v5507 = vadd.f32 %v5304, %v5433
    %v5508 = vadd.f32 %v5305, %v5438
    %v5509 = vadd.f32 %v5306, %v5438
    %v5510 = vadd.f32 %v5307, %v5443
    %v5511 = vadd.f32 %v5308, %v5443
    %v5512 = vadd.f32 %v5309, %v5448
    %v5513 = vadd.f32 %v5310, %v5448
    %v5514 = vadd.f32 %v5311, %v5453
    %v5515 = vadd.f32 %v5312, %v5453
    %v5516 = vadd.f32 %v5313, %v5458
    %v5517 = vadd.f32 %v5314, %v5458
    %v5518 = vmax.f32 %v5460, %v5464
    %v5519 = vmax.f32 %v5462, %v5466
    %v5520 = vmax.f32 %v5518, %v5468
    %v5521 = vmax.f32 %v5519, %v5470
    %v5522 = vmax.f32 %v5520, %v5472
    %v5523 = vmax.f32 %v5521, %v5474
    %v5524 = vmax.f32 %v5522, %v5476
    %v5525 = vmax.f32 %v5523, %v5478
    %v5526 = vmax.f32 %v5524, %v5480
    %v5527 = vmax.f32 %v5525, %v5482
    %v5528 = vmax.f32 %v5526, %v5484
    %v5529 = vmax.f32 %v5527, %v5486
    %v5530 = vmax.f32 %v5528, %v5488
    %v5531 = vmax.f32 %v5529, %v5490
    %v5532 = vmax.f32 %v5530, %v5492
    %v5533 = vmax.f32 %v5531, %v5494
    %v5534 = vmax.f32 %v5532, %v5496
    %v5535 = vmax.f32 %v5533, %v5498
    %v5536 = vmax.f32 %v5534, %v5500
    %v5537 = vmax.f32 %v5535, %v5502
    %v5538 = vmax.f32 %v5536, %v5504
    %v5539 = vmax.f32 %v5537, %v5506
    %v5540 = vmax.f32 %v5538, %v5508
    %v5541 = vmax.f32 %v5539, %v5510
    %v5542 = vmax.f32 %v5540, %v5512
    %v5543 = vmax.f32 %v5541, %v5514
    %v5544 = vsel %vm773, %v5516, -inf
    %v5545 = vmax.f32 %v5542, %v5544
    %v5546 = vmax.f32 %v5545, %v5543
    %v5547 = vrot.slane %v5546, 4
    %v5548 = vmax.f32 %v5546, %v5547
    %v5549 = vrot.slane %v5548, 2
    %v5550 = vmax.f32 %v5548, %v5549
    %v5551 = vrot.slane %v5550, 1
    %v5552 = vmax.f32 %v5550, %v5551
    %v5553 = vsel %vm770, %v5461, -inf
    %v5554 = vsel %vm770, %v5463, -inf
    %v5555 = vsel %vm770, %v5465, -inf
    %v5556 = vmax.f32 %v5553, %v5555
    %v5557 = vsel %vm770, %v5467, -inf
    %v5558 = vmax.f32 %v5554, %v5557
    %v5559 = vsel %vm770, %v5469, -inf
    %v5560 = vmax.f32 %v5556, %v5559
    %v5561 = vsel %vm770, %v5471, -inf
    %v5562 = vmax.f32 %v5558, %v5561
    %v5563 = vsel %vm770, %v5473, -inf
    %v5564 = vmax.f32 %v5560, %v5563
    %v5565 = vsel %vm770, %v5475, -inf
    %v5566 = vmax.f32 %v5562, %v5565
    %v5567 = vsel %vm770, %v5477, -inf
    %v5568 = vmax.f32 %v5564, %v5567
    %v5569 = vsel %vm770, %v5479, -inf
    %v5570 = vmax.f32 %v5566, %v5569
    %v5571 = vsel %vm770, %v5481, -inf
    %v5572 = vmax.f32 %v5568, %v5571
    %v5573 = vsel %vm770, %v5483, -inf
    %v5574 = vmax.f32 %v5570, %v5573
    %v5575 = vsel %vm770, %v5485, -inf
    %v5576 = vmax.f32 %v5572, %v5575
    %v5577 = vsel %vm770, %v5487, -inf
    %v5578 = vmax.f32 %v5574, %v5577
    %v5579 = vsel %vm770, %v5489, -inf
    %v5580 = vmax.f32 %v5576, %v5579
    %v5581 = vsel %vm770, %v5491, -inf
    %v5582 = vmax.f32 %v5578, %v5581
    %v5583 = vsel %vm770, %v5493, -inf
    %v5584 = vmax.f32 %v5580, %v5583
    %v5585 = vsel %vm770, %v5495, -inf
    %v5586 = vmax.f32 %v5582, %v5585
    %v5587 = vsel %vm770, %v5497, -inf
    %v5588 = vmax.f32 %v5584, %v5587
    %v5589 = vsel %vm770, %v5499, -inf
    %v5590 = vmax.f32 %v5586, %v5589
    %v5591 = vsel %vm770, %v5501, -inf
    %v5592 = vmax.f32 %v5588, %v5591
    %v5593 = vsel %vm770, %v5503, -inf
    %v5594 = vmax.f32 %v5590, %v5593
    %v5595 = vsel %vm770, %v5505, -inf
    %v5596 = vmax.f32 %v5592, %v5595
    %v5597 = vsel %vm770, %v5507, -inf
    %v5598 = vmax.f32 %v5594, %v5597
    %v5599 = vsel %vm770, %v5509, -inf
    %v5600 = vmax.f32 %v5596, %v5599
    %v5601 = vsel %vm770, %v5511, -inf
    %v5602 = vmax.f32 %v5598, %v5601
    %v5603 = vsel %vm770, %v5513, -inf
    %v5604 = vmax.f32 %v5600, %v5603
    %v5605 = vsel %vm770, %v5515, -inf
    %v5606 = vmax.f32 %v5602, %v5605
    %vm5607 = vcmask 786432
    %v5608 = vsel %vm5607, %v5517, -inf
    %v5609 = vmax.f32 %v5604, %v5608
    %v5610 = vmax.f32 %v5609, %v5606
    %v5611 = vrot.slane %v5610, 4
    %v5612 = vmax.f32 %v5610, %v5611
    %v5613 = vrot.slane %v5612, 2
    %v5614 = vmax.f32 %v5612, %v5613
    %v5615 = vrot.slane %v5614, 1
    %v5616 = vmax.f32 %v5614, %v5615
    %v5617 = vsub.f32 %v5460, %v5552
    %v5618 = vsub.f32 %v5461, %v5616
    %v5619 = vsub.f32 %v5462, %v5552
    %v5620 = vsub.f32 %v5463, %v5616
    %v5621 = vsub.f32 %v5464, %v5552
    %v5622 = vsub.f32 %v5465, %v5616
    %v5623 = vsub.f32 %v5466, %v5552
    %v5624 = vsub.f32 %v5467, %v5616
    %v5625 = vsub.f32 %v5468, %v5552
    %v5626 = vsub.f32 %v5469, %v5616
    %v5627 = vsub.f32 %v5470, %v5552
    %v5628 = vsub.f32 %v5471, %v5616
    %v5629 = vsub.f32 %v5472, %v5552
    %v5630 = vsub.f32 %v5473, %v5616
    %v5631 = vsub.f32 %v5474, %v5552
    %v5632 = vsub.f32 %v5475, %v5616
    %v5633 = vsub.f32 %v5476, %v5552
    %v5634 = vsub.f32 %v5477, %v5616
    %v5635 = vsub.f32 %v5478, %v5552
    %v5636 = vsub.f32 %v5479, %v5616
    %v5637 = vsub.f32 %v5480, %v5552
    %v5638 = vsub.f32 %v5481, %v5616
    %v5639 = vsub.f32 %v5482, %v5552
    %v5640 = vsub.f32 %v5483, %v5616
    %v5641 = vsub.f32 %v5484, %v5552
    %v5642 = vsub.f32 %v5485, %v5616
    %v5643 = vsub.f32 %v5486, %v5552
    %v5644 = vsub.f32 %v5487, %v5616
    %v5645 = vsub.f32 %v5488, %v5552
    %v5646 = vsub.f32 %v5489, %v5616
    %v5647 = vsub.f32 %v5490, %v5552
    %v5648 = vsub.f32 %v5491, %v5616
    %v5649 = vsub.f32 %v5492, %v5552
    %v5650 = vsub.f32 %v5493, %v5616
    %v5651 = vsub.f32 %v5494, %v5552
    %v5652 = vsub.f32 %v5495, %v5616
    %v5653 = vsub.f32 %v5496, %v5552
    %v5654 = vsub.f32 %v5497, %v5616
    %v5655 = vsub.f32 %v5498, %v5552
    %v5656 = vsub.f32 %v5499, %v5616
    %v5657 = vsub.f32 %v5500, %v5552
    %v5658 = vsub.f32 %v5501, %v5616
    %v5659 = vsub.f32 %v5502, %v5552
    %v5660 = vsub.f32 %v5503, %v5616
    %v5661 = vsub.f32 %v5504, %v5552
    %v5662 = vsub.f32 %v5505, %v5616
    %v5663 = vsub.f32 %v5506, %v5552
    %v5664 = vsub.f32 %v5507, %v5616
    %v5665 = vsub.f32 %v5508, %v5552
    %v5666 = vsub.f32 %v5509, %v5616
    %v5667 = vsub.f32 %v5510, %v5552
    %v5668 = vsub.f32 %v5511, %v5616
    %v5669 = vsub.f32 %v5512, %v5552
    %v5670 = vsub.f32 %v5513, %v5616
    %v5671 = vsub.f32 %v5514, %v5552
    %v5672 = vsub.f32 %v5515, %v5616
    %v5673 = vsub.f32 %v5516, %v5552
    %v5674 = vsub.f32 %v5517, %v5616
    %v5675 = vmul.f32 %v5617, 1.442695
    %v5676 = vpow.pop %v5675
    %v5677 = vmul.f32 %v5618, 1.442695
    %v5678 = vpow.pop %v5677
    %v5679 = vmul.f32 %v5619, 1.442695
    %v5680 = vpow.pop %v5679
    %v5681 = vmul.f32 %v5620, 1.442695
    %v5682 = vpow.pop %v5681
    %v5683 = vmul.f32 %v5621, 1.442695
    %v5684 = vpow.pop %v5683
    %v5685 = vmul.f32 %v5622, 1.442695
    %v5686 = vpow.pop %v5685
    %v5687 = vmul.f32 %v5623, 1.442695
    %v5688 = vpow.pop %v5687
    %v5689 = vmul.f32 %v5624, 1.442695
    %v5690 = vpow.pop %v5689
    %v5691 = vmul.f32 %v5625, 1.442695
    %v5692 = vpow.pop %v5691
    %v5693 = vmul.f32 %v5626, 1.442695
    %v5694 = vpow.pop %v5693
    %v5695 = vmul.f32 %v5627, 1.442695
    %v5696 = vpow.pop %v5695
    %v5697 = vmul.f32 %v5628, 1.442695
    %v5698 = vpow.pop %v5697
    %v5699 = vmul.f32 %v5629, 1.442695
    %v5700 = vpow.pop %v5699
    %v5701 = vmul.f32 %v5630, 1.442695
    %v5702 = vpow.pop %v5701
    %v5703 = vmul.f32 %v5631, 1.442695
    %v5704 = vpow.pop %v5703
    %v5705 = vmul.f32 %v5632, 1.442695
    %v5706 = vpow.pop %v5705
    %v5707 = vmul.f32 %v5633, 1.442695
    %v5708 = vpow.pop %v5707
    %v5709 = vmul.f32 %v5634, 1.442695
    %v5710 = vpow.pop %v5709
    %v5711 = vmul.f32 %v5635, 1.442695
    %v5712 = vpow.pop %v5711
    %v5713 = vmul.f32 %v5636, 1.442695
    %v5714 = vpow.pop %v5713
    %v5715 = vmul.f32 %v5637, 1.442695
    %v5716 = vpow.pop %v5715
    %v5717 = vmul.f32 %v5638, 1.442695
    %v5718 = vpow.pop %v5717
    %v5719 = vmul.f32 %v5639, 1.442695
    %v5720 = vpow.pop %v5719
    %v5721 = vmul.f32 %v5640, 1.442695
    %v5722 = vpow.pop %v5721
    %v5723 = vmul.f32 %v5641, 1.442695
    %v5724 = vpow.pop %v5723
    %v5725 = vmul.f32 %v5642, 1.442695
    %v5726 = vpow.pop %v5725
    %v5727 = vmul.f32 %v5643, 1.442695
    %v5728 = vpow.pop %v5727
    %v5729 = vmul.f32 %v5644, 1.442695
    %v5730 = vpow.pop %v5729
    %v5731 = vmul.f32 %v5645, 1.442695
    %v5732 = vpow.pop %v5731
    %v5733 = vmul.f32 %v5646, 1.442695
    %v5734 = vpow.pop %v5733
    %v5735 = vmul.f32 %v5647, 1.442695
    %v5736 = vpow.pop %v5735
    %v5737 = vmul.f32 %v5648, 1.442695
    %v5738 = vpow.pop %v5737
    %v5739 = vmul.f32 %v5649, 1.442695
    %v5740 = vpow.pop %v5739
    %v5741 = vmul.f32 %v5650, 1.442695
    %v5742 = vpow.pop %v5741
    %v5743 = vmul.f32 %v5651, 1.442695
    %v5744 = vpow.pop %v5743
    %v5745 = vmul.f32 %v5652, 1.442695
    %v5746 = vpow.pop %v5745
    %v5747 = vmul.f32 %v5653, 1.442695
    %v5748 = vpow.pop %v5747
    %v5749 = vmul.f32 %v5654, 1.442695
    %v5750 = vpow.pop %v5749
    %v5751 = vmul.f32 %v5655, 1.442695
    %v5752 = vpow.pop %v5751
    %v5753 = vmul.f32 %v5656, 1.442695
    %v5754 = vpow.pop %v5753
    %v5755 = vmul.f32 %v5657, 1.442695
    %v5756 = vpow.pop %v5755
    %v5757 = vmul.f32 %v5658, 1.442695
    %v5758 = vpow.pop %v5757
    %v5759 = vmul.f32 %v5659, 1.442695
    %v5760 = vpow.pop %v5759
    %v5761 = vmul.f32 %v5660, 1.442695
    %v5762 = vpow.pop %v5761
    %v5763 = vmul.f32 %v5661, 1.442695
    %v5764 = vpow.pop %v5763
    %v5765 = vmul.f32 %v5662, 1.442695
    %v5766 = vpow.pop %v5765
    %v5767 = vmul.f32 %v5663, 1.442695
    %v5768 = vpow.pop %v5767
    %v5769 = vmul.f32 %v5664, 1.442695
    %v5770 = vpow.pop %v5769
    %v5771 = vmul.f32 %v5665, 1.442695
    %v5772 = vpow.pop %v5771
    %v5773 = vmul.f32 %v5666, 1.442695
    %v5774 = vpow.pop %v5773
    %v5775 = vmul.f32 %v5667, 1.442695
    %v5776 = vpow.pop %v5775
    %v5777 = vmul.f32 %v5668, 1.442695
    %v5778 = vpow.pop %v5777
    %v5779 = vmul.f32 %v5669, 1.442695
    %v5780 = vpow.pop %v5779
    %v5781 = vmul.f32 %v5670, 1.442695
    %v5782 = vpow.pop %v5781
    %v5783 = vmul.f32 %v5671, 1.442695
    %v5784 = vpow.pop %v5783
    %v5785 = vmul.f32 %v5672, 1.442695
    %v5786 = vpow.pop %v5785
    %v5787 = vmul.f32 %v5673, 1.442695
    %v5788 = vpow.pop %v5787
    %v5789 = vmul.f32 %v5674, 1.442695
    %v5790 = vpow.pop %v5789
    %v5791 = vadd.f32 %v5676, %v5680
    %v5792 = vadd.f32 %v5791, %v5684
    %v5793 = vadd.f32 %v5792, %v5688
    %v5794 = vadd.f32 %v5793, %v5692
    %v5795 = vadd.f32 %v5794, %v5696
    %v5796 = vadd.f32 %v5795, %v5700
    %v5797 = vadd.f32 %v5796, %v5704
    %v5798 = vadd.f32 %v5797, %v5708
    %v5799 = vadd.f32 %v5798, %v5712
    %v5800 = vadd.f32 %v5799, %v5716
    %v5801 = vadd.f32 %v5800, %v5720
    %v5802 = vadd.f32 %v5801, %v5724
    %v5803 = vadd.f32 %v5802, %v5728
    %v5804 = vadd.f32 %v5803, %v5732
    %v5805 = vadd.f32 %v5804, %v5736
    %v5806 = vadd.f32 %v5805, %v5740
    %v5807 = vadd.f32 %v5806, %v5744
    %v5808 = vadd.f32 %v5807, %v5748
    %v5809 = vadd.f32 %v5808, %v5752
    %v5810 = vadd.f32 %v5809, %v5756
    %v5811 = vadd.f32 %v5810, %v5760
    %v5812 = vadd.f32 %v5811, %v5764
    %v5813 = vadd.f32 %v5812, %v5768
    %v5814 = vadd.f32 %v5813, %v5772
    %v5815 = vadd.f32 %v5814, %v5776
    %v5816 = vadd.f32 %v5815, %v5780
    %v5817 = vadd.f32 %v5816, %v5784
    %v5818 = vsel %vm773, %v5788, 0.0
    %v5819 = vadd.f32 %v5817, %v5818
    %v5820 = vrot.slane %v5819, 4
    %v5821 = vadd.f32 %v5819, %v5820
    %v5822 = vrot.slane %v5821, 2
    %v5823 = vadd.f32 %v5821, %v5822
    %v5824 = vrot.slane %v5823, 1
    %v5825 = vadd.f32 %v5823, %v5824
    %v5826 = vsel %vm770, %v5678, 0.0
    %v5827 = vsel %vm770, %v5682, 0.0
    %v5828 = vadd.f32 %v5826, %v5827
    %v5829 = vsel %vm770, %v5686, 0.0
    %v5830 = vadd.f32 %v5828, %v5829
    %v5831 = vsel %vm770, %v5690, 0.0
    %v5832 = vadd.f32 %v5830, %v5831
    %v5833 = vsel %vm770, %v5694, 0.0
    %v5834 = vadd.f32 %v5832, %v5833
    %v5835 = vsel %vm770, %v5698, 0.0
    %v5836 = vadd.f32 %v5834, %v5835
    %v5837 = vsel %vm770, %v5702, 0.0
    %v5838 = vadd.f32 %v5836, %v5837
    %v5839 = vsel %vm770, %v5706, 0.0
    %v5840 = vadd.f32 %v5838, %v5839
    %v5841 = vsel %vm770, %v5710, 0.0
    %v5842 = vadd.f32 %v5840, %v5841
    %v5843 = vsel %vm770, %v5714, 0.0
    %v5844 = vadd.f32 %v5842, %v5843
    %v5845 = vsel %vm770, %v5718, 0.0
    %v5846 = vadd.f32 %v5844, %v5845
    %v5847 = vsel %vm770, %v5722, 0.0
    %v5848 = vadd.f32 %v5846, %v5847
    %v5849 = vsel %vm770, %v5726, 0.0
    %v5850 = vadd.f32 %v5848, %v5849
    %v5851 = vsel %vm770, %v5730, 0.0
    %v5852 = vadd.f32 %v5850, %v5851
    %v5853 = vsel %vm770, %v5734, 0.0
    %v5854 = vadd.f32 %v5852, %v5853
    %v5855 = vsel %vm770, %v5738, 0.0
    %v5856 = vadd.f32 %v5854, %v5855
    %v5857 = vsel %vm770, %v5742, 0.0
    %v5858 = vadd.f32 %v5856, %v5857
    %v5859 = vsel %vm770, %v5746, 0.0
    %v5860 = vadd.f32 %v5858, %v5859
    %v5861 = vsel %vm770, %v5750, 0.0
    %v5862 = vadd.f32 %v5860, %v5861
    %v5863 = vsel %vm770, %v5754, 0.0
    %v5864 = vadd.f32 %v5862, %v5863
    %v5865 = vsel %vm770, %v5758, 0.0
    %v5866 = vadd.f32 %v5864, %v5865
    %v5867 = vsel %vm770, %v5762, 0.0
    %v5868 = vadd.f32 %v5866, %v5867
    %v5869 = vsel %vm770, %v5766, 0.0
    %v5870 = vadd.f32 %v5868, %v5869
    %v5871 = vsel %vm770, %v5770, 0.0
    %v5872 = vadd.f32 %v5870, %v5871
    %v5873 = vsel %vm770, %v5774, 0.0
    %v5874 = vadd.f32 %v5872, %v5873
    %v5875 = vsel %vm770, %v5778, 0.0
    %v5876 = vadd.f32 %v5874, %v5875
    %v5877 = vsel %vm770, %v5782, 0.0
    %v5878 = vadd.f32 %v5876, %v5877
    %v5879 = vsel %vm770, %v5786, 0.0
    %v5880 = vadd.f32 %v5878, %v5879
    %v5881 = vsel %vm5607, %v5790, 0.0
    %v5882 = vadd.f32 %v5880, %v5881
    %v5883 = vrot.slane %v5882, 4
    %v5884 = vadd.f32 %v5882, %v5883
    %v5885 = vrot.slane %v5884, 2
    %v5886 = vadd.f32 %v5884, %v5885
    %v5887 = vrot.slane %v5886, 1
    %v5888 = vadd.f32 %v5886, %v5887
    %v5889 = vrcp.pop %v5825
    %v5890 = vmul.f32 %v5676, %v5889
    %v5891 = vrcp.pop %v5888
    %v5892 = vmul.f32 %v5678, %v5891
    %v5893 = vmul.f32 %v5680, %v5889
    %v5894 = vmul.f32 %v5682, %v5891
    %v5895 = vmul.f32 %v5684, %v5889
    %v5896 = vmul.f32 %v5686, %v5891
    %v5897 = vmul.f32 %v5688, %v5889
    %v5898 = vmul.f32 %v5690, %v5891
    %v5899 = vmul.f32 %v5692, %v5889
    %v5900 = vmul.f32 %v5694, %v5891
    %v5901 = vmul.f32 %v5696, %v5889
    %v5902 = vmul.f32 %v5698, %v5891
    %v5903 = vmul.f32 %v5700, %v5889
    %v5904 = vmul.f32 %v5702, %v5891
    %v5905 = vmul.f32 %v5704, %v5889
    %v5906 = vmul.f32 %v5706, %v5891
    %v5907 = vmul.f32 %v5708, %v5889
    %v5908 = vmul.f32 %v5710, %v5891
    %v5909 = vmul.f32 %v5712, %v5889
    %v5910 = vmul.f32 %v5714, %v5891
    %v5911 = vmul.f32 %v5716, %v5889
    %v5912 = vmul.f32 %v5718, %v5891
    %v5913 = vmul.f32 %v5720, %v5889
    %v5914 = vmul.f32 %v5722, %v5891
    %v5915 = vmul.f32 %v5724, %v5889
    %v5916 = vmul.f32 %v5726, %v5891
    %v5917 = vmul.f32 %v5728, %v5889
    %v5918 = vmul.f32 %v5730, %v5891
    %v5919 = vmul.f32 %v5732, %v5889
    %v5920 = vmul.f32 %v5734, %v5891
    %v5921 = vmul.f32 %v5736, %v5889
    %v5922 = vmul.f32 %v5738, %v5891
    %v5923 = vmul.f32 %v5740, %v5889
    %v5924 = vmul.f32 %v5742, %v5891
    %v5925 = vmul.f32 %v5744, %v5889
    %v5926 = vmul.f32 %v5746, %v5891
    %v5927 = vmul.f32 %v5748, %v5889
    %v5928 = vmul.f32 %v5750, %v5891
    %v5929 = vmul.f32 %v5752, %v5889
    %v5930 = vmul.f32 %v5754, %v5891
    %v5931 = vmul.f32 %v5756, %v5889
    %v5932 = vmul.f32 %v5758, %v5891
    %v5933 = vmul.f32 %v5760, %v5889
    %v5934 = vmul.f32 %v5762, %v5891
    %v5935 = vmul.f32 %v5764, %v5889
    %v5936 = vmul.f32 %v5766, %v5891
    %v5937 = vmul.f32 %v5768, %v5889
    %v5938 = vmul.f32 %v5770, %v5891
    %v5939 = vmul.f32 %v5772, %v5889
    %v5940 = vmul.f32 %v5774, %v5891
    %v5941 = vmul.f32 %v5776, %v5889
    %v5942 = vmul.f32 %v5778, %v5891
    %v5943 = vmul.f32 %v5780, %v5889
    %v5944 = vmul.f32 %v5782, %v5891
    %v5945 = vmul.f32 %v5784, %v5889
    %v5946 = vmul.f32 %v5786, %v5891
    %v5947 = vmul.f32 %v5788, %v5889
    %v5948 = vmul.f32 %v5790, %v5891
    %5950 = vset.pattern.permute.xlu0 0
    %5951 = vperm.xlu0 %5950, %v5006
    %v5952 = vpop.permute.xlu0 %5951
    %5955 = vset.pattern.permute.xlu0 0
    %5956 = vperm.xlu0 %5955, %v5007
    %v5957 = vpop.permute.xlu0 %5956
    %5960 = vset.pattern.permute.xlu0 0
    %5961 = vperm.xlu0 %5960, %v5008
    %v5962 = vpop.permute.xlu0 %5961
    %5965 = vset.pattern.permute.xlu0 0
    %5966 = vperm.xlu0 %5965, %v5009
    %v5967 = vpop.permute.xlu0 %5966
    %5970 = vset.pattern.permute.xlu0 0
    %5971 = vperm.xlu0 %5970, %v5010
    %v5972 = vpop.permute.xlu0 %5971
    %5975 = vset.pattern.permute.xlu0 0
    %5976 = vperm.xlu0 %5975, %v5011
    %v5977 = vpop.permute.xlu0 %5976
    %5980 = vset.pattern.permute.xlu0 0
    %5981 = vperm.xlu0 %5980, %v5012
    %v5982 = vpop.permute.xlu0 %5981
    %5985 = vset.pattern.permute.xlu0 0
    %5986 = vperm.xlu0 %5985, %v5013
    %v5987 = vpop.permute.xlu0 %5986
    %5990 = vset.pattern.permute.xlu0 0
    %5991 = vperm.xlu0 %5990, %v5014
    %v5992 = vpop.permute.xlu0 %5991
    %5995 = vset.pattern.permute.xlu0 0
    %5996 = vperm.xlu0 %5995, %v5015
    %v5997 = vpop.permute.xlu0 %5996
    %6000 = vset.pattern.permute.xlu0 0
    %6001 = vperm.xlu0 %6000, %v5016
    %v6002 = vpop.permute.xlu0 %6001
    %6005 = vset.pattern.permute.xlu0 0
    %6006 = vperm.xlu0 %6005, %v5017
    %v6007 = vpop.permute.xlu0 %6006
    %6010 = vset.pattern.permute.xlu0 0
    %6011 = vperm.xlu0 %6010, %v5018
    %v6012 = vpop.permute.xlu0 %6011
    %6015 = vset.pattern.permute.xlu0 0
    %6016 = vperm.xlu0 %6015, %v5019
    %v6017 = vpop.permute.xlu0 %6016
    %6020 = vset.pattern.permute.xlu0 0
    %6021 = vperm.xlu0 %6020, %v5020
    %v6022 = vpop.permute.xlu0 %6021
    %6025 = vset.pattern.permute.xlu0 0
    %6026 = vperm.xlu0 %6025, %v5021
    %v6027 = vpop.permute.xlu0 %6026
    %6030 = vset.pattern.permute.xlu0 0
    %6031 = vperm.xlu0 %6030, %v5022
    %v6032 = vpop.permute.xlu0 %6031
    %6035 = vset.pattern.permute.xlu0 0
    %6036 = vperm.xlu0 %6035, %v5023
    %v6037 = vpop.permute.xlu0 %6036
    %6040 = vset.pattern.permute.xlu0 0
    %6041 = vperm.xlu0 %6040, %v5024
    %v6042 = vpop.permute.xlu0 %6041
    %6045 = vset.pattern.permute.xlu0 0
    %6046 = vperm.xlu0 %6045, %v5025
    %v6047 = vpop.permute.xlu0 %6046
    %6050 = vset.pattern.permute.xlu0 0
    %6051 = vperm.xlu0 %6050, %v5026
    %v6052 = vpop.permute.xlu0 %6051
    %6055 = vset.pattern.permute.xlu0 0
    %6056 = vperm.xlu0 %6055, %v5027
    %v6057 = vpop.permute.xlu0 %6056
    %6060 = vset.pattern.permute.xlu0 0
    %6061 = vperm.xlu0 %6060, %v5028
    %v6062 = vpop.permute.xlu0 %6061
    %6065 = vset.pattern.permute.xlu0 0
    %6066 = vperm.xlu0 %6065, %v5029
    %v6067 = vpop.permute.xlu0 %6066
    %6070 = vset.pattern.permute.xlu0 0
    %6071 = vperm.xlu0 %6070, %v5030
    %v6072 = vpop.permute.xlu0 %6071
    %6075 = vset.pattern.permute.xlu0 0
    %6076 = vperm.xlu0 %6075, %v5031
    %v6077 = vpop.permute.xlu0 %6076
    %6080 = vset.pattern.permute.xlu0 0
    %6081 = vperm.xlu0 %6080, %v5032
    %v6082 = vpop.permute.xlu0 %6081
    %6085 = vset.pattern.permute.xlu0 0
    %6086 = vperm.xlu0 %6085, %v5033
    %v6087 = vpop.permute.xlu0 %6086
    %6090 = vset.pattern.permute.xlu0 0
    %6091 = vperm.xlu0 %6090, %v5034
    %v6092 = vpop.permute.xlu0 %6091
    %v6094 = vmul.f32 %v5890, %v5952
    %v6095 = vmul.f32 %v5892, %v5952
    %v6096 = vmul.f32 %v5893, %v5957
    %v6097 = vmul.f32 %v5894, %v5957
    %v6098 = vmul.f32 %v5895, %v5962
    %v6099 = vmul.f32 %v5896, %v5962
    %v6100 = vmul.f32 %v5897, %v5967
    %v6101 = vmul.f32 %v5898, %v5967
    %v6102 = vmul.f32 %v5899, %v5972
    %v6103 = vmul.f32 %v5900, %v5972
    %v6104 = vmul.f32 %v5901, %v5977
    %v6105 = vmul.f32 %v5902, %v5977
    %v6106 = vmul.f32 %v5903, %v5982
    %v6107 = vmul.f32 %v5904, %v5982
    %v6108 = vmul.f32 %v5905, %v5987
    %v6109 = vmul.f32 %v5906, %v5987
    %v6110 = vmul.f32 %v5907, %v5992
    %v6111 = vmul.f32 %v5908, %v5992
    %v6112 = vmul.f32 %v5909, %v5997
    %v6113 = vmul.f32 %v5910, %v5997
    %v6114 = vmul.f32 %v5911, %v6002
    %v6115 = vmul.f32 %v5912, %v6002
    %v6116 = vmul.f32 %v5913, %v6007
    %v6117 = vmul.f32 %v5914, %v6007
    %v6118 = vmul.f32 %v5915, %v6012
    %v6119 = vmul.f32 %v5916, %v6012
    %v6120 = vmul.f32 %v5917, %v6017
    %v6121 = vmul.f32 %v5918, %v6017
    %v6122 = vmul.f32 %v5919, %v6022
    %v6123 = vmul.f32 %v5920, %v6022
    %v6124 = vmul.f32 %v5921, %v6027
    %v6125 = vmul.f32 %v5922, %v6027
    %v6126 = vmul.f32 %v5923, %v6032
    %v6127 = vmul.f32 %v5924, %v6032
    %v6128 = vmul.f32 %v5925, %v6037
    %v6129 = vmul.f32 %v5926, %v6037
    %v6130 = vmul.f32 %v5927, %v6042
    %v6131 = vmul.f32 %v5928, %v6042
    %v6132 = vmul.f32 %v5929, %v6047
    %v6133 = vmul.f32 %v5930, %v6047
    %v6134 = vmul.f32 %v5931, %v6052
    %v6135 = vmul.f32 %v5932, %v6052
    %v6136 = vmul.f32 %v5933, %v6057
    %v6137 = vmul.f32 %v5934, %v6057
    %v6138 = vmul.f32 %v5935, %v6062
    %v6139 = vmul.f32 %v5936, %v6062
    %v6140 = vmul.f32 %v5937, %v6067
    %v6141 = vmul.f32 %v5938, %v6067
    %v6142 = vmul.f32 %v5939, %v6072
    %v6143 = vmul.f32 %v5940, %v6072
    %v6144 = vmul.f32 %v5941, %v6077
    %v6145 = vmul.f32 %v5942, %v6077
    %v6146 = vmul.f32 %v5943, %v6082
    %v6147 = vmul.f32 %v5944, %v6082
    %v6148 = vmul.f32 %v5945, %v6087
    %v6149 = vmul.f32 %v5946, %v6087
    %v6150 = vmul.f32 %v5947, %v6092
    %v6151 = vmul.f32 %v5948, %v6092
    %v6152 = vadd.f32 %v6094, %v6096
    %v6153 = vadd.f32 %v6152, %v6098
    %v6154 = vadd.f32 %v6153, %v6100
    %v6155 = vadd.f32 %v6154, %v6102
    %v6156 = vadd.f32 %v6155, %v6104
    %v6157 = vadd.f32 %v6156, %v6106
    %v6158 = vadd.f32 %v6157, %v6108
    %v6159 = vadd.f32 %v6158, %v6110
    %v6160 = vadd.f32 %v6159, %v6112
    %v6161 = vadd.f32 %v6160, %v6114
    %v6162 = vadd.f32 %v6161, %v6116
    %v6163 = vadd.f32 %v6162, %v6118
    %v6164 = vadd.f32 %v6163, %v6120
    %v6165 = vadd.f32 %v6164, %v6122
    %v6166 = vadd.f32 %v6165, %v6124
    %v6167 = vadd.f32 %v6166, %v6126
    %v6168 = vadd.f32 %v6167, %v6128
    %v6169 = vadd.f32 %v6168, %v6130
    %v6170 = vadd.f32 %v6169, %v6132
    %v6171 = vadd.f32 %v6170, %v6134
    %v6172 = vadd.f32 %v6171, %v6136
    %v6173 = vadd.f32 %v6172, %v6138
    %v6174 = vadd.f32 %v6173, %v6140
    %v6175 = vadd.f32 %v6174, %v6142
    %v6176 = vadd.f32 %v6175, %v6144
    %v6177 = vadd.f32 %v6176, %v6146
    %v6178 = vadd.f32 %v6177, %v6148
    %v6179 = vsel %vm773, %v6150, 0.0
    %v6180 = vadd.f32 %v6178, %v6179
    %v6181 = vrot.slane %v6180, 4
    %v6182 = vadd.f32 %v6180, %v6181
    %v6183 = vrot.slane %v6182, 2
    %v6184 = vadd.f32 %v6182, %v6183
    %v6185 = vrot.slane %v6184, 1
    %v6186 = vadd.f32 %v6184, %v6185
    %v6187 = vsel %vm770, %v6095, 0.0
    %v6188 = vsel %vm770, %v6097, 0.0
    %v6189 = vadd.f32 %v6187, %v6188
    %v6190 = vsel %vm770, %v6099, 0.0
    %v6191 = vadd.f32 %v6189, %v6190
    %v6192 = vsel %vm770, %v6101, 0.0
    %v6193 = vadd.f32 %v6191, %v6192
    %v6194 = vsel %vm770, %v6103, 0.0
    %v6195 = vadd.f32 %v6193, %v6194
    %v6196 = vsel %vm770, %v6105, 0.0
    %v6197 = vadd.f32 %v6195, %v6196
    %v6198 = vsel %vm770, %v6107, 0.0
    %v6199 = vadd.f32 %v6197, %v6198
    %v6200 = vsel %vm770, %v6109, 0.0
    %v6201 = vadd.f32 %v6199, %v6200
    %v6202 = vsel %vm770, %v6111, 0.0
    %v6203 = vadd.f32 %v6201, %v6202
    %v6204 = vsel %vm770, %v6113, 0.0
    %v6205 = vadd.f32 %v6203, %v6204
    %v6206 = vsel %vm770, %v6115, 0.0
    %v6207 = vadd.f32 %v6205, %v6206
    %v6208 = vsel %vm770, %v6117, 0.0
    %v6209 = vadd.f32 %v6207, %v6208
    %v6210 = vsel %vm770, %v6119, 0.0
    %v6211 = vadd.f32 %v6209, %v6210
    %v6212 = vsel %vm770, %v6121, 0.0
    %v6213 = vadd.f32 %v6211, %v6212
    %v6214 = vsel %vm770, %v6123, 0.0
    %v6215 = vadd.f32 %v6213, %v6214
    %v6216 = vsel %vm770, %v6125, 0.0
    %v6217 = vadd.f32 %v6215, %v6216
    %v6218 = vsel %vm770, %v6127, 0.0
    %v6219 = vadd.f32 %v6217, %v6218
    %v6220 = vsel %vm770, %v6129, 0.0
    %v6221 = vadd.f32 %v6219, %v6220
    %v6222 = vsel %vm770, %v6131, 0.0
    %v6223 = vadd.f32 %v6221, %v6222
    %v6224 = vsel %vm770, %v6133, 0.0
    %v6225 = vadd.f32 %v6223, %v6224
    %v6226 = vsel %vm770, %v6135, 0.0
    %v6227 = vadd.f32 %v6225, %v6226
    %v6228 = vsel %vm770, %v6137, 0.0
    %v6229 = vadd.f32 %v6227, %v6228
    %v6230 = vsel %vm770, %v6139, 0.0
    %v6231 = vadd.f32 %v6229, %v6230
    %v6232 = vsel %vm770, %v6141, 0.0
    %v6233 = vadd.f32 %v6231, %v6232
    %v6234 = vsel %vm770, %v6143, 0.0
    %v6235 = vadd.f32 %v6233, %v6234
    %v6236 = vsel %vm770, %v6145, 0.0
    %v6237 = vadd.f32 %v6235, %v6236
    %v6238 = vsel %vm770, %v6147, 0.0
    %v6239 = vadd.f32 %v6237, %v6238
    %v6240 = vsel %vm770, %v6149, 0.0
    %v6241 = vadd.f32 %v6239, %v6240
    %v6242 = vsel %vm5607, %v6151, 0.0
    %v6243 = vadd.f32 %v6241, %v6242
    %v6244 = vrot.slane %v6243, 4
    %v6245 = vadd.f32 %v6243, %v6244
    %v6246 = vrot.slane %v6245, 2
    %v6247 = vadd.f32 %v6245, %v6246
    %v6248 = vrot.slane %v6247, 1
    %v6249 = vadd.f32 %v6247, %v6248
    %v6252 = vcombine.low %v6186, %v6249
    %v6254 = vunpack.c.l.s4 1966171168
    %v6255 = vunpack.c.0.s8 %v6254
    %v6256 = vlaneseq
    %v6257 = vshrl.u32 %v6256, 7
    %v6258 = vsub.s32 %v6255, %v6257
    %v6259 = vrot.slane %v6252, %v6258
    %v6261 = vunpack.c.l.s4 1966171168
    %v6262 = vunpack.c.0.s8 %v6261
    %v6263 = vlaneseq
    %v6264 = vshrl.u32 %v6263, 7
    %v6265 = vsub.s32 %v6262, %v6264
    %v6266 = vrot.slane %v6259, %v6265
    %v6268 = vlaneseq
    %vm6269 = vcmp.ge.s32.totalorder %v6268, 0
    %vm6270 = vcmp.lt.s32.totalorder %v6268, 225
    %vm6271 = vmand %vm6269, %vm6270
    %6272 = vst.msk [vmem:[#allocation2] ss:$2 sm:$0x3] %vm6271, %v6266
    %6273 = vset.pattern.permute.xlu0 1
    %6274 = vperm.xlu0 %6273, %v4946
    %v6275 = vpop.permute.xlu0 %6274
    %6277 = vset.pattern.permute.xlu0 1
    %6278 = vperm.xlu0 %6277, %v4947
    %v6279 = vpop.permute.xlu0 %6278
    %6281 = vset.pattern.permute.xlu0 1
    %6282 = vperm.xlu0 %6281, %v4948
    %v6283 = vpop.permute.xlu0 %6282
    %6285 = vset.pattern.permute.xlu0 1
    %6286 = vperm.xlu0 %6285, %v4949
    %v6287 = vpop.permute.xlu0 %6286
    %6289 = vset.pattern.permute.xlu0 1
    %6290 = vperm.xlu0 %6289, %v4950
    %v6291 = vpop.permute.xlu0 %6290
    %6293 = vset.pattern.permute.xlu0 1
    %6294 = vperm.xlu0 %6293, %v4951
    %v6295 = vpop.permute.xlu0 %6294
    %6297 = vset.pattern.permute.xlu0 1
    %6298 = vperm.xlu0 %6297, %v4952
    %v6299 = vpop.permute.xlu0 %6298
    %6301 = vset.pattern.permute.xlu0 1
    %6302 = vperm.xlu0 %6301, %v4953
    %v6303 = vpop.permute.xlu0 %6302
    %6305 = vset.pattern.permute.xlu0 1
    %6306 = vperm.xlu0 %6305, %v4954
    %v6307 = vpop.permute.xlu0 %6306
    %6309 = vset.pattern.permute.xlu0 1
    %6310 = vperm.xlu0 %6309, %v4955
    %v6311 = vpop.permute.xlu0 %6310
    %6313 = vset.pattern.permute.xlu0 1
    %6314 = vperm.xlu0 %6313, %v4956
    %v6315 = vpop.permute.xlu0 %6314
    %6317 = vset.pattern.permute.xlu0 1
    %6318 = vperm.xlu0 %6317, %v4957
    %v6319 = vpop.permute.xlu0 %6318
    %6321 = vset.pattern.permute.xlu0 1
    %6322 = vperm.xlu0 %6321, %v4958
    %v6323 = vpop.permute.xlu0 %6322
    %6325 = vset.pattern.permute.xlu0 1
    %6326 = vperm.xlu0 %6325, %v4959
    %v6327 = vpop.permute.xlu0 %6326
    %6329 = vset.pattern.permute.xlu0 1
    %6330 = vperm.xlu0 %6329, %v4960
    %v6331 = vpop.permute.xlu0 %6330
    %6333 = vset.pattern.permute.xlu0 1
    %6334 = vperm.xlu0 %6333, %v4961
    %v6335 = vpop.permute.xlu0 %6334
    %6337 = vset.pattern.permute.xlu0 1
    %6338 = vperm.xlu0 %6337, %v4962
    %v6339 = vpop.permute.xlu0 %6338
    %6341 = vset.pattern.permute.xlu0 1
    %6342 = vperm.xlu0 %6341, %v4963
    %v6343 = vpop.permute.xlu0 %6342
    %6345 = vset.pattern.permute.xlu0 1
    %6346 = vperm.xlu0 %6345, %v4964
    %v6347 = vpop.permute.xlu0 %6346
    %6349 = vset.pattern.permute.xlu0 1
    %6350 = vperm.xlu0 %6349, %v4965
    %v6351 = vpop.permute.xlu0 %6350
    %6353 = vset.pattern.permute.xlu0 1
    %6354 = vperm.xlu0 %6353, %v4966
    %v6355 = vpop.permute.xlu0 %6354
    %6357 = vset.pattern.permute.xlu0 1
    %6358 = vperm.xlu0 %6357, %v4967
    %v6359 = vpop.permute.xlu0 %6358
    %6361 = vset.pattern.permute.xlu0 1
    %6362 = vperm.xlu0 %6361, %v4968
    %v6363 = vpop.permute.xlu0 %6362
    %6365 = vset.pattern.permute.xlu0 1
    %6366 = vperm.xlu0 %6365, %v4969
    %v6367 = vpop.permute.xlu0 %6366
    %6369 = vset.pattern.permute.xlu0 1
    %6370 = vperm.xlu0 %6369, %v4970
    %v6371 = vpop.permute.xlu0 %6370
    %6373 = vset.pattern.permute.xlu0 1
    %6374 = vperm.xlu0 %6373, %v4971
    %v6375 = vpop.permute.xlu0 %6374
    %6377 = vset.pattern.permute.xlu0 1
    %6378 = vperm.xlu0 %6377, %v4972
    %v6379 = vpop.permute.xlu0 %6378
    %6381 = vset.pattern.permute.xlu0 1
    %6382 = vperm.xlu0 %6381, %v4973
    %v6383 = vpop.permute.xlu0 %6382
    %6385 = vset.pattern.permute.xlu0 1
    %6386 = vperm.xlu0 %6385, %v4974
    %v6387 = vpop.permute.xlu0 %6386
    %v6389 = vlaneseq
    %v6390 = vshrl.u32 %v6389, 7
    %v6391 = vsub.s32 1, %v6390
    %v6392 = vrot.slane %v4914, %v6391
    %v6393 = vlaneseq
    %v6394 = vshrl.u32 %v6393, 7
    %v6395 = vsub.s32 3, %v6394
    %v6396 = vrot.slane %v4914, %v6395
    %v6399 = vlaneseq
    %v6400 = vshrl.u32 %v6399, 7
    %v6401 = vsub.s32 1, %v6400
    %v6402 = vrot.slane %v6392, %v6401
    %v6403 = vlaneseq
    %v6404 = vshrl.u32 %v6403, 7
    %v6405 = vsub.s32 1, %v6404
    %v6406 = vrot.slane %v6396, %v6405
    %v6407 = vmul.f32 %v6275, %v6402
    %v6408 = vmul.f32 %v6275, %v6406
    %v6409 = vmul.f32 %v6279, %v6402
    %v6410 = vmul.f32 %v6279, %v6406
    %v6411 = vmul.f32 %v6283, %v6402
    %v6412 = vmul.f32 %v6283, %v6406
    %v6413 = vmul.f32 %v6287, %v6402
    %v6414 = vmul.f32 %v6287, %v6406
    %v6415 = vmul.f32 %v6291, %v6402
    %v6416 = vmul.f32 %v6291, %v6406
    %v6417 = vmul.f32 %v6295, %v6402
    %v6418 = vmul.f32 %v6295, %v6406
    %v6419 = vmul.f32 %v6299, %v6402
    %v6420 = vmul.f32 %v6299, %v6406
    %v6421 = vmul.f32 %v6303, %v6402
    %v6422 = vmul.f32 %v6303, %v6406
    %v6423 = vmul.f32 %v6307, %v6402
    %v6424 = vmul.f32 %v6307, %v6406
    %v6425 = vmul.f32 %v6311, %v6402
    %v6426 = vmul.f32 %v6311, %v6406
    %v6427 = vmul.f32 %v6315, %v6402
    %v6428 = vmul.f32 %v6315, %v6406
    %v6429 = vmul.f32 %v6319, %v6402
    %v6430 = vmul.f32 %v6319, %v6406
    %v6431 = vmul.f32 %v6323, %v6402
    %v6432 = vmul.f32 %v6323, %v6406
    %v6433 = vmul.f32 %v6327, %v6402
    %v6434 = vmul.f32 %v6327, %v6406
    %v6435 = vmul.f32 %v6331, %v6402
    %v6436 = vmul.f32 %v6331, %v6406
    %v6437 = vmul.f32 %v6335, %v6402
    %v6438 = vmul.f32 %v6335, %v6406
    %v6439 = vmul.f32 %v6339, %v6402
    %v6440 = vmul.f32 %v6339, %v6406
    %v6441 = vmul.f32 %v6343, %v6402
    %v6442 = vmul.f32 %v6343, %v6406
    %v6443 = vmul.f32 %v6347, %v6402
    %v6444 = vmul.f32 %v6347, %v6406
    %v6445 = vmul.f32 %v6351, %v6402
    %v6446 = vmul.f32 %v6351, %v6406
    %v6447 = vmul.f32 %v6355, %v6402
    %v6448 = vmul.f32 %v6355, %v6406
    %v6449 = vmul.f32 %v6359, %v6402
    %v6450 = vmul.f32 %v6359, %v6406
    %v6451 = vmul.f32 %v6363, %v6402
    %v6452 = vmul.f32 %v6363, %v6406
    %v6453 = vmul.f32 %v6367, %v6402
    %v6454 = vmul.f32 %v6367, %v6406
    %v6455 = vmul.f32 %v6371, %v6402
    %v6456 = vmul.f32 %v6371, %v6406
    %v6457 = vmul.f32 %v6375, %v6402
    %v6458 = vmul.f32 %v6375, %v6406
    %v6459 = vmul.f32 %v6379, %v6402
    %v6460 = vmul.f32 %v6379, %v6406
    %v6461 = vmul.f32 %v6383, %v6402
    %v6462 = vmul.f32 %v6383, %v6406
    %v6463 = vmul.f32 %v6387, %v6402
    %v6464 = vmul.f32 %v6387, %v6406
    %6465 = vset.pattern.permute.xlu0 1
    %6466 = vperm.xlu0 %6465, %v5064
    %v6467 = vpop.permute.xlu0 %6466
    %6469 = vset.pattern.permute.xlu0 1
    %6470 = vperm.xlu0 %6469, %v5065
    %v6471 = vpop.permute.xlu0 %6470
    %6473 = vset.pattern.permute.xlu0 1
    %6474 = vperm.xlu0 %6473, %v5066
    %v6475 = vpop.permute.xlu0 %6474
    %6477 = vset.pattern.permute.xlu0 1
    %6478 = vperm.xlu0 %6477, %v5067
    %v6479 = vpop.permute.xlu0 %6478
    %6481 = vset.pattern.permute.xlu0 1
    %6482 = vperm.xlu0 %6481, %v5068
    %v6483 = vpop.permute.xlu0 %6482
    %6485 = vset.pattern.permute.xlu0 1
    %6486 = vperm.xlu0 %6485, %v5069
    %v6487 = vpop.permute.xlu0 %6486
    %6489 = vset.pattern.permute.xlu0 1
    %6490 = vperm.xlu0 %6489, %v5070
    %v6491 = vpop.permute.xlu0 %6490
    %6493 = vset.pattern.permute.xlu0 1
    %6494 = vperm.xlu0 %6493, %v5071
    %v6495 = vpop.permute.xlu0 %6494
    %6497 = vset.pattern.permute.xlu0 1
    %6498 = vperm.xlu0 %6497, %v5072
    %v6499 = vpop.permute.xlu0 %6498
    %6501 = vset.pattern.permute.xlu0 1
    %6502 = vperm.xlu0 %6501, %v5073
    %v6503 = vpop.permute.xlu0 %6502
    %6505 = vset.pattern.permute.xlu0 1
    %6506 = vperm.xlu0 %6505, %v5074
    %v6507 = vpop.permute.xlu0 %6506
    %6509 = vset.pattern.permute.xlu0 1
    %6510 = vperm.xlu0 %6509, %v5075
    %v6511 = vpop.permute.xlu0 %6510
    %6513 = vset.pattern.permute.xlu0 1
    %6514 = vperm.xlu0 %6513, %v5076
    %v6515 = vpop.permute.xlu0 %6514
    %6517 = vset.pattern.permute.xlu0 1
    %6518 = vperm.xlu0 %6517, %v5077
    %v6519 = vpop.permute.xlu0 %6518
    %6521 = vset.pattern.permute.xlu0 1
    %6522 = vperm.xlu0 %6521, %v5078
    %v6523 = vpop.permute.xlu0 %6522
    %6525 = vset.pattern.permute.xlu0 1
    %6526 = vperm.xlu0 %6525, %v5079
    %v6527 = vpop.permute.xlu0 %6526
    %6529 = vset.pattern.permute.xlu0 1
    %6530 = vperm.xlu0 %6529, %v5080
    %v6531 = vpop.permute.xlu0 %6530
    %6533 = vset.pattern.permute.xlu0 1
    %6534 = vperm.xlu0 %6533, %v5081
    %v6535 = vpop.permute.xlu0 %6534
    %6537 = vset.pattern.permute.xlu0 1
    %6538 = vperm.xlu0 %6537, %v5082
    %v6539 = vpop.permute.xlu0 %6538
    %6541 = vset.pattern.permute.xlu0 1
    %6542 = vperm.xlu0 %6541, %v5083
    %v6543 = vpop.permute.xlu0 %6542
    %6545 = vset.pattern.permute.xlu0 1
    %6546 = vperm.xlu0 %6545, %v5084
    %v6547 = vpop.permute.xlu0 %6546
    %6549 = vset.pattern.permute.xlu0 1
    %6550 = vperm.xlu0 %6549, %v5085
    %v6551 = vpop.permute.xlu0 %6550
    %6553 = vset.pattern.permute.xlu0 1
    %6554 = vperm.xlu0 %6553, %v5086
    %v6555 = vpop.permute.xlu0 %6554
    %6557 = vset.pattern.permute.xlu0 1
    %6558 = vperm.xlu0 %6557, %v5087
    %v6559 = vpop.permute.xlu0 %6558
    %6561 = vset.pattern.permute.xlu0 1
    %6562 = vperm.xlu0 %6561, %v5088
    %v6563 = vpop.permute.xlu0 %6562
    %6565 = vset.pattern.permute.xlu0 1
    %6566 = vperm.xlu0 %6565, %v5089
    %v6567 = vpop.permute.xlu0 %6566
    %6569 = vset.pattern.permute.xlu0 1
    %6570 = vperm.xlu0 %6569, %v5090
    %v6571 = vpop.permute.xlu0 %6570
    %6573 = vset.pattern.permute.xlu0 1
    %6574 = vperm.xlu0 %6573, %v5091
    %v6575 = vpop.permute.xlu0 %6574
    %6577 = vset.pattern.permute.xlu0 1
    %6578 = vperm.xlu0 %6577, %v5092
    %v6579 = vpop.permute.xlu0 %6578
    %v6581 = vadd.f32 %v6407, %v6467
    %v6582 = vadd.f32 %v6408, %v6467
    %v6583 = vadd.f32 %v6409, %v6471
    %v6584 = vadd.f32 %v6410, %v6471
    %v6585 = vadd.f32 %v6411, %v6475
    %v6586 = vadd.f32 %v6412, %v6475
    %v6587 = vadd.f32 %v6413, %v6479
    %v6588 = vadd.f32 %v6414, %v6479
    %v6589 = vadd.f32 %v6415, %v6483
    %v6590 = vadd.f32 %v6416, %v6483
    %v6591 = vadd.f32 %v6417, %v6487
    %v6592 = vadd.f32 %v6418, %v6487
    %v6593 = vadd.f32 %v6419, %v6491
    %v6594 = vadd.f32 %v6420, %v6491
    %v6595 = vadd.f32 %v6421, %v6495
    %v6596 = vadd.f32 %v6422, %v6495
    %v6597 = vadd.f32 %v6423, %v6499
    %v6598 = vadd.f32 %v6424, %v6499
    %v6599 = vadd.f32 %v6425, %v6503
    %v6600 = vadd.f32 %v6426, %v6503
    %v6601 = vadd.f32 %v6427, %v6507
    %v6602 = vadd.f32 %v6428, %v6507
    %v6603 = vadd.f32 %v6429, %v6511
    %v6604 = vadd.f32 %v6430, %v6511
    %v6605 = vadd.f32 %v6431, %v6515
    %v6606 = vadd.f32 %v6432, %v6515
    %v6607 = vadd.f32 %v6433, %v6519
    %v6608 = vadd.f32 %v6434, %v6519
    %v6609 = vadd.f32 %v6435, %v6523
    %v6610 = vadd.f32 %v6436, %v6523
    %v6611 = vadd.f32 %v6437, %v6527
    %v6612 = vadd.f32 %v6438, %v6527
    %v6613 = vadd.f32 %v6439, %v6531
    %v6614 = vadd.f32 %v6440, %v6531
    %v6615 = vadd.f32 %v6441, %v6535
    %v6616 = vadd.f32 %v6442, %v6535
    %v6617 = vadd.f32 %v6443, %v6539
    %v6618 = vadd.f32 %v6444, %v6539
    %v6619 = vadd.f32 %v6445, %v6543
    %v6620 = vadd.f32 %v6446, %v6543
    %v6621 = vadd.f32 %v6447, %v6547
    %v6622 = vadd.f32 %v6448, %v6547
    %v6623 = vadd.f32 %v6449, %v6551
    %v6624 = vadd.f32 %v6450, %v6551
    %v6625 = vadd.f32 %v6451, %v6555
    %v6626 = vadd.f32 %v6452, %v6555
    %v6627 = vadd.f32 %v6453, %v6559
    %v6628 = vadd.f32 %v6454, %v6559
    %v6629 = vadd.f32 %v6455, %v6563
    %v6630 = vadd.f32 %v6456, %v6563
    %v6631 = vadd.f32 %v6457, %v6567
    %v6632 = vadd.f32 %v6458, %v6567
    %v6633 = vadd.f32 %v6459, %v6571
    %v6634 = vadd.f32 %v6460, %v6571
    %v6635 = vadd.f32 %v6461, %v6575
    %v6636 = vadd.f32 %v6462, %v6575
    %v6637 = vadd.f32 %v6463, %v6579
    %v6638 = vadd.f32 %v6464, %v6579
    %v6639 = vmax.f32 %v6581, %v6585
    %v6640 = vmax.f32 %v6583, %v6587
    %v6641 = vmax.f32 %v6639, %v6589
    %v6642 = vmax.f32 %v6640, %v6591
    %v6643 = vmax.f32 %v6641, %v6593
    %v6644 = vmax.f32 %v6642, %v6595
    %v6645 = vmax.f32 %v6643, %v6597
    %v6646 = vmax.f32 %v6644, %v6599
    %v6647 = vmax.f32 %v6645, %v6601
    %v6648 = vmax.f32 %v6646, %v6603
    %v6649 = vmax.f32 %v6647, %v6605
    %v6650 = vmax.f32 %v6648, %v6607
    %v6651 = vmax.f32 %v6649, %v6609
    %v6652 = vmax.f32 %v6650, %v6611
    %v6653 = vmax.f32 %v6651, %v6613
    %v6654 = vmax.f32 %v6652, %v6615
    %v6655 = vmax.f32 %v6653, %v6617
    %v6656 = vmax.f32 %v6654, %v6619
    %v6657 = vmax.f32 %v6655, %v6621
    %v6658 = vmax.f32 %v6656, %v6623
    %v6659 = vmax.f32 %v6657, %v6625
    %v6660 = vmax.f32 %v6658, %v6627
    %v6661 = vmax.f32 %v6659, %v6629
    %v6662 = vmax.f32 %v6660, %v6631
    %v6663 = vmax.f32 %v6661, %v6633
    %v6664 = vmax.f32 %v6662, %v6635
    %v6665 = vsel %vm773, %v6637, -inf
    %v6666 = vmax.f32 %v6663, %v6665
    %v6667 = vmax.f32 %v6666, %v6664
    %v6668 = vrot.slane %v6667, 4
    %v6669 = vmax.f32 %v6667, %v6668
    %v6670 = vrot.slane %v6669, 2
    %v6671 = vmax.f32 %v6669, %v6670
    %v6672 = vrot.slane %v6671, 1
    %v6673 = vmax.f32 %v6671, %v6672
    %v6674 = vsel %vm770, %v6582, -inf
    %v6675 = vsel %vm770, %v6584, -inf
    %v6676 = vsel %vm770, %v6586, -inf
    %v6677 = vmax.f32 %v6674, %v6676
    %v6678 = vsel %vm770, %v6588, -inf
    %v6679 = vmax.f32 %v6675, %v6678
    %v6680 = vsel %vm770, %v6590, -inf
    %v6681 = vmax.f32 %v6677, %v6680
    %v6682 = vsel %vm770, %v6592, -inf
    %v6683 = vmax.f32 %v6679, %v6682
    %v6684 = vsel %vm770, %v6594, -inf
    %v6685 = vmax.f32 %v6681, %v6684
    %v6686 = vsel %vm770, %v6596, -inf
    %v6687 = vmax.f32 %v6683, %v6686
    %v6688 = vsel %vm770, %v6598, -inf
    %v6689 = vmax.f32 %v6685, %v6688
    %v6690 = vsel %vm770, %v6600, -inf
    %v6691 = vmax.f32 %v6687, %v6690
    %v6692 = vsel %vm770, %v6602, -inf
    %v6693 = vmax.f32 %v6689, %v6692
    %v6694 = vsel %vm770, %v6604, -inf
    %v6695 = vmax.f32 %v6691, %v6694
    %v6696 = vsel %vm770, %v6606, -inf
    %v6697 = vmax.f32 %v6693, %v6696
    %v6698 = vsel %vm770, %v6608, -inf
    %v6699 = vmax.f32 %v6695, %v6698
    %v6700 = vsel %vm770, %v6610, -inf
    %v6701 = vmax.f32 %v6697, %v6700
    %v6702 = vsel %vm770, %v6612, -inf
    %v6703 = vmax.f32 %v6699, %v6702
    %v6704 = vsel %vm770, %v6614, -inf
    %v6705 = vmax.f32 %v6701, %v6704
    %v6706 = vsel %vm770, %v6616, -inf
    %v6707 = vmax.f32 %v6703, %v6706
    %v6708 = vsel %vm770, %v6618, -inf
    %v6709 = vmax.f32 %v6705, %v6708
    %v6710 = vsel %vm770, %v6620, -inf
    %v6711 = vmax.f32 %v6707, %v6710
    %v6712 = vsel %vm770, %v6622, -inf
    %v6713 = vmax.f32 %v6709, %v6712
    %v6714 = vsel %vm770, %v6624, -inf
    %v6715 = vmax.f32 %v6711, %v6714
    %v6716 = vsel %vm770, %v6626, -inf
    %v6717 = vmax.f32 %v6713, %v6716
    %v6718 = vsel %vm770, %v6628, -inf
    %v6719 = vmax.f32 %v6715, %v6718
    %v6720 = vsel %vm770, %v6630, -inf
    %v6721 = vmax.f32 %v6717, %v6720
    %v6722 = vsel %vm770, %v6632, -inf
    %v6723 = vmax.f32 %v6719, %v6722
    %v6724 = vsel %vm770, %v6634, -inf
    %v6725 = vmax.f32 %v6721, %v6724
    %v6726 = vsel %vm770, %v6636, -inf
    %v6727 = vmax.f32 %v6723, %v6726
    %v6728 = vsel %vm5607, %v6638, -inf
    %v6729 = vmax.f32 %v6725, %v6728
    %v6730 = vmax.f32 %v6729, %v6727
    %v6731 = vrot.slane %v6730, 4
    %v6732 = vmax.f32 %v6730, %v6731
    %v6733 = vrot.slane %v6732, 2
    %v6734 = vmax.f32 %v6732, %v6733
    %v6735 = vrot.slane %v6734, 1
    %v6736 = vmax.f32 %v6734, %v6735
    %v6737 = vsub.f32 %v6581, %v6673
    %v6738 = vsub.f32 %v6582, %v6736
    %v6739 = vsub.f32 %v6583, %v6673
    %v6740 = vsub.f32 %v6584, %v6736
    %v6741 = vsub.f32 %v6585, %v6673
    %v6742 = vsub.f32 %v6586, %v6736
    %v6743 = vsub.f32 %v6587, %v6673
    %v6744 = vsub.f32 %v6588, %v6736
    %v6745 = vsub.f32 %v6589, %v6673
    %v6746 = vsub.f32 %v6590, %v6736
    %v6747 = vsub.f32 %v6591, %v6673
    %v6748 = vsub.f32 %v6592, %v6736
    %v6749 = vsub.f32 %v6593, %v6673
    %v6750 = vsub.f32 %v6594, %v6736
    %v6751 = vsub.f32 %v6595, %v6673
    %v6752 = vsub.f32 %v6596, %v6736
    %v6753 = vsub.f32 %v6597, %v6673
    %v6754 = vsub.f32 %v6598, %v6736
    %v6755 = vsub.f32 %v6599, %v6673
    %v6756 = vsub.f32 %v6600, %v6736
    %v6757 = vsub.f32 %v6601, %v6673
    %v6758 = vsub.f32 %v6602, %v6736
    %v6759 = vsub.f32 %v6603, %v6673
    %v6760 = vsub.f32 %v6604, %v6736
    %v6761 = vsub.f32 %v6605, %v6673
    %v6762 = vsub.f32 %v6606, %v6736
    %v6763 = vsub.f32 %v6607, %v6673
    %v6764 = vsub.f32 %v6608, %v6736
    %v6765 = vsub.f32 %v6609, %v6673
    %v6766 = vsub.f32 %v6610, %v6736
    %v6767 = vsub.f32 %v6611, %v6673
    %v6768 = vsub.f32 %v6612, %v6736
    %v6769 = vsub.f32 %v6613, %v6673
    %v6770 = vsub.f32 %v6614, %v6736
    %v6771 = vsub.f32 %v6615, %v6673
    %v6772 = vsub.f32 %v6616, %v6736
    %v6773 = vsub.f32 %v6617, %v6673
    %v6774 = vsub.f32 %v6618, %v6736
    %v6775 = vsub.f32 %v6619, %v6673
    %v6776 = vsub.f32 %v6620, %v6736
    %v6777 = vsub.f32 %v6621, %v6673
    %v6778 = vsub.f32 %v6622, %v6736
    %v6779 = vsub.f32 %v6623, %v6673
    %v6780 = vsub.f32 %v6624, %v6736
    %v6781 = vsub.f32 %v6625, %v6673
    %v6782 = vsub.f32 %v6626, %v6736
    %v6783 = vsub.f32 %v6627, %v6673
    %v6784 = vsub.f32 %v6628, %v6736
    %v6785 = vsub.f32 %v6629, %v6673
    %v6786 = vsub.f32 %v6630, %v6736
    %v6787 = vsub.f32 %v6631, %v6673
    %v6788 = vsub.f32 %v6632, %v6736
    %v6789 = vsub.f32 %v6633, %v6673
    %v6790 = vsub.f32 %v6634, %v6736
    %v6791 = vsub.f32 %v6635, %v6673
    %v6792 = vsub.f32 %v6636, %v6736
    %v6793 = vsub.f32 %v6637, %v6673
    %v6794 = vsub.f32 %v6638, %v6736
    %v6795 = vmul.f32 %v6737, 1.442695
    %v6796 = vpow.pop %v6795
    %v6797 = vmul.f32 %v6738, 1.442695
    %v6798 = vpow.pop %v6797
    %v6799 = vmul.f32 %v6739, 1.442695
    %v6800 = vpow.pop %v6799
    %v6801 = vmul.f32 %v6740, 1.442695
    %v6802 = vpow.pop %v6801
    %v6803 = vmul.f32 %v6741, 1.442695
    %v6804 = vpow.pop %v6803
    %v6805 = vmul.f32 %v6742, 1.442695
    %v6806 = vpow.pop %v6805
    %v6807 = vmul.f32 %v6743, 1.442695
    %v6808 = vpow.pop %v6807
    %v6809 = vmul.f32 %v6744, 1.442695
    %v6810 = vpow.pop %v6809
    %v6811 = vmul.f32 %v6745, 1.442695
    %v6812 = vpow.pop %v6811
    %v6813 = vmul.f32 %v6746, 1.442695
    %v6814 = vpow.pop %v6813
    %v6815 = vmul.f32 %v6747, 1.442695
    %v6816 = vpow.pop %v6815
    %v6817 = vmul.f32 %v6748, 1.442695
    %v6818 = vpow.pop %v6817
    %v6819 = vmul.f32 %v6749, 1.442695
    %v6820 = vpow.pop %v6819
    %v6821 = vmul.f32 %v6750, 1.442695
    %v6822 = vpow.pop %v6821
    %v6823 = vmul.f32 %v6751, 1.442695
    %v6824 = vpow.pop %v6823
    %v6825 = vmul.f32 %v6752, 1.442695
    %v6826 = vpow.pop %v6825
    %v6827 = vmul.f32 %v6753, 1.442695
    %v6828 = vpow.pop %v6827
    %v6829 = vmul.f32 %v6754, 1.442695
    %v6830 = vpow.pop %v6829
    %v6831 = vmul.f32 %v6755, 1.442695
    %v6832 = vpow.pop %v6831
    %v6833 = vmul.f32 %v6756, 1.442695
    %v6834 = vpow.pop %v6833
    %v6835 = vmul.f32 %v6757, 1.442695
    %v6836 = vpow.pop %v6835
    %v6837 = vmul.f32 %v6758, 1.442695
    %v6838 = vpow.pop %v6837
    %v6839 = vmul.f32 %v6759, 1.442695
    %v6840 = vpow.pop %v6839
    %v6841 = vmul.f32 %v6760, 1.442695
    %v6842 = vpow.pop %v6841
    %v6843 = vmul.f32 %v6761, 1.442695
    %v6844 = vpow.pop %v6843
    %v6845 = vmul.f32 %v6762, 1.442695
    %v6846 = vpow.pop %v6845
    %v6847 = vmul.f32 %v6763, 1.442695
    %v6848 = vpow.pop %v6847
    %v6849 = vmul.f32 %v6764, 1.442695
    %v6850 = vpow.pop %v6849
    %v6851 = vmul.f32 %v6765, 1.442695
    %v6852 = vpow.pop %v6851
    %v6853 = vmul.f32 %v6766, 1.442695
    %v6854 = vpow.pop %v6853
    %v6855 = vmul.f32 %v6767, 1.442695
    %v6856 = vpow.pop %v6855
    %v6857 = vmul.f32 %v6768, 1.442695
    %v6858 = vpow.pop %v6857
    %v6859 = vmul.f32 %v6769, 1.442695
    %v6860 = vpow.pop %v6859
    %v6861 = vmul.f32 %v6770, 1.442695
    %v6862 = vpow.pop %v6861
    %v6863 = vmul.f32 %v6771, 1.442695
    %v6864 = vpow.pop %v6863
    %v6865 = vmul.f32 %v6772, 1.442695
    %v6866 = vpow.pop %v6865
    %v6867 = vmul.f32 %v6773, 1.442695
    %v6868 = vpow.pop %v6867
    %v6869 = vmul.f32 %v6774, 1.442695
    %v6870 = vpow.pop %v6869
    %v6871 = vmul.f32 %v6775, 1.442695
    %v6872 = vpow.pop %v6871
    %v6873 = vmul.f32 %v6776, 1.442695
    %v6874 = vpow.pop %v6873
    %v6875 = vmul.f32 %v6777, 1.442695
    %v6876 = vpow.pop %v6875
    %v6877 = vmul.f32 %v6778, 1.442695
    %v6878 = vpow.pop %v6877
    %v6879 = vmul.f32 %v6779, 1.442695
    %v6880 = vpow.pop %v6879
    %v6881 = vmul.f32 %v6780, 1.442695
    %v6882 = vpow.pop %v6881
    %v6883 = vmul.f32 %v6781, 1.442695
    %v6884 = vpow.pop %v6883
    %v6885 = vmul.f32 %v6782, 1.442695
    %v6886 = vpow.pop %v6885
    %v6887 = vmul.f32 %v6783, 1.442695
    %v6888 = vpow.pop %v6887
    %v6889 = vmul.f32 %v6784, 1.442695
    %v6890 = vpow.pop %v6889
    %v6891 = vmul.f32 %v6785, 1.442695
    %v6892 = vpow.pop %v6891
    %v6893 = vmul.f32 %v6786, 1.442695
    %v6894 = vpow.pop %v6893
    %v6895 = vmul.f32 %v6787, 1.442695
    %v6896 = vpow.pop %v6895
    %v6897 = vmul.f32 %v6788, 1.442695
    %v6898 = vpow.pop %v6897
    %v6899 = vmul.f32 %v6789, 1.442695
    %v6900 = vpow.pop %v6899
    %v6901 = vmul.f32 %v6790, 1.442695
    %v6902 = vpow.pop %v6901
    %v6903 = vmul.f32 %v6791, 1.442695
    %v6904 = vpow.pop %v6903
    %v6905 = vmul.f32 %v6792, 1.442695
    %v6906 = vpow.pop %v6905
    %v6907 = vmul.f32 %v6793, 1.442695
    %v6908 = vpow.pop %v6907
    %v6909 = vmul.f32 %v6794, 1.442695
    %v6910 = vpow.pop %v6909
    %v6911 = vadd.f32 %v6796, %v6800
    %v6912 = vadd.f32 %v6911, %v6804
    %v6913 = vadd.f32 %v6912, %v6808
    %v6914 = vadd.f32 %v6913, %v6812
    %v6915 = vadd.f32 %v6914, %v6816
    %v6916 = vadd.f32 %v6915, %v6820
    %v6917 = vadd.f32 %v6916, %v6824
    %v6918 = vadd.f32 %v6917, %v6828
    %v6919 = vadd.f32 %v6918, %v6832
    %v6920 = vadd.f32 %v6919, %v6836
    %v6921 = vadd.f32 %v6920, %v6840
    %v6922 = vadd.f32 %v6921, %v6844
    %v6923 = vadd.f32 %v6922, %v6848
    %v6924 = vadd.f32 %v6923, %v6852
    %v6925 = vadd.f32 %v6924, %v6856
    %v6926 = vadd.f32 %v6925, %v6860
    %v6927 = vadd.f32 %v6926, %v6864
    %v6928 = vadd.f32 %v6927, %v6868
    %v6929 = vadd.f32 %v6928, %v6872
    %v6930 = vadd.f32 %v6929, %v6876
    %v6931 = vadd.f32 %v6930, %v6880
    %v6932 = vadd.f32 %v6931, %v6884
    %v6933 = vadd.f32 %v6932, %v6888
    %v6934 = vadd.f32 %v6933, %v6892
    %v6935 = vadd.f32 %v6934, %v6896
    %v6936 = vadd.f32 %v6935, %v6900
    %v6937 = vadd.f32 %v6936, %v6904
    %v6938 = vsel %vm773, %v6908, 0.0
    %v6939 = vadd.f32 %v6937, %v6938
    %v6940 = vrot.slane %v6939, 4
    %v6941 = vadd.f32 %v6939, %v6940
    %v6942 = vrot.slane %v6941, 2
    %v6943 = vadd.f32 %v6941, %v6942
    %v6944 = vrot.slane %v6943, 1
    %v6945 = vadd.f32 %v6943, %v6944
    %v6946 = vsel %vm770, %v6798, 0.0
    %v6947 = vsel %vm770, %v6802, 0.0
    %v6948 = vadd.f32 %v6946, %v6947
    %v6949 = vsel %vm770, %v6806, 0.0
    %v6950 = vadd.f32 %v6948, %v6949
    %v6951 = vsel %vm770, %v6810, 0.0
    %v6952 = vadd.f32 %v6950, %v6951
    %v6953 = vsel %vm770, %v6814, 0.0
    %v6954 = vadd.f32 %v6952, %v6953
    %v6955 = vsel %vm770, %v6818, 0.0
    %v6956 = vadd.f32 %v6954, %v6955
    %v6957 = vsel %vm770, %v6822, 0.0
    %v6958 = vadd.f32 %v6956, %v6957
    %v6959 = vsel %vm770, %v6826, 0.0
    %v6960 = vadd.f32 %v6958, %v6959
    %v6961 = vsel %vm770, %v6830, 0.0
    %v6962 = vadd.f32 %v6960, %v6961
    %v6963 = vsel %vm770, %v6834, 0.0
    %v6964 = vadd.f32 %v6962, %v6963
    %v6965 = vsel %vm770, %v6838, 0.0
    %v6966 = vadd.f32 %v6964, %v6965
    %v6967 = vsel %vm770, %v6842, 0.0
    %v6968 = vadd.f32 %v6966, %v6967
    %v6969 = vsel %vm770, %v6846, 0.0
    %v6970 = vadd.f32 %v6968, %v6969
    %v6971 = vsel %vm770, %v6850, 0.0
    %v6972 = vadd.f32 %v6970, %v6971
    %v6973 = vsel %vm770, %v6854, 0.0
    %v6974 = vadd.f32 %v6972, %v6973
    %v6975 = vsel %vm770, %v6858, 0.0
    %v6976 = vadd.f32 %v6974, %v6975
    %v6977 = vsel %vm770, %v6862, 0.0
    %v6978 = vadd.f32 %v6976, %v6977
    %v6979 = vsel %vm770, %v6866, 0.0
    %v6980 = vadd.f32 %v6978, %v6979
    %v6981 = vsel %vm770, %v6870, 0.0
    %v6982 = vadd.f32 %v6980, %v6981
    %v6983 = vsel %vm770, %v6874, 0.0
    %v6984 = vadd.f32 %v6982, %v6983
    %v6985 = vsel %vm770, %v6878, 0.0
    %v6986 = vadd.f32 %v6984, %v6985
    %v6987 = vsel %vm770, %v6882, 0.0
    %v6988 = vadd.f32 %v6986, %v6987
    %v6989 = vsel %vm770, %v6886, 0.0
    %v6990 = vadd.f32 %v6988, %v6989
    %v6991 = vsel %vm770, %v6890, 0.0
    %v6992 = vadd.f32 %v6990, %v6991
    %v6993 = vsel %vm770, %v6894, 0.0
    %v6994 = vadd.f32 %v6992, %v6993
    %v6995 = vsel %vm770, %v6898, 0.0
    %v6996 = vadd.f32 %v6994, %v6995
    %v6997 = vsel %vm770, %v6902, 0.0
    %v6998 = vadd.f32 %v6996, %v6997
    %v6999 = vsel %vm770, %v6906, 0.0
    %v7000 = vadd.f32 %v6998, %v6999
    %v7001 = vsel %vm5607, %v6910, 0.0
    %v7002 = vadd.f32 %v7000, %v7001
    %v7003 = vrot.slane %v7002, 4
    %v7004 = vadd.f32 %v7002, %v7003
    %v7005 = vrot.slane %v7004, 2
    %v7006 = vadd.f32 %v7004, %v7005
    %v7007 = vrot.slane %v7006, 1
    %v7008 = vadd.f32 %v7006, %v7007
    %v7009 = vrcp.pop %v6945
    %v7010 = vmul.f32 %v6796, %v7009
    %v7011 = vrcp.pop %v7008
    %v7012 = vmul.f32 %v6798, %v7011
    %v7013 = vmul.f32 %v6800, %v7009
    %v7014 = vmul.f32 %v6802, %v7011
    %v7015 = vmul.f32 %v6804, %v7009
    %v7016 = vmul.f32 %v6806, %v7011
    %v7017 = vmul.f32 %v6808, %v7009
    %v7018 = vmul.f32 %v6810, %v7011
    %v7019 = vmul.f32 %v6812, %v7009
    %v7020 = vmul.f32 %v6814, %v7011
    %v7021 = vmul.f32 %v6816, %v7009
    %v7022 = vmul.f32 %v6818, %v7011
    %v7023 = vmul.f32 %v6820, %v7009
    %v7024 = vmul.f32 %v6822, %v7011
    %v7025 = vmul.f32 %v6824, %v7009
    %v7026 = vmul.f32 %v6826, %v7011
    %v7027 = vmul.f32 %v6828, %v7009
    %v7028 = vmul.f32 %v6830, %v7011
    %v7029 = vmul.f32 %v6832, %v7009
    %v7030 = vmul.f32 %v6834, %v7011
    %v7031 = vmul.f32 %v6836, %v7009
    %v7032 = vmul.f32 %v6838, %v7011
    %v7033 = vmul.f32 %v6840, %v7009
    %v7034 = vmul.f32 %v6842, %v7011
    %v7035 = vmul.f32 %v6844, %v7009
    %v7036 = vmul.f32 %v6846, %v7011
    %v7037 = vmul.f32 %v6848, %v7009
    %v7038 = vmul.f32 %v6850, %v7011
    %v7039 = vmul.f32 %v6852, %v7009
    %v7040 = vmul.f32 %v6854, %v7011
    %v7041 = vmul.f32 %v6856, %v7009
    %v7042 = vmul.f32 %v6858, %v7011
    %v7043 = vmul.f32 %v6860, %v7009
    %v7044 = vmul.f32 %v6862, %v7011
    %v7045 = vmul.f32 %v6864, %v7009
    %v7046 = vmul.f32 %v6866, %v7011
    %v7047 = vmul.f32 %v6868, %v7009
    %v7048 = vmul.f32 %v6870, %v7011
    %v7049 = vmul.f32 %v6872, %v7009
    %v7050 = vmul.f32 %v6874, %v7011
    %v7051 = vmul.f32 %v6876, %v7009
    %v7052 = vmul.f32 %v6878, %v7011
    %v7053 = vmul.f32 %v6880, %v7009
    %v7054 = vmul.f32 %v6882, %v7011
    %v7055 = vmul.f32 %v6884, %v7009
    %v7056 = vmul.f32 %v6886, %v7011
    %v7057 = vmul.f32 %v6888, %v7009
    %v7058 = vmul.f32 %v6890, %v7011
    %v7059 = vmul.f32 %v6892, %v7009
    %v7060 = vmul.f32 %v6894, %v7011
    %v7061 = vmul.f32 %v6896, %v7009
    %v7062 = vmul.f32 %v6898, %v7011
    %v7063 = vmul.f32 %v6900, %v7009
    %v7064 = vmul.f32 %v6902, %v7011
    %v7065 = vmul.f32 %v6904, %v7009
    %v7066 = vmul.f32 %v6906, %v7011
    %v7067 = vmul.f32 %v6908, %v7009
    %v7068 = vmul.f32 %v6910, %v7011
    %7069 = vset.pattern.permute.xlu0 1
    %7070 = vperm.xlu0 %7069, %v5006
    %v7071 = vpop.permute.xlu0 %7070
    %7073 = vset.pattern.permute.xlu0 1
    %7074 = vperm.xlu0 %7073, %v5007
    %v7075 = vpop.permute.xlu0 %7074
    %7077 = vset.pattern.permute.xlu0 1
    %7078 = vperm.xlu0 %7077, %v5008
    %v7079 = vpop.permute.xlu0 %7078
    %7081 = vset.pattern.permute.xlu0 1
    %7082 = vperm.xlu0 %7081, %v5009
    %v7083 = vpop.permute.xlu0 %7082
    %7085 = vset.pattern.permute.xlu0 1
    %7086 = vperm.xlu0 %7085, %v5010
    %v7087 = vpop.permute.xlu0 %7086
    %7089 = vset.pattern.permute.xlu0 1
    %7090 = vperm.xlu0 %7089, %v5011
    %v7091 = vpop.permute.xlu0 %7090
    %7093 = vset.pattern.permute.xlu0 1
    %7094 = vperm.xlu0 %7093, %v5012
    %v7095 = vpop.permute.xlu0 %7094
    %7097 = vset.pattern.permute.xlu0 1
    %7098 = vperm.xlu0 %7097, %v5013
    %v7099 = vpop.permute.xlu0 %7098
    %7101 = vset.pattern.permute.xlu0 1
    %7102 = vperm.xlu0 %7101, %v5014
    %v7103 = vpop.permute.xlu0 %7102
    %7105 = vset.pattern.permute.xlu0 1
    %7106 = vperm.xlu0 %7105, %v5015
    %v7107 = vpop.permute.xlu0 %7106
    %7109 = vset.pattern.permute.xlu0 1
    %7110 = vperm.xlu0 %7109, %v5016
    %v7111 = vpop.permute.xlu0 %7110
    %7113 = vset.pattern.permute.xlu0 1
    %7114 = vperm.xlu0 %7113, %v5017
    %v7115 = vpop.permute.xlu0 %7114
    %7117 = vset.pattern.permute.xlu0 1
    %7118 = vperm.xlu0 %7117, %v5018
    %v7119 = vpop.permute.xlu0 %7118
    %7121 = vset.pattern.permute.xlu0 1
    %7122 = vperm.xlu0 %7121, %v5019
    %v7123 = vpop.permute.xlu0 %7122
    %7125 = vset.pattern.permute.xlu0 1
    %7126 = vperm.xlu0 %7125, %v5020
    %v7127 = vpop.permute.xlu0 %7126
    %7129 = vset.pattern.permute.xlu0 1
    %7130 = vperm.xlu0 %7129, %v5021
    %v7131 = vpop.permute.xlu0 %7130
    %7133 = vset.pattern.permute.xlu0 1
    %7134 = vperm.xlu0 %7133, %v5022
    %v7135 = vpop.permute.xlu0 %7134
    %7137 = vset.pattern.permute.xlu0 1
    %7138 = vperm.xlu0 %7137, %v5023
    %v7139 = vpop.permute.xlu0 %7138
    %7141 = vset.pattern.permute.xlu0 1
    %7142 = vperm.xlu0 %7141, %v5024
    %v7143 = vpop.permute.xlu0 %7142
    %7145 = vset.pattern.permute.xlu0 1
    %7146 = vperm.xlu0 %7145, %v5025
    %v7147 = vpop.permute.xlu0 %7146
    %7149 = vset.pattern.permute.xlu0 1
    %7150 = vperm.xlu0 %7149, %v5026
    %v7151 = vpop.permute.xlu0 %7150
    %7153 = vset.pattern.permute.xlu0 1
    %7154 = vperm.xlu0 %7153, %v5027
    %v7155 = vpop.permute.xlu0 %7154
    %7157 = vset.pattern.permute.xlu0 1
    %7158 = vperm.xlu0 %7157, %v5028
    %v7159 = vpop.permute.xlu0 %7158
    %7161 = vset.pattern.permute.xlu0 1
    %7162 = vperm.xlu0 %7161, %v5029
    %v7163 = vpop.permute.xlu0 %7162
    %7165 = vset.pattern.permute.xlu0 1
    %7166 = vperm.xlu0 %7165, %v5030
    %v7167 = vpop.permute.xlu0 %7166
    %7169 = vset.pattern.permute.xlu0 1
    %7170 = vperm.xlu0 %7169, %v5031
    %v7171 = vpop.permute.xlu0 %7170
    %7173 = vset.pattern.permute.xlu0 1
    %7174 = vperm.xlu0 %7173, %v5032
    %v7175 = vpop.permute.xlu0 %7174
    %7177 = vset.pattern.permute.xlu0 1
    %7178 = vperm.xlu0 %7177, %v5033
    %v7179 = vpop.permute.xlu0 %7178
    %7181 = vset.pattern.permute.xlu0 1
    %7182 = vperm.xlu0 %7181, %v5034
    %v7183 = vpop.permute.xlu0 %7182
    %v7185 = vmul.f32 %v7010, %v7071
    %v7186 = vmul.f32 %v7012, %v7071
    %v7187 = vmul.f32 %v7013, %v7075
    %v7188 = vmul.f32 %v7014, %v7075
    %v7189 = vmul.f32 %v7015, %v7079
    %v7190 = vmul.f32 %v7016, %v7079
    %v7191 = vmul.f32 %v7017, %v7083
    %v7192 = vmul.f32 %v7018, %v7083
    %v7193 = vmul.f32 %v7019, %v7087
    %v7194 = vmul.f32 %v7020, %v7087
    %v7195 = vmul.f32 %v7021, %v7091
    %v7196 = vmul.f32 %v7022, %v7091
    %v7197 = vmul.f32 %v7023, %v7095
    %v7198 = vmul.f32 %v7024, %v7095
    %v7199 = vmul.f32 %v7025, %v7099
    %v7200 = vmul.f32 %v7026, %v7099
    %v7201 = vmul.f32 %v7027, %v7103
    %v7202 = vmul.f32 %v7028, %v7103
    %v7203 = vmul.f32 %v7029, %v7107
    %v7204 = vmul.f32 %v7030, %v7107
    %v7205 = vmul.f32 %v7031, %v7111
    %v7206 = vmul.f32 %v7032, %v7111
    %v7207 = vmul.f32 %v7033, %v7115
    %v7208 = vmul.f32 %v7034, %v7115
    %v7209 = vmul.f32 %v7035, %v7119
    %v7210 = vmul.f32 %v7036, %v7119
    %v7211 = vmul.f32 %v7037, %v7123
    %v7212 = vmul.f32 %v7038, %v7123
    %v7213 = vmul.f32 %v7039, %v7127
    %v7214 = vmul.f32 %v7040, %v7127
    %v7215 = vmul.f32 %v7041, %v7131
    %v7216 = vmul.f32 %v7042, %v7131
    %v7217 = vmul.f32 %v7043, %v7135
    %v7218 = vmul.f32 %v7044, %v7135
    %v7219 = vmul.f32 %v7045, %v7139
    %v7220 = vmul.f32 %v7046, %v7139
    %v7221 = vmul.f32 %v7047, %v7143
    %v7222 = vmul.f32 %v7048, %v7143
    %v7223 = vmul.f32 %v7049, %v7147
    %v7224 = vmul.f32 %v7050, %v7147
    %v7225 = vmul.f32 %v7051, %v7151
    %v7226 = vmul.f32 %v7052, %v7151
    %v7227 = vmul.f32 %v7053, %v7155
    %v7228 = vmul.f32 %v7054, %v7155
    %v7229 = vmul.f32 %v7055, %v7159
    %v7230 = vmul.f32 %v7056, %v7159
    %v7231 = vmul.f32 %v7057, %v7163
    %v7232 = vmul.f32 %v7058, %v7163
    %v7233 = vmul.f32 %v7059, %v7167
    %v7234 = vmul.f32 %v7060, %v7167
    %v7235 = vmul.f32 %v7061, %v7171
    %v7236 = vmul.f32 %v7062, %v7171
    %v7237 = vmul.f32 %v7063, %v7175
    %v7238 = vmul.f32 %v7064, %v7175
    %v7239 = vmul.f32 %v7065, %v7179
    %v7240 = vmul.f32 %v7066, %v7179
    %v7241 = vmul.f32 %v7067, %v7183
    %v7242 = vmul.f32 %v7068, %v7183
    %v7243 = vadd.f32 %v7185, %v7187
    %v7244 = vadd.f32 %v7243, %v7189
    %v7245 = vadd.f32 %v7244, %v7191
    %v7246 = vadd.f32 %v7245, %v7193
    %v7247 = vadd.f32 %v7246, %v7195
    %v7248 = vadd.f32 %v7247, %v7197
    %v7249 = vadd.f32 %v7248, %v7199
    %v7250 = vadd.f32 %v7249, %v7201
    %v7251 = vadd.f32 %v7250, %v7203
    %v7252 = vadd.f32 %v7251, %v7205
    %v7253 = vadd.f32 %v7252, %v7207
    %v7254 = vadd.f32 %v7253, %v7209
    %v7255 = vadd.f32 %v7254, %v7211
    %v7256 = vadd.f32 %v7255, %v7213
    %v7257 = vadd.f32 %v7256, %v7215
    %v7258 = vadd.f32 %v7257, %v7217
    %v7259 = vadd.f32 %v7258, %v7219
    %v7260 = vadd.f32 %v7259, %v7221
    %v7261 = vadd.f32 %v7260, %v7223
    %v7262 = vadd.f32 %v7261, %v7225
    %v7263 = vadd.f32 %v7262, %v7227
    %v7264 = vadd.f32 %v7263, %v7229
    %v7265 = vadd.f32 %v7264, %v7231
    %v7266 = vadd.f32 %v7265, %v7233
    %v7267 = vadd.f32 %v7266, %v7235
    %v7268 = vadd.f32 %v7267, %v7237
    %v7269 = vadd.f32 %v7268, %v7239
    %v7270 = vsel %vm773, %v7241, 0.0
    %v7271 = vadd.f32 %v7269, %v7270
    %v7272 = vrot.slane %v7271, 4
    %v7273 = vadd.f32 %v7271, %v7272
    %v7274 = vrot.slane %v7273, 2
    %v7275 = vadd.f32 %v7273, %v7274
    %v7276 = vrot.slane %v7275, 1
    %v7277 = vadd.f32 %v7275, %v7276
    %v7278 = vsel %vm770, %v7186, 0.0
    %v7279 = vsel %vm770, %v7188, 0.0
    %v7280 = vadd.f32 %v7278, %v7279
    %v7281 = vsel %vm770, %v7190, 0.0
    %v7282 = vadd.f32 %v7280, %v7281
    %v7283 = vsel %vm770, %v7192, 0.0
    %v7284 = vadd.f32 %v7282, %v7283
    %v7285 = vsel %vm770, %v7194, 0.0
    %v7286 = vadd.f32 %v7284, %v7285
    %v7287 = vsel %vm770, %v7196, 0.0
    %v7288 = vadd.f32 %v7286, %v7287
    %v7289 = vsel %vm770, %v7198, 0.0
    %v7290 = vadd.f32 %v7288, %v7289
    %v7291 = vsel %vm770, %v7200, 0.0
    %v7292 = vadd.f32 %v7290, %v7291
    %v7293 = vsel %vm770, %v7202, 0.0
    %v7294 = vadd.f32 %v7292, %v7293
    %v7295 = vsel %vm770, %v7204, 0.0
    %v7296 = vadd.f32 %v7294, %v7295
    %v7297 = vsel %vm770, %v7206, 0.0
    %v7298 = vadd.f32 %v7296, %v7297
    %v7299 = vsel %vm770, %v7208, 0.0
    %v7300 = vadd.f32 %v7298, %v7299
    %v7301 = vsel %vm770, %v7210, 0.0
    %v7302 = vadd.f32 %v7300, %v7301
    %v7303 = vsel %vm770, %v7212, 0.0
    %v7304 = vadd.f32 %v7302, %v7303
    %v7305 = vsel %vm770, %v7214, 0.0
    %v7306 = vadd.f32 %v7304, %v7305
    %v7307 = vsel %vm770, %v7216, 0.0
    %v7308 = vadd.f32 %v7306, %v7307
    %v7309 = vsel %vm770, %v7218, 0.0
    %v7310 = vadd.f32 %v7308, %v7309
    %v7311 = vsel %vm770, %v7220, 0.0
    %v7312 = vadd.f32 %v7310, %v7311
    %v7313 = vsel %vm770, %v7222, 0.0
    %v7314 = vadd.f32 %v7312, %v7313
    %v7315 = vsel %vm770, %v7224, 0.0
    %v7316 = vadd.f32 %v7314, %v7315
    %v7317 = vsel %vm770, %v7226, 0.0
    %v7318 = vadd.f32 %v7316, %v7317
    %v7319 = vsel %vm770, %v7228, 0.0
    %v7320 = vadd.f32 %v7318, %v7319
    %v7321 = vsel %vm770, %v7230, 0.0
    %v7322 = vadd.f32 %v7320, %v7321
    %v7323 = vsel %vm770, %v7232, 0.0
    %v7324 = vadd.f32 %v7322, %v7323
    %v7325 = vsel %vm770, %v7234, 0.0
    %v7326 = vadd.f32 %v7324, %v7325
    %v7327 = vsel %vm770, %v7236, 0.0
    %v7328 = vadd.f32 %v7326, %v7327
    %v7329 = vsel %vm770, %v7238, 0.0
    %v7330 = vadd.f32 %v7328, %v7329
    %v7331 = vsel %vm770, %v7240, 0.0
    %v7332 = vadd.f32 %v7330, %v7331
    %v7333 = vsel %vm5607, %v7242, 0.0
    %v7334 = vadd.f32 %v7332, %v7333
    %v7335 = vrot.slane %v7334, 4
    %v7336 = vadd.f32 %v7334, %v7335
    %v7337 = vrot.slane %v7336, 2
    %v7338 = vadd.f32 %v7336, %v7337
    %v7339 = vrot.slane %v7338, 1
    %v7340 = vadd.f32 %v7338, %v7339
    %v7343 = vcombine.low %v7277, %v7340
    %v7345 = vunpack.c.l.s4 1966171168
    %v7346 = vunpack.c.0.s8 %v7345
    %v7347 = vlaneseq
    %v7348 = vshrl.u32 %v7347, 7
    %v7349 = vsub.s32 %v7346, %v7348
    %v7350 = vrot.slane %v7343, %v7349
    %v7352 = vunpack.c.l.s4 1966171168
    %v7353 = vunpack.c.0.s8 %v7352
    %v7354 = vlaneseq
    %v7355 = vshrl.u32 %v7354, 7
    %v7356 = vsub.s32 %v7353, %v7355
    %v7357 = vrot.slane %v7350, %v7356
    %s7359 = scalar_lea.vmem [#allocation2], 1
    %7360 = vst.msk [vmem:[%s7359] ss:$2 sm:$0x3] %vm6271, %v7357
    %v7361 = vld [vmem:[#allocation2] sm:$0xf]
    %v7362 = vld [vmem:[%s33] sm:$0xff]
    %v7363 = vld [vmem:[%s33 + $0x8] sm:$0xff]
    %v7364 = vld [vmem:[%s33 + $0x10] sm:$0xff]
    %v7365 = vld [vmem:[%s33 + $0x18] sm:$0xff]
    %v7366 = vld [vmem:[%s33 + $0x20] sm:$0xff]
    %v7367 = vld [vmem:[%s33 + $0x28] sm:$0xff]
    %v7368 = vld [vmem:[%s33 + $0x30] sm:$0xff]
    %v7369 = vld [vmem:[%s33 + $0x38] sm:$0xff]
    %v7370 = vld [vmem:[%s33 + $0x40] sm:$0xff]
    %v7371 = vld [vmem:[%s33 + $0x48] sm:$0xff]
    %v7372 = vld [vmem:[%s33 + $0x50] sm:$0xff]
    %v7373 = vld [vmem:[%s33 + $0x58] sm:$0xff]
    %v7374 = vld [vmem:[%s33 + $0x60] sm:$0xff]
    %v7375 = vld [vmem:[%s33 + $0x68] sm:$0xff]
    %v7376 = vld [vmem:[%s33 + $0x70] sm:$0xff]
    %v7377 = vld [vmem:[%s33 + $0x78] sm:$0xff]
    %v7378 = vld [vmem:[%s33 + $0x80] sm:$0xff]
    %v7379 = vld [vmem:[%s33 + $0x88] sm:$0xff]
    %v7380 = vld [vmem:[%s33 + $0x90] sm:$0xff]
    %v7381 = vld [vmem:[%s33 + $0x98] sm:$0xff]
    %v7382 = vld [vmem:[%s33 + $0xa0] sm:$0xff]
    %v7383 = vld [vmem:[%s33 + $0xa8] sm:$0xff]
    %v7384 = vld [vmem:[%s33 + $0xb0] sm:$0xff]
    %v7385 = vld [vmem:[%s33 + $0xb8] sm:$0xff]
    %v7386 = vld [vmem:[%s33 + $0xc0] sm:$0xff]
    %v7387 = vld [vmem:[%s33 + $0xc8] sm:$0xff]
    %v7388 = vld [vmem:[%s33 + $0xd0] sm:$0xff]
    %v7389 = vld [vmem:[%s33 + $0xd8] sm:$0xff]
    %v7390 = vld [vmem:[%s33 + $0xe0] sm:$0xff]
    %v7391 = vld [vmem:[%s33 + $0xe8] sm:$0xff]
    %v7392 = vld [vmem:[%s33 + $0xf0] sm:$0xff]
    %v7393 = vld [vmem:[%s33 + $0xf8] sm:$0xff]
    %v7394 = vld [vmem:[%s33 + $0x100] sm:$0xff]
    %v7395 = vld [vmem:[%s33 + $0x108] sm:$0xff]
    %v7396 = vld [vmem:[%s33 + $0x110] sm:$0xff]
    %v7397 = vld [vmem:[%s33 + $0x118] sm:$0xff]
    %v7398 = vld [vmem:[%s33 + $0x120] sm:$0xff]
    %v7399 = vld [vmem:[%s33 + $0x128] sm:$0xff]
    %v7400 = vld [vmem:[%s33 + $0x130] sm:$0xff]
    %v7401 = vld [vmem:[%s33 + $0x138] sm:$0xff]
    %v7402 = vld [vmem:[%s33 + $0x140] sm:$0xff]
    %v7403 = vld [vmem:[%s33 + $0x148] sm:$0xff]
    %v7404 = vld [vmem:[%s33 + $0x150] sm:$0xff]
    %v7405 = vld [vmem:[%s33 + $0x158] sm:$0xff]
    %v7406 = vld [vmem:[%s33 + $0x160] sm:$0xff]
    %v7407 = vld [vmem:[%s33 + $0x168] sm:$0xff]
    %v7408 = vld [vmem:[%s33 + $0x170] sm:$0xff]
    %v7409 = vld [vmem:[%s33 + $0x178] sm:$0xff]
    %v7410 = vld [vmem:[%s33 + $0x180] sm:$0xff]
    %v7411 = vld [vmem:[%s33 + $0x188] sm:$0xff]
    %v7412 = vld [vmem:[%s33 + $0x190] sm:$0xff]
    %v7413 = vld [vmem:[%s33 + $0x198] sm:$0xff]
    %v7414 = vld [vmem:[%s33 + $0x1a0] sm:$0xff]
    %v7415 = vld [vmem:[%s33 + $0x1a8] sm:$0xff]
    %v7416 = vld [vmem:[%s33 + $0x1b0] sm:$0xff]
    %v7417 = vld [vmem:[%s33 + $0x1b8] sm:$0xff]
    %v7418 = vld [vmem:[%s33 + $0x1c0] sm:$0x1]
    %v7419 = vld [vmem:[%s33 + $0x1c8] sm:$0x1]
    %v7420 = vld [vmem:[%s35] sm:$0x3]
    %v7422 = vlaneseq
    %v7423 = vshrl.u32 %v7422, 7
    %v7424 = vsub.s32 0, %v7423
    %v7425 = vrot.slane %v7420, %v7424
    %v7426 = vlaneseq
    %v7427 = vshrl.u32 %v7426, 7
    %v7428 = vsub.s32 1, %v7427
    %v7429 = vrot.slane %v7420, %v7428
    %v7434 = vunpack.c.l.s4 1983009808
    %v7435 = vunpack.c.0.s8 %v7434
    %v7436 = vlaneseq
    %v7437 = vshrl.u32 %v7436, 7
    %v7438 = vsub.s32 %v7435, %v7437
    %v7439 = vrot.slane %v7361, %v7438
    %v7440 = vcombine.high %v7439, %v7439
    %v7442 = vsel %vm770, %v7440, 0
    %v7445 = vsel %vm773, %v7418, 0
    %v7448 = vsel %vm773, %v7419, 0
    %7450 = vmatprep.subr.mxu0 %v7363
    %7451 = vmatpush1.msra.mxu0 %v7362
    %7452 = vmatprep.subr.mxu0 %v7365
    %7453 = vmatpush1.msra.mxu0 %v7364
    %7454 = vmatprep.subr.mxu0 %v7367
    %7455 = vmatpush1.msra.mxu0 %v7366
    %7456 = vmatprep.subr.mxu0 %v7369
    %7457 = vmatpush1.msra.mxu0 %v7368
    %7458 = vmatprep.subr.mxu0 %v7371
    %7459 = vmatpush1.msra.mxu0 %v7370
    %7460 = vmatprep.subr.mxu0 %v7373
    %7461 = vmatpush1.msra.mxu0 %v7372
    %7462 = vmatprep.subr.mxu0 %v7375
    %7463 = vmatpush1.msra.mxu0 %v7374
    %7464 = vmatprep.subr.mxu0 %v7377
    %7465 = vmatpush1.msra.mxu0 %v7376
    %7466 = vmatprep.subr.mxu0 %v7379
    %7467 = vmatpush1.msra.mxu0 %v7378
    %7468 = vmatprep.subr.mxu0 %v7381
    %7469 = vmatpush1.msra.mxu0 %v7380
    %7470 = vmatprep.subr.mxu0 %v7383
    %7471 = vmatpush1.msra.mxu0 %v7382
    %7472 = vmatprep.subr.mxu0 %v7385
    %7473 = vmatpush1.msra.mxu0 %v7384
    %7474 = vmatprep.subr.mxu0 %v7387
    %7475 = vmatpush1.msra.mxu0 %v7386
    %7476 = vmatprep.subr.mxu0 %v7389
    %7477 = vmatpush1.msra.mxu0 %v7388
    %7478 = vmatprep.subr.mxu0 %v7391
    %7479 = vmatpush1.msra.mxu0 %v7390
    %7480 = vmatprep.subr.mxu0 %v7393
    %7481 = vmatpush1.msra.mxu0 %v7392
    %7482 = vmatprep.subr.mxu0 %v7395
    %7483 = vmatpush1.msra.mxu0 %v7394
    %7484 = vmatprep.subr.mxu0 %v7397
    %7485 = vmatpush1.msra.mxu0 %v7396
    %7486 = vmatprep.subr.mxu0 %v7399
    %7487 = vmatpush1.msra.mxu0 %v7398
    %7488 = vmatprep.subr.mxu0 %v7401
    %7489 = vmatpush1.msra.mxu0 %v7400
    %7490 = vmatprep.subr.mxu0 %v7403
    %7491 = vmatpush1.msra.mxu0 %v7402
    %7492 = vmatprep.subr.mxu0 %v7405
    %7493 = vmatpush1.msra.mxu0 %v7404
    %7494 = vmatprep.subr.mxu0 %v7407
    %7495 = vmatpush1.msra.mxu0 %v7406
    %7496 = vmatprep.subr.mxu0 %v7409
    %7497 = vmatpush1.msra.mxu0 %v7408
    %7498 = vmatprep.subr.mxu0 %v7411
    %7499 = vmatpush1.msra.mxu0 %v7410
    %7500 = vmatprep.subr.mxu0 %v7413
    %7501 = vmatpush1.msra.mxu0 %v7412
    %7502 = vmatprep.subr.mxu0 %v7415
    %7503 = vmatpush1.msra.mxu0 %v7414
    %7504 = vmatprep.subr.mxu0 %v7417
    %7505 = vmatpush1.msra.mxu0 %v7416
    %7506 = vmatprep.subr.mxu0 %v7448
    %7507 = vmatpush1.msra.mxu0 %v7445
    %7508 = vmatprep.subr.mxu0 0.0
    %7509 = vmatpush1.msra.mxu0 0.0
    %7510 = vmatprep.subr.mxu0 0.0
    %7511 = vmatpush1.msra.mxu0 0.0
    %7512 = vmatprep.subr.mxu0 0.0
    %7513 = vmatpush1.msra.mxu0 0.0
    %7514 = vmatprep.mubr.f32.mxu0 %v7442
    %7515 = vmatmul.mubr.f32.gmra.mrb[0].mxu0 %v7439
    %v7516 = vpop.f32.mrb[0].mxu0
    %v7517 = vadd.f32 %v7425, %v7516
    %v7518 = vpop.f32.mrb[0].mxu0
    %v7519 = vadd.f32 %v7429, %v7518
    %7520 = vdwg.mxu0
    %v7521 = vld [vmem:[%s37] sm:$0xff]
    %v7522 = vld [vmem:[%s37 + $0x8] sm:$0xff]
    %v7523 = vld [vmem:[%s37 + $0x10] sm:$0xff]
    %v7524 = vld [vmem:[%s37 + $0x18] sm:$0xff]
    %v7525 = vld [vmem:[%s37 + $0x20] sm:$0xff]
    %v7526 = vld [vmem:[%s37 + $0x28] sm:$0xff]
    %v7527 = vld [vmem:[%s37 + $0x30] sm:$0xff]
    %v7528 = vld [vmem:[%s37 + $0x38] sm:$0xff]
    %v7529 = vld [vmem:[%s37 + $0x40] sm:$0xff]
    %v7530 = vld [vmem:[%s37 + $0x48] sm:$0xff]
    %v7531 = vld [vmem:[%s37 + $0x50] sm:$0xff]
    %v7532 = vld [vmem:[%s37 + $0x58] sm:$0xff]
    %v7533 = vld [vmem:[%s37 + $0x60] sm:$0xff]
    %v7534 = vld [vmem:[%s37 + $0x68] sm:$0xff]
    %v7535 = vld [vmem:[%s37 + $0x70] sm:$0xff]
    %v7536 = vld [vmem:[%s37 + $0x78] sm:$0xff]
    %v7537 = vld [vmem:[%s37 + $0x80] sm:$0xff]
    %v7538 = vld [vmem:[%s37 + $0x88] sm:$0xff]
    %v7539 = vld [vmem:[%s37 + $0x90] sm:$0xff]
    %v7540 = vld [vmem:[%s37 + $0x98] sm:$0xff]
    %v7541 = vld [vmem:[%s37 + $0xa0] sm:$0xff]
    %v7542 = vld [vmem:[%s37 + $0xa8] sm:$0xff]
    %v7543 = vld [vmem:[%s37 + $0xb0] sm:$0xff]
    %v7544 = vld [vmem:[%s37 + $0xb8] sm:$0xff]
    %v7545 = vld [vmem:[%s37 + $0xc0] sm:$0xff]
    %v7546 = vld [vmem:[%s39] sm:$0x1]
    %v7548 = vlaneseq
    %v7549 = vshrl.u32 %v7548, 7
    %v7550 = vsub.s32 0, %v7549
    %v7551 = vrot.slane %v7546, %v7550
    %vm7553 = vcmask 588800
    %v7555 = vsel %vm7553, %v7519, 0
    %7557 = vmatprep.subr.mxu0 0.0
    %7558 = vmatpush1.msra.mxu0 %v7521
    %7559 = vmatprep.subr.mxu0 0.0
    %7560 = vmatpush1.msra.mxu0 %v7522
    %7561 = vmatprep.subr.mxu0 0.0
    %7562 = vmatpush1.msra.mxu0 %v7523
    %7563 = vmatprep.subr.mxu0 0.0
    %7564 = vmatpush1.msra.mxu0 %v7524
    %7565 = vmatprep.subr.mxu0 0.0
    %7566 = vmatpush1.msra.mxu0 %v7525
    %7567 = vmatprep.subr.mxu0 0.0
    %7568 = vmatpush1.msra.mxu0 %v7526
    %7569 = vmatprep.subr.mxu0 0.0
    %7570 = vmatpush1.msra.mxu0 %v7527
    %7571 = vmatprep.subr.mxu0 0.0
    %7572 = vmatpush1.msra.mxu0 %v7528
    %7573 = vmatprep.subr.mxu0 0.0
    %7574 = vmatpush1.msra.mxu0 %v7529
    %7575 = vmatprep.subr.mxu0 0.0
    %7576 = vmatpush1.msra.mxu0 %v7530
    %7577 = vmatprep.subr.mxu0 0.0
    %7578 = vmatpush1.msra.mxu0 %v7531
    %7579 = vmatprep.subr.mxu0 0.0
    %7580 = vmatpush1.msra.mxu0 %v7532
    %7581 = vmatprep.subr.mxu0 0.0
    %7582 = vmatpush1.msra.mxu0 %v7533
    %7583 = vmatprep.subr.mxu0 0.0
    %7584 = vmatpush1.msra.mxu0 %v7534
    %7585 = vmatprep.subr.mxu0 0.0
    %7586 = vmatpush1.msra.mxu0 %v7535
    %7587 = vmatprep.subr.mxu0 0.0
    %7588 = vmatpush1.msra.mxu0 %v7536
    %7589 = vmatprep.subr.mxu0 0.0
    %7590 = vmatpush1.msra.mxu0 %v7537
    %7591 = vmatprep.subr.mxu0 0.0
    %7592 = vmatpush1.msra.mxu0 %v7538
    %7593 = vmatprep.subr.mxu0 0.0
    %7594 = vmatpush1.msra.mxu0 %v7539
    %7595 = vmatprep.subr.mxu0 0.0
    %7596 = vmatpush1.msra.mxu0 %v7540
    %7597 = vmatprep.subr.mxu0 0.0
    %7598 = vmatpush1.msra.mxu0 %v7541
    %7599 = vmatprep.subr.mxu0 0.0
    %7600 = vmatpush1.msra.mxu0 %v7542
    %7601 = vmatprep.subr.mxu0 0.0
    %7602 = vmatpush1.msra.mxu0 %v7543
    %7603 = vmatprep.subr.mxu0 0.0
    %7604 = vmatpush1.msra.mxu0 %v7544
    %7605 = vmatprep.subr.mxu0 0.0
    %7606 = vmatpush1.msra.mxu0 %v7545
    %7607 = vmatprep.subr.mxu0 0.0
    %7608 = vmatpush1.msra.mxu0 0.0
    %7609 = vmatprep.subr.mxu0 0.0
    %7610 = vmatpush1.msra.mxu0 0.0
    %7611 = vmatprep.subr.mxu0 0.0
    %7612 = vmatpush1.msra.mxu0 0.0
    %7613 = vmatprep.subr.mxu0 0.0
    %7614 = vmatpush1.msra.mxu0 0.0
    %7615 = vmatprep.subr.mxu0 0.0
    %7616 = vmatpush1.msra.mxu0 0.0
    %7617 = vmatprep.subr.mxu0 0.0
    %7618 = vmatpush1.msra.mxu0 0.0
    %7619 = vmatprep.subr.mxu0 0.0
    %7620 = vmatpush1.msra.mxu0 0.0
    %7621 = vmatprep.mubr.f32.mxu0 %v7555
    %7622 = vmatmul.mubr.f32.gmra.mrb[0].mxu0 %v7517
    %v7623 = vpop.f32.mrb[0].mxu0
    %v7624 = vadd.f32 %v7551, %v7623
    %v7625 = vpop.f32.mrb[0].mxu0
    %7626 = vdwg.mxu0
    %v7627 = vtanh.pop %v7624
    %v7628 = vld [vmem:[%s41] sm:$0xff]
    %v7629 = vld [vmem:[%s41 + $0x8] sm:$0xff]
    %v7630 = vld [vmem:[%s41 + $0x10] sm:$0xff]
    %v7631 = vld [vmem:[%s41 + $0x18] sm:$0xff]
    %v7632 = vld [vmem:[%s41 + $0x20] sm:$0xff]
    %v7633 = vld [vmem:[%s41 + $0x28] sm:$0xff]
    %v7634 = vld [vmem:[%s41 + $0x30] sm:$0xff]
    %v7635 = vld [vmem:[%s41 + $0x38] sm:$0xff]
    %v7636 = vld [vmem:[%s41 + $0x40] sm:$0xff]
    %v7637 = vld [vmem:[%s41 + $0x48] sm:$0xff]
    %v7638 = vld [vmem:[%s41 + $0x50] sm:$0xff]
    %v7639 = vld [vmem:[%s41 + $0x58] sm:$0xff]
    %v7640 = vld [vmem:[%s41 + $0x60] sm:$0xf]
    %v7641 = vld [vmem:[%s43] sm:$0x1]
    %v7643 = vlaneseq
    %v7644 = vshrl.u32 %v7643, 7
    %v7645 = vsub.s32 0, %v7644
    %v7646 = vrot.slane %v7641, %v7645
    %v7649 = vsel %vm4677, %v7627, 0
    %v7652 = vsel %vm4442, %v7640, 0
    %7654 = vmatprep.subr.mxu0 0.0
    %7655 = vmatpush1.msra.mxu0 %v7628
    %7656 = vmatprep.subr.mxu0 0.0
    %7657 = vmatpush1.msra.mxu0 %v7629
    %7658 = vmatprep.subr.mxu0 0.0
    %7659 = vmatpush1.msra.mxu0 %v7630
    %7660 = vmatprep.subr.mxu0 0.0
    %7661 = vmatpush1.msra.mxu0 %v7631
    %7662 = vmatprep.subr.mxu0 0.0
    %7663 = vmatpush1.msra.mxu0 %v7632
    %7664 = vmatprep.subr.mxu0 0.0
    %7665 = vmatpush1.msra.mxu0 %v7633
    %7666 = vmatprep.subr.mxu0 0.0
    %7667 = vmatpush1.msra.mxu0 %v7634
    %7668 = vmatprep.subr.mxu0 0.0
    %7669 = vmatpush1.msra.mxu0 %v7635
    %7670 = vmatprep.subr.mxu0 0.0
    %7671 = vmatpush1.msra.mxu0 %v7636
    %7672 = vmatprep.subr.mxu0 0.0
    %7673 = vmatpush1.msra.mxu0 %v7637
    %7674 = vmatprep.subr.mxu0 0.0
    %7675 = vmatpush1.msra.mxu0 %v7638
    %7676 = vmatprep.subr.mxu0 0.0
    %7677 = vmatpush1.msra.mxu0 %v7639
    %7678 = vmatprep.subr.mxu0 0.0
    %7679 = vmatpush1.msra.mxu0 %v7652
    %7680 = vmatprep.subr.mxu0 0.0
    %7681 = vmatpush1.msra.mxu0 0.0
    %7682 = vmatprep.subr.mxu0 0.0
    %7683 = vmatpush1.msra.mxu0 0.0
    %7684 = vmatprep.subr.mxu0 0.0
    %7685 = vmatpush1.msra.mxu0 0.0
    %7686 = vmatprep.subr.mxu0 0.0
    %7687 = vmatpush1.msra.mxu0 0.0
    %7688 = vmatprep.subr.mxu0 0.0
    %7689 = vmatpush1.msra.mxu0 0.0
    %7690 = vmatprep.subr.mxu0 0.0
    %7691 = vmatpush1.msra.mxu0 0.0
    %7692 = vmatprep.subr.mxu0 0.0
    %7693 = vmatpush1.msra.mxu0 0.0
    %7694 = vmatprep.subr.mxu0 0.0
    %7695 = vmatpush1.msra.mxu0 0.0
    %7696 = vmatprep.subr.mxu0 0.0
    %7697 = vmatpush1.msra.mxu0 0.0
    %7698 = vmatprep.subr.mxu0 0.0
    %7699 = vmatpush1.msra.mxu0 0.0
    %7700 = vmatprep.subr.mxu0 0.0
    %7701 = vmatpush1.msra.mxu0 0.0
    %7702 = vmatprep.subr.mxu0 0.0
    %7703 = vmatpush1.msra.mxu0 0.0
    %7704 = vmatprep.subr.mxu0 0.0
    %7705 = vmatpush1.msra.mxu0 0.0
    %7706 = vmatprep.subr.mxu0 0.0
    %7707 = vmatpush1.msra.mxu0 0.0
    %7708 = vmatprep.subr.mxu0 0.0
    %7709 = vmatpush1.msra.mxu0 0.0
    %7710 = vmatprep.subr.mxu0 0.0
    %7711 = vmatpush1.msra.mxu0 0.0
    %7712 = vmatprep.subr.mxu0 0.0
    %7713 = vmatpush1.msra.mxu0 0.0
    %7714 = vmatprep.subr.mxu0 0.0
    %7715 = vmatpush1.msra.mxu0 0.0
    %7716 = vmatprep.subr.mxu0 0.0
    %7717 = vmatpush1.msra.mxu0 0.0
    %7718 = vmatprep.mubr.f32.mxu0 0.0
    %7719 = vmatmul.mubr.f32.gmra.mrb[0].mxu0 %v7649
    %v7720 = vpop.f32.mrb[0].mxu0
    %v7721 = vadd.f32 %v7646, %v7720
    %v7722 = vpop.f32.mrb[0].mxu0
    %7723 = vdwg.mxu0
    %v7724 = vtanh.pop %v7721
    %v7725 = vld [vmem:[%s45] sm:$0xff]
    %v7726 = vld [vmem:[%s45 + $0x8] sm:$0xff]
    %v7727 = vld [vmem:[%s45 + $0x10] sm:$0xff]
    %v7728 = vld [vmem:[%s45 + $0x18] sm:$0xff]
    %v7729 = vld [vmem:[%s45 + $0x20] sm:$0xff]
    %v7730 = vld [vmem:[%s45 + $0x28] sm:$0xff]
    %v7731 = vld [vmem:[%s45 + $0x30] sm:$0xff]
    %v7732 = vld [vmem:[%s45 + $0x38] sm:$0xff]
    %v7733 = vld [vmem:[%s45 + $0x40] sm:$0xff]
    %v7734 = vld [vmem:[%s45 + $0x48] sm:$0xff]
    %v7735 = vld [vmem:[%s47] sm:$0x1]
    %v7737 = vlaneseq
    %v7738 = vshrl.u32 %v7737, 7
    %v7739 = vsub.s32 0, %v7738
    %v7740 = vrot.slane %v7735, %v7739
    %v7743 = vsel %vm4772, %v7724, 0
    %7745 = vmatprep.subr.mxu0 0.0
    %7746 = vmatpush1.msra.mxu0 %v7725
    %7747 = vmatprep.subr.mxu0 0.0
    %7748 = vmatpush1.msra.mxu0 %v7726
    %7749 = vmatprep.subr.mxu0 0.0
    %7750 = vmatpush1.msra.mxu0 %v7727
    %7751 = vmatprep.subr.mxu0 0.0
    %7752 = vmatpush1.msra.mxu0 %v7728
    %7753 = vmatprep.subr.mxu0 0.0
    %7754 = vmatpush1.msra.mxu0 %v7729
    %7755 = vmatprep.subr.mxu0 0.0
    %7756 = vmatpush1.msra.mxu0 %v7730
    %7757 = vmatprep.subr.mxu0 0.0
    %7758 = vmatpush1.msra.mxu0 %v7731
    %7759 = vmatprep.subr.mxu0 0.0
    %7760 = vmatpush1.msra.mxu0 %v7732
    %7761 = vmatprep.subr.mxu0 0.0
    %7762 = vmatpush1.msra.mxu0 %v7733
    %7763 = vmatprep.subr.mxu0 0.0
    %7764 = vmatpush1.msra.mxu0 %v7734
    %7765 = vmatprep.subr.mxu0 0.0
    %7766 = vmatpush1.msra.mxu0 0.0
    %7767 = vmatprep.subr.mxu0 0.0
    %7768 = vmatpush1.msra.mxu0 0.0
    %7769 = vmatprep.subr.mxu0 0.0
    %7770 = vmatpush1.msra.mxu0 0.0
    %7771 = vmatprep.subr.mxu0 0.0
    %7772 = vmatpush1.msra.mxu0 0.0
    %7773 = vmatprep.subr.mxu0 0.0
    %7774 = vmatpush1.msra.mxu0 0.0
    %7775 = vmatprep.subr.mxu0 0.0
    %7776 = vmatpush1.msra.mxu0 0.0
    %7777 = vmatprep.subr.mxu0 0.0
    %7778 = vmatpush1.msra.mxu0 0.0
    %7779 = vmatprep.subr.mxu0 0.0
    %7780 = vmatpush1.msra.mxu0 0.0
    %7781 = vmatprep.subr.mxu0 0.0
    %7782 = vmatpush1.msra.mxu0 0.0
    %7783 = vmatprep.subr.mxu0 0.0
    %7784 = vmatpush1.msra.mxu0 0.0
    %7785 = vmatprep.subr.mxu0 0.0
    %7786 = vmatpush1.msra.mxu0 0.0
    %7787 = vmatprep.subr.mxu0 0.0
    %7788 = vmatpush1.msra.mxu0 0.0
    %7789 = vmatprep.subr.mxu0 0.0
    %7790 = vmatpush1.msra.mxu0 0.0
    %7791 = vmatprep.subr.mxu0 0.0
    %7792 = vmatpush1.msra.mxu0 0.0
    %7793 = vmatprep.subr.mxu0 0.0
    %7794 = vmatpush1.msra.mxu0 0.0
    %7795 = vmatprep.subr.mxu0 0.0
    %7796 = vmatpush1.msra.mxu0 0.0
    %7797 = vmatprep.subr.mxu0 0.0
    %7798 = vmatpush1.msra.mxu0 0.0
    %7799 = vmatprep.subr.mxu0 0.0
    %7800 = vmatpush1.msra.mxu0 0.0
    %7801 = vmatprep.subr.mxu0 0.0
    %7802 = vmatpush1.msra.mxu0 0.0
    %7803 = vmatprep.subr.mxu0 0.0
    %7804 = vmatpush1.msra.mxu0 0.0
    %7805 = vmatprep.subr.mxu0 0.0
    %7806 = vmatpush1.msra.mxu0 0.0
    %7807 = vmatprep.subr.mxu0 0.0
    %7808 = vmatpush1.msra.mxu0 0.0
    %7809 = vmatprep.mubr.f32.mxu0 0.0
    %7810 = vmatmul.mubr.f32.gmra.mrb[0].mxu0 %v7743
    %v7811 = vpop.f32.mrb[0].mxu0
    %v7812 = vadd.f32 %v7740, %v7811
    %v7813 = vpop.f32.mrb[0].mxu0
    %7814 = vdwg.mxu0
    %v7815 = vld [vmem:[%s3] sm:$0x3]
    %v7816 = vld [vmem:[%s49] sm:$0x7]
    %v7817 = vld [vmem:[%s51] sm:$0x1]
    %v7819 = vlaneseq
    %v7820 = vshrl.u32 %v7819, 7
    %v7821 = vsub.s32 0, %v7820
    %v7822 = vrot.slane %v7817, %v7821
    %vm7824 = vcmask 23552
    %v7826 = vsel %vm7824, %v7815, 0
    %vm7828 = vcmask 1042432
    %v7830 = vsel %vm7828, %v7816, 0
    %7832 = vmatprep.subr.mxu0 0.0
    %7833 = vmatpush1.msra.mxu0 %v7830
    %7834 = vmatprep.subr.mxu0 0.0
    %7835 = vmatpush1.msra.mxu0 0.0
    %7836 = vmatprep.subr.mxu0 0.0
    %7837 = vmatpush1.msra.mxu0 0.0
    %7838 = vmatprep.subr.mxu0 0.0
    %7839 = vmatpush1.msra.mxu0 0.0
    %7840 = vmatprep.subr.mxu0 0.0
    %7841 = vmatpush1.msra.mxu0 0.0
    %7842 = vmatprep.subr.mxu0 0.0
    %7843 = vmatpush1.msra.mxu0 0.0
    %7844 = vmatprep.subr.mxu0 0.0
    %7845 = vmatpush1.msra.mxu0 0.0
    %7846 = vmatprep.subr.mxu0 0.0
    %7847 = vmatpush1.msra.mxu0 0.0
    %7848 = vmatprep.subr.mxu0 0.0
    %7849 = vmatpush1.msra.mxu0 0.0
    %7850 = vmatprep.subr.mxu0 0.0
    %7851 = vmatpush1.msra.mxu0 0.0
    %7852 = vmatprep.subr.mxu0 0.0
    %7853 = vmatpush1.msra.mxu0 0.0
    %7854 = vmatprep.subr.mxu0 0.0
    %7855 = vmatpush1.msra.mxu0 0.0
    %7856 = vmatprep.subr.mxu0 0.0
    %7857 = vmatpush1.msra.mxu0 0.0
    %7858 = vmatprep.subr.mxu0 0.0
    %7859 = vmatpush1.msra.mxu0 0.0
    %7860 = vmatprep.subr.mxu0 0.0
    %7861 = vmatpush1.msra.mxu0 0.0
    %7862 = vmatprep.subr.mxu0 0.0
    %7863 = vmatpush1.msra.mxu0 0.0
    %7864 = vmatprep.subr.mxu0 0.0
    %7865 = vmatpush1.msra.mxu0 0.0
    %7866 = vmatprep.subr.mxu0 0.0
    %7867 = vmatpush1.msra.mxu0 0.0
    %7868 = vmatprep.subr.mxu0 0.0
    %7869 = vmatpush1.msra.mxu0 0.0
    %7870 = vmatprep.subr.mxu0 0.0
    %7871 = vmatpush1.msra.mxu0 0.0
    %7872 = vmatprep.subr.mxu0 0.0
    %7873 = vmatpush1.msra.mxu0 0.0
    %7874 = vmatprep.subr.mxu0 0.0
    %7875 = vmatpush1.msra.mxu0 0.0
    %7876 = vmatprep.subr.mxu0 0.0
    %7877 = vmatpush1.msra.mxu0 0.0
    %7878 = vmatprep.subr.mxu0 0.0
    %7879 = vmatpush1.msra.mxu0 0.0
    %7880 = vmatprep.subr.mxu0 0.0
    %7881 = vmatpush1.msra.mxu0 0.0
    %7882 = vmatprep.subr.mxu0 0.0
    %7883 = vmatpush1.msra.mxu0 0.0
    %7884 = vmatprep.subr.mxu0 0.0
    %7885 = vmatpush1.msra.mxu0 0.0
    %7886 = vmatprep.subr.mxu0 0.0
    %7887 = vmatpush1.msra.mxu0 0.0
    %7888 = vmatprep.subr.mxu0 0.0
    %7889 = vmatpush1.msra.mxu0 0.0
    %7890 = vmatprep.subr.mxu0 0.0
    %7891 = vmatpush1.msra.mxu0 0.0
    %7892 = vmatprep.subr.mxu0 0.0
    %7893 = vmatpush1.msra.mxu0 0.0
    %7894 = vmatprep.subr.mxu0 0.0
    %7895 = vmatpush1.msra.mxu0 0.0
    %7896 = vmatprep.mubr.f32.mxu0 0.0
    %7897 = vmatmul.mubr.f32.gmra.mrb[0].mxu0 %v7826
    %v7898 = vpop.f32.mrb[0].mxu0
    %v7899 = vadd.f32 %v7822, %v7898
    %v7900 = vpop.f32.mrb[0].mxu0
    %7901 = vdwg.mxu0
    %v7902 = vand.u32 2147483647, %v7899
    %vm7903 = vcmp.le.f32.partialorder %v7902, 0.7853982
    %vm7904 = vcmp.lt.s32.totalorder %v7899, 0
    %v7905 = vand.u32 %v7899, 2139095040
    %v7906 = vshrl.u32 %v7905, 23
    %v7907 = vsub.s32 %v7906, 127
    %v7908 = vand.u32 2147483647, %v7899
    %v7909 = vand.u32 %v7908, 8388607
    %v7910 = vor.u32 %v7909, 8388608
    %v7911 = vsub.s32 0, %v7910
    %v7912 = vadd.s32 %v7907, 1
    %vm7913 = vcmp.gt.s32.totalorder %v7912, 0
    %v7914 = vsel %vm7913, %v7912, 0
    %v7915 = vshrl.u32 %v7914, 5
    %v7916 = vand.u32 %v7914, 31
    %v7917 = vsub.s32 32, %v7916
    %v7918 = vshrl.u32 683565275, %v7917
    %v7919 = vshll.u32 683565275, %v7916
    %v7920 = vshrl.u32 2475754826, %v7917
    %v7921 = vor.u32 %v7919, %v7920
    %v7922 = vshll.u32 2475754826, %v7916
    %v7923 = vshrl.u32 2131351028, %v7917
    %v7924 = vor.u32 %v7922, %v7923
    %v7925 = vshll.u32 2131351028, %v7916
    %v7926 = vshrl.u32 2102212464, %v7917
    %v7927 = vor.u32 %v7925, %v7926
    %v7928 = vshll.u32 2102212464, %v7916
    %v7929 = vshrl.u32 920167782, %v7917
    %v7930 = vor.u32 %v7928, %v7929
    %v7931 = vshll.u32 920167782, %v7916
    %v7932 = vshrl.u32 1326507024, %v7917
    %v7933 = vor.u32 %v7931, %v7932
    %vm7934 = vcmp.lt.s32.totalorder %v7915, 1
    %vm7935 = vcmp.lt.s32.totalorder %v7915, 2
    %vm7936 = vcmp.lt.s32.totalorder %v7915, 3
    %vm7937 = vcmp.lt.s32.totalorder %v7915, 4
    %v7938 = vsel %vm7934, %v7918, %v7921
    %v7939 = vsel %vm7937, %v7927, 2102212464
    %v7940 = vsel %vm7936, %v7924, %v7939
    %v7941 = vsel %vm7935, %v7938, %v7940
    %v7942 = vsel %vm7934, %v7921, %v7924
    %v7943 = vsel %vm7937, %v7930, 920167782
    %v7944 = vsel %vm7936, %v7927, %v7943
    %v7945 = vsel %vm7935, %v7942, %v7944
    %v7946 = vsel %vm7934, %v7924, %v7927
    %v7947 = vsel %vm7937, %v7933, 1326507024
    %v7948 = vsel %vm7936, %v7930, %v7947
    %v7949 = vsel %vm7935, %v7946, %v7948
    %v7950 = vshll.u32 %v7910, 8
    %v7951 = vmul.u32.u64.compose %v7950, %v7949
    %v7952 = vextract.low.u32 %v7951
    %v7953 = vextract.high.u32 %v7951
    %v7954 = vmul.u32.u64.compose %v7950, %v7945
    %v7955 = vextract.low.u32 %v7954
    %v7956 = vextract.high.u32 %v7954
    %v7957 = vmul.u32 %v7950, %v7941
    %v7958 = vadd.s32 %v7953, %v7955
    %vm7959 = vc.u32 %v7953, %v7955
    %v7960 = vadd.s32 %v7956, 1
    %v7961 = vsel %vm7959, %v7960, %v7956
    %v7962 = vadd.s32 %v7957, %v7961
    %v7963 = vadd.s32 %v7962, 536870912
    %v7964 = vshrl.u32 %v7963, 30
    %v7965 = vshll.u32 %v7964, 30
    %v7966 = vsub.s32 %v7962, %v7965
    %vm7967 = vcmp.lt.s32.totalorder %v7966, 0
    %v7968 = vsub.s32 0, %v7966
    %v7969 = vsel %vm7967, %v7968, %v7966
    %v7970 = vclz %v7969
    %v7971 = vsub.s32 %v7970, 2
    %vm7972 = vcmp.gt.s32.totalorder 0, %v7971
    %v7973 = vsel %vm7972, 0, %v7971
    %v7974 = vsub.s32 32, %v7973
    %v7975 = vshll.u32 %v7966, %v7973
    %v7976 = vshrl.u32 %v7958, %v7974
    %v7977 = vor.u32 %v7975, %v7976
    %v7978 = vsub.s32 4294967266, %v7973
    %v7979 = vadd.s32 %v7978, 127
    %v7980 = vshll.u32 %v7979, 23
    %v7981 = vor.u32 4788187, %v7980
    %v7982 = vand.u32 2147483647, %v7981
    %v7984 = vcvt.s32.f32 %v7977
    %v7985 = vmul.f32 %v7984, %v7982
    %v7986 = vxor.u32 %v7985, 2147483648
    %v7987 = vsel %vm7904, %v7986, %v7985
    %v7988 = vsub.s32 4, %v7964
    %v7989 = vsel %vm7904, %v7988, %v7964
    %v7990 = vsel %vm7903, %v7899, %v7987
    %v7991 = vsel %vm7903, 0, %v7989
    %v7992 = vcosq.f32.pop %v7990
    %v7993 = vsinq.f32.pop %v7990
    %vm7994 = vweird.f32 %v7899
    %v7995 = vadd.s32 %v7991, 3
    %v7996 = vand.u32 %v7995, 3
    %vm7997 = vcmp.lt.s32.totalorder %v7996, 2
    %vm7998 = vcmp.eq.s32.totalorder %v7996, 0
    %v7999 = vxor.u32 %v7993, 2147483648
    %v8000 = vsel %vm7998, %v7992, %v7999
    %vm8001 = vcmp.eq.s32.totalorder %v7996, 2
    %v8002 = vxor.u32 %v7992, 2147483648
    %v8003 = vsel %vm8001, %v8002, %v7993
    %v8004 = vsel %vm7997, %v8000, %v8003
    %v8005 = vsel %vm7994, nan, %v8004
    %v8006 = vld [vmem:[%s53] sm:$0xff]
    %v8007 = vld [vmem:[%s53 + $0x8] sm:$0xff]
    %v8008 = vld [vmem:[%s53 + $0x10] sm:$0xff]
    %v8009 = vld [vmem:[%s53 + $0x18] sm:$0xff]
    %v8010 = vld [vmem:[%s53 + $0x20] sm:$0xff]
    %v8011 = vld [vmem:[%s53 + $0x28] sm:$0xff]
    %v8012 = vld [vmem:[%s53 + $0x30] sm:$0xff]
    %v8013 = vld [vmem:[%s53 + $0x38] sm:$0xff]
    %v8014 = vld [vmem:[%s53 + $0x40] sm:$0xff]
    %v8015 = vld [vmem:[%s53 + $0x48] sm:$0xff]
    %v8016 = vld [vmem:[%s55] sm:$0x1]
    %v8018 = vlaneseq
    %v8019 = vshrl.u32 %v8018, 7
    %v8020 = vsub.s32 0, %v8019
    %v8021 = vrot.slane %v8016, %v8020
    %v8024 = vsel %vm4772, %v8005, 0
    %8026 = vmatprep.subr.mxu0 0.0
    %8027 = vmatpush1.msra.mxu0 %v8006
    %8028 = vmatprep.subr.mxu0 0.0
    %8029 = vmatpush1.msra.mxu0 %v8007
    %8030 = vmatprep.subr.mxu0 0.0
    %8031 = vmatpush1.msra.mxu0 %v8008
    %8032 = vmatprep.subr.mxu0 0.0
    %8033 = vmatpush1.msra.mxu0 %v8009
    %8034 = vmatprep.subr.mxu0 0.0
    %8035 = vmatpush1.msra.mxu0 %v8010
    %8036 = vmatprep.subr.mxu0 0.0
    %8037 = vmatpush1.msra.mxu0 %v8011
    %8038 = vmatprep.subr.mxu0 0.0
    %8039 = vmatpush1.msra.mxu0 %v8012
    %8040 = vmatprep.subr.mxu0 0.0
    %8041 = vmatpush1.msra.mxu0 %v8013
    %8042 = vmatprep.subr.mxu0 0.0
    %8043 = vmatpush1.msra.mxu0 %v8014
    %8044 = vmatprep.subr.mxu0 0.0
    %8045 = vmatpush1.msra.mxu0 %v8015
    %8046 = vmatprep.subr.mxu0 0.0
    %8047 = vmatpush1.msra.mxu0 0.0
    %8048 = vmatprep.subr.mxu0 0.0
    %8049 = vmatpush1.msra.mxu0 0.0
    %8050 = vmatprep.subr.mxu0 0.0
    %8051 = vmatpush1.msra.mxu0 0.0
    %8052 = vmatprep.subr.mxu0 0.0
    %8053 = vmatpush1.msra.mxu0 0.0
    %8054 = vmatprep.subr.mxu0 0.0
    %8055 = vmatpush1.msra.mxu0 0.0
    %8056 = vmatprep.subr.mxu0 0.0
    %8057 = vmatpush1.msra.mxu0 0.0
    %8058 = vmatprep.subr.mxu0 0.0
    %8059 = vmatpush1.msra.mxu0 0.0
    %8060 = vmatprep.subr.mxu0 0.0
    %8061 = vmatpush1.msra.mxu0 0.0
    %8062 = vmatprep.subr.mxu0 0.0
    %8063 = vmatpush1.msra.mxu0 0.0
    %8064 = vmatprep.subr.mxu0 0.0
    %8065 = vmatpush1.msra.mxu0 0.0
    %8066 = vmatprep.subr.mxu0 0.0
    %8067 = vmatpush1.msra.mxu0 0.0
    %8068 = vmatprep.subr.mxu0 0.0
    %8069 = vmatpush1.msra.mxu0 0.0
    %8070 = vmatprep.subr.mxu0 0.0
    %8071 = vmatpush1.msra.mxu0 0.0
    %8072 = vmatprep.subr.mxu0 0.0
    %8073 = vmatpush1.msra.mxu0 0.0
    %8074 = vmatprep.subr.mxu0 0.0
    %8075 = vmatpush1.msra.mxu0 0.0
    %8076 = vmatprep.subr.mxu0 0.0
    %8077 = vmatpush1.msra.mxu0 0.0
    %8078 = vmatprep.subr.mxu0 0.0
    %8079 = vmatpush1.msra.mxu0 0.0
    %8080 = vmatprep.subr.mxu0 0.0
    %8081 = vmatpush1.msra.mxu0 0.0
    %8082 = vmatprep.subr.mxu0 0.0
    %8083 = vmatpush1.msra.mxu0 0.0
    %8084 = vmatprep.subr.mxu0 0.0
    %8085 = vmatpush1.msra.mxu0 0.0
    %8086 = vmatprep.subr.mxu0 0.0
    %8087 = vmatpush1.msra.mxu0 0.0
    %8088 = vmatprep.subr.mxu0 0.0
    %8089 = vmatpush1.msra.mxu0 0.0
    %8090 = vmatprep.mubr.f32.mxu0 0.0
    %8091 = vmatmul.mubr.f32.gmra.mrb[0].mxu0 %v8024
    %v8092 = vpop.f32.mrb[0].mxu0
    %v8093 = vadd.f32 %v8021, %v8092
    %v8094 = vpop.f32.mrb[0].mxu0
    %8095 = vdwg.mxu0
    %v8096 = vand.u32 2147483647, %v8093
    %vm8097 = vcmp.le.f32.partialorder %v8096, 0.7853982
    %vm8098 = vcmp.lt.s32.totalorder %v8093, 0
    %v8099 = vand.u32 %v8093, 2139095040
    %v8100 = vshrl.u32 %v8099, 23
    %v8101 = vsub.s32 %v8100, 127
    %v8102 = vand.u32 2147483647, %v8093
    %v8103 = vand.u32 %v8102, 8388607
    %v8104 = vor.u32 %v8103, 8388608
    %v8105 = vsub.s32 0, %v8104
    %v8106 = vadd.s32 %v8101, 1
    %vm8107 = vcmp.gt.s32.totalorder %v8106, 0
    %v8108 = vsel %vm8107, %v8106, 0
    %v8109 = vshrl.u32 %v8108, 5
    %v8110 = vand.u32 %v8108, 31
    %v8111 = vsub.s32 32, %v8110
    %v8112 = vshrl.u32 683565275, %v8111
    %v8113 = vshll.u32 683565275, %v8110
    %v8114 = vshrl.u32 2475754826, %v8111
    %v8115 = vor.u32 %v8113, %v8114
    %v8116 = vshll.u32 2475754826, %v8110
    %v8117 = vshrl.u32 2131351028, %v8111
    %v8118 = vor.u32 %v8116, %v8117
    %v8119 = vshll.u32 2131351028, %v8110
    %v8120 = vshrl.u32 2102212464, %v8111
    %v8121 = vor.u32 %v8119, %v8120
    %v8122 = vshll.u32 2102212464, %v8110
    %v8123 = vshrl.u32 920167782, %v8111
    %v8124 = vor.u32 %v8122, %v8123
    %v8125 = vshll.u32 920167782, %v8110
    %v8126 = vshrl.u32 1326507024, %v8111
    %v8127 = vor.u32 %v8125, %v8126
    %vm8128 = vcmp.lt.s32.totalorder %v8109, 1
    %vm8129 = vcmp.lt.s32.totalorder %v8109, 2
    %vm8130 = vcmp.lt.s32.totalorder %v8109, 3
    %vm8131 = vcmp.lt.s32.totalorder %v8109, 4
    %v8132 = vsel %vm8128, %v8112, %v8115
    %v8133 = vsel %vm8131, %v8121, 2102212464
    %v8134 = vsel %vm8130, %v8118, %v8133
    %v8135 = vsel %vm8129, %v8132, %v8134
    %v8136 = vsel %vm8128, %v8115, %v8118
    %v8137 = vsel %vm8131, %v8124, 920167782
    %v8138 = vsel %vm8130, %v8121, %v8137
    %v8139 = vsel %vm8129, %v8136, %v8138
    %v8140 = vsel %vm8128, %v8118, %v8121
    %v8141 = vsel %vm8131, %v8127, 1326507024
    %v8142 = vsel %vm8130, %v8124, %v8141
    %v8143 = vsel %vm8129, %v8140, %v8142
    %v8144 = vshll.u32 %v8104, 8
    %v8145 = vmul.u32.u64.compose %v8144, %v8143
    %v8146 = vextract.low.u32 %v8145
    %v8147 = vextract.high.u32 %v8145
    %v8148 = vmul.u32.u64.compose %v8144, %v8139
    %v8149 = vextract.low.u32 %v8148
    %v8150 = vextract.high.u32 %v8148
    %v8151 = vmul.u32 %v8144, %v8135
    %v8152 = vadd.s32 %v8147, %v8149
    %vm8153 = vc.u32 %v8147, %v8149
    %v8154 = vadd.s32 %v8150, 1
    %v8155 = vsel %vm8153, %v8154, %v8150
    %v8156 = vadd.s32 %v8151, %v8155
    %v8157 = vadd.s32 %v8156, 536870912
    %v8158 = vshrl.u32 %v8157, 30
    %v8159 = vshll.u32 %v8158, 30
    %v8160 = vsub.s32 %v8156, %v8159
    %vm8161 = vcmp.lt.s32.totalorder %v8160, 0
    %v8162 = vsub.s32 0, %v8160
    %v8163 = vsel %vm8161, %v8162, %v8160
    %v8164 = vclz %v8163
    %v8165 = vsub.s32 %v8164, 2
    %vm8166 = vcmp.gt.s32.totalorder 0, %v8165
    %v8167 = vsel %vm8166, 0, %v8165
    %v8168 = vsub.s32 32, %v8167
    %v8169 = vshll.u32 %v8160, %v8167
    %v8170 = vshrl.u32 %v8152, %v8168
    %v8171 = vor.u32 %v8169, %v8170
    %v8172 = vsub.s32 4294967266, %v8167
    %v8173 = vadd.s32 %v8172, 127
    %v8174 = vshll.u32 %v8173, 23
    %v8175 = vor.u32 4788187, %v8174
    %v8176 = vand.u32 2147483647, %v8175
    %v8178 = vcvt.s32.f32 %v8171
    %v8179 = vmul.f32 %v8178, %v8176
    %v8180 = vxor.u32 %v8179, 2147483648
    %v8181 = vsel %vm8098, %v8180, %v8179
    %v8182 = vsub.s32 4, %v8158
    %v8183 = vsel %vm8098, %v8182, %v8158
    %v8184 = vsel %vm8097, %v8093, %v8181
    %v8185 = vsel %vm8097, 0, %v8183
    %v8186 = vcosq.f32.pop %v8184
    %v8187 = vsinq.f32.pop %v8184
    %vm8188 = vweird.f32 %v8093
    %v8189 = vadd.s32 %v8185, 3
    %v8190 = vand.u32 %v8189, 3
    %vm8191 = vcmp.lt.s32.totalorder %v8190, 2
    %vm8192 = vcmp.eq.s32.totalorder %v8190, 0
    %v8193 = vxor.u32 %v8187, 2147483648
    %v8194 = vsel %vm8192, %v8186, %v8193
    %vm8195 = vcmp.eq.s32.totalorder %v8190, 2
    %v8196 = vxor.u32 %v8186, 2147483648
    %v8197 = vsel %vm8195, %v8196, %v8187
    %v8198 = vsel %vm8191, %v8194, %v8197
    %v8199 = vsel %vm8188, nan, %v8198
    %v8200 = vld [vmem:[%s57] sm:$0xff]
    %v8201 = vld [vmem:[%s57 + $0x8] sm:$0xff]
    %v8202 = vld [vmem:[%s57 + $0x10] sm:$0xff]
    %v8203 = vld [vmem:[%s57 + $0x18] sm:$0xff]
    %v8204 = vld [vmem:[%s57 + $0x20] sm:$0xff]
    %v8205 = vld [vmem:[%s57 + $0x28] sm:$0xff]
    %v8206 = vld [vmem:[%s57 + $0x30] sm:$0xff]
    %v8207 = vld [vmem:[%s57 + $0x38] sm:$0xff]
    %v8208 = vld [vmem:[%s57 + $0x40] sm:$0xff]
    %v8209 = vld [vmem:[%s57 + $0x48] sm:$0xff]
    %v8210 = vld [vmem:[%s59] sm:$0x1]
    %v8212 = vlaneseq
    %v8213 = vshrl.u32 %v8212, 7
    %v8214 = vsub.s32 0, %v8213
    %v8215 = vrot.slane %v8210, %v8214
    %v8218 = vsel %vm4772, %v8199, 0
    %8220 = vmatprep.subr.mxu0 0.0
    %8221 = vmatpush1.msra.mxu0 %v8200
    %8222 = vmatprep.subr.mxu0 0.0
    %8223 = vmatpush1.msra.mxu0 %v8201
    %8224 = vmatprep.subr.mxu0 0.0
    %8225 = vmatpush1.msra.mxu0 %v8202
    %8226 = vmatprep.subr.mxu0 0.0
    %8227 = vmatpush1.msra.mxu0 %v8203
    %8228 = vmatprep.subr.mxu0 0.0
    %8229 = vmatpush1.msra.mxu0 %v8204
    %8230 = vmatprep.subr.mxu0 0.0
    %8231 = vmatpush1.msra.mxu0 %v8205
    %8232 = vmatprep.subr.mxu0 0.0
    %8233 = vmatpush1.msra.mxu0 %v8206
    %8234 = vmatprep.subr.mxu0 0.0
    %8235 = vmatpush1.msra.mxu0 %v8207
    %8236 = vmatprep.subr.mxu0 0.0
    %8237 = vmatpush1.msra.mxu0 %v8208
    %8238 = vmatprep.subr.mxu0 0.0
    %8239 = vmatpush1.msra.mxu0 %v8209
    %8240 = vmatprep.subr.mxu0 0.0
    %8241 = vmatpush1.msra.mxu0 0.0
    %8242 = vmatprep.subr.mxu0 0.0
    %8243 = vmatpush1.msra.mxu0 0.0
    %8244 = vmatprep.subr.mxu0 0.0
    %8245 = vmatpush1.msra.mxu0 0.0
    %8246 = vmatprep.subr.mxu0 0.0
    %8247 = vmatpush1.msra.mxu0 0.0
    %8248 = vmatprep.subr.mxu0 0.0
    %8249 = vmatpush1.msra.mxu0 0.0
    %8250 = vmatprep.subr.mxu0 0.0
    %8251 = vmatpush1.msra.mxu0 0.0
    %8252 = vmatprep.subr.mxu0 0.0
    %8253 = vmatpush1.msra.mxu0 0.0
    %8254 = vmatprep.subr.mxu0 0.0
    %8255 = vmatpush1.msra.mxu0 0.0
    %8256 = vmatprep.subr.mxu0 0.0
    %8257 = vmatpush1.msra.mxu0 0.0
    %8258 = vmatprep.subr.mxu0 0.0
    %8259 = vmatpush1.msra.mxu0 0.0
    %8260 = vmatprep.subr.mxu0 0.0
    %8261 = vmatpush1.msra.mxu0 0.0
    %8262 = vmatprep.subr.mxu0 0.0
    %8263 = vmatpush1.msra.mxu0 0.0
    %8264 = vmatprep.subr.mxu0 0.0
    %8265 = vmatpush1.msra.mxu0 0.0
    %8266 = vmatprep.subr.mxu0 0.0
    %8267 = vmatpush1.msra.mxu0 0.0
    %8268 = vmatprep.subr.mxu0 0.0
    %8269 = vmatpush1.msra.mxu0 0.0
    %8270 = vmatprep.subr.mxu0 0.0
    %8271 = vmatpush1.msra.mxu0 0.0
    %8272 = vmatprep.subr.mxu0 0.0
    %8273 = vmatpush1.msra.mxu0 0.0
    %8274 = vmatprep.subr.mxu0 0.0
    %8275 = vmatpush1.msra.mxu0 0.0
    %8276 = vmatprep.subr.mxu0 0.0
    %8277 = vmatpush1.msra.mxu0 0.0
    %8278 = vmatprep.subr.mxu0 0.0
    %8279 = vmatpush1.msra.mxu0 0.0
    %8280 = vmatprep.subr.mxu0 0.0
    %8281 = vmatpush1.msra.mxu0 0.0
    %8282 = vmatprep.subr.mxu0 0.0
    %8283 = vmatpush1.msra.mxu0 0.0
    %8284 = vmatprep.mubr.f32.mxu0 0.0
    %8285 = vmatmul.mubr.f32.gmra.mrb[0].mxu0 %v8218
    %v8286 = vpop.f32.mrb[0].mxu0
    %v8287 = vadd.f32 %v8215, %v8286
    %v8288 = vpop.f32.mrb[0].mxu0
    %8289 = vdwg.mxu0
    %v8290 = vld [vmem:[%s61] sm:$0xff]
    %v8291 = vld [vmem:[%s61 + $0x8] sm:$0xff]
    %v8292 = vld [vmem:[%s61 + $0x10] sm:$0xff]
    %v8293 = vld [vmem:[%s61 + $0x18] sm:$0xff]
    %v8294 = vld [vmem:[%s61 + $0x20] sm:$0xff]
    %v8295 = vld [vmem:[%s61 + $0x28] sm:$0xff]
    %v8296 = vld [vmem:[%s61 + $0x30] sm:$0xff]
    %v8297 = vld [vmem:[%s61 + $0x38] sm:$0xff]
    %v8298 = vld [vmem:[%s61 + $0x40] sm:$0xff]
    %v8299 = vld [vmem:[%s61 + $0x48] sm:$0xff]
    %v8300 = vld [vmem:[%s61 + $0x50] sm:$0xff]
    %v8301 = vld [vmem:[%s61 + $0x58] sm:$0xff]
    %v8302 = vld [vmem:[%s61 + $0x60] sm:$0xff]
    %v8303 = vld [vmem:[%s61 + $0x68] sm:$0xff]
    %v8304 = vld [vmem:[%s61 + $0x70] sm:$0xff]
    %v8305 = vld [vmem:[%s61 + $0x78] sm:$0xff]
    %v8306 = vld [vmem:[%s61 + $0x80] sm:$0xff]
    %v8307 = vld [vmem:[%s61 + $0x88] sm:$0xff]
    %v8308 = vld [vmem:[%s61 + $0x90] sm:$0xff]
    %v8309 = vld [vmem:[%s61 + $0x98] sm:$0xff]
    %v8310 = vld [vmem:[%s63] sm:$0xff]
    %v8311 = vld [vmem:[%s63 + $0x8] sm:$0xff]
    %v8312 = vld [vmem:[%s63 + $0x10] sm:$0xff]
    %v8313 = vld [vmem:[%s63 + $0x18] sm:$0xff]
    %v8314 = vld [vmem:[%s63 + $0x20] sm:$0xff]
    %v8315 = vld [vmem:[%s63 + $0x28] sm:$0xff]
    %v8316 = vld [vmem:[%s63 + $0x30] sm:$0xff]
    %v8317 = vld [vmem:[%s63 + $0x38] sm:$0xff]
    %v8318 = vld [vmem:[%s63 + $0x40] sm:$0xff]
    %v8319 = vld [vmem:[%s63 + $0x48] sm:$0xff]
    %v8320 = vld [vmem:[%s63 + $0x50] sm:$0xff]
    %v8321 = vld [vmem:[%s63 + $0x58] sm:$0xff]
    %v8322 = vld [vmem:[%s63 + $0x60] sm:$0xff]
    %v8323 = vld [vmem:[%s63 + $0x68] sm:$0xff]
    %v8324 = vld [vmem:[%s63 + $0x70] sm:$0xff]
    %v8325 = vld [vmem:[%s63 + $0x78] sm:$0xff]
    %v8326 = vld [vmem:[%s63 + $0x80] sm:$0xff]
    %v8327 = vld [vmem:[%s63 + $0x88] sm:$0xff]
    %v8328 = vld [vmem:[%s63 + $0x90] sm:$0xff]
    %v8329 = vld [vmem:[%s63 + $0x98] sm:$0xff]
    %v8330 = vld [vmem:[%s65] sm:$0x3]
    %v8332 = vsel %vm4772, %v4843, 0
    %8334 = vmatprep.subr.mxu0 %v8311
    %8335 = vmatpush1.msra.mxu0 %v8310
    %8336 = vmatprep.subr.mxu0 %v8313
    %8337 = vmatpush1.msra.mxu0 %v8312
    %8338 = vmatprep.subr.mxu0 %v8315
    %8339 = vmatpush1.msra.mxu0 %v8314
    %8340 = vmatprep.subr.mxu0 %v8317
    %8341 = vmatpush1.msra.mxu0 %v8316
    %8342 = vmatprep.subr.mxu0 %v8319
    %8343 = vmatpush1.msra.mxu0 %v8318
    %8344 = vmatprep.subr.mxu0 %v8321
    %8345 = vmatpush1.msra.mxu0 %v8320
    %8346 = vmatprep.subr.mxu0 %v8323
    %8347 = vmatpush1.msra.mxu0 %v8322
    %8348 = vmatprep.subr.mxu0 %v8325
    %8349 = vmatpush1.msra.mxu0 %v8324
    %8350 = vmatprep.subr.mxu0 %v8327
    %8351 = vmatpush1.msra.mxu0 %v8326
    %8352 = vmatprep.subr.mxu0 %v8329
    %8353 = vmatpush1.msra.mxu0 %v8328
    %8354 = vmatprep.subr.mxu0 0.0
    %8355 = vmatpush1.msra.mxu0 0.0
    %8356 = vmatprep.subr.mxu0 0.0
    %8357 = vmatpush1.msra.mxu0 0.0
    %8358 = vmatprep.subr.mxu0 0.0
    %8359 = vmatpush1.msra.mxu0 0.0
    %8360 = vmatprep.subr.mxu0 0.0
    %8361 = vmatpush1.msra.mxu0 0.0
    %8362 = vmatprep.subr.mxu0 0.0
    %8363 = vmatpush1.msra.mxu0 0.0
    %8364 = vmatprep.subr.mxu0 0.0
    %8365 = vmatpush1.msra.mxu0 0.0
    %8366 = vmatprep.subr.mxu0 0.0
    %8367 = vmatpush1.msra.mxu0 0.0
    %8368 = vmatprep.subr.mxu0 0.0
    %8369 = vmatpush1.msra.mxu0 0.0
    %8370 = vmatprep.subr.mxu0 0.0
    %8371 = vmatpush1.msra.mxu0 0.0
    %8372 = vmatprep.subr.mxu0 0.0
    %8373 = vmatpush1.msra.mxu0 0.0
    %8374 = vmatprep.subr.mxu0 0.0
    %8375 = vmatpush1.msra.mxu0 0.0
    %8376 = vmatprep.subr.mxu0 0.0
    %8377 = vmatpush1.msra.mxu0 0.0
    %8378 = vmatprep.subr.mxu0 0.0
    %8379 = vmatpush1.msra.mxu0 0.0
    %8380 = vmatprep.subr.mxu0 0.0
    %8381 = vmatpush1.msra.mxu0 0.0
    %8382 = vmatprep.subr.mxu0 0.0
    %8383 = vmatpush1.msra.mxu0 0.0
    %8384 = vmatprep.subr.mxu0 0.0
    %8385 = vmatpush1.msra.mxu0 0.0
    %8386 = vmatprep.subr.mxu0 0.0
    %8387 = vmatpush1.msra.mxu0 0.0
    %8388 = vmatprep.subr.mxu0 0.0
    %8389 = vmatpush1.msra.mxu0 0.0
    %8390 = vmatprep.subr.mxu0 0.0
    %8391 = vmatpush1.msra.mxu0 0.0
    %8392 = vmatprep.subr.mxu0 0.0
    %8393 = vmatpush1.msra.mxu0 0.0
    %8394 = vmatprep.subr.mxu0 0.0
    %8395 = vmatpush1.msra.mxu0 0.0
    %8396 = vmatprep.subr.mxu0 0.0
    %8397 = vmatpush1.msra.mxu0 0.0
    %8398 = vmatprep.mubr.f32.mxu0 0.0
    %8399 = vmatmul.mubr.f32.gmra.mrb[0].mxu0 %v8332
    %v8400 = vpop.f32.mrb[0].mxu0
    %v8401 = vadd.f32 0.0, %v8400
    %v8402 = vpop.f32.mrb[0].mxu0
    %v8403 = vadd.f32 0.0, %v8402
    %8404 = vdwg.mxu0
    %v8406 = vsel %vm4772, %v7812, 0
    %8408 = vmatprep.subr.mxu0 %v8291
    %8409 = vmatpush1.msra.mxu0 %v8290
    %8410 = vmatprep.subr.mxu0 %v8293
    %8411 = vmatpush1.msra.mxu0 %v8292
    %8412 = vmatprep.subr.mxu0 %v8295
    %8413 = vmatpush1.msra.mxu0 %v8294
    %8414 = vmatprep.subr.mxu0 %v8297
    %8415 = vmatpush1.msra.mxu0 %v8296
    %8416 = vmatprep.subr.mxu0 %v8299
    %8417 = vmatpush1.msra.mxu0 %v8298
    %8418 = vmatprep.subr.mxu0 %v8301
    %8419 = vmatpush1.msra.mxu0 %v8300
    %8420 = vmatprep.subr.mxu0 %v8303
    %8421 = vmatpush1.msra.mxu0 %v8302
    %8422 = vmatprep.subr.mxu0 %v8305
    %8423 = vmatpush1.msra.mxu0 %v8304
    %8424 = vmatprep.subr.mxu0 %v8307
    %8425 = vmatpush1.msra.mxu0 %v8306
    %8426 = vmatprep.subr.mxu0 %v8309
    %8427 = vmatpush1.msra.mxu0 %v8308
    %8428 = vmatprep.subr.mxu0 0.0
    %8429 = vmatpush1.msra.mxu0 0.0
    %8430 = vmatprep.subr.mxu0 0.0
    %8431 = vmatpush1.msra.mxu0 0.0
    %8432 = vmatprep.subr.mxu0 0.0
    %8433 = vmatpush1.msra.mxu0 0.0
    %8434 = vmatprep.subr.mxu0 0.0
    %8435 = vmatpush1.msra.mxu0 0.0
    %8436 = vmatprep.subr.mxu0 0.0
    %8437 = vmatpush1.msra.mxu0 0.0
    %8438 = vmatprep.subr.mxu0 0.0
    %8439 = vmatpush1.msra.mxu0 0.0
    %8440 = vmatprep.subr.mxu0 0.0
    %8441 = vmatpush1.msra.mxu0 0.0
    %8442 = vmatprep.subr.mxu0 0.0
    %8443 = vmatpush1.msra.mxu0 0.0
    %8444 = vmatprep.subr.mxu0 0.0
    %8445 = vmatpush1.msra.mxu0 0.0
    %8446 = vmatprep.subr.mxu0 0.0
    %8447 = vmatpush1.msra.mxu0 0.0
    %8448 = vmatprep.subr.mxu0 0.0
    %8449 = vmatpush1.msra.mxu0 0.0
    %8450 = vmatprep.subr.mxu0 0.0
    %8451 = vmatpush1.msra.mxu0 0.0
    %8452 = vmatprep.subr.mxu0 0.0
    %8453 = vmatpush1.msra.mxu0 0.0
    %8454 = vmatprep.subr.mxu0 0.0
    %8455 = vmatpush1.msra.mxu0 0.0
    %8456 = vmatprep.subr.mxu0 0.0
    %8457 = vmatpush1.msra.mxu0 0.0
    %8458 = vmatprep.subr.mxu0 0.0
    %8459 = vmatpush1.msra.mxu0 0.0
    %8460 = vmatprep.subr.mxu0 0.0
    %8461 = vmatpush1.msra.mxu0 0.0
    %8462 = vmatprep.subr.mxu0 0.0
    %8463 = vmatpush1.msra.mxu0 0.0
    %8464 = vmatprep.subr.mxu0 0.0
    %8465 = vmatpush1.msra.mxu0 0.0
    %8466 = vmatprep.subr.mxu0 0.0
    %8467 = vmatpush1.msra.mxu0 0.0
    %8468 = vmatprep.subr.mxu0 0.0
    %8469 = vmatpush1.msra.mxu0 0.0
    %8470 = vmatprep.subr.mxu0 0.0
    %8471 = vmatpush1.msra.mxu0 0.0
    %8472 = vmatprep.mubr.f32.mxu0 0.0
    %8473 = vmatmul.mubr.f32.gmra.mrb[0].mxu0 %v8406
    %v8474 = vpop.f32.mrb[0].mxu0
    %v8475 = vadd.f32 %v8401, %v8474
    %v8476 = vpop.f32.mrb[0].mxu0
    %v8477 = vadd.f32 %v8403, %v8476
    %8478 = vdwg.mxu0
    %v8480 = vlaneseq
    %v8481 = vshrl.u32 %v8480, 7
    %v8482 = vsub.s32 0, %v8481
    %v8483 = vrot.slane %v8330, %v8482
    %v8484 = vlaneseq
    %v8485 = vshrl.u32 %v8484, 7
    %v8486 = vsub.s32 1, %v8485
    %v8487 = vrot.slane %v8330, %v8486
    %v8490 = vadd.f32 %v8475, %v8483
    %v8491 = vadd.f32 %v8477, %v8487
    %v8492 = vld [vmem:[%s67] sm:$0xff]
    %v8493 = vld [vmem:[%s67 + $0x8] sm:$0xff]
    %v8494 = vld [vmem:[%s67 + $0x10] sm:$0xff]
    %v8495 = vld [vmem:[%s67 + $0x18] sm:$0xff]
    %v8496 = vld [vmem:[%s67 + $0x20] sm:$0xff]
    %v8497 = vld [vmem:[%s67 + $0x28] sm:$0xff]
    %v8498 = vld [vmem:[%s67 + $0x30] sm:$0xff]
    %v8499 = vld [vmem:[%s67 + $0x38] sm:$0xff]
    %v8500 = vld [vmem:[%s67 + $0x40] sm:$0xff]
    %v8501 = vld [vmem:[%s67 + $0x48] sm:$0xff]
    %v8502 = vld [vmem:[%s67 + $0x50] sm:$0xff]
    %v8503 = vld [vmem:[%s67 + $0x58] sm:$0xff]
    %v8504 = vld [vmem:[%s67 + $0x60] sm:$0xff]
    %v8505 = vld [vmem:[%s67 + $0x68] sm:$0xff]
    %v8506 = vld [vmem:[%s67 + $0x70] sm:$0xff]
    %v8507 = vld [vmem:[%s67 + $0x78] sm:$0xff]
    %v8508 = vld [vmem:[%s67 + $0x80] sm:$0xff]
    %v8509 = vld [vmem:[%s67 + $0x88] sm:$0xff]
    %v8510 = vld [vmem:[%s67 + $0x90] sm:$0xff]
    %v8511 = vld [vmem:[%s67 + $0x98] sm:$0xff]
    %v8512 = vld [vmem:[%s67 + $0xa0] sm:$0xff]
    %v8513 = vld [vmem:[%s67 + $0xa8] sm:$0xff]
    %v8514 = vld [vmem:[%s67 + $0xb0] sm:$0xff]
    %v8515 = vld [vmem:[%s67 + $0xb8] sm:$0xff]
    %v8516 = vld [vmem:[%s67 + $0xc0] sm:$0xff]
    %v8517 = vld [vmem:[%s69] sm:$0x1]
    %v8519 = vlaneseq
    %v8520 = vshrl.u32 %v8519, 7
    %v8521 = vsub.s32 0, %v8520
    %v8522 = vrot.slane %v8517, %v8521
    %v8525 = vsel %vm7553, %v8491, 0
    %8527 = vmatprep.subr.mxu0 0.0
    %8528 = vmatpush1.msra.mxu0 %v8492
    %8529 = vmatprep.subr.mxu0 0.0
    %8530 = vmatpush1.msra.mxu0 %v8493
    %8531 = vmatprep.subr.mxu0 0.0
    %8532 = vmatpush1.msra.mxu0 %v8494
    %8533 = vmatprep.subr.mxu0 0.0
    %8534 = vmatpush1.msra.mxu0 %v8495
    %8535 = vmatprep.subr.mxu0 0.0
    %8536 = vmatpush1.msra.mxu0 %v8496
    %8537 = vmatprep.subr.mxu0 0.0
    %8538 = vmatpush1.msra.mxu0 %v8497
    %8539 = vmatprep.subr.mxu0 0.0
    %8540 = vmatpush1.msra.mxu0 %v8498
    %8541 = vmatprep.subr.mxu0 0.0
    %8542 = vmatpush1.msra.mxu0 %v8499
    %8543 = vmatprep.subr.mxu0 0.0
    %8544 = vmatpush1.msra.mxu0 %v8500
    %8545 = vmatprep.subr.mxu0 0.0
    %8546 = vmatpush1.msra.mxu0 %v8501
    %8547 = vmatprep.subr.mxu0 0.0
    %8548 = vmatpush1.msra.mxu0 %v8502
    %8549 = vmatprep.subr.mxu0 0.0
    %8550 = vmatpush1.msra.mxu0 %v8503
    %8551 = vmatprep.subr.mxu0 0.0
    %8552 = vmatpush1.msra.mxu0 %v8504
    %8553 = vmatprep.subr.mxu0 0.0
    %8554 = vmatpush1.msra.mxu0 %v8505
    %8555 = vmatprep.subr.mxu0 0.0
    %8556 = vmatpush1.msra.mxu0 %v8506
    %8557 = vmatprep.subr.mxu0 0.0
    %8558 = vmatpush1.msra.mxu0 %v8507
    %8559 = vmatprep.subr.mxu0 0.0
    %8560 = vmatpush1.msra.mxu0 %v8508
    %8561 = vmatprep.subr.mxu0 0.0
    %8562 = vmatpush1.msra.mxu0 %v8509
    %8563 = vmatprep.subr.mxu0 0.0
    %8564 = vmatpush1.msra.mxu0 %v8510
    %8565 = vmatprep.subr.mxu0 0.0
    %8566 = vmatpush1.msra.mxu0 %v8511
    %8567 = vmatprep.subr.mxu0 0.0
    %8568 = vmatpush1.msra.mxu0 %v8512
    %8569 = vmatprep.subr.mxu0 0.0
    %8570 = vmatpush1.msra.mxu0 %v8513
    %8571 = vmatprep.subr.mxu0 0.0
    %8572 = vmatpush1.msra.mxu0 %v8514
    %8573 = vmatprep.subr.mxu0 0.0
    %8574 = vmatpush1.msra.mxu0 %v8515
    %8575 = vmatprep.subr.mxu0 0.0
    %8576 = vmatpush1.msra.mxu0 %v8516
    %8577 = vmatprep.subr.mxu0 0.0
    %8578 = vmatpush1.msra.mxu0 0.0
    %8579 = vmatprep.subr.mxu0 0.0
    %8580 = vmatpush1.msra.mxu0 0.0
    %8581 = vmatprep.subr.mxu0 0.0
    %8582 = vmatpush1.msra.mxu0 0.0
    %8583 = vmatprep.subr.mxu0 0.0
    %8584 = vmatpush1.msra.mxu0 0.0
    %8585 = vmatprep.subr.mxu0 0.0
    %8586 = vmatpush1.msra.mxu0 0.0
    %8587 = vmatprep.subr.mxu0 0.0
    %8588 = vmatpush1.msra.mxu0 0.0
    %8589 = vmatprep.subr.mxu0 0.0
    %8590 = vmatpush1.msra.mxu0 0.0
    %8591 = vmatprep.mubr.f32.mxu0 %v8525
    %8592 = vmatmul.mubr.f32.gmra.mrb[0].mxu0 %v8490
    %v8593 = vpop.f32.mrb[0].mxu0
    %v8594 = vadd.f32 %v8522, %v8593
    %v8595 = vpop.f32.mrb[0].mxu0
    %8596 = vdwg.mxu0
    %v8597 = vtanh.pop %v8594
    %v8598 = vld [vmem:[%s71] sm:$0xff]
    %v8599 = vld [vmem:[%s71 + $0x8] sm:$0xff]
    %v8600 = vld [vmem:[%s71 + $0x10] sm:$0xff]
    %v8601 = vld [vmem:[%s71 + $0x18] sm:$0xff]
    %v8602 = vld [vmem:[%s71 + $0x20] sm:$0xff]
    %v8603 = vld [vmem:[%s71 + $0x28] sm:$0xff]
    %v8604 = vld [vmem:[%s71 + $0x30] sm:$0xff]
    %v8605 = vld [vmem:[%s71 + $0x38] sm:$0xff]
    %v8606 = vld [vmem:[%s71 + $0x40] sm:$0xff]
    %v8607 = vld [vmem:[%s71 + $0x48] sm:$0xff]
    %v8608 = vld [vmem:[%s71 + $0x50] sm:$0xff]
    %v8609 = vld [vmem:[%s71 + $0x58] sm:$0xff]
    %v8610 = vld [vmem:[%s71 + $0x60] sm:$0xf]
    %v8611 = vld [vmem:[%s73] sm:$0x1]
    %v8613 = vlaneseq
    %v8614 = vshrl.u32 %v8613, 7
    %v8615 = vsub.s32 0, %v8614
    %v8616 = vrot.slane %v8611, %v8615
    %v8619 = vsel %vm4677, %v8597, 0
    %v8622 = vsel %vm4442, %v8610, 0
    %8624 = vmatprep.subr.mxu0 0.0
    %8625 = vmatpush1.msra.mxu0 %v8598
    %8626 = vmatprep.subr.mxu0 0.0
    %8627 = vmatpush1.msra.mxu0 %v8599
    %8628 = vmatprep.subr.mxu0 0.0
    %8629 = vmatpush1.msra.mxu0 %v8600
    %8630 = vmatprep.subr.mxu0 0.0
    %8631 = vmatpush1.msra.mxu0 %v8601
    %8632 = vmatprep.subr.mxu0 0.0
    %8633 = vmatpush1.msra.mxu0 %v8602
    %8634 = vmatprep.subr.mxu0 0.0
    %8635 = vmatpush1.msra.mxu0 %v8603
    %8636 = vmatprep.subr.mxu0 0.0
    %8637 = vmatpush1.msra.mxu0 %v8604
    %8638 = vmatprep.subr.mxu0 0.0
    %8639 = vmatpush1.msra.mxu0 %v8605
    %8640 = vmatprep.subr.mxu0 0.0
    %8641 = vmatpush1.msra.mxu0 %v8606
    %8642 = vmatprep.subr.mxu0 0.0
    %8643 = vmatpush1.msra.mxu0 %v8607
    %8644 = vmatprep.subr.mxu0 0.0
    %8645 = vmatpush1.msra.mxu0 %v8608
    %8646 = vmatprep.subr.mxu0 0.0
    %8647 = vmatpush1.msra.mxu0 %v8609
    %8648 = vmatprep.subr.mxu0 0.0
    %8649 = vmatpush1.msra.mxu0 %v8622
    %8650 = vmatprep.subr.mxu0 0.0
    %8651 = vmatpush1.msra.mxu0 0.0
    %8652 = vmatprep.subr.mxu0 0.0
    %8653 = vmatpush1.msra.mxu0 0.0
    %8654 = vmatprep.subr.mxu0 0.0
    %8655 = vmatpush1.msra.mxu0 0.0
    %8656 = vmatprep.subr.mxu0 0.0
    %8657 = vmatpush1.msra.mxu0 0.0
    %8658 = vmatprep.subr.mxu0 0.0
    %8659 = vmatpush1.msra.mxu0 0.0
    %8660 = vmatprep.subr.mxu0 0.0
    %8661 = vmatpush1.msra.mxu0 0.0
    %8662 = vmatprep.subr.mxu0 0.0
    %8663 = vmatpush1.msra.mxu0 0.0
    %8664 = vmatprep.subr.mxu0 0.0
    %8665 = vmatpush1.msra.mxu0 0.0
    %8666 = vmatprep.subr.mxu0 0.0
    %8667 = vmatpush1.msra.mxu0 0.0
    %8668 = vmatprep.subr.mxu0 0.0
    %8669 = vmatpush1.msra.mxu0 0.0
    %8670 = vmatprep.subr.mxu0 0.0
    %8671 = vmatpush1.msra.mxu0 0.0
    %8672 = vmatprep.subr.mxu0 0.0
    %8673 = vmatpush1.msra.mxu0 0.0
    %8674 = vmatprep.subr.mxu0 0.0
    %8675 = vmatpush1.msra.mxu0 0.0
    %8676 = vmatprep.subr.mxu0 0.0
    %8677 = vmatpush1.msra.mxu0 0.0
    %8678 = vmatprep.subr.mxu0 0.0
    %8679 = vmatpush1.msra.mxu0 0.0
    %8680 = vmatprep.subr.mxu0 0.0
    %8681 = vmatpush1.msra.mxu0 0.0
    %8682 = vmatprep.subr.mxu0 0.0
    %8683 = vmatpush1.msra.mxu0 0.0
    %8684 = vmatprep.subr.mxu0 0.0
    %8685 = vmatpush1.msra.mxu0 0.0
    %8686 = vmatprep.subr.mxu0 0.0
    %8687 = vmatpush1.msra.mxu0 0.0
    %8688 = vmatprep.mubr.f32.mxu0 0.0
    %8689 = vmatmul.mubr.f32.gmra.mrb[0].mxu0 %v8619
    %v8690 = vpop.f32.mrb[0].mxu0
    %v8691 = vadd.f32 %v8616, %v8690
    %v8692 = vpop.f32.mrb[0].mxu0
    %8693 = vdwg.mxu0
    %v8694 = vtanh.pop %v8691
    %v8695 = vld [vmem:[%s75] sm:$0xff]
    %v8696 = vld [vmem:[%s75 + $0x8] sm:$0xff]
    %v8697 = vld [vmem:[%s75 + $0x10] sm:$0xff]
    %v8698 = vld [vmem:[%s75 + $0x18] sm:$0xff]
    %v8699 = vld [vmem:[%s75 + $0x20] sm:$0xff]
    %v8700 = vld [vmem:[%s75 + $0x28] sm:$0xff]
    %v8701 = vld [vmem:[%s75 + $0x30] sm:$0xff]
    %v8702 = vld [vmem:[%s75 + $0x38] sm:$0xff]
    %v8703 = vld [vmem:[%s75 + $0x40] sm:$0xff]
    %v8704 = vld [vmem:[%s75 + $0x48] sm:$0xff]
    %v8705 = vld [vmem:[%s77] sm:$0x1]
    %v8707 = vlaneseq
    %v8708 = vshrl.u32 %v8707, 7
    %v8709 = vsub.s32 0, %v8708
    %v8710 = vrot.slane %v8705, %v8709
    %v8713 = vsel %vm4772, %v8694, 0
    %8715 = vmatprep.subr.mxu0 0.0
    %8716 = vmatpush1.msra.mxu0 %v8695
    %8717 = vmatprep.subr.mxu0 0.0
    %8718 = vmatpush1.msra.mxu0 %v8696
    %8719 = vmatprep.subr.mxu0 0.0
    %8720 = vmatpush1.msra.mxu0 %v8697
    %8721 = vmatprep.subr.mxu0 0.0
    %8722 = vmatpush1.msra.mxu0 %v8698
    %8723 = vmatprep.subr.mxu0 0.0
    %8724 = vmatpush1.msra.mxu0 %v8699
    %8725 = vmatprep.subr.mxu0 0.0
    %8726 = vmatpush1.msra.mxu0 %v8700
    %8727 = vmatprep.subr.mxu0 0.0
    %8728 = vmatpush1.msra.mxu0 %v8701
    %8729 = vmatprep.subr.mxu0 0.0
    %8730 = vmatpush1.msra.mxu0 %v8702
    %8731 = vmatprep.subr.mxu0 0.0
    %8732 = vmatpush1.msra.mxu0 %v8703
    %8733 = vmatprep.subr.mxu0 0.0
    %8734 = vmatpush1.msra.mxu0 %v8704
    %8735 = vmatprep.subr.mxu0 0.0
    %8736 = vmatpush1.msra.mxu0 0.0
    %8737 = vmatprep.subr.mxu0 0.0
    %8738 = vmatpush1.msra.mxu0 0.0
    %8739 = vmatprep.subr.mxu0 0.0
    %8740 = vmatpush1.msra.mxu0 0.0
    %8741 = vmatprep.subr.mxu0 0.0
    %8742 = vmatpush1.msra.mxu0 0.0
    %8743 = vmatprep.subr.mxu0 0.0
    %8744 = vmatpush1.msra.mxu0 0.0
    %8745 = vmatprep.subr.mxu0 0.0
    %8746 = vmatpush1.msra.mxu0 0.0
    %8747 = vmatprep.subr.mxu0 0.0
    %8748 = vmatpush1.msra.mxu0 0.0
    %8749 = vmatprep.subr.mxu0 0.0
    %8750 = vmatpush1.msra.mxu0 0.0
    %8751 = vmatprep.subr.mxu0 0.0
    %8752 = vmatpush1.msra.mxu0 0.0
    %8753 = vmatprep.subr.mxu0 0.0
    %8754 = vmatpush1.msra.mxu0 0.0
    %8755 = vmatprep.subr.mxu0 0.0
    %8756 = vmatpush1.msra.mxu0 0.0
    %8757 = vmatprep.subr.mxu0 0.0
    %8758 = vmatpush1.msra.mxu0 0.0
    %8759 = vmatprep.subr.mxu0 0.0
    %8760 = vmatpush1.msra.mxu0 0.0
    %8761 = vmatprep.subr.mxu0 0.0
    %8762 = vmatpush1.msra.mxu0 0.0
    %8763 = vmatprep.subr.mxu0 0.0
    %8764 = vmatpush1.msra.mxu0 0.0
    %8765 = vmatprep.subr.mxu0 0.0
    %8766 = vmatpush1.msra.mxu0 0.0
    %8767 = vmatprep.subr.mxu0 0.0
    %8768 = vmatpush1.msra.mxu0 0.0
    %8769 = vmatprep.subr.mxu0 0.0
    %8770 = vmatpush1.msra.mxu0 0.0
    %8771 = vmatprep.subr.mxu0 0.0
    %8772 = vmatpush1.msra.mxu0 0.0
    %8773 = vmatprep.subr.mxu0 0.0
    %8774 = vmatpush1.msra.mxu0 0.0
    %8775 = vmatprep.subr.mxu0 0.0
    %8776 = vmatpush1.msra.mxu0 0.0
    %8777 = vmatprep.subr.mxu0 0.0
    %8778 = vmatpush1.msra.mxu0 0.0
    %8779 = vmatprep.mubr.f32.mxu0 0.0
    %8780 = vmatmul.mubr.f32.gmra.mrb[0].mxu0 %v8713
    %v8781 = vpop.f32.mrb[0].mxu0
    %v8782 = vadd.f32 %v8710, %v8781
    %v8783 = vpop.f32.mrb[0].mxu0
    %8784 = vdwg.mxu0
    %v8785 = vld [vmem:[%s79] sm:$0xff]
    %v8786 = vld [vmem:[%s79 + $0x8] sm:$0xff]
    %v8787 = vld [vmem:[%s79 + $0x10] sm:$0xff]
    %v8788 = vld [vmem:[%s79 + $0x18] sm:$0xff]
    %v8789 = vld [vmem:[%s79 + $0x20] sm:$0xff]
    %v8790 = vld [vmem:[%s79 + $0x28] sm:$0xff]
    %v8791 = vld [vmem:[%s79 + $0x30] sm:$0xff]
    %v8792 = vld [vmem:[%s79 + $0x38] sm:$0xff]
    %v8793 = vld [vmem:[%s79 + $0x40] sm:$0xff]
    %v8794 = vld [vmem:[%s79 + $0x48] sm:$0xff]
    %v8795 = vld [vmem:[%s79 + $0x50] sm:$0xff]
    %v8796 = vld [vmem:[%s79 + $0x58] sm:$0xff]
    %v8797 = vld [vmem:[%s79 + $0x60] sm:$0xff]
    %v8798 = vld [vmem:[%s79 + $0x68] sm:$0xff]
    %v8799 = vld [vmem:[%s79 + $0x70] sm:$0xff]
    %v8800 = vld [vmem:[%s79 + $0x78] sm:$0xff]
    %v8801 = vld [vmem:[%s79 + $0x80] sm:$0xff]
    %v8802 = vld [vmem:[%s79 + $0x88] sm:$0xff]
    %v8803 = vld [vmem:[%s79 + $0x90] sm:$0xff]
    %v8804 = vld [vmem:[%s79 + $0x98] sm:$0xff]
    %v8805 = vld [vmem:[%s81] sm:$0xff]
    %v8806 = vld [vmem:[%s81 + $0x8] sm:$0xff]
    %v8807 = vld [vmem:[%s81 + $0x10] sm:$0xff]
    %v8808 = vld [vmem:[%s81 + $0x18] sm:$0xff]
    %v8809 = vld [vmem:[%s81 + $0x20] sm:$0xff]
    %v8810 = vld [vmem:[%s81 + $0x28] sm:$0xff]
    %v8811 = vld [vmem:[%s81 + $0x30] sm:$0xff]
    %v8812 = vld [vmem:[%s81 + $0x38] sm:$0xff]
    %v8813 = vld [vmem:[%s81 + $0x40] sm:$0xff]
    %v8814 = vld [vmem:[%s81 + $0x48] sm:$0xff]
    %v8815 = vld [vmem:[%s81 + $0x50] sm:$0xff]
    %v8816 = vld [vmem:[%s81 + $0x58] sm:$0xff]
    %v8817 = vld [vmem:[%s81 + $0x60] sm:$0xff]
    %v8818 = vld [vmem:[%s81 + $0x68] sm:$0xff]
    %v8819 = vld [vmem:[%s81 + $0x70] sm:$0xff]
    %v8820 = vld [vmem:[%s81 + $0x78] sm:$0xff]
    %v8821 = vld [vmem:[%s81 + $0x80] sm:$0xff]
    %v8822 = vld [vmem:[%s81 + $0x88] sm:$0xff]
    %v8823 = vld [vmem:[%s81 + $0x90] sm:$0xff]
    %v8824 = vld [vmem:[%s81 + $0x98] sm:$0xff]
    %v8825 = vld [vmem:[%s83] sm:$0x3]
    %8826 = vmatprep.subr.mxu0 %v8806
    %8827 = vmatpush1.msra.mxu0 %v8805
    %8828 = vmatprep.subr.mxu0 %v8808
    %8829 = vmatpush1.msra.mxu0 %v8807
    %8830 = vmatprep.subr.mxu0 %v8810
    %8831 = vmatpush1.msra.mxu0 %v8809
    %8832 = vmatprep.subr.mxu0 %v8812
    %8833 = vmatpush1.msra.mxu0 %v8811
    %8834 = vmatprep.subr.mxu0 %v8814
    %8835 = vmatpush1.msra.mxu0 %v8813
    %8836 = vmatprep.subr.mxu0 %v8816
    %8837 = vmatpush1.msra.mxu0 %v8815
    %8838 = vmatprep.subr.mxu0 %v8818
    %8839 = vmatpush1.msra.mxu0 %v8817
    %8840 = vmatprep.subr.mxu0 %v8820
    %8841 = vmatpush1.msra.mxu0 %v8819
    %8842 = vmatprep.subr.mxu0 %v8822
    %8843 = vmatpush1.msra.mxu0 %v8821
    %8844 = vmatprep.subr.mxu0 %v8824
    %8845 = vmatpush1.msra.mxu0 %v8823
    %8846 = vmatprep.subr.mxu0 0.0
    %8847 = vmatpush1.msra.mxu0 0.0
    %8848 = vmatprep.subr.mxu0 0.0
    %8849 = vmatpush1.msra.mxu0 0.0
    %8850 = vmatprep.subr.mxu0 0.0
    %8851 = vmatpush1.msra.mxu0 0.0
    %8852 = vmatprep.subr.mxu0 0.0
    %8853 = vmatpush1.msra.mxu0 0.0
    %8854 = vmatprep.subr.mxu0 0.0
    %8855 = vmatpush1.msra.mxu0 0.0
    %8856 = vmatprep.subr.mxu0 0.0
    %8857 = vmatpush1.msra.mxu0 0.0
    %8858 = vmatprep.subr.mxu0 0.0
    %8859 = vmatpush1.msra.mxu0 0.0
    %8860 = vmatprep.subr.mxu0 0.0
    %8861 = vmatpush1.msra.mxu0 0.0
    %8862 = vmatprep.subr.mxu0 0.0
    %8863 = vmatpush1.msra.mxu0 0.0
    %8864 = vmatprep.subr.mxu0 0.0
    %8865 = vmatpush1.msra.mxu0 0.0
    %8866 = vmatprep.subr.mxu0 0.0
    %8867 = vmatpush1.msra.mxu0 0.0
    %8868 = vmatprep.subr.mxu0 0.0
    %8869 = vmatpush1.msra.mxu0 0.0
    %8870 = vmatprep.subr.mxu0 0.0
    %8871 = vmatpush1.msra.mxu0 0.0
    %8872 = vmatprep.subr.mxu0 0.0
    %8873 = vmatpush1.msra.mxu0 0.0
    %8874 = vmatprep.subr.mxu0 0.0
    %8875 = vmatpush1.msra.mxu0 0.0
    %8876 = vmatprep.subr.mxu0 0.0
    %8877 = vmatpush1.msra.mxu0 0.0
    %8878 = vmatprep.subr.mxu0 0.0
    %8879 = vmatpush1.msra.mxu0 0.0
    %8880 = vmatprep.subr.mxu0 0.0
    %8881 = vmatpush1.msra.mxu0 0.0
    %8882 = vmatprep.subr.mxu0 0.0
    %8883 = vmatpush1.msra.mxu0 0.0
    %8884 = vmatprep.subr.mxu0 0.0
    %8885 = vmatpush1.msra.mxu0 0.0
    %8886 = vmatprep.subr.mxu0 0.0
    %8887 = vmatpush1.msra.mxu0 0.0
    %8888 = vmatprep.subr.mxu0 0.0
    %8889 = vmatpush1.msra.mxu0 0.0
    %8890 = vmatprep.mubr.f32.mxu0 0.0
    %8891 = vmatmul.mubr.f32.gmra.mrb[0].mxu0 %v8332
    %v8892 = vpop.f32.mrb[0].mxu0
    %v8893 = vadd.f32 0.0, %v8892
    %v8894 = vpop.f32.mrb[0].mxu0
    %v8895 = vadd.f32 0.0, %v8894
    %8896 = vdwg.mxu0
    %v8898 = vsel %vm4772, %v8287, 0
    %8900 = vmatprep.subr.mxu0 %v8786
    %8901 = vmatpush1.msra.mxu0 %v8785
    %8902 = vmatprep.subr.mxu0 %v8788
    %8903 = vmatpush1.msra.mxu0 %v8787
    %8904 = vmatprep.subr.mxu0 %v8790
    %8905 = vmatpush1.msra.mxu0 %v8789
    %8906 = vmatprep.subr.mxu0 %v8792
    %8907 = vmatpush1.msra.mxu0 %v8791
    %8908 = vmatprep.subr.mxu0 %v8794
    %8909 = vmatpush1.msra.mxu0 %v8793
    %8910 = vmatprep.subr.mxu0 %v8796
    %8911 = vmatpush1.msra.mxu0 %v8795
    %8912 = vmatprep.subr.mxu0 %v8798
    %8913 = vmatpush1.msra.mxu0 %v8797
    %8914 = vmatprep.subr.mxu0 %v8800
    %8915 = vmatpush1.msra.mxu0 %v8799
    %8916 = vmatprep.subr.mxu0 %v8802
    %8917 = vmatpush1.msra.mxu0 %v8801
    %8918 = vmatprep.subr.mxu0 %v8804
    %8919 = vmatpush1.msra.mxu0 %v8803
    %8920 = vmatprep.subr.mxu0 0.0
    %8921 = vmatpush1.msra.mxu0 0.0
    %8922 = vmatprep.subr.mxu0 0.0
    %8923 = vmatpush1.msra.mxu0 0.0
    %8924 = vmatprep.subr.mxu0 0.0
    %8925 = vmatpush1.msra.mxu0 0.0
    %8926 = vmatprep.subr.mxu0 0.0
    %8927 = vmatpush1.msra.mxu0 0.0
    %8928 = vmatprep.subr.mxu0 0.0
    %8929 = vmatpush1.msra.mxu0 0.0
    %8930 = vmatprep.subr.mxu0 0.0
    %8931 = vmatpush1.msra.mxu0 0.0
    %8932 = vmatprep.subr.mxu0 0.0
    %8933 = vmatpush1.msra.mxu0 0.0
    %8934 = vmatprep.subr.mxu0 0.0
    %8935 = vmatpush1.msra.mxu0 0.0
    %8936 = vmatprep.subr.mxu0 0.0
    %8937 = vmatpush1.msra.mxu0 0.0
    %8938 = vmatprep.subr.mxu0 0.0
    %8939 = vmatpush1.msra.mxu0 0.0
    %8940 = vmatprep.subr.mxu0 0.0
    %8941 = vmatpush1.msra.mxu0 0.0
    %8942 = vmatprep.subr.mxu0 0.0
    %8943 = vmatpush1.msra.mxu0 0.0
    %8944 = vmatprep.subr.mxu0 0.0
    %8945 = vmatpush1.msra.mxu0 0.0
    %8946 = vmatprep.subr.mxu0 0.0
    %8947 = vmatpush1.msra.mxu0 0.0
    %8948 = vmatprep.subr.mxu0 0.0
    %8949 = vmatpush1.msra.mxu0 0.0
    %8950 = vmatprep.subr.mxu0 0.0
    %8951 = vmatpush1.msra.mxu0 0.0
    %8952 = vmatprep.subr.mxu0 0.0
    %8953 = vmatpush1.msra.mxu0 0.0
    %8954 = vmatprep.subr.mxu0 0.0
    %8955 = vmatpush1.msra.mxu0 0.0
    %8956 = vmatprep.subr.mxu0 0.0
    %8957 = vmatpush1.msra.mxu0 0.0
    %8958 = vmatprep.subr.mxu0 0.0
    %8959 = vmatpush1.msra.mxu0 0.0
    %8960 = vmatprep.subr.mxu0 0.0
    %8961 = vmatpush1.msra.mxu0 0.0
    %8962 = vmatprep.subr.mxu0 0.0
    %8963 = vmatpush1.msra.mxu0 0.0
    %8964 = vmatprep.mubr.f32.mxu0 0.0
    %8965 = vmatmul.mubr.f32.gmra.mrb[0].mxu0 %v8898
    %v8966 = vpop.f32.mrb[0].mxu0
    %v8967 = vadd.f32 %v8893, %v8966
    %v8968 = vpop.f32.mrb[0].mxu0
    %v8969 = vadd.f32 %v8895, %v8968
    %8970 = vdwg.mxu0
    %v8972 = vlaneseq
    %v8973 = vshrl.u32 %v8972, 7
    %v8974 = vsub.s32 0, %v8973
    %v8975 = vrot.slane %v8825, %v8974
    %v8976 = vlaneseq
    %v8977 = vshrl.u32 %v8976, 7
    %v8978 = vsub.s32 1, %v8977
    %v8979 = vrot.slane %v8825, %v8978
    %v8982 = vadd.f32 %v8967, %v8975
    %v8983 = vadd.f32 %v8969, %v8979
    %v8984 = vld [vmem:[%s85] sm:$0xff]
    %v8985 = vld [vmem:[%s85 + $0x8] sm:$0xff]
    %v8986 = vld [vmem:[%s85 + $0x10] sm:$0xff]
    %v8987 = vld [vmem:[%s85 + $0x18] sm:$0xff]
    %v8988 = vld [vmem:[%s85 + $0x20] sm:$0xff]
    %v8989 = vld [vmem:[%s85 + $0x28] sm:$0xff]
    %v8990 = vld [vmem:[%s85 + $0x30] sm:$0xff]
    %v8991 = vld [vmem:[%s85 + $0x38] sm:$0xff]
    %v8992 = vld [vmem:[%s85 + $0x40] sm:$0xff]
    %v8993 = vld [vmem:[%s85 + $0x48] sm:$0xff]
    %v8994 = vld [vmem:[%s85 + $0x50] sm:$0xff]
    %v8995 = vld [vmem:[%s85 + $0x58] sm:$0xff]
    %v8996 = vld [vmem:[%s85 + $0x60] sm:$0xff]
    %v8997 = vld [vmem:[%s85 + $0x68] sm:$0xff]
    %v8998 = vld [vmem:[%s85 + $0x70] sm:$0xff]
    %v8999 = vld [vmem:[%s85 + $0x78] sm:$0xff]
    %v9000 = vld [vmem:[%s85 + $0x80] sm:$0xff]
    %v9001 = vld [vmem:[%s85 + $0x88] sm:$0xff]
    %v9002 = vld [vmem:[%s85 + $0x90] sm:$0xff]
    %v9003 = vld [vmem:[%s85 + $0x98] sm:$0xff]
    %v9004 = vld [vmem:[%s85 + $0xa0] sm:$0xff]
    %v9005 = vld [vmem:[%s85 + $0xa8] sm:$0xff]
    %v9006 = vld [vmem:[%s85 + $0xb0] sm:$0xff]
    %v9007 = vld [vmem:[%s85 + $0xb8] sm:$0xff]
    %v9008 = vld [vmem:[%s85 + $0xc0] sm:$0xff]
    %v9009 = vld [vmem:[%s87] sm:$0x1]
    %v9011 = vlaneseq
    %v9012 = vshrl.u32 %v9011, 7
    %v9013 = vsub.s32 0, %v9012
    %v9014 = vrot.slane %v9009, %v9013
    %v9017 = vsel %vm7553, %v8983, 0
    %9019 = vmatprep.subr.mxu0 0.0
    %9020 = vmatpush1.msra.mxu0 %v8984
    %9021 = vmatprep.subr.mxu0 0.0
    %9022 = vmatpush1.msra.mxu0 %v8985
    %9023 = vmatprep.subr.mxu0 0.0
    %9024 = vmatpush1.msra.mxu0 %v8986
    %9025 = vmatprep.subr.mxu0 0.0
    %9026 = vmatpush1.msra.mxu0 %v8987
    %9027 = vmatprep.subr.mxu0 0.0
    %9028 = vmatpush1.msra.mxu0 %v8988
    %9029 = vmatprep.subr.mxu0 0.0
    %9030 = vmatpush1.msra.mxu0 %v8989
    %9031 = vmatprep.subr.mxu0 0.0
    %9032 = vmatpush1.msra.mxu0 %v8990
    %9033 = vmatprep.subr.mxu0 0.0
    %9034 = vmatpush1.msra.mxu0 %v8991
    %9035 = vmatprep.subr.mxu0 0.0
    %9036 = vmatpush1.msra.mxu0 %v8992
    %9037 = vmatprep.subr.mxu0 0.0
    %9038 = vmatpush1.msra.mxu0 %v8993
    %9039 = vmatprep.subr.mxu0 0.0
    %9040 = vmatpush1.msra.mxu0 %v8994
    %9041 = vmatprep.subr.mxu0 0.0
    %9042 = vmatpush1.msra.mxu0 %v8995
    %9043 = vmatprep.subr.mxu0 0.0
    %9044 = vmatpush1.msra.mxu0 %v8996
    %9045 = vmatprep.subr.mxu0 0.0
    %9046 = vmatpush1.msra.mxu0 %v8997
    %9047 = vmatprep.subr.mxu0 0.0
    %9048 = vmatpush1.msra.mxu0 %v8998
    %9049 = vmatprep.subr.mxu0 0.0
    %9050 = vmatpush1.msra.mxu0 %v8999
    %9051 = vmatprep.subr.mxu0 0.0
    %9052 = vmatpush1.msra.mxu0 %v9000
    %9053 = vmatprep.subr.mxu0 0.0
    %9054 = vmatpush1.msra.mxu0 %v9001
    %9055 = vmatprep.subr.mxu0 0.0
    %9056 = vmatpush1.msra.mxu0 %v9002
    %9057 = vmatprep.subr.mxu0 0.0
    %9058 = vmatpush1.msra.mxu0 %v9003
    %9059 = vmatprep.subr.mxu0 0.0
    %9060 = vmatpush1.msra.mxu0 %v9004
    %9061 = vmatprep.subr.mxu0 0.0
    %9062 = vmatpush1.msra.mxu0 %v9005
    %9063 = vmatprep.subr.mxu0 0.0
    %9064 = vmatpush1.msra.mxu0 %v9006
    %9065 = vmatprep.subr.mxu0 0.0
    %9066 = vmatpush1.msra.mxu0 %v9007
    %9067 = vmatprep.subr.mxu0 0.0
    %9068 = vmatpush1.msra.mxu0 %v9008
    %9069 = vmatprep.subr.mxu0 0.0
    %9070 = vmatpush1.msra.mxu0 0.0
    %9071 = vmatprep.subr.mxu0 0.0
    %9072 = vmatpush1.msra.mxu0 0.0
    %9073 = vmatprep.subr.mxu0 0.0
    %9074 = vmatpush1.msra.mxu0 0.0
    %9075 = vmatprep.subr.mxu0 0.0
    %9076 = vmatpush1.msra.mxu0 0.0
    %9077 = vmatprep.subr.mxu0 0.0
    %9078 = vmatpush1.msra.mxu0 0.0
    %9079 = vmatprep.subr.mxu0 0.0
    %9080 = vmatpush1.msra.mxu0 0.0
    %9081 = vmatprep.subr.mxu0 0.0
    %9082 = vmatpush1.msra.mxu0 0.0
    %9083 = vmatprep.mubr.f32.mxu0 %v9017
    %9084 = vmatmul.mubr.f32.gmra.mrb[0].mxu0 %v8982
    %v9085 = vpop.f32.mrb[0].mxu0
    %v9086 = vadd.f32 %v9014, %v9085
    %v9087 = vpop.f32.mrb[0].mxu0
    %9088 = vdwg.mxu0
    %v9089 = vtanh.pop %v9086
    %v9090 = vld [vmem:[%s89] sm:$0xff]
    %v9091 = vld [vmem:[%s89 + $0x8] sm:$0xff]
    %v9092 = vld [vmem:[%s89 + $0x10] sm:$0xff]
    %v9093 = vld [vmem:[%s89 + $0x18] sm:$0xff]
    %v9094 = vld [vmem:[%s89 + $0x20] sm:$0xff]
    %v9095 = vld [vmem:[%s89 + $0x28] sm:$0xff]
    %v9096 = vld [vmem:[%s89 + $0x30] sm:$0xff]
    %v9097 = vld [vmem:[%s89 + $0x38] sm:$0xff]
    %v9098 = vld [vmem:[%s89 + $0x40] sm:$0xff]
    %v9099 = vld [vmem:[%s89 + $0x48] sm:$0xff]
    %v9100 = vld [vmem:[%s89 + $0x50] sm:$0xff]
    %v9101 = vld [vmem:[%s89 + $0x58] sm:$0xff]
    %v9102 = vld [vmem:[%s89 + $0x60] sm:$0xf]
    %v9103 = vld [vmem:[%s91] sm:$0x1]
    %v9105 = vlaneseq
    %v9106 = vshrl.u32 %v9105, 7
    %v9107 = vsub.s32 0, %v9106
    %v9108 = vrot.slane %v9103, %v9107
    %v9111 = vsel %vm4677, %v9089, 0
    %v9114 = vsel %vm4442, %v9102, 0
    %9116 = vmatprep.subr.mxu0 0.0
    %9117 = vmatpush1.msra.mxu0 %v9090
    %9118 = vmatprep.subr.mxu0 0.0
    %9119 = vmatpush1.msra.mxu0 %v9091
    %9120 = vmatprep.subr.mxu0 0.0
    %9121 = vmatpush1.msra.mxu0 %v9092
    %9122 = vmatprep.subr.mxu0 0.0
    %9123 = vmatpush1.msra.mxu0 %v9093
    %9124 = vmatprep.subr.mxu0 0.0
    %9125 = vmatpush1.msra.mxu0 %v9094
    %9126 = vmatprep.subr.mxu0 0.0
    %9127 = vmatpush1.msra.mxu0 %v9095
    %9128 = vmatprep.subr.mxu0 0.0
    %9129 = vmatpush1.msra.mxu0 %v9096
    %9130 = vmatprep.subr.mxu0 0.0
    %9131 = vmatpush1.msra.mxu0 %v9097
    %9132 = vmatprep.subr.mxu0 0.0
    %9133 = vmatpush1.msra.mxu0 %v9098
    %9134 = vmatprep.subr.mxu0 0.0
    %9135 = vmatpush1.msra.mxu0 %v9099
    %9136 = vmatprep.subr.mxu0 0.0
    %9137 = vmatpush1.msra.mxu0 %v9100
    %9138 = vmatprep.subr.mxu0 0.0
    %9139 = vmatpush1.msra.mxu0 %v9101
    %9140 = vmatprep.subr.mxu0 0.0
    %9141 = vmatpush1.msra.mxu0 %v9114
    %9142 = vmatprep.subr.mxu0 0.0
    %9143 = vmatpush1.msra.mxu0 0.0
    %9144 = vmatprep.subr.mxu0 0.0
    %9145 = vmatpush1.msra.mxu0 0.0
    %9146 = vmatprep.subr.mxu0 0.0
    %9147 = vmatpush1.msra.mxu0 0.0
    %9148 = vmatprep.subr.mxu0 0.0
    %9149 = vmatpush1.msra.mxu0 0.0
    %9150 = vmatprep.subr.mxu0 0.0
    %9151 = vmatpush1.msra.mxu0 0.0
    %9152 = vmatprep.subr.mxu0 0.0
    %9153 = vmatpush1.msra.mxu0 0.0
    %9154 = vmatprep.subr.mxu0 0.0
    %9155 = vmatpush1.msra.mxu0 0.0
    %9156 = vmatprep.subr.mxu0 0.0
    %9157 = vmatpush1.msra.mxu0 0.0
    %9158 = vmatprep.subr.mxu0 0.0
    %9159 = vmatpush1.msra.mxu0 0.0
    %9160 = vmatprep.subr.mxu0 0.0
    %9161 = vmatpush1.msra.mxu0 0.0
    %9162 = vmatprep.subr.mxu0 0.0
    %9163 = vmatpush1.msra.mxu0 0.0
    %9164 = vmatprep.subr.mxu0 0.0
    %9165 = vmatpush1.msra.mxu0 0.0
    %9166 = vmatprep.subr.mxu0 0.0
    %9167 = vmatpush1.msra.mxu0 0.0
    %9168 = vmatprep.subr.mxu0 0.0
    %9169 = vmatpush1.msra.mxu0 0.0
    %9170 = vmatprep.subr.mxu0 0.0
    %9171 = vmatpush1.msra.mxu0 0.0
    %9172 = vmatprep.subr.mxu0 0.0
    %9173 = vmatpush1.msra.mxu0 0.0
    %9174 = vmatprep.subr.mxu0 0.0
    %9175 = vmatpush1.msra.mxu0 0.0
    %9176 = vmatprep.subr.mxu0 0.0
    %9177 = vmatpush1.msra.mxu0 0.0
    %9178 = vmatprep.subr.mxu0 0.0
    %9179 = vmatpush1.msra.mxu0 0.0
    %9180 = vmatprep.mubr.f32.mxu0 0.0
    %9181 = vmatmul.mubr.f32.gmra.mrb[0].mxu0 %v9111
    %v9182 = vpop.f32.mrb[0].mxu0
    %v9183 = vadd.f32 %v9108, %v9182
    %v9184 = vpop.f32.mrb[0].mxu0
    %9185 = vdwg.mxu0
    %v9186 = vtanh.pop %v9183
    %v9187 = vld [vmem:[%s93] sm:$0xff]
    %v9188 = vld [vmem:[%s93 + $0x8] sm:$0xff]
    %v9189 = vld [vmem:[%s93 + $0x10] sm:$0xff]
    %v9190 = vld [vmem:[%s93 + $0x18] sm:$0xff]
    %v9191 = vld [vmem:[%s93 + $0x20] sm:$0xff]
    %v9192 = vld [vmem:[%s93 + $0x28] sm:$0xff]
    %v9193 = vld [vmem:[%s93 + $0x30] sm:$0xff]
    %v9194 = vld [vmem:[%s93 + $0x38] sm:$0xff]
    %v9195 = vld [vmem:[%s93 + $0x40] sm:$0xff]
    %v9196 = vld [vmem:[%s93 + $0x48] sm:$0xff]
    %v9197 = vld [vmem:[%s95] sm:$0x1]
    %v9199 = vlaneseq
    %v9200 = vshrl.u32 %v9199, 7
    %v9201 = vsub.s32 0, %v9200
    %v9202 = vrot.slane %v9197, %v9201
    %v9205 = vsel %vm4772, %v9186, 0
    %9207 = vmatprep.subr.mxu0 0.0
    %9208 = vmatpush1.msra.mxu0 %v9187
    %9209 = vmatprep.subr.mxu0 0.0
    %9210 = vmatpush1.msra.mxu0 %v9188
    %9211 = vmatprep.subr.mxu0 0.0
    %9212 = vmatpush1.msra.mxu0 %v9189
    %9213 = vmatprep.subr.mxu0 0.0
    %9214 = vmatpush1.msra.mxu0 %v9190
    %9215 = vmatprep.subr.mxu0 0.0
    %9216 = vmatpush1.msra.mxu0 %v9191
    %9217 = vmatprep.subr.mxu0 0.0
    %9218 = vmatpush1.msra.mxu0 %v9192
    %9219 = vmatprep.subr.mxu0 0.0
    %9220 = vmatpush1.msra.mxu0 %v9193
    %9221 = vmatprep.subr.mxu0 0.0
    %9222 = vmatpush1.msra.mxu0 %v9194
    %9223 = vmatprep.subr.mxu0 0.0
    %9224 = vmatpush1.msra.mxu0 %v9195
    %9225 = vmatprep.subr.mxu0 0.0
    %9226 = vmatpush1.msra.mxu0 %v9196
    %9227 = vmatprep.subr.mxu0 0.0
    %9228 = vmatpush1.msra.mxu0 0.0
    %9229 = vmatprep.subr.mxu0 0.0
    %9230 = vmatpush1.msra.mxu0 0.0
    %9231 = vmatprep.subr.mxu0 0.0
    %9232 = vmatpush1.msra.mxu0 0.0
    %9233 = vmatprep.subr.mxu0 0.0
    %9234 = vmatpush1.msra.mxu0 0.0
    %9235 = vmatprep.subr.mxu0 0.0
    %9236 = vmatpush1.msra.mxu0 0.0
    %9237 = vmatprep.subr.mxu0 0.0
    %9238 = vmatpush1.msra.mxu0 0.0
    %9239 = vmatprep.subr.mxu0 0.0
    %9240 = vmatpush1.msra.mxu0 0.0
    %9241 = vmatprep.subr.mxu0 0.0
    %9242 = vmatpush1.msra.mxu0 0.0
    %9243 = vmatprep.subr.mxu0 0.0
    %9244 = vmatpush1.msra.mxu0 0.0
    %9245 = vmatprep.subr.mxu0 0.0
    %9246 = vmatpush1.msra.mxu0 0.0
    %9247 = vmatprep.subr.mxu0 0.0
    %9248 = vmatpush1.msra.mxu0 0.0
    %9249 = vmatprep.subr.mxu0 0.0
    %9250 = vmatpush1.msra.mxu0 0.0
    %9251 = vmatprep.subr.mxu0 0.0
    %9252 = vmatpush1.msra.mxu0 0.0
    %9253 = vmatprep.subr.mxu0 0.0
    %9254 = vmatpush1.msra.mxu0 0.0
    %9255 = vmatprep.subr.mxu0 0.0
    %9256 = vmatpush1.msra.mxu0 0.0
    %9257 = vmatprep.subr.mxu0 0.0
    %9258 = vmatpush1.msra.mxu0 0.0
    %9259 = vmatprep.subr.mxu0 0.0
    %9260 = vmatpush1.msra.mxu0 0.0
    %9261 = vmatprep.subr.mxu0 0.0
    %9262 = vmatpush1.msra.mxu0 0.0
    %9263 = vmatprep.subr.mxu0 0.0
    %9264 = vmatpush1.msra.mxu0 0.0
    %9265 = vmatprep.subr.mxu0 0.0
    %9266 = vmatpush1.msra.mxu0 0.0
    %9267 = vmatprep.subr.mxu0 0.0
    %9268 = vmatpush1.msra.mxu0 0.0
    %9269 = vmatprep.subr.mxu0 0.0
    %9270 = vmatpush1.msra.mxu0 0.0
    %9271 = vmatprep.mubr.f32.mxu0 0.0
    %9272 = vmatmul.mubr.f32.gmra.mrb[0].mxu0 %v9205
    %v9273 = vpop.f32.mrb[0].mxu0
    %v9274 = vadd.f32 %v9202, %v9273
    %v9275 = vpop.f32.mrb[0].mxu0
    %9276 = vdwg.mxu0
    %v9277 = vmul.f32 %v8782, %v9274
    %vm9278 = vcmask 648192
    %v9279 = vsel %vm9278, %v9277, 0.0
    %9280 = vadd.xlane.f32.xlu0 %v9279
    %v9281 = vpop.xlane.xlu0 %9280
    %vm9282 = vcmask 1024
    %9283 = vst.msk [vmem:[%s97] sm:$0x3] %vm9282, %v9281
    // Predicated region
    $region198: #{deeponet_forward.1} parent=1 // pred_check
      _
    $region199: #{deeponet_forward.1} parent=1 // pred_check_branch
      %9285 = sbr.rel (0) target = $region201
    $region200: #{deeponet_forward.1} parent=1 // pred_region
      _
    $region201: #{deeponet_forward.1} parent=1 // pred_fallthru
      _
    // Predicated region
    $region202: #{deeponet_forward.1} parent=1 // pred_check
      _
    $region203: #{deeponet_forward.1} parent=1 // pred_check_branch
      %9287 = sbr.rel (0) target = $region205
    $region204: #{deeponet_forward.1} parent=1 // pred_region
      _
    $region205: #{deeponet_forward.1} parent=1 // pred_fallthru
      _
    %9288 = vsyncpa [#allocation4], 1

</llo_original>
